<compile_context>
chip_gen: v6e
topology: v6e:2x2x1
jax: 0.10.0
libtpu: 0.0.40
codegen_flags: <defaults>
</compile_context>

<pallas_src>
import functools
import numpy as np

import jax
import jax.numpy as jnp
from jax.experimental import pallas as pl
from jax.experimental.pallas import tpu as pltpu


# ----------------------------------------------------------------------------
# Fused C2f kernel (one batch element per grid step, channel-major [C, N])
# ----------------------------------------------------------------------------

def _c2f_kernel(x_ref, cv1w_ref, cv1s_ref, cv1b_ref,
                wqkv_ref, bqkv_ref, wproj_ref, bproj_ref,
                pool_ref, posb_ref, agentb_ref,
                dwcw_ref, dwcb_ref, dwcm_ref,
                cv2w_ref, cv2s_ref, cv2b_ref,
                o_ref, attn_ref, *,
                num_heads, head_dim_pad, scale, img_w, n_blocks):
    f32, bf16 = jnp.float32, jnp.bfloat16
    hdp = head_dim_pad
    cp = num_heads * hdp                       # padded attention width
    c = wproj_ref.shape[1]                     # real attention width

    x = x_ref[0]                               # [c1, N]  bf16
    N = x.shape[-1]

    # ---- cv1: 1x1 conv (channel matmul) + folded BN(eval) + SiLU -----------
    y = jnp.dot(cv1w_ref[...], x, preferred_element_type=f32)
    y = y * cv1s_ref[...] + cv1b_ref[...]
    y = y * jax.nn.sigmoid(y)                  # SiLU, [2c, N] f32

    pool_b = pool_ref[...]                     # [Ap, N] bf16
    masks = dwcm_ref[...]                      # [9, 1, N] f32

    chunks = [y[0:c, :], y[c:2 * c, :]]        # f32 chunks, 8-row aligned

    # ---- n x AgentAttention blocks (statically unrolled) --------------------
    for j in range(n_blocks):
        xin = chunks[-1]                       # [c, N] f32 (block shortcut)
        xin_b = xin.astype(bf16)               # single cast, reused below

        qkv = jnp.dot(wqkv_ref[j], xin_b,
                      preferred_element_type=f32) + bqkv_ref[j]   # [3cp, N]
        q = qkv[0:cp, :]
        k = qkv[cp:2 * cp, :]
        v = qkv[2 * cp:3 * cp, :]
        q_b, k_b, v_b = q.astype(bf16), k.astype(bf16), v.astype(bf16)

        # agent tokens for ALL heads in one K=N matmul; scale hoisted out of
        # the head loop.  Column order matches the padded per-head row order.
        agents = jax.lax.dot_general(pool_b, q_b, (((1,), (1,)), ((), ())),
                                     preferred_element_type=f32)  # [Ap, cp]
        agents_b = (agents * scale).astype(bf16)

        for h in range(num_heads):
            r0 = h * hdp                       # 8-aligned head offset
            a_h = agents_b[:, r0:r0 + hdp]     # [Ap, hdp]
            q_h = q_b[r0:r0 + hdp, :]          # [hdp, N]
            k_h = k_b[r0:r0 + hdp, :]
            v_h = v_b[r0:r0 + hdp, :]

            # agent_attn = softmax_N(agent*scale @ k^T + position_bias)
            l1 = (jnp.dot(a_h, k_h, preferred_element_type=f32)
                  + posb_ref[j, h].astype(f32))                   # [Ap, N]
            l1 = l1 - jnp.max(l1, axis=-1, keepdims=True)
            e1 = jnp.exp(l1)
            attn1 = e1 * pl.reciprocal(jnp.sum(e1, axis=-1, keepdims=True),
                                       approx=True)
            # TODO(synk): approx=False for exact softmax parity with PyTorch.

            # agent_v, channel-major [hdp, Ap]
            agent_v = jax.lax.dot_general(v_h, attn1.astype(bf16),
                                          (((1,), (1,)), ((), ())),
                                          preferred_element_type=f32)

            # q_attn^T = softmax_A(agent*scale @ q^T + agent_bias^T);
            # padded agent rows carry a -1e9 bias so they vanish.
            l2 = (jnp.dot(a_h, q_h, preferred_element_type=f32)
                  + agentb_ref[j, h].astype(f32))                 # [Ap, N]
            l2 = l2 - jnp.max(l2, axis=0, keepdims=True)
            e2 = jnp.exp(l2)
            attn2 = e2 * pl.reciprocal(jnp.sum(e2, axis=0, keepdims=True),
                                       approx=True)

            # per-head output written straight into aligned VMEM scratch
            attn_ref[r0:r0 + hdp, :] = jnp.dot(agent_v.astype(bf16),
                                               attn2.astype(bf16),
                                               preferred_element_type=f32)

        # depthwise 3x3 conv (zero padding) on v: lane rolls + boundary masks;
        # centre tap needs neither roll nor mask.
        wdw = dwcw_ref[j]                      # [9, cp, 1]
        dwc = v * wdw[4] + dwcb_ref[j]
        for t in range(9):
            if t == 4:
                continue
            dy, dx = t // 3 - 1, t % 3 - 1
            off = dy * img_w + dx              # token-axis offset
            sv = pltpu.roll(v, shift=(-off) % N, axis=1)
            dwc = dwc + (sv * masks[t]) * wdw[t]

        # proj + gated residual:  out = xin * sigmoid(proj(attn + dwc))
        # TODO(synk): attn_drop / proj_drop are identity here (eval-mode dropout).
        z = jnp.dot(wproj_ref[j], (attn_ref[...] + dwc).astype(bf16),
                    preferred_element_type=f32) + bproj_ref[j]    # [c, N]
        chunks.append(xin * jax.nn.sigmoid(z))

    # ---- cv2: single K=(2+n)*c matmul over the channel concat ---------------
    # TODO(synk): at large N, stream chunks into a bf16 VMEM buffer instead of
    # an f32 concat to halve this temporary's residency.
    ycat = jnp.concatenate(chunks, axis=0).astype(bf16)           # [(2+n)c, N]
    out = jnp.dot(cv2w_ref[...], ycat, preferred_element_type=f32)
    out = out * cv2s_ref[...] + cv2b_ref[...]
    out = out * jax.nn.sigmoid(out)                               # SiLU
    o_ref[0] = out.astype(o_ref.dtype)


def _vmem_limit_bytes(const_args, c1, C2, N, c, cp, Ap, n):
    const = sum(int(a.size) * a.dtype.itemsize for a in const_args)
    io_blocks = 2 * (c1 * N * 2 + C2 * N * 2)        # double-buffered bf16 I/O
    work = 4 * N * (2 * c + 10 * cp + 12 * Ap + 3 * (2 + n) * c)
    est = 2 * const + io_blocks + work
    return int(min(128 * 2 ** 20, max(32 * 2 ** 20, 2 * est)))


def c2f_forward(x_nchw, params):
    """C2f forward.  Input in NCHW (PyTorch convention); output NCHW bf16."""
    B, C1, H, Wd = x_nchw.shape
    N = H * Wd
    assert Wd == params["W"]
    c = params["c"]
    cp = params["cp"]
    heads = params["num_heads"]
    hdp = params["head_dim_pad"]
    Ap = params["agent_pad"]
    n = params["n"]
    C2 = params["cv2_scale"].shape[0]

    # channel-major token layout: lane axis = H*W (NCHW reshape is free);
    # x is cast to bf16 host-side to halve the per-step HBM DMA.
    x_cm = x_nchw.reshape(B, C1, N).astype(jnp.bfloat16)

    kern = functools.partial(_c2f_kernel, num_heads=heads, head_dim_pad=hdp,
                             scale=params["scale"], img_w=Wd, n_blocks=n)

    const_args = (params["cv1_w"], params["cv1_scale"], params["cv1_bias"],
                  params["wqkv"], params["bqkv"], params["wproj"], params["bproj"],
                  params["pool_mat"], params["pos_bias"], params["agent_bias"],
                  params["dwc_w"], params["dwc_b"], params["dwc_mask"],
                  params["cv2_w"], params["cv2_scale"], params["cv2_bias"])

    vmem_limit = _vmem_limit_bytes(const_args, C1, C2, N, c, cp, Ap, n)

    def build(single_buffer_consts):
        def const_spec(a):
            shape = a.shape
            rank = len(shape)
            idx = lambda b: (0,) * rank
            if single_buffer_consts:
                # constants never change across the batch grid: 1 buffer is enough
                return pl.BlockSpec(shape, idx, pipeline_mode=pl.Buffered(1))
            return pl.BlockSpec(shape, idx)

        in_specs = [pl.BlockSpec((1, C1, N), lambda b: (b, 0, 0))]
        in_specs += [const_spec(a) for a in const_args]

        return pl.pallas_call(
            kern,
            out_shape=jax.ShapeDtypeStruct((B, C2, N), jnp.bfloat16),
            grid=(B,),
            in_specs=in_specs,
            out_specs=pl.BlockSpec((1, C2, N), lambda b: (b, 0, 0)),
            scratch_shapes=[pltpu.VMEM((cp, N), jnp.float32)],   # head outputs
            compiler_params=pltpu.CompilerParams(
                dimension_semantics=("parallel",),
                vmem_limit_bytes=vmem_limit),
        )

    use_single = hasattr(pl, "Buffered")
    try:
        out = build(use_single)(x_cm, *const_args)
    except Exception:
        if not use_single:
            raise
        out = build(False)(x_cm, *const_args)   # fallback: default buffering
    return out.reshape(B, C2, H, Wd)


# ----------------------------------------------------------------------------
# Host-side glue: constant matrices & parameter construction
# ----------------------------------------------------------------------------

def _bilinear_matrix(out_size, in_size):
    """F.interpolate(mode='bilinear', align_corners=False) as a matrix."""
    s = in_size / out_size
    i = np.arange(out_size)
    src = np.maximum((i + 0.5) * s - 0.5, 0.0)
    i0 = np.minimum(np.floor(src).astype(np.int64), in_size - 1)
    i1 = np.minimum(i0 + 1, in_size - 1)
    lam = src - i0
    M = np.zeros((out_size, in_size), np.float32)
    M[np.arange(out_size), i0] += (1.0 - lam)
    M[np.arange(out_size), i1] += lam
    return M


def _adaptive_pool_matrix(out_size, in_size):
    """nn.AdaptiveAvgPool semantics (per axis) as a matrix [out, in]."""
    M = np.zeros((out_size, in_size), np.float32)
    for i in range(out_size):
        start = (i * in_size) // out_size
        end = -(-((i + 1) * in_size) // out_size)
        M[i, start:end] = 1.0 / (end - start)
    return M


def _dwc_masks(H, W):
    """[9, 1, N] validity masks for the zero-padded 3x3 stencil shifts."""
    yy, xx = np.meshgrid(np.arange(H), np.arange(W), indexing="ij")
    y, x = yy.reshape(-1), xx.reshape(-1)
    m = np.zeros((9, 1, H * W), np.float32)
    for t in range(9):
        dy, dx = t // 3 - 1, t % 3 - 1
        valid = (y + dy >= 0) & (y + dy < H) & (x + dx >= 0) & (x + dx < W)
        m[t, 0] = valid.astype(np.float32)
    return m


def _bn_fold(gamma, beta, mean, var, eps=1e-5):
    scale = gamma / np.sqrt(var + eps)
    bias = beta - mean * scale
    return scale.astype(np.float32), bias.astype(np.float32)


def _trunc_normal(key, shape, std=0.02):
    return std * jax.random.truncated_normal(key, -2.0, 2.0, shape, jnp.float32)


def make_c2f_params(key, c1, c2, H, W, n=1, e=0.5, num_heads=4, agent_num=49):
    c = int(c2 * e)
    assert c % num_heads == 0
    hd = c // num_heads
    hdp = max(8, ((hd + 7) // 8) * 8)        # head_dim padded to f32 sublane tile
    cp = num_heads * hdp
    A = agent_num
    Ap = ((A + 63) // 64) * 64               # padded agent axis
    pool_size = int(A ** 0.5)
    N = H * W
    keys = iter(jax.random.split(key, 64))

    def nrm(shape, s):
        return np.asarray(s * jax.random.normal(next(keys), shape, jnp.float32))

    params = {"c": c, "cp": cp, "num_heads": num_heads, "head_dim": hd,
              "head_dim_pad": hdp, "agent_num": A, "agent_pad": Ap,
              "W": W, "n": n, "scale": float(hd ** -0.5)}

    # cv1: Conv(c1, 2c, k=1) + BN(eval) + SiLU -- weight stored as [2c, c1]
    g1 = 1.0 + nrm((2 * c,), 0.05)
    b1 = nrm((2 * c,), 0.05)
    s1, bb1 = _bn_fold(g1, b1, np.zeros(2 * c), np.ones(2 * c))
    params["cv1_w"] = jnp.asarray(nrm((2 * c, c1), 1.0 / np.sqrt(c1)), jnp.bfloat16)
    params["cv1_scale"] = jnp.asarray(s1.reshape(-1, 1))
    params["cv1_bias"] = jnp.asarray(bb1.reshape(-1, 1))

    # cv2: Conv((2+n)c, c2, k=1) as ONE flat matmul weight [c2, (2+n)c]
    cin2 = (2 + n) * c
    g2 = 1.0 + nrm((c2,), 0.05)
    b2 = nrm((c2,), 0.05)
    s2, bb2 = _bn_fold(g2, b2, np.zeros(c2), np.ones(c2))
    params["cv2_w"] = jnp.asarray(nrm((c2, cin2), 1.0 / np.sqrt(cin2)), jnp.bfloat16)
    params["cv2_scale"] = jnp.asarray(s2.reshape(-1, 1))
    params["cv2_bias"] = jnp.asarray(bb2.reshape(-1, 1))

    # shared attention constants
    Mh, Mw = _bilinear_matrix(H, pool_size), _bilinear_matrix(W, pool_size)
    Ph, Pw = _adaptive_pool_matrix(pool_size, H), _adaptive_pool_matrix(pool_size, W)
    pool_mat = np.einsum("iy,jx->ijyx", Ph, Pw).reshape(A, N).astype(np.float32)
    pool_pad = np.zeros((Ap, N), np.float32)
    pool_pad[:A] = pool_mat
    params["pool_mat"] = jnp.asarray(pool_pad, jnp.bfloat16)     # [Ap, N]
    params["dwc_mask"] = jnp.asarray(_dwc_masks(H, W))           # [9, 1, N] f32

    def scatter_rows(w, parts):
        """Map rows (part, head, dim) of width hd onto padded width hdp."""
        out = np.zeros((parts * cp,) + w.shape[1:], np.float32)
        for p in range(parts):
            for h in range(num_heads):
                out[p * cp + h * hdp: p * cp + h * hdp + hd] = \
                    w[p * c + h * hd: p * c + h * hd + hd]
        return out

    def scatter_cols(w):
        out = np.zeros(w.shape[:-1] + (cp,), np.float32)
        for h in range(num_heads):
            out[..., h * hdp:h * hdp + hd] = w[..., h * hd:h * hd + hd]
        return out

    wqkv, bqkv, wproj, bproj = [], [], [], []
    dwc_w, dwc_b, pos_b, agent_b = [], [], [], []
    for _ in range(n):
        an_bias = np.asarray(_trunc_normal(next(keys), (num_heads, A, pool_size, pool_size)))
        na_bias = np.asarray(_trunc_normal(next(keys), (num_heads, A, pool_size, pool_size)))
        # ah/aw/ha/wa biases in the reference forward are hard zeros -> only the
        # bilinear-interpolated terms contribute.
        pb = np.einsum("hapq,yp,xq->hayx", an_bias, Mh, Mw).reshape(num_heads, A, N)
        ab = np.einsum("hapq,yp,xq->hayx", na_bias, Mh, Mw).reshape(num_heads, A, N)
        pb_pad = np.zeros((num_heads, Ap, N), np.float32)
        pb_pad[:, :A] = pb
        # padded agent rows get a large negative bias so the softmax over agents
        # (axis 0 in the kernel) ignores them.
        ab_pad = np.full((num_heads, Ap, N), -1e9, np.float32)
        ab_pad[:, :A] = ab
        pos_b.append(pb_pad)
        agent_b.append(ab_pad)

        wqkv.append(scatter_rows(nrm((3 * c, c), 1.0 / np.sqrt(c)), 3))
        bqkv.append(scatter_rows(nrm((3 * c, 1), 0.02), 3))
        wproj.append(scatter_cols(nrm((c, c), 1.0 / np.sqrt(c))))
        bproj.append(nrm((c, 1), 0.02))

        dw = nrm((9, c, 1), 1.0 / 3.0)          # 3x3 taps per channel
        db = nrm((c, 1), 0.02)
        dwp = np.zeros((9, cp, 1), np.float32)
        dbp = np.zeros((cp, 1), np.float32)
        for h in range(num_heads):
            dwp[:, h * hdp:h * hdp + hd] = dw[:, h * hd:h * hd + hd]
            dbp[h * hdp:h * hdp + hd] = db[h * hd:h * hd + hd]
        dwc_w.append(dwp)
        dwc_b.append(dbp)

    params["wqkv"] = jnp.asarray(np.stack(wqkv), jnp.bfloat16)    # [n, 3cp, c]
    params["bqkv"] = jnp.asarray(np.stack(bqkv))                  # [n, 3cp, 1]
    params["wproj"] = jnp.asarray(np.stack(wproj), jnp.bfloat16)  # [n, c, cp]
    params["bproj"] = jnp.asarray(np.stack(bproj))                # [n, c, 1]
    params["dwc_w"] = jnp.asarray(np.stack(dwc_w))                # [n, 9, cp, 1]
    params["dwc_b"] = jnp.asarray(np.stack(dwc_b))                # [n, cp, 1]
    params["pos_bias"] = jnp.asarray(np.stack(pos_b), jnp.bfloat16)   # [n, h, Ap, N]
    params["agent_bias"] = jnp.asarray(np.stack(agent_b), jnp.bfloat16)
    return params


# ----------------------------------------------------------------------------
# Main
# ----------------------------------------------------------------------------

if __name__ == "__main__":
    key = jax.random.PRNGKey(0)
    k_x, k_p = jax.random.split(key)

    B, c1, c2, H, W = 2, 8, 16, 16, 16      # c=8, heads=4, head_dim=2, N=256
    x = jax.random.normal(k_x, (B, c1, H, W), jnp.float32)

    params = make_c2f_params(k_p, c1, c2, H, W, n=1, e=0.5,
                             num_heads=4, agent_num=49)

    out = c2f_forward(x, params)
    out = jax.block_until_ready(out)

    assert out.shape == (B, c2, H, W), out.shape
    assert bool(jnp.all(jnp.isfinite(out.astype(jnp.float32))))
    print("KERNEL_OK")
</pallas_src>

<mosaic_0001>
module attributes {stable_mosaic.version = 11 : i64} {
  func.func @_c2f_kernel(%arg0: i32, %arg1: memref<1x8x256xbf16, #tpu.memory_space<vmem>>, %arg2: memref<16x8xbf16, #tpu.memory_space<vmem>>, %arg3: memref<16x1xf32, #tpu.memory_space<vmem>>, %arg4: memref<16x1xf32, #tpu.memory_space<vmem>>, %arg5: memref<1x96x8xbf16, #tpu.memory_space<vmem>>, %arg6: memref<1x96x1xf32, #tpu.memory_space<vmem>>, %arg7: memref<1x8x32xbf16, #tpu.memory_space<vmem>>, %arg8: memref<1x8x1xf32, #tpu.memory_space<vmem>>, %arg9: memref<64x256xbf16, #tpu.memory_space<vmem>>, %arg10: memref<1x4x64x256xbf16, #tpu.memory_space<vmem>>, %arg11: memref<1x4x64x256xbf16, #tpu.memory_space<vmem>>, %arg12: memref<1x9x32x1xf32, #tpu.memory_space<vmem>>, %arg13: memref<1x32x1xf32, #tpu.memory_space<vmem>>, %arg14: memref<9x1x256xf32, #tpu.memory_space<vmem>>, %arg15: memref<16x24xbf16, #tpu.memory_space<vmem>>, %arg16: memref<16x1xf32, #tpu.memory_space<vmem>>, %arg17: memref<16x1xf32, #tpu.memory_space<vmem>>, %arg18: memref<1x16x256xbf16, #tpu.memory_space<vmem>>, %arg19: memref<32x256xf32, #tpu.memory_space<vmem>>) attributes {dimension_semantics = [#tpu.dimension_semantics<parallel>], iteration_bounds = array<i64: 2>, scalar_prefetch = 0 : i64, scratch_operands = 1 : i64, tpu.core_type = #tpu.core_type<tc>, window_params = [{transform_indices = @transform_0, window_bounds = array<i64: 1, 8, 256>}, {pipeline_mode = #tpu.pipeline_mode<synchronous>, transform_indices = @transform_1, window_bounds = array<i64: 16, 8>}, {pipeline_mode = #tpu.pipeline_mode<synchronous>, transform_indices = @transform_2, window_bounds = array<i64: 16, 1>}, {pipeline_mode = #tpu.pipeline_mode<synchronous>, transform_indices = @transform_3, window_bounds = array<i64: 16, 1>}, {pipeline_mode = #tpu.pipeline_mode<synchronous>, transform_indices = @transform_4, window_bounds = array<i64: 1, 96, 8>}, {pipeline_mode = #tpu.pipeline_mode<synchronous>, transform_indices = @transform_5, window_bounds = array<i64: 1, 96, 1>}, {pipeline_mode = #tpu.pipeline_mode<synchronous>, transform_indices = @transform_6, window_bounds = array<i64: 1, 8, 32>}, {pipeline_mode = #tpu.pipeline_mode<synchronous>, transform_indices = @transform_7, window_bounds = array<i64: 1, 8, 1>}, {pipeline_mode = #tpu.pipeline_mode<synchronous>, transform_indices = @transform_8, window_bounds = array<i64: 64, 256>}, {pipeline_mode = #tpu.pipeline_mode<synchronous>, transform_indices = @transform_9, window_bounds = array<i64: 1, 4, 64, 256>}, {pipeline_mode = #tpu.pipeline_mode<synchronous>, transform_indices = @transform_10, window_bounds = array<i64: 1, 4, 64, 256>}, {pipeline_mode = #tpu.pipeline_mode<synchronous>, transform_indices = @transform_11, window_bounds = array<i64: 1, 9, 32, 1>}, {pipeline_mode = #tpu.pipeline_mode<synchronous>, transform_indices = @transform_12, window_bounds = array<i64: 1, 32, 1>}, {pipeline_mode = #tpu.pipeline_mode<synchronous>, transform_indices = @transform_13, window_bounds = array<i64: 9, 1, 256>}, {pipeline_mode = #tpu.pipeline_mode<synchronous>, transform_indices = @transform_14, window_bounds = array<i64: 16, 24>}, {pipeline_mode = #tpu.pipeline_mode<synchronous>, transform_indices = @transform_15, window_bounds = array<i64: 16, 1>}, {pipeline_mode = #tpu.pipeline_mode<synchronous>, transform_indices = @transform_16, window_bounds = array<i64: 16, 1>}, {transform_indices = @transform_17, window_bounds = array<i64: 1, 16, 256>}]} {
    %c0 = arith.constant 0 : index
    %c0_0 = arith.constant 0 : index
    %c0_1 = arith.constant 0 : index
    %0 = vector.load %arg1[%c0, %c0_0, %c0_1] : memref<1x8x256xbf16, #tpu.memory_space<vmem>>, vector<1x8x256xbf16>
    %1 = vector.shape_cast %0 : vector<1x8x256xbf16> to vector<8x256xbf16>
    %c0_2 = arith.constant 0 : index
    %c0_3 = arith.constant 0 : index
    %2 = vector.load %arg2[%c0_2, %c0_3] : memref<16x8xbf16, #tpu.memory_space<vmem>>, vector<16x8xbf16>
    %cst = arith.constant dense<0.000000e+00> : vector<16x256xf32>
    %3 = tpu.matmul %2, %1, %cst {dimension_numbers = #tpu.dot_dimension_numbers<[1], [0], [0], [1], [0, 0, 1, 1], [], []>} : vector<16x8xbf16>, vector<8x256xbf16>, vector<16x256xf32> -> vector<16x256xf32>
    %c0_4 = arith.constant 0 : index
    %c0_5 = arith.constant 0 : index
    %4 = vector.load %arg3[%c0_4, %c0_5] : memref<16x1xf32, #tpu.memory_space<vmem>>, vector<16x1xf32>
    %5 = vector.broadcast %4 : vector<16x1xf32> to vector<16x256xf32>
    %6 = arith.mulf %3, %5 : vector<16x256xf32>
    %c0_6 = arith.constant 0 : index
    %c0_7 = arith.constant 0 : index
    %7 = vector.load %arg4[%c0_6, %c0_7] : memref<16x1xf32, #tpu.memory_space<vmem>>, vector<16x1xf32>
    %8 = vector.broadcast %7 : vector<16x1xf32> to vector<16x256xf32>
    %9 = arith.addf %6, %8 : vector<16x256xf32>
    %10 = arith.negf %9 : vector<16x256xf32>
    %11 = math.exp %10 : vector<16x256xf32>
    %cst_8 = arith.constant 1.000000e+00 : f32
    %12 = vector.broadcast %cst_8 : f32 to vector<16x256xf32>
    %13 = arith.addf %12, %11 : vector<16x256xf32>
    %14 = arith.divf %12, %13 : vector<16x256xf32>
    %15 = arith.mulf %9, %14 : vector<16x256xf32>
    %c0_9 = arith.constant 0 : index
    %c0_10 = arith.constant 0 : index
    %16 = vector.load %arg9[%c0_9, %c0_10] : memref<64x256xbf16, #tpu.memory_space<vmem>>, vector<64x256xbf16>
    %c0_11 = arith.constant 0 : index
    %c0_12 = arith.constant 0 : index
    %c0_13 = arith.constant 0 : index
    %17 = vector.load %arg14[%c0_11, %c0_12, %c0_13] : memref<9x1x256xf32, #tpu.memory_space<vmem>>, vector<9x1x256xf32>
    %18 = vector.extract_strided_slice %15 {offsets = [0, 0], sizes = [8, 256], strides = [1, 1]} : vector<16x256xf32> to vector<8x256xf32>
    %19 = vector.extract_strided_slice %15 {offsets = [8, 0], sizes = [8, 256], strides = [1, 1]} : vector<16x256xf32> to vector<8x256xf32>
    %20 = arith.truncf %19 : vector<8x256xf32> to vector<8x256xbf16>
    %c0_14 = arith.constant 0 : index
    %c0_15 = arith.constant 0 : index
    %c0_16 = arith.constant 0 : index
    %21 = vector.load %arg5[%c0_14, %c0_15, %c0_16] : memref<1x96x8xbf16, #tpu.memory_space<vmem>>, vector<1x96x8xbf16>
    %22 = vector.shape_cast %21 : vector<1x96x8xbf16> to vector<96x8xbf16>
    %cst_17 = arith.constant dense<0.000000e+00> : vector<96x256xf32>
    %23 = tpu.matmul %22, %20, %cst_17 {dimension_numbers = #tpu.dot_dimension_numbers<[1], [0], [0], [1], [0, 0, 1, 1], [], []>} : vector<96x8xbf16>, vector<8x256xbf16>, vector<96x256xf32> -> vector<96x256xf32>
    %c0_18 = arith.constant 0 : index
    %c0_19 = arith.constant 0 : index
    %c0_20 = arith.constant 0 : index
    %24 = vector.load %arg6[%c0_18, %c0_19, %c0_20] : memref<1x96x1xf32, #tpu.memory_space<vmem>>, vector<1x96x1xf32>
    %25 = vector.shape_cast %24 : vector<1x96x1xf32> to vector<96x1xf32>
    %26 = vector.broadcast %25 : vector<96x1xf32> to vector<96x256xf32>
    %27 = arith.addf %23, %26 : vector<96x256xf32>
    %28 = vector.extract_strided_slice %27 {offsets = [0, 0], sizes = [32, 256], strides = [1, 1]} : vector<96x256xf32> to vector<32x256xf32>
    %29 = vector.extract_strided_slice %27 {offsets = [32, 0], sizes = [32, 256], strides = [1, 1]} : vector<96x256xf32> to vector<32x256xf32>
    %30 = vector.extract_strided_slice %27 {offsets = [64, 0], sizes = [32, 256], strides = [1, 1]} : vector<96x256xf32> to vector<32x256xf32>
    %31 = arith.truncf %28 : vector<32x256xf32> to vector<32x256xbf16>
    %32 = arith.truncf %29 : vector<32x256xf32> to vector<32x256xbf16>
    %33 = arith.truncf %30 : vector<32x256xf32> to vector<32x256xbf16>
    %cst_21 = arith.constant dense<0.000000e+00> : vector<64x32xf32>
    %34 = tpu.matmul %16, %31, %cst_21 {dimension_numbers = #tpu.dot_dimension_numbers<[1], [1], [0], [0], [0, 0, 1, 0], [], []>} : vector<64x256xbf16>, vector<32x256xbf16>, vector<64x32xf32> -> vector<64x32xf32>
    %cst_22 = arith.constant 0.707106769 : f32
    %35 = vector.broadcast %cst_22 : f32 to vector<64x32xf32>
    %36 = arith.mulf %34, %35 : vector<64x32xf32>
    %37 = arith.truncf %36 : vector<64x32xf32> to vector<64x32xbf16>
    %38 = vector.extract_strided_slice %37 {offsets = [0, 0], sizes = [64, 8], strides = [1, 1]} : vector<64x32xbf16> to vector<64x8xbf16>
    %39 = vector.extract_strided_slice %31 {offsets = [0, 0], sizes = [8, 256], strides = [1, 1]} : vector<32x256xbf16> to vector<8x256xbf16>
    %40 = vector.extract_strided_slice %32 {offsets = [0, 0], sizes = [8, 256], strides = [1, 1]} : vector<32x256xbf16> to vector<8x256xbf16>
    %41 = vector.extract_strided_slice %33 {offsets = [0, 0], sizes = [8, 256], strides = [1, 1]} : vector<32x256xbf16> to vector<8x256xbf16>
    %cst_23 = arith.constant dense<0.000000e+00> : vector<64x256xf32>
    %42 = tpu.matmul %38, %40, %cst_23 {dimension_numbers = #tpu.dot_dimension_numbers<[1], [0], [0], [1], [0, 0, 1, 1], [], []>} : vector<64x8xbf16>, vector<8x256xbf16>, vector<64x256xf32> -> vector<64x256xf32>
    %c0_24 = arith.constant 0 : index
    %c0_25 = arith.constant 0 : index
    %c0_26 = arith.constant 0 : index
    %c0_27 = arith.constant 0 : index
    %43 = vector.load %arg10[%c0_24, %c0_25, %c0_26, %c0_27] : memref<1x4x64x256xbf16, #tpu.memory_space<vmem>>, vector<1x1x64x256xbf16>
    %44 = vector.shape_cast %43 : vector<1x1x64x256xbf16> to vector<64x256xbf16>
    %45 = arith.extf %44 : vector<64x256xbf16> to vector<64x256xf32>
    %46 = arith.addf %42, %45 : vector<64x256xf32>
    %cst_28 = arith.constant dense<0xFF800000> : vector<64xf32>
    %47 = vector.multi_reduction <maximumf>, %46, %cst_28 [1] : vector<64x256xf32> to vector<64xf32>
    %48 = vector.shape_cast %47 : vector<64xf32> to vector<64x1xf32>
    %49 = vector.broadcast %48 : vector<64x1xf32> to vector<64x256xf32>
    %50 = arith.subf %46, %49 : vector<64x256xf32>
    %51 = math.exp %50 : vector<64x256xf32>
    %cst_29 = arith.constant dense<0.000000e+00> : vector<64xf32>
    %52 = vector.multi_reduction <add>, %51, %cst_29 [1] : vector<64x256xf32> to vector<64xf32>
    %53 = vector.shape_cast %52 : vector<64xf32> to vector<64x1xf32>
    %54 = tpu.reciprocal %53 {approx = true} : vector<64x1xf32> -> vector<64x1xf32>
    %55 = vector.broadcast %54 : vector<64x1xf32> to vector<64x256xf32>
    %56 = arith.mulf %51, %55 : vector<64x256xf32>
    %57 = arith.truncf %56 : vector<64x256xf32> to vector<64x256xbf16>
    %cst_30 = arith.constant dense<0.000000e+00> : vector<8x64xf32>
    %58 = tpu.matmul %41, %57, %cst_30 {dimension_numbers = #tpu.dot_dimension_numbers<[1], [1], [0], [0], [0, 0, 1, 0], [], []>} : vector<8x256xbf16>, vector<64x256xbf16>, vector<8x64xf32> -> vector<8x64xf32>
    %cst_31 = arith.constant dense<0.000000e+00> : vector<64x256xf32>
    %59 = tpu.matmul %38, %39, %cst_31 {dimension_numbers = #tpu.dot_dimension_numbers<[1], [0], [0], [1], [0, 0, 1, 1], [], []>} : vector<64x8xbf16>, vector<8x256xbf16>, vector<64x256xf32> -> vector<64x256xf32>
    %c0_32 = arith.constant 0 : index
    %c0_33 = arith.constant 0 : index
    %c0_34 = arith.constant 0 : index
    %c0_35 = arith.constant 0 : index
    %60 = vector.load %arg11[%c0_32, %c0_33, %c0_34, %c0_35] : memref<1x4x64x256xbf16, #tpu.memory_space<vmem>>, vector<1x1x64x256xbf16>
    %61 = vector.shape_cast %60 : vector<1x1x64x256xbf16> to vector<64x256xbf16>
    %62 = arith.extf %61 : vector<64x256xbf16> to vector<64x256xf32>
    %63 = arith.addf %59, %62 : vector<64x256xf32>
    %cst_36 = arith.constant dense<0xFF800000> : vector<256xf32>
    %64 = vector.multi_reduction <maximumf>, %63, %cst_36 [0] : vector<64x256xf32> to vector<256xf32>
    %65 = vector.shape_cast %64 : vector<256xf32> to vector<1x256xf32>
    %66 = vector.broadcast %65 : vector<1x256xf32> to vector<64x256xf32>
    %67 = arith.subf %63, %66 : vector<64x256xf32>
    %68 = math.exp %67 : vector<64x256xf32>
    %cst_37 = arith.constant dense<0.000000e+00> : vector<256xf32>
    %69 = vector.multi_reduction <add>, %68, %cst_37 [0] : vector<64x256xf32> to vector<256xf32>
    %70 = vector.shape_cast %69 : vector<256xf32> to vector<1x256xf32>
    %71 = tpu.reciprocal %70 {approx = true} : vector<1x256xf32> -> vector<1x256xf32>
    %72 = vector.broadcast %71 : vector<1x256xf32> to vector<64x256xf32>
    %73 = arith.mulf %68, %72 : vector<64x256xf32>
    %74 = arith.truncf %58 : vector<8x64xf32> to vector<8x64xbf16>
    %75 = arith.truncf %73 : vector<64x256xf32> to vector<64x256xbf16>
    %cst_38 = arith.constant dense<0.000000e+00> : vector<8x256xf32>
    %76 = tpu.matmul %74, %75, %cst_38 {dimension_numbers = #tpu.dot_dimension_numbers<[1], [0], [0], [1], [0, 0, 1, 1], [], []>} : vector<8x64xbf16>, vector<64x256xbf16>, vector<8x256xf32> -> vector<8x256xf32>
    %c0_39 = arith.constant 0 : index
    %c0_40 = arith.constant 0 : index
    %77 = vector.load %arg19[%c0_39, %c0_40] : memref<32x256xf32, #tpu.memory_space<vmem>>, vector<8x256xf32>
    tpu.vector_store %arg19[%c0_39, %c0_40], %76 {strides = array<i32>} : memref<32x256xf32, #tpu.memory_space<vmem>>, vector<8x256xf32>,
    %78 = vector.extract_strided_slice %37 {offsets = [0, 8], sizes = [64, 8], strides = [1, 1]} : vector<64x32xbf16> to vector<64x8xbf16>
    %79 = vector.extract_strided_slice %31 {offsets = [8, 0], sizes = [8, 256], strides = [1, 1]} : vector<32x256xbf16> to vector<8x256xbf16>
    %80 = vector.extract_strided_slice %32 {offsets = [8, 0], sizes = [8, 256], strides = [1, 1]} : vector<32x256xbf16> to vector<8x256xbf16>
    %81 = vector.extract_strided_slice %33 {offsets = [8, 0], sizes = [8, 256], strides = [1, 1]} : vector<32x256xbf16> to vector<8x256xbf16>
    %cst_41 = arith.constant dense<0.000000e+00> : vector<64x256xf32>
    %82 = tpu.matmul %78, %80, %cst_41 {dimension_numbers = #tpu.dot_dimension_numbers<[1], [0], [0], [1], [0, 0, 1, 1], [], []>} : vector<64x8xbf16>, vector<8x256xbf16>, vector<64x256xf32> -> vector<64x256xf32>
    %c0_42 = arith.constant 0 : index
    %c1 = arith.constant 1 : index
    %c0_43 = arith.constant 0 : index
    %c0_44 = arith.constant 0 : index
    %83 = vector.load %arg10[%c0_42, %c1, %c0_43, %c0_44] : memref<1x4x64x256xbf16, #tpu.memory_space<vmem>>, vector<1x1x64x256xbf16>
    %84 = vector.shape_cast %83 : vector<1x1x64x256xbf16> to vector<64x256xbf16>
    %85 = arith.extf %84 : vector<64x256xbf16> to vector<64x256xf32>
    %86 = arith.addf %82, %85 : vector<64x256xf32>
    %cst_45 = arith.constant dense<0xFF800000> : vector<64xf32>
    %87 = vector.multi_reduction <maximumf>, %86, %cst_45 [1] : vector<64x256xf32> to vector<64xf32>
    %88 = vector.shape_cast %87 : vector<64xf32> to vector<64x1xf32>
    %89 = vector.broadcast %88 : vector<64x1xf32> to vector<64x256xf32>
    %90 = arith.subf %86, %89 : vector<64x256xf32>
    %91 = math.exp %90 : vector<64x256xf32>
    %cst_46 = arith.constant dense<0.000000e+00> : vector<64xf32>
    %92 = vector.multi_reduction <add>, %91, %cst_46 [1] : vector<64x256xf32> to vector<64xf32>
    %93 = vector.shape_cast %92 : vector<64xf32> to vector<64x1xf32>
    %94 = tpu.reciprocal %93 {approx = true} : vector<64x1xf32> -> vector<64x1xf32>
    %95 = vector.broadcast %94 : vector<64x1xf32> to vector<64x256xf32>
    %96 = arith.mulf %91, %95 : vector<64x256xf32>
    %97 = arith.truncf %96 : vector<64x256xf32> to vector<64x256xbf16>
    %cst_47 = arith.constant dense<0.000000e+00> : vector<8x64xf32>
    %98 = tpu.matmul %81, %97, %cst_47 {dimension_numbers = #tpu.dot_dimension_numbers<[1], [1], [0], [0], [0, 0, 1, 0], [], []>} : vector<8x256xbf16>, vector<64x256xbf16>, vector<8x64xf32> -> vector<8x64xf32>
    %cst_48 = arith.constant dense<0.000000e+00> : vector<64x256xf32>
    %99 = tpu.matmul %78, %79, %cst_48 {dimension_numbers = #tpu.dot_dimension_numbers<[1], [0], [0], [1], [0, 0, 1, 1], [], []>} : vector<64x8xbf16>, vector<8x256xbf16>, vector<64x256xf32> -> vector<64x256xf32>
    %c0_49 = arith.constant 0 : index
    %c1_50 = arith.constant 1 : index
    %c0_51 = arith.constant 0 : index
    %c0_52 = arith.constant 0 : index
    %100 = vector.load %arg11[%c0_49, %c1_50, %c0_51, %c0_52] : memref<1x4x64x256xbf16, #tpu.memory_space<vmem>>, vector<1x1x64x256xbf16>
    %101 = vector.shape_cast %100 : vector<1x1x64x256xbf16> to vector<64x256xbf16>
    %102 = arith.extf %101 : vector<64x256xbf16> to vector<64x256xf32>
    %103 = arith.addf %99, %102 : vector<64x256xf32>
    %cst_53 = arith.constant dense<0xFF800000> : vector<256xf32>
    %104 = vector.multi_reduction <maximumf>, %103, %cst_53 [0] : vector<64x256xf32> to vector<256xf32>
    %105 = vector.shape_cast %104 : vector<256xf32> to vector<1x256xf32>
    %106 = vector.broadcast %105 : vector<1x256xf32> to vector<64x256xf32>
    %107 = arith.subf %103, %106 : vector<64x256xf32>
    %108 = math.exp %107 : vector<64x256xf32>
    %cst_54 = arith.constant dense<0.000000e+00> : vector<256xf32>
    %109 = vector.multi_reduction <add>, %108, %cst_54 [0] : vector<64x256xf32> to vector<256xf32>
    %110 = vector.shape_cast %109 : vector<256xf32> to vector<1x256xf32>
    %111 = tpu.reciprocal %110 {approx = true} : vector<1x256xf32> -> vector<1x256xf32>
    %112 = vector.broadcast %111 : vector<1x256xf32> to vector<64x256xf32>
    %113 = arith.mulf %108, %112 : vector<64x256xf32>
    %114 = arith.truncf %98 : vector<8x64xf32> to vector<8x64xbf16>
    %115 = arith.truncf %113 : vector<64x256xf32> to vector<64x256xbf16>
    %cst_55 = arith.constant dense<0.000000e+00> : vector<8x256xf32>
    %116 = tpu.matmul %114, %115, %cst_55 {dimension_numbers = #tpu.dot_dimension_numbers<[1], [0], [0], [1], [0, 0, 1, 1], [], []>} : vector<8x64xbf16>, vector<64x256xbf16>, vector<8x256xf32> -> vector<8x256xf32>
    %c8 = arith.constant 8 : index
    %c0_56 = arith.constant 0 : index
    %117 = vector.load %arg19[%c8, %c0_56] : memref<32x256xf32, #tpu.memory_space<vmem>>, vector<8x256xf32>
    tpu.vector_store %arg19[%c8, %c0_56], %116 {strides = array<i32>} : memref<32x256xf32, #tpu.memory_space<vmem>>, vector<8x256xf32>,
    %118 = vector.extract_strided_slice %37 {offsets = [0, 16], sizes = [64, 8], strides = [1, 1]} : vector<64x32xbf16> to vector<64x8xbf16>
    %119 = vector.extract_strided_slice %31 {offsets = [16, 0], sizes = [8, 256], strides = [1, 1]} : vector<32x256xbf16> to vector<8x256xbf16>
    %120 = vector.extract_strided_slice %32 {offsets = [16, 0], sizes = [8, 256], strides = [1, 1]} : vector<32x256xbf16> to vector<8x256xbf16>
    %121 = vector.extract_strided_slice %33 {offsets = [16, 0], sizes = [8, 256], strides = [1, 1]} : vector<32x256xbf16> to vector<8x256xbf16>
    %cst_57 = arith.constant dense<0.000000e+00> : vector<64x256xf32>
    %122 = tpu.matmul %118, %120, %cst_57 {dimension_numbers = #tpu.dot_dimension_numbers<[1], [0], [0], [1], [0, 0, 1, 1], [], []>} : vector<64x8xbf16>, vector<8x256xbf16>, vector<64x256xf32> -> vector<64x256xf32>
    %c0_58 = arith.constant 0 : index
    %c2 = arith.constant 2 : index
    %c0_59 = arith.constant 0 : index
    %c0_60 = arith.constant 0 : index
    %123 = vector.load %arg10[%c0_58, %c2, %c0_59, %c0_60] : memref<1x4x64x256xbf16, #tpu.memory_space<vmem>>, vector<1x1x64x256xbf16>
    %124 = vector.shape_cast %123 : vector<1x1x64x256xbf16> to vector<64x256xbf16>
    %125 = arith.extf %124 : vector<64x256xbf16> to vector<64x256xf32>
    %126 = arith.addf %122, %125 : vector<64x256xf32>
    %cst_61 = arith.constant dense<0xFF800000> : vector<64xf32>
    %127 = vector.multi_reduction <maximumf>, %126, %cst_61 [1] : vector<64x256xf32> to vector<64xf32>
    %128 = vector.shape_cast %127 : vector<64xf32> to vector<64x1xf32>
    %129 = vector.broadcast %128 : vector<64x1xf32> to vector<64x256xf32>
    %130 = arith.subf %126, %129 : vector<64x256xf32>
    %131 = math.exp %130 : vector<64x256xf32>
    %cst_62 = arith.constant dense<0.000000e+00> : vector<64xf32>
    %132 = vector.multi_reduction <add>, %131, %cst_62 [1] : vector<64x256xf32> to vector<64xf32>
    %133 = vector.shape_cast %132 : vector<64xf32> to vector<64x1xf32>
    %134 = tpu.reciprocal %133 {approx = true} : vector<64x1xf32> -> vector<64x1xf32>
    %135 = vector.broadcast %134 : vector<64x1xf32> to vector<64x256xf32>
    %136 = arith.mulf %131, %135 : vector<64x256xf32>
    %137 = arith.truncf %136 : vector<64x256xf32> to vector<64x256xbf16>
    %cst_63 = arith.constant dense<0.000000e+00> : vector<8x64xf32>
    %138 = tpu.matmul %121, %137, %cst_63 {dimension_numbers = #tpu.dot_dimension_numbers<[1], [1], [0], [0], [0, 0, 1, 0], [], []>} : vector<8x256xbf16>, vector<64x256xbf16>, vector<8x64xf32> -> vector<8x64xf32>
    %cst_64 = arith.constant dense<0.000000e+00> : vector<64x256xf32>
    %139 = tpu.matmul %118, %119, %cst_64 {dimension_numbers = #tpu.dot_dimension_numbers<[1], [0], [0], [1], [0, 0, 1, 1], [], []>} : vector<64x8xbf16>, vector<8x256xbf16>, vector<64x256xf32> -> vector<64x256xf32>
    %c0_65 = arith.constant 0 : index
    %c2_66 = arith.constant 2 : index
    %c0_67 = arith.constant 0 : index
    %c0_68 = arith.constant 0 : index
    %140 = vector.load %arg11[%c0_65, %c2_66, %c0_67, %c0_68] : memref<1x4x64x256xbf16, #tpu.memory_space<vmem>>, vector<1x1x64x256xbf16>
    %141 = vector.shape_cast %140 : vector<1x1x64x256xbf16> to vector<64x256xbf16>
    %142 = arith.extf %141 : vector<64x256xbf16> to vector<64x256xf32>
    %143 = arith.addf %139, %142 : vector<64x256xf32>
    %cst_69 = arith.constant dense<0xFF800000> : vector<256xf32>
    %144 = vector.multi_reduction <maximumf>, %143, %cst_69 [0] : vector<64x256xf32> to vector<256xf32>
    %145 = vector.shape_cast %144 : vector<256xf32> to vector<1x256xf32>
    %146 = vector.broadcast %145 : vector<1x256xf32> to vector<64x256xf32>
    %147 = arith.subf %143, %146 : vector<64x256xf32>
    %148 = math.exp %147 : vector<64x256xf32>
    %cst_70 = arith.constant dense<0.000000e+00> : vector<256xf32>
    %149 = vector.multi_reduction <add>, %148, %cst_70 [0] : vector<64x256xf32> to vector<256xf32>
    %150 = vector.shape_cast %149 : vector<256xf32> to vector<1x256xf32>
    %151 = tpu.reciprocal %150 {approx = true} : vector<1x256xf32> -> vector<1x256xf32>
    %152 = vector.broadcast %151 : vector<1x256xf32> to vector<64x256xf32>
    %153 = arith.mulf %148, %152 : vector<64x256xf32>
    %154 = arith.truncf %138 : vector<8x64xf32> to vector<8x64xbf16>
    %155 = arith.truncf %153 : vector<64x256xf32> to vector<64x256xbf16>
    %cst_71 = arith.constant dense<0.000000e+00> : vector<8x256xf32>
    %156 = tpu.matmul %154, %155, %cst_71 {dimension_numbers = #tpu.dot_dimension_numbers<[1], [0], [0], [1], [0, 0, 1, 1], [], []>} : vector<8x64xbf16>, vector<64x256xbf16>, vector<8x256xf32> -> vector<8x256xf32>
    %c16 = arith.constant 16 : index
    %c0_72 = arith.constant 0 : index
    %157 = vector.load %arg19[%c16, %c0_72] : memref<32x256xf32, #tpu.memory_space<vmem>>, vector<8x256xf32>
    tpu.vector_store %arg19[%c16, %c0_72], %156 {strides = array<i32>} : memref<32x256xf32, #tpu.memory_space<vmem>>, vector<8x256xf32>,
    %158 = vector.extract_strided_slice %37 {offsets = [0, 24], sizes = [64, 8], strides = [1, 1]} : vector<64x32xbf16> to vector<64x8xbf16>
    %159 = vector.extract_strided_slice %31 {offsets = [24, 0], sizes = [8, 256], strides = [1, 1]} : vector<32x256xbf16> to vector<8x256xbf16>
    %160 = vector.extract_strided_slice %32 {offsets = [24, 0], sizes = [8, 256], strides = [1, 1]} : vector<32x256xbf16> to vector<8x256xbf16>
    %161 = vector.extract_strided_slice %33 {offsets = [24, 0], sizes = [8, 256], strides = [1, 1]} : vector<32x256xbf16> to vector<8x256xbf16>
    %cst_73 = arith.constant dense<0.000000e+00> : vector<64x256xf32>
    %162 = tpu.matmul %158, %160, %cst_73 {dimension_numbers = #tpu.dot_dimension_numbers<[1], [0], [0], [1], [0, 0, 1, 1], [], []>} : vector<64x8xbf16>, vector<8x256xbf16>, vector<64x256xf32> -> vector<64x256xf32>
    %c0_74 = arith.constant 0 : index
    %c3 = arith.constant 3 : index
    %c0_75 = arith.constant 0 : index
    %c0_76 = arith.constant 0 : index
    %163 = vector.load %arg10[%c0_74, %c3, %c0_75, %c0_76] : memref<1x4x64x256xbf16, #tpu.memory_space<vmem>>, vector<1x1x64x256xbf16>
    %164 = vector.shape_cast %163 : vector<1x1x64x256xbf16> to vector<64x256xbf16>
    %165 = arith.extf %164 : vector<64x256xbf16> to vector<64x256xf32>
    %166 = arith.addf %162, %165 : vector<64x256xf32>
    %cst_77 = arith.constant dense<0xFF800000> : vector<64xf32>
    %167 = vector.multi_reduction <maximumf>, %166, %cst_77 [1] : vector<64x256xf32> to vector<64xf32>
    %168 = vector.shape_cast %167 : vector<64xf32> to vector<64x1xf32>
    %169 = vector.broadcast %168 : vector<64x1xf32> to vector<64x256xf32>
    %170 = arith.subf %166, %169 : vector<64x256xf32>
    %171 = math.exp %170 : vector<64x256xf32>
    %cst_78 = arith.constant dense<0.000000e+00> : vector<64xf32>
    %172 = vector.multi_reduction <add>, %171, %cst_78 [1] : vector<64x256xf32> to vector<64xf32>
    %173 = vector.shape_cast %172 : vector<64xf32> to vector<64x1xf32>
    %174 = tpu.reciprocal %173 {approx = true} : vector<64x1xf32> -> vector<64x1xf32>
    %175 = vector.broadcast %174 : vector<64x1xf32> to vector<64x256xf32>
    %176 = arith.mulf %171, %175 : vector<64x256xf32>
    %177 = arith.truncf %176 : vector<64x256xf32> to vector<64x256xbf16>
    %cst_79 = arith.constant dense<0.000000e+00> : vector<8x64xf32>
    %178 = tpu.matmul %161, %177, %cst_79 {dimension_numbers = #tpu.dot_dimension_numbers<[1], [1], [0], [0], [0, 0, 1, 0], [], []>} : vector<8x256xbf16>, vector<64x256xbf16>, vector<8x64xf32> -> vector<8x64xf32>
    %cst_80 = arith.constant dense<0.000000e+00> : vector<64x256xf32>
    %179 = tpu.matmul %158, %159, %cst_80 {dimension_numbers = #tpu.dot_dimension_numbers<[1], [0], [0], [1], [0, 0, 1, 1], [], []>} : vector<64x8xbf16>, vector<8x256xbf16>, vector<64x256xf32> -> vector<64x256xf32>
    %c0_81 = arith.constant 0 : index
    %c3_82 = arith.constant 3 : index
    %c0_83 = arith.constant 0 : index
    %c0_84 = arith.constant 0 : index
    %180 = vector.load %arg11[%c0_81, %c3_82, %c0_83, %c0_84] : memref<1x4x64x256xbf16, #tpu.memory_space<vmem>>, vector<1x1x64x256xbf16>
    %181 = vector.shape_cast %180 : vector<1x1x64x256xbf16> to vector<64x256xbf16>
    %182 = arith.extf %181 : vector<64x256xbf16> to vector<64x256xf32>
    %183 = arith.addf %179, %182 : vector<64x256xf32>
    %cst_85 = arith.constant dense<0xFF800000> : vector<256xf32>
    %184 = vector.multi_reduction <maximumf>, %183, %cst_85 [0] : vector<64x256xf32> to vector<256xf32>
    %185 = vector.shape_cast %184 : vector<256xf32> to vector<1x256xf32>
    %186 = vector.broadcast %185 : vector<1x256xf32> to vector<64x256xf32>
    %187 = arith.subf %183, %186 : vector<64x256xf32>
    %188 = math.exp %187 : vector<64x256xf32>
    %cst_86 = arith.constant dense<0.000000e+00> : vector<256xf32>
    %189 = vector.multi_reduction <add>, %188, %cst_86 [0] : vector<64x256xf32> to vector<256xf32>
    %190 = vector.shape_cast %189 : vector<256xf32> to vector<1x256xf32>
    %191 = tpu.reciprocal %190 {approx = true} : vector<1x256xf32> -> vector<1x256xf32>
    %192 = vector.broadcast %191 : vector<1x256xf32> to vector<64x256xf32>
    %193 = arith.mulf %188, %192 : vector<64x256xf32>
    %194 = arith.truncf %178 : vector<8x64xf32> to vector<8x64xbf16>
    %195 = arith.truncf %193 : vector<64x256xf32> to vector<64x256xbf16>
    %cst_87 = arith.constant dense<0.000000e+00> : vector<8x256xf32>
    %196 = tpu.matmul %194, %195, %cst_87 {dimension_numbers = #tpu.dot_dimension_numbers<[1], [0], [0], [1], [0, 0, 1, 1], [], []>} : vector<8x64xbf16>, vector<64x256xbf16>, vector<8x256xf32> -> vector<8x256xf32>
    %c24 = arith.constant 24 : index
    %c0_88 = arith.constant 0 : index
    %197 = vector.load %arg19[%c24, %c0_88] : memref<32x256xf32, #tpu.memory_space<vmem>>, vector<8x256xf32>
    tpu.vector_store %arg19[%c24, %c0_88], %196 {strides = array<i32>} : memref<32x256xf32, #tpu.memory_space<vmem>>, vector<8x256xf32>,
    %c0_89 = arith.constant 0 : index
    %c0_90 = arith.constant 0 : index
    %c0_91 = arith.constant 0 : index
    %c0_92 = arith.constant 0 : index
    %198 = vector.load %arg12[%c0_89, %c0_90, %c0_91, %c0_92] : memref<1x9x32x1xf32, #tpu.memory_space<vmem>>, vector<1x9x32x1xf32>
    %199 = vector.shape_cast %198 : vector<1x9x32x1xf32> to vector<9x32x1xf32>
    %200 = vector.extract_strided_slice %199 {offsets = [4, 0, 0], sizes = [1, 32, 1], strides = [1, 1, 1]} : vector<9x32x1xf32> to vector<1x32x1xf32>
    %201 = vector.shape_cast %200 : vector<1x32x1xf32> to vector<32x1xf32>
    %202 = vector.broadcast %201 : vector<32x1xf32> to vector<32x256xf32>
    %203 = arith.mulf %30, %202 : vector<32x256xf32>
    %c0_93 = arith.constant 0 : index
    %c0_94 = arith.constant 0 : index
    %c0_95 = arith.constant 0 : index
    %204 = vector.load %arg13[%c0_93, %c0_94, %c0_95] : memref<1x32x1xf32, #tpu.memory_space<vmem>>, vector<1x32x1xf32>
    %205 = vector.shape_cast %204 : vector<1x32x1xf32> to vector<32x1xf32>
    %206 = vector.broadcast %205 : vector<32x1xf32> to vector<32x256xf32>
    %207 = arith.addf %203, %206 : vector<32x256xf32>
    %c17_i32 = arith.constant 17 : i32
    %208 = tpu.dynamic_rotate %30 by %c17_i32 dim 1 : vector<32x256xf32>, i32 -> vector<32x256xf32>
    %209 = vector.extract_strided_slice %17 {offsets = [0, 0, 0], sizes = [1, 1, 256], strides = [1, 1, 1]} : vector<9x1x256xf32> to vector<1x1x256xf32>
    %210 = vector.shape_cast %209 : vector<1x1x256xf32> to vector<1x256xf32>
    %211 = vector.broadcast %210 : vector<1x256xf32> to vector<32x256xf32>
    %212 = arith.mulf %208, %211 : vector<32x256xf32>
    %213 = vector.extract_strided_slice %199 {offsets = [0, 0, 0], sizes = [1, 32, 1], strides = [1, 1, 1]} : vector<9x32x1xf32> to vector<1x32x1xf32>
    %214 = vector.shape_cast %213 : vector<1x32x1xf32> to vector<32x1xf32>
    %215 = vector.broadcast %214 : vector<32x1xf32> to vector<32x256xf32>
    %216 = arith.mulf %212, %215 : vector<32x256xf32>
    %217 = arith.addf %207, %216 : vector<32x256xf32>
    %c16_i32 = arith.constant 16 : i32
    %218 = tpu.dynamic_rotate %30 by %c16_i32 dim 1 : vector<32x256xf32>, i32 -> vector<32x256xf32>
    %219 = vector.extract_strided_slice %17 {offsets = [1, 0, 0], sizes = [1, 1, 256], strides = [1, 1, 1]} : vector<9x1x256xf32> to vector<1x1x256xf32>
    %220 = vector.shape_cast %219 : vector<1x1x256xf32> to vector<1x256xf32>
    %221 = vector.broadcast %220 : vector<1x256xf32> to vector<32x256xf32>
    %222 = arith.mulf %218, %221 : vector<32x256xf32>
    %223 = vector.extract_strided_slice %199 {offsets = [1, 0, 0], sizes = [1, 32, 1], strides = [1, 1, 1]} : vector<9x32x1xf32> to vector<1x32x1xf32>
    %224 = vector.shape_cast %223 : vector<1x32x1xf32> to vector<32x1xf32>
    %225 = vector.broadcast %224 : vector<32x1xf32> to vector<32x256xf32>
    %226 = arith.mulf %222, %225 : vector<32x256xf32>
    %227 = arith.addf %217, %226 : vector<32x256xf32>
    %c15_i32 = arith.constant 15 : i32
    %228 = tpu.dynamic_rotate %30 by %c15_i32 dim 1 : vector<32x256xf32>, i32 -> vector<32x256xf32>
    %229 = vector.extract_strided_slice %17 {offsets = [2, 0, 0], sizes = [1, 1, 256], strides = [1, 1, 1]} : vector<9x1x256xf32> to vector<1x1x256xf32>
    %230 = vector.shape_cast %229 : vector<1x1x256xf32> to vector<1x256xf32>
    %231 = vector.broadcast %230 : vector<1x256xf32> to vector<32x256xf32>
    %232 = arith.mulf %228, %231 : vector<32x256xf32>
    %233 = vector.extract_strided_slice %199 {offsets = [2, 0, 0], sizes = [1, 32, 1], strides = [1, 1, 1]} : vector<9x32x1xf32> to vector<1x32x1xf32>
    %234 = vector.shape_cast %233 : vector<1x32x1xf32> to vector<32x1xf32>
    %235 = vector.broadcast %234 : vector<32x1xf32> to vector<32x256xf32>
    %236 = arith.mulf %232, %235 : vector<32x256xf32>
    %237 = arith.addf %227, %236 : vector<32x256xf32>
    %c1_i32 = arith.constant 1 : i32
    %238 = tpu.dynamic_rotate %30 by %c1_i32 dim 1 : vector<32x256xf32>, i32 -> vector<32x256xf32>
    %239 = vector.extract_strided_slice %17 {offsets = [3, 0, 0], sizes = [1, 1, 256], strides = [1, 1, 1]} : vector<9x1x256xf32> to vector<1x1x256xf32>
    %240 = vector.shape_cast %239 : vector<1x1x256xf32> to vector<1x256xf32>
    %241 = vector.broadcast %240 : vector<1x256xf32> to vector<32x256xf32>
    %242 = arith.mulf %238, %241 : vector<32x256xf32>
    %243 = vector.extract_strided_slice %199 {offsets = [3, 0, 0], sizes = [1, 32, 1], strides = [1, 1, 1]} : vector<9x32x1xf32> to vector<1x32x1xf32>
    %244 = vector.shape_cast %243 : vector<1x32x1xf32> to vector<32x1xf32>
    %245 = vector.broadcast %244 : vector<32x1xf32> to vector<32x256xf32>
    %246 = arith.mulf %242, %245 : vector<32x256xf32>
    %247 = arith.addf %237, %246 : vector<32x256xf32>
    %c255_i32 = arith.constant 255 : i32
    %248 = tpu.dynamic_rotate %30 by %c255_i32 dim 1 : vector<32x256xf32>, i32 -> vector<32x256xf32>
    %249 = vector.extract_strided_slice %17 {offsets = [5, 0, 0], sizes = [1, 1, 256], strides = [1, 1, 1]} : vector<9x1x256xf32> to vector<1x1x256xf32>
    %250 = vector.shape_cast %249 : vector<1x1x256xf32> to vector<1x256xf32>
    %251 = vector.broadcast %250 : vector<1x256xf32> to vector<32x256xf32>
    %252 = arith.mulf %248, %251 : vector<32x256xf32>
    %253 = vector.extract_strided_slice %199 {offsets = [5, 0, 0], sizes = [1, 32, 1], strides = [1, 1, 1]} : vector<9x32x1xf32> to vector<1x32x1xf32>
    %254 = vector.shape_cast %253 : vector<1x32x1xf32> to vector<32x1xf32>
    %255 = vector.broadcast %254 : vector<32x1xf32> to vector<32x256xf32>
    %256 = arith.mulf %252, %255 : vector<32x256xf32>
    %257 = arith.addf %247, %256 : vector<32x256xf32>
    %c241_i32 = arith.constant 241 : i32
    %258 = tpu.dynamic_rotate %30 by %c241_i32 dim 1 : vector<32x256xf32>, i32 -> vector<32x256xf32>
    %259 = vector.extract_strided_slice %17 {offsets = [6, 0, 0], sizes = [1, 1, 256], strides = [1, 1, 1]} : vector<9x1x256xf32> to vector<1x1x256xf32>
    %260 = vector.shape_cast %259 : vector<1x1x256xf32> to vector<1x256xf32>
    %261 = vector.broadcast %260 : vector<1x256xf32> to vector<32x256xf32>
    %262 = arith.mulf %258, %261 : vector<32x256xf32>
    %263 = vector.extract_strided_slice %199 {offsets = [6, 0, 0], sizes = [1, 32, 1], strides = [1, 1, 1]} : vector<9x32x1xf32> to vector<1x32x1xf32>
    %264 = vector.shape_cast %263 : vector<1x32x1xf32> to vector<32x1xf32>
    %265 = vector.broadcast %264 : vector<32x1xf32> to vector<32x256xf32>
    %266 = arith.mulf %262, %265 : vector<32x256xf32>
    %267 = arith.addf %257, %266 : vector<32x256xf32>
    %c240_i32 = arith.constant 240 : i32
    %268 = tpu.dynamic_rotate %30 by %c240_i32 dim 1 : vector<32x256xf32>, i32 -> vector<32x256xf32>
    %269 = vector.extract_strided_slice %17 {offsets = [7, 0, 0], sizes = [1, 1, 256], strides = [1, 1, 1]} : vector<9x1x256xf32> to vector<1x1x256xf32>
    %270 = vector.shape_cast %269 : vector<1x1x256xf32> to vector<1x256xf32>
    %271 = vector.broadcast %270 : vector<1x256xf32> to vector<32x256xf32>
    %272 = arith.mulf %268, %271 : vector<32x256xf32>
    %273 = vector.extract_strided_slice %199 {offsets = [7, 0, 0], sizes = [1, 32, 1], strides = [1, 1, 1]} : vector<9x32x1xf32> to vector<1x32x1xf32>
    %274 = vector.shape_cast %273 : vector<1x32x1xf32> to vector<32x1xf32>
    %275 = vector.broadcast %274 : vector<32x1xf32> to vector<32x256xf32>
    %276 = arith.mulf %272, %275 : vector<32x256xf32>
    %277 = arith.addf %267, %276 : vector<32x256xf32>
    %c239_i32 = arith.constant 239 : i32
    %278 = tpu.dynamic_rotate %30 by %c239_i32 dim 1 : vector<32x256xf32>, i32 -> vector<32x256xf32>
    %279 = vector.extract_strided_slice %17 {offsets = [8, 0, 0], sizes = [1, 1, 256], strides = [1, 1, 1]} : vector<9x1x256xf32> to vector<1x1x256xf32>
    %280 = vector.shape_cast %279 : vector<1x1x256xf32> to vector<1x256xf32>
    %281 = vector.broadcast %280 : vector<1x256xf32> to vector<32x256xf32>
    %282 = arith.mulf %278, %281 : vector<32x256xf32>
    %283 = vector.extract_strided_slice %199 {offsets = [8, 0, 0], sizes = [1, 32, 1], strides = [1, 1, 1]} : vector<9x32x1xf32> to vector<1x32x1xf32>
    %284 = vector.shape_cast %283 : vector<1x32x1xf32> to vector<32x1xf32>
    %285 = vector.broadcast %284 : vector<32x1xf32> to vector<32x256xf32>
    %286 = arith.mulf %282, %285 : vector<32x256xf32>
    %287 = arith.addf %277, %286 : vector<32x256xf32>
    %c0_96 = arith.constant 0 : index
    %c0_97 = arith.constant 0 : index
    %c0_98 = arith.constant 0 : index
    %288 = vector.load %arg7[%c0_96, %c0_97, %c0_98] : memref<1x8x32xbf16, #tpu.memory_space<vmem>>, vector<1x8x32xbf16>
    %289 = vector.shape_cast %288 : vector<1x8x32xbf16> to vector<8x32xbf16>
    %c0_99 = arith.constant 0 : index
    %c0_100 = arith.constant 0 : index
    %290 = vector.load %arg19[%c0_99, %c0_100] : memref<32x256xf32, #tpu.memory_space<vmem>>, vector<32x256xf32>
    %291 = arith.addf %290, %287 : vector<32x256xf32>
    %292 = arith.truncf %291 : vector<32x256xf32> to vector<32x256xbf16>
    %cst_101 = arith.constant dense<0.000000e+00> : vector<8x256xf32>
    %293 = tpu.matmul %289, %292, %cst_101 {dimension_numbers = #tpu.dot_dimension_numbers<[1], [0], [0], [1], [0, 0, 1, 1], [], []>} : vector<8x32xbf16>, vector<32x256xbf16>, vector<8x256xf32> -> vector<8x256xf32>
    %c0_102 = arith.constant 0 : index
    %c0_103 = arith.constant 0 : index
    %c0_104 = arith.constant 0 : index
    %294 = vector.load %arg8[%c0_102, %c0_103, %c0_104] : memref<1x8x1xf32, #tpu.memory_space<vmem>>, vector<1x8x1xf32>
    %295 = vector.shape_cast %294 : vector<1x8x1xf32> to vector<8x1xf32>
    %296 = vector.broadcast %295 : vector<8x1xf32> to vector<8x256xf32>
    %297 = arith.addf %293, %296 : vector<8x256xf32>
    %298 = arith.negf %297 : vector<8x256xf32>
    %299 = math.exp %298 : vector<8x256xf32>
    %cst_105 = arith.constant 1.000000e+00 : f32
    %300 = vector.broadcast %cst_105 : f32 to vector<8x256xf32>
    %301 = arith.addf %300, %299 : vector<8x256xf32>
    %302 = arith.divf %300, %301 : vector<8x256xf32>
    %303 = arith.mulf %19, %302 : vector<8x256xf32>
    %304 = tpu.concatenate %18, %19, %303 in 0 : vector<8x256xf32>, vector<8x256xf32>, vector<8x256xf32> -> vector<24x256xf32>
    %305 = arith.truncf %304 : vector<24x256xf32> to vector<24x256xbf16>
    %c0_106 = arith.constant 0 : index
    %c0_107 = arith.constant 0 : index
    %306 = vector.load %arg15[%c0_106, %c0_107] : memref<16x24xbf16, #tpu.memory_space<vmem>>, vector<16x24xbf16>
    %cst_108 = arith.constant dense<0.000000e+00> : vector<16x256xf32>
    %307 = tpu.matmul %306, %305, %cst_108 {dimension_numbers = #tpu.dot_dimension_numbers<[1], [0], [0], [1], [0, 0, 1, 1], [], []>} : vector<16x24xbf16>, vector<24x256xbf16>, vector<16x256xf32> -> vector<16x256xf32>
    %c0_109 = arith.constant 0 : index
    %c0_110 = arith.constant 0 : index
    %308 = vector.load %arg16[%c0_109, %c0_110] : memref<16x1xf32, #tpu.memory_space<vmem>>, vector<16x1xf32>
    %309 = vector.broadcast %308 : vector<16x1xf32> to vector<16x256xf32>
    %310 = arith.mulf %307, %309 : vector<16x256xf32>
    %c0_111 = arith.constant 0 : index
    %c0_112 = arith.constant 0 : index
    %311 = vector.load %arg17[%c0_111, %c0_112] : memref<16x1xf32, #tpu.memory_space<vmem>>, vector<16x1xf32>
    %312 = vector.broadcast %311 : vector<16x1xf32> to vector<16x256xf32>
    %313 = arith.addf %310, %312 : vector<16x256xf32>
    %314 = arith.negf %313 : vector<16x256xf32>
    %315 = math.exp %314 : vector<16x256xf32>
    %cst_113 = arith.constant 1.000000e+00 : f32
    %316 = vector.broadcast %cst_113 : f32 to vector<16x256xf32>
    %317 = arith.addf %316, %315 : vector<16x256xf32>
    %318 = arith.divf %316, %317 : vector<16x256xf32>
    %319 = arith.mulf %313, %318 : vector<16x256xf32>
    %320 = arith.truncf %319 : vector<16x256xf32> to vector<16x256xbf16>
    %c0_114 = arith.constant 0 : index
    %c0_115 = arith.constant 0 : index
    %c0_116 = arith.constant 0 : index
    %321 = vector.load %arg18[%c0_114, %c0_115, %c0_116] : memref<1x16x256xbf16, #tpu.memory_space<vmem>>, vector<1x16x256xbf16>
    %322 = vector.shape_cast %321 : vector<1x16x256xbf16> to vector<16x256xbf16>
    %323 = vector.shape_cast %320 : vector<16x256xbf16> to vector<1x16x256xbf16>
    tpu.vector_store %arg18[%c0_114, %c0_115, %c0_116], %323 {strides = array<i32>} : memref<1x16x256xbf16, #tpu.memory_space<vmem>>, vector<1x16x256xbf16>,
    return
  }
  func.func @transform_0(%arg0: i32) -> (i32, i32, i32) {
    %c0_i32 = arith.constant 0 : i32
    %c0_i32_0 = arith.constant 0 : i32
    %c0_i32_1 = arith.constant 0 : i32
    return %arg0, %c0_i32, %c0_i32_0 : i32, i32, i32
  }
  func.func @transform_1(%arg0: i32) -> (i32, i32) {
    %c0_i32 = arith.constant 0 : i32
    %c0_i32_0 = arith.constant 0 : i32
    %c0_i32_1 = arith.constant 0 : i32
    return %c0_i32, %c0_i32_0 : i32, i32
  }
  func.func @transform_2(%arg0: i32) -> (i32, i32) {
    %c0_i32 = arith.constant 0 : i32
    %c0_i32_0 = arith.constant 0 : i32
    %c0_i32_1 = arith.constant 0 : i32
    return %c0_i32, %c0_i32_0 : i32, i32
  }
  func.func @transform_3(%arg0: i32) -> (i32, i32) {
    %c0_i32 = arith.constant 0 : i32
    %c0_i32_0 = arith.constant 0 : i32
    %c0_i32_1 = arith.constant 0 : i32
    return %c0_i32, %c0_i32_0 : i32, i32
  }
  func.func @transform_4(%arg0: i32) -> (i32, i32, i32) {
    %c0_i32 = arith.constant 0 : i32
    %c0_i32_0 = arith.constant 0 : i32
    %c0_i32_1 = arith.constant 0 : i32
    %c0_i32_2 = arith.constant 0 : i32
    return %c0_i32, %c0_i32_0, %c0_i32_1 : i32, i32, i32
  }
  func.func @transform_5(%arg0: i32) -> (i32, i32, i32) {
    %c0_i32 = arith.constant 0 : i32
    %c0_i32_0 = arith.constant 0 : i32
    %c0_i32_1 = arith.constant 0 : i32
    %c0_i32_2 = arith.constant 0 : i32
    return %c0_i32, %c0_i32_0, %c0_i32_1 : i32, i32, i32
  }
  func.func @transform_6(%arg0: i32) -> (i32, i32, i32) {
    %c0_i32 = arith.constant 0 : i32
    %c0_i32_0 = arith.constant 0 : i32
    %c0_i32_1 = arith.constant 0 : i32
    %c0_i32_2 = arith.constant 0 : i32
    return %c0_i32, %c0_i32_0, %c0_i32_1 : i32, i32, i32
  }
  func.func @transform_7(%arg0: i32) -> (i32, i32, i32) {
    %c0_i32 = arith.constant 0 : i32
    %c0_i32_0 = arith.constant 0 : i32
    %c0_i32_1 = arith.constant 0 : i32
    %c0_i32_2 = arith.constant 0 : i32
    return %c0_i32, %c0_i32_0, %c0_i32_1 : i32, i32, i32
  }
  func.func @transform_8(%arg0: i32) -> (i32, i32) {
    %c0_i32 = arith.constant 0 : i32
    %c0_i32_0 = arith.constant 0 : i32
    %c0_i32_1 = arith.constant 0 : i32
    return %c0_i32, %c0_i32_0 : i32, i32
  }
  func.func @transform_9(%arg0: i32) -> (i32, i32, i32, i32) {
    %c0_i32 = arith.constant 0 : i32
    %c0_i32_0 = arith.constant 0 : i32
    %c0_i32_1 = arith.constant 0 : i32
    %c0_i32_2 = arith.constant 0 : i32
    %c0_i32_3 = arith.constant 0 : i32
    return %c0_i32, %c0_i32_0, %c0_i32_1, %c0_i32_2 : i32, i32, i32, i32
  }
  func.func @transform_10(%arg0: i32) -> (i32, i32, i32, i32) {
    %c0_i32 = arith.constant 0 : i32
    %c0_i32_0 = arith.constant 0 : i32
    %c0_i32_1 = arith.constant 0 : i32
    %c0_i32_2 = arith.constant 0 : i32
    %c0_i32_3 = arith.constant 0 : i32
    return %c0_i32, %c0_i32_0, %c0_i32_1, %c0_i32_2 : i32, i32, i32, i32
  }
  func.func @transform_11(%arg0: i32) -> (i32, i32, i32, i32) {
    %c0_i32 = arith.constant 0 : i32
    %c0_i32_0 = arith.constant 0 : i32
    %c0_i32_1 = arith.constant 0 : i32
    %c0_i32_2 = arith.constant 0 : i32
    %c0_i32_3 = arith.constant 0 : i32
    return %c0_i32, %c0_i32_0, %c0_i32_1, %c0_i32_2 : i32, i32, i32, i32
  }
  func.func @transform_12(%arg0: i32) -> (i32, i32, i32) {
    %c0_i32 = arith.constant 0 : i32
    %c0_i32_0 = arith.constant 0 : i32
    %c0_i32_1 = arith.constant 0 : i32
    %c0_i32_2 = arith.constant 0 : i32
    return %c0_i32, %c0_i32_0, %c0_i32_1 : i32, i32, i32
  }
  func.func @transform_13(%arg0: i32) -> (i32, i32, i32) {
    %c0_i32 = arith.constant 0 : i32
    %c0_i32_0 = arith.constant 0 : i32
    %c0_i32_1 = arith.constant 0 : i32
    %c0_i32_2 = arith.constant 0 : i32
    return %c0_i32, %c0_i32_0, %c0_i32_1 : i32, i32, i32
  }
  func.func @transform_14(%arg0: i32) -> (i32, i32) {
    %c0_i32 = arith.constant 0 : i32
    %c0_i32_0 = arith.constant 0 : i32
    %c0_i32_1 = arith.constant 0 : i32
    return %c0_i32, %c0_i32_0 : i32, i32
  }
  func.func @transform_15(%arg0: i32) -> (i32, i32) {
    %c0_i32 = arith.constant 0 : i32
    %c0_i32_0 = arith.constant 0 : i32
    %c0_i32_1 = arith.constant 0 : i32
    return %c0_i32, %c0_i32_0 : i32, i32
  }
  func.func @transform_16(%arg0: i32) -> (i32, i32) {
    %c0_i32 = arith.constant 0 : i32
    %c0_i32_0 = arith.constant 0 : i32
    %c0_i32_1 = arith.constant 0 : i32
    return %c0_i32, %c0_i32_0 : i32, i32
  }
  func.func @transform_17(%arg0: i32) -> (i32, i32, i32) {
    %c0_i32 = arith.constant 0 : i32
    %c0_i32_0 = arith.constant 0 : i32
    %c0_i32_1 = arith.constant 0 : i32
    return %arg0, %c0_i32, %c0_i32_0 : i32, i32, i32
  }
}

module attributes {stable_mosaic.version = 11 : i64} {
  func.func @_c2f_kernel(%arg0: i32, %arg1: memref<1x8x256xbf16, #tpu.memory_space<vmem>>, %arg2: memref<16x8xbf16, #tpu.memory_space<vmem>>, %arg3: memref<16x1xf32, #tpu.memory_space<vmem>>, %arg4: memref<16x1xf32, #tpu.memory_space<vmem>>, %arg5: memref<1x96x8xbf16, #tpu.memory_space<vmem>>, %arg6: memref<1x96x1xf32, #tpu.memory_space<vmem>>, %arg7: memref<1x8x32xbf16, #tpu.memory_space<vmem>>, %arg8: memref<1x8x1xf32, #tpu.memory_space<vmem>>, %arg9: memref<64x256xbf16, #tpu.memory_space<vmem>>, %arg10: memref<1x4x64x256xbf16, #tpu.memory_space<vmem>>, %arg11: memref<1x4x64x256xbf16, #tpu.memory_space<vmem>>, %arg12: memref<1x9x32x1xf32, #tpu.memory_space<vmem>>, %arg13: memref<1x32x1xf32, #tpu.memory_space<vmem>>, %arg14: memref<9x1x256xf32, #tpu.memory_space<vmem>>, %arg15: memref<16x24xbf16, #tpu.memory_space<vmem>>, %arg16: memref<16x1xf32, #tpu.memory_space<vmem>>, %arg17: memref<16x1xf32, #tpu.memory_space<vmem>>, %arg18: memref<1x16x256xbf16, #tpu.memory_space<vmem>>, %arg19: memref<32x256xf32, #tpu.memory_space<vmem>>) attributes {dimension_semantics = [#tpu.dimension_semantics<parallel>], iteration_bounds = array<i64: 2>, scalar_prefetch = 0 : i64, scratch_operands = 1 : i64, tpu.core_type = #tpu.core_type<tc>, window_params = [{transform_indices = @transform_0, window_bounds = array<i64: 1, 8, 256>}, {pipeline_mode = #tpu.pipeline_mode<synchronous>, transform_indices = @transform_1, window_bounds = array<i64: 16, 8>}, {pipeline_mode = #tpu.pipeline_mode<synchronous>, transform_indices = @transform_2, window_bounds = array<i64: 16, 1>}, {pipeline_mode = #tpu.pipeline_mode<synchronous>, transform_indices = @transform_3, window_bounds = array<i64: 16, 1>}, {pipeline_mode = #tpu.pipeline_mode<synchronous>, transform_indices = @transform_4, window_bounds = array<i64: 1, 96, 8>}, {pipeline_mode = #tpu.pipeline_mode<synchronous>, transform_indices = @transform_5, window_bounds = array<i64: 1, 96, 1>}, {pipeline_mode = #tpu.pipeline_mode<synchronous>, transform_indices = @transform_6, window_bounds = array<i64: 1, 8, 32>}, {pipeline_mode = #tpu.pipeline_mode<synchronous>, transform_indices = @transform_7, window_bounds = array<i64: 1, 8, 1>}, {pipeline_mode = #tpu.pipeline_mode<synchronous>, transform_indices = @transform_8, window_bounds = array<i64: 64, 256>}, {pipeline_mode = #tpu.pipeline_mode<synchronous>, transform_indices = @transform_9, window_bounds = array<i64: 1, 4, 64, 256>}, {pipeline_mode = #tpu.pipeline_mode<synchronous>, transform_indices = @transform_10, window_bounds = array<i64: 1, 4, 64, 256>}, {pipeline_mode = #tpu.pipeline_mode<synchronous>, transform_indices = @transform_11, window_bounds = array<i64: 1, 9, 32, 1>}, {pipeline_mode = #tpu.pipeline_mode<synchronous>, transform_indices = @transform_12, window_bounds = array<i64: 1, 32, 1>}, {pipeline_mode = #tpu.pipeline_mode<synchronous>, transform_indices = @transform_13, window_bounds = array<i64: 9, 1, 256>}, {pipeline_mode = #tpu.pipeline_mode<synchronous>, transform_indices = @transform_14, window_bounds = array<i64: 16, 24>}, {pipeline_mode = #tpu.pipeline_mode<synchronous>, transform_indices = @transform_15, window_bounds = array<i64: 16, 1>}, {pipeline_mode = #tpu.pipeline_mode<synchronous>, transform_indices = @transform_16, window_bounds = array<i64: 16, 1>}, {transform_indices = @transform_17, window_bounds = array<i64: 1, 16, 256>}]} {
    %c0 = arith.constant 0 : index
    %c0_0 = arith.constant 0 : index
    %c0_1 = arith.constant 0 : index
    %0 = vector.load %arg1[%c0, %c0_0, %c0_1] : memref<1x8x256xbf16, #tpu.memory_space<vmem>>, vector<1x8x256xbf16>
    %1 = vector.shape_cast %0 : vector<1x8x256xbf16> to vector<8x256xbf16>
    %c0_2 = arith.constant 0 : index
    %c0_3 = arith.constant 0 : index
    %2 = vector.load %arg2[%c0_2, %c0_3] : memref<16x8xbf16, #tpu.memory_space<vmem>>, vector<16x8xbf16>
    %cst = arith.constant dense<0.000000e+00> : vector<16x256xf32>
    %3 = tpu.matmul %2, %1, %cst {dimension_numbers = #tpu.dot_dimension_numbers<[1], [0], [0], [1], [0, 0, 1, 1], [], []>} : vector<16x8xbf16>, vector<8x256xbf16>, vector<16x256xf32> -> vector<16x256xf32>
    %c0_4 = arith.constant 0 : index
    %c0_5 = arith.constant 0 : index
    %4 = vector.load %arg3[%c0_4, %c0_5] : memref<16x1xf32, #tpu.memory_space<vmem>>, vector<16x1xf32>
    %5 = vector.broadcast %4 : vector<16x1xf32> to vector<16x256xf32>
    %6 = arith.mulf %3, %5 : vector<16x256xf32>
    %c0_6 = arith.constant 0 : index
    %c0_7 = arith.constant 0 : index
    %7 = vector.load %arg4[%c0_6, %c0_7] : memref<16x1xf32, #tpu.memory_space<vmem>>, vector<16x1xf32>
    %8 = vector.broadcast %7 : vector<16x1xf32> to vector<16x256xf32>
    %9 = arith.addf %6, %8 : vector<16x256xf32>
    %10 = arith.negf %9 : vector<16x256xf32>
    %11 = math.exp %10 : vector<16x256xf32>
    %cst_8 = arith.constant 1.000000e+00 : f32
    %12 = vector.broadcast %cst_8 : f32 to vector<16x256xf32>
    %13 = arith.addf %12, %11 : vector<16x256xf32>
    %14 = arith.divf %12, %13 : vector<16x256xf32>
    %15 = arith.mulf %9, %14 : vector<16x256xf32>
    %c0_9 = arith.constant 0 : index
    %c0_10 = arith.constant 0 : index
    %16 = vector.load %arg9[%c0_9, %c0_10] : memref<64x256xbf16, #tpu.memory_space<vmem>>, vector<64x256xbf16>
    %c0_11 = arith.constant 0 : index
    %c0_12 = arith.constant 0 : index
    %c0_13 = arith.constant 0 : index
    %17 = vector.load %arg14[%c0_11, %c0_12, %c0_13] : memref<9x1x256xf32, #tpu.memory_space<vmem>>, vector<9x1x256xf32>
    %18 = vector.extract_strided_slice %15 {offsets = [0, 0], sizes = [8, 256], strides = [1, 1]} : vector<16x256xf32> to vector<8x256xf32>
    %19 = vector.extract_strided_slice %15 {offsets = [8, 0], sizes = [8, 256], strides = [1, 1]} : vector<16x256xf32> to vector<8x256xf32>
    %20 = arith.truncf %19 : vector<8x256xf32> to vector<8x256xbf16>
    %c0_14 = arith.constant 0 : index
    %c0_15 = arith.constant 0 : index
    %c0_16 = arith.constant 0 : index
    %21 = vector.load %arg5[%c0_14, %c0_15, %c0_16] : memref<1x96x8xbf16, #tpu.memory_space<vmem>>, vector<1x96x8xbf16>
    %22 = vector.shape_cast %21 : vector<1x96x8xbf16> to vector<96x8xbf16>
    %cst_17 = arith.constant dense<0.000000e+00> : vector<96x256xf32>
    %23 = tpu.matmul %22, %20, %cst_17 {dimension_numbers = #tpu.dot_dimension_numbers<[1], [0], [0], [1], [0, 0, 1, 1], [], []>} : vector<96x8xbf16>, vector<8x256xbf16>, vector<96x256xf32> -> vector<96x256xf32>
    %c0_18 = arith.constant 0 : index
    %c0_19 = arith.constant 0 : index
    %c0_20 = arith.constant 0 : index
    %24 = vector.load %arg6[%c0_18, %c0_19, %c0_20] : memref<1x96x1xf32, #tpu.memory_space<vmem>>, vector<1x96x1xf32>
    %25 = vector.shape_cast %24 : vector<1x96x1xf32> to vector<96x1xf32>
    %26 = vector.broadcast %25 : vector<96x1xf32> to vector<96x256xf32>
    %27 = arith.addf %23, %26 : vector<96x256xf32>
    %28 = vector.extract_strided_slice %27 {offsets = [0, 0], sizes = [32, 256], strides = [1, 1]} : vector<96x256xf32> to vector<32x256xf32>
    %29 = vector.extract_strided_slice %27 {offsets = [32, 0], sizes = [32, 256], strides = [1, 1]} : vector<96x256xf32> to vector<32x256xf32>
    %30 = vector.extract_strided_slice %27 {offsets = [64, 0], sizes = [32, 256], strides = [1, 1]} : vector<96x256xf32> to vector<32x256xf32>
    %31 = arith.truncf %28 : vector<32x256xf32> to vector<32x256xbf16>
    %32 = arith.truncf %29 : vector<32x256xf32> to vector<32x256xbf16>
    %33 = arith.truncf %30 : vector<32x256xf32> to vector<32x256xbf16>
    %cst_21 = arith.constant dense<0.000000e+00> : vector<64x32xf32>
    %34 = tpu.matmul %16, %31, %cst_21 {dimension_numbers = #tpu.dot_dimension_numbers<[1], [1], [0], [0], [0, 0, 1, 0], [], []>} : vector<64x256xbf16>, vector<32x256xbf16>, vector<64x32xf32> -> vector<64x32xf32>
    %cst_22 = arith.constant 0.707106769 : f32
    %35 = vector.broadcast %cst_22 : f32 to vector<64x32xf32>
    %36 = arith.mulf %34, %35 : vector<64x32xf32>
    %37 = arith.truncf %36 : vector<64x32xf32> to vector<64x32xbf16>
    %38 = vector.extract_strided_slice %37 {offsets = [0, 0], sizes = [64, 8], strides = [1, 1]} : vector<64x32xbf16> to vector<64x8xbf16>
    %39 = vector.extract_strided_slice %31 {offsets = [0, 0], sizes = [8, 256], strides = [1, 1]} : vector<32x256xbf16> to vector<8x256xbf16>
    %40 = vector.extract_strided_slice %32 {offsets = [0, 0], sizes = [8, 256], strides = [1, 1]} : vector<32x256xbf16> to vector<8x256xbf16>
    %41 = vector.extract_strided_slice %33 {offsets = [0, 0], sizes = [8, 256], strides = [1, 1]} : vector<32x256xbf16> to vector<8x256xbf16>
    %cst_23 = arith.constant dense<0.000000e+00> : vector<64x256xf32>
    %42 = tpu.matmul %38, %40, %cst_23 {dimension_numbers = #tpu.dot_dimension_numbers<[1], [0], [0], [1], [0, 0, 1, 1], [], []>} : vector<64x8xbf16>, vector<8x256xbf16>, vector<64x256xf32> -> vector<64x256xf32>
    %c0_24 = arith.constant 0 : index
    %c0_25 = arith.constant 0 : index
    %c0_26 = arith.constant 0 : index
    %c0_27 = arith.constant 0 : index
    %43 = vector.load %arg10[%c0_24, %c0_25, %c0_26, %c0_27] : memref<1x4x64x256xbf16, #tpu.memory_space<vmem>>, vector<1x1x64x256xbf16>
    %44 = vector.shape_cast %43 : vector<1x1x64x256xbf16> to vector<64x256xbf16>
    %45 = arith.extf %44 : vector<64x256xbf16> to vector<64x256xf32>
    %46 = arith.addf %42, %45 : vector<64x256xf32>
    %cst_28 = arith.constant dense<0xFF800000> : vector<64xf32>
    %47 = vector.multi_reduction <maximumf>, %46, %cst_28 [1] : vector<64x256xf32> to vector<64xf32>
    %48 = vector.shape_cast %47 : vector<64xf32> to vector<64x1xf32>
    %49 = vector.broadcast %48 : vector<64x1xf32> to vector<64x256xf32>
    %50 = arith.subf %46, %49 : vector<64x256xf32>
    %51 = math.exp %50 : vector<64x256xf32>
    %cst_29 = arith.constant dense<0.000000e+00> : vector<64xf32>
    %52 = vector.multi_reduction <add>, %51, %cst_29 [1] : vector<64x256xf32> to vector<64xf32>
    %53 = vector.shape_cast %52 : vector<64xf32> to vector<64x1xf32>
    %54 = tpu.reciprocal %53 {approx = true} : vector<64x1xf32> -> vector<64x1xf32>
    %55 = vector.broadcast %54 : vector<64x1xf32> to vector<64x256xf32>
    %56 = arith.mulf %51, %55 : vector<64x256xf32>
    %57 = arith.truncf %56 : vector<64x256xf32> to vector<64x256xbf16>
    %cst_30 = arith.constant dense<0.000000e+00> : vector<8x64xf32>
    %58 = tpu.matmul %41, %57, %cst_30 {dimension_numbers = #tpu.dot_dimension_numbers<[1], [1], [0], [0], [0, 0, 1, 0], [], []>} : vector<8x256xbf16>, vector<64x256xbf16>, vector<8x64xf32> -> vector<8x64xf32>
    %cst_31 = arith.constant dense<0.000000e+00> : vector<64x256xf32>
    %59 = tpu.matmul %38, %39, %cst_31 {dimension_numbers = #tpu.dot_dimension_numbers<[1], [0], [0], [1], [0, 0, 1, 1], [], []>} : vector<64x8xbf16>, vector<8x256xbf16>, vector<64x256xf32> -> vector<64x256xf32>
    %c0_32 = arith.constant 0 : index
    %c0_33 = arith.constant 0 : index
    %c0_34 = arith.constant 0 : index
    %c0_35 = arith.constant 0 : index
    %60 = vector.load %arg11[%c0_32, %c0_33, %c0_34, %c0_35] : memref<1x4x64x256xbf16, #tpu.memory_space<vmem>>, vector<1x1x64x256xbf16>
    %61 = vector.shape_cast %60 : vector<1x1x64x256xbf16> to vector<64x256xbf16>
    %62 = arith.extf %61 : vector<64x256xbf16> to vector<64x256xf32>
    %63 = arith.addf %59, %62 : vector<64x256xf32>
    %cst_36 = arith.constant dense<0xFF800000> : vector<256xf32>
    %64 = vector.multi_reduction <maximumf>, %63, %cst_36 [0] : vector<64x256xf32> to vector<256xf32>
    %65 = vector.shape_cast %64 : vector<256xf32> to vector<1x256xf32>
    %66 = vector.broadcast %65 : vector<1x256xf32> to vector<64x256xf32>
    %67 = arith.subf %63, %66 : vector<64x256xf32>
    %68 = math.exp %67 : vector<64x256xf32>
    %cst_37 = arith.constant dense<0.000000e+00> : vector<256xf32>
    %69 = vector.multi_reduction <add>, %68, %cst_37 [0] : vector<64x256xf32> to vector<256xf32>
    %70 = vector.shape_cast %69 : vector<256xf32> to vector<1x256xf32>
    %71 = tpu.reciprocal %70 {approx = true} : vector<1x256xf32> -> vector<1x256xf32>
    %72 = vector.broadcast %71 : vector<1x256xf32> to vector<64x256xf32>
    %73 = arith.mulf %68, %72 : vector<64x256xf32>
    %74 = arith.truncf %58 : vector<8x64xf32> to vector<8x64xbf16>
    %75 = arith.truncf %73 : vector<64x256xf32> to vector<64x256xbf16>
    %cst_38 = arith.constant dense<0.000000e+00> : vector<8x256xf32>
    %76 = tpu.matmul %74, %75, %cst_38 {dimension_numbers = #tpu.dot_dimension_numbers<[1], [0], [0], [1], [0, 0, 1, 1], [], []>} : vector<8x64xbf16>, vector<64x256xbf16>, vector<8x256xf32> -> vector<8x256xf32>
    %c0_39 = arith.constant 0 : index
    %c0_40 = arith.constant 0 : index
    %77 = vector.load %arg19[%c0_39, %c0_40] : memref<32x256xf32, #tpu.memory_space<vmem>>, vector<8x256xf32>
    tpu.vector_store %arg19[%c0_39, %c0_40], %76 {strides = array<i32>} : memref<32x256xf32, #tpu.memory_space<vmem>>, vector<8x256xf32>,
    %78 = vector.extract_strided_slice %37 {offsets = [0, 8], sizes = [64, 8], strides = [1, 1]} : vector<64x32xbf16> to vector<64x8xbf16>
    %79 = vector.extract_strided_slice %31 {offsets = [8, 0], sizes = [8, 256], strides = [1, 1]} : vector<32x256xbf16> to vector<8x256xbf16>
    %80 = vector.extract_strided_slice %32 {offsets = [8, 0], sizes = [8, 256], strides = [1, 1]} : vector<32x256xbf16> to vector<8x256xbf16>
    %81 = vector.extract_strided_slice %33 {offsets = [8, 0], sizes = [8, 256], strides = [1, 1]} : vector<32x256xbf16> to vector<8x256xbf16>
    %cst_41 = arith.constant dense<0.000000e+00> : vector<64x256xf32>
    %82 = tpu.matmul %78, %80, %cst_41 {dimension_numbers = #tpu.dot_dimension_numbers<[1], [0], [0], [1], [0, 0, 1, 1], [], []>} : vector<64x8xbf16>, vector<8x256xbf16>, vector<64x256xf32> -> vector<64x256xf32>
    %c0_42 = arith.constant 0 : index
    %c1 = arith.constant 1 : index
    %c0_43 = arith.constant 0 : index
    %c0_44 = arith.constant 0 : index
    %83 = vector.load %arg10[%c0_42, %c1, %c0_43, %c0_44] : memref<1x4x64x256xbf16, #tpu.memory_space<vmem>>, vector<1x1x64x256xbf16>
    %84 = vector.shape_cast %83 : vector<1x1x64x256xbf16> to vector<64x256xbf16>
    %85 = arith.extf %84 : vector<64x256xbf16> to vector<64x256xf32>
    %86 = arith.addf %82, %85 : vector<64x256xf32>
    %cst_45 = arith.constant dense<0xFF800000> : vector<64xf32>
    %87 = vector.multi_reduction <maximumf>, %86, %cst_45 [1] : vector<64x256xf32> to vector<64xf32>
    %88 = vector.shape_cast %87 : vector<64xf32> to vector<64x1xf32>
    %89 = vector.broadcast %88 : vector<64x1xf32> to vector<64x256xf32>
    %90 = arith.subf %86, %89 : vector<64x256xf32>
    %91 = math.exp %90 : vector<64x256xf32>
    %cst_46 = arith.constant dense<0.000000e+00> : vector<64xf32>
    %92 = vector.multi_reduction <add>, %91, %cst_46 [1] : vector<64x256xf32> to vector<64xf32>
    %93 = vector.shape_cast %92 : vector<64xf32> to vector<64x1xf32>
    %94 = tpu.reciprocal %93 {approx = true} : vector<64x1xf32> -> vector<64x1xf32>
    %95 = vector.broadcast %94 : vector<64x1xf32> to vector<64x256xf32>
    %96 = arith.mulf %91, %95 : vector<64x256xf32>
    %97 = arith.truncf %96 : vector<64x256xf32> to vector<64x256xbf16>
    %cst_47 = arith.constant dense<0.000000e+00> : vector<8x64xf32>
    %98 = tpu.matmul %81, %97, %cst_47 {dimension_numbers = #tpu.dot_dimension_numbers<[1], [1], [0], [0], [0, 0, 1, 0], [], []>} : vector<8x256xbf16>, vector<64x256xbf16>, vector<8x64xf32> -> vector<8x64xf32>
    %cst_48 = arith.constant dense<0.000000e+00> : vector<64x256xf32>
    %99 = tpu.matmul %78, %79, %cst_48 {dimension_numbers = #tpu.dot_dimension_numbers<[1], [0], [0], [1], [0, 0, 1, 1], [], []>} : vector<64x8xbf16>, vector<8x256xbf16>, vector<64x256xf32> -> vector<64x256xf32>
    %c0_49 = arith.constant 0 : index
    %c1_50 = arith.constant 1 : index
    %c0_51 = arith.constant 0 : index
    %c0_52 = arith.constant 0 : index
    %100 = vector.load %arg11[%c0_49, %c1_50, %c0_51, %c0_52] : memref<1x4x64x256xbf16, #tpu.memory_space<vmem>>, vector<1x1x64x256xbf16>
    %101 = vector.shape_cast %100 : vector<1x1x64x256xbf16> to vector<64x256xbf16>
    %102 = arith.extf %101 : vector<64x256xbf16> to vector<64x256xf32>
    %103 = arith.addf %99, %102 : vector<64x256xf32>
    %cst_53 = arith.constant dense<0xFF800000> : vector<256xf32>
    %104 = vector.multi_reduction <maximumf>, %103, %cst_53 [0] : vector<64x256xf32> to vector<256xf32>
    %105 = vector.shape_cast %104 : vector<256xf32> to vector<1x256xf32>
    %106 = vector.broadcast %105 : vector<1x256xf32> to vector<64x256xf32>
    %107 = arith.subf %103, %106 : vector<64x256xf32>
    %108 = math.exp %107 : vector<64x256xf32>
    %cst_54 = arith.constant dense<0.000000e+00> : vector<256xf32>
    %109 = vector.multi_reduction <add>, %108, %cst_54 [0] : vector<64x256xf32> to vector<256xf32>
    %110 = vector.shape_cast %109 : vector<256xf32> to vector<1x256xf32>
    %111 = tpu.reciprocal %110 {approx = true} : vector<1x256xf32> -> vector<1x256xf32>
    %112 = vector.broadcast %111 : vector<1x256xf32> to vector<64x256xf32>
    %113 = arith.mulf %108, %112 : vector<64x256xf32>
    %114 = arith.truncf %98 : vector<8x64xf32> to vector<8x64xbf16>
    %115 = arith.truncf %113 : vector<64x256xf32> to vector<64x256xbf16>
    %cst_55 = arith.constant dense<0.000000e+00> : vector<8x256xf32>
    %116 = tpu.matmul %114, %115, %cst_55 {dimension_numbers = #tpu.dot_dimension_numbers<[1], [0], [0], [1], [0, 0, 1, 1], [], []>} : vector<8x64xbf16>, vector<64x256xbf16>, vector<8x256xf32> -> vector<8x256xf32>
    %c8 = arith.constant 8 : index
    %c0_56 = arith.constant 0 : index
    %117 = vector.load %arg19[%c8, %c0_56] : memref<32x256xf32, #tpu.memory_space<vmem>>, vector<8x256xf32>
    tpu.vector_store %arg19[%c8, %c0_56], %116 {strides = array<i32>} : memref<32x256xf32, #tpu.memory_space<vmem>>, vector<8x256xf32>,
    %118 = vector.extract_strided_slice %37 {offsets = [0, 16], sizes = [64, 8], strides = [1, 1]} : vector<64x32xbf16> to vector<64x8xbf16>
    %119 = vector.extract_strided_slice %31 {offsets = [16, 0], sizes = [8, 256], strides = [1, 1]} : vector<32x256xbf16> to vector<8x256xbf16>
    %120 = vector.extract_strided_slice %32 {offsets = [16, 0], sizes = [8, 256], strides = [1, 1]} : vector<32x256xbf16> to vector<8x256xbf16>
    %121 = vector.extract_strided_slice %33 {offsets = [16, 0], sizes = [8, 256], strides = [1, 1]} : vector<32x256xbf16> to vector<8x256xbf16>
    %cst_57 = arith.constant dense<0.000000e+00> : vector<64x256xf32>
    %122 = tpu.matmul %118, %120, %cst_57 {dimension_numbers = #tpu.dot_dimension_numbers<[1], [0], [0], [1], [0, 0, 1, 1], [], []>} : vector<64x8xbf16>, vector<8x256xbf16>, vector<64x256xf32> -> vector<64x256xf32>
    %c0_58 = arith.constant 0 : index
    %c2 = arith.constant 2 : index
    %c0_59 = arith.constant 0 : index
    %c0_60 = arith.constant 0 : index
    %123 = vector.load %arg10[%c0_58, %c2, %c0_59, %c0_60] : memref<1x4x64x256xbf16, #tpu.memory_space<vmem>>, vector<1x1x64x256xbf16>
    %124 = vector.shape_cast %123 : vector<1x1x64x256xbf16> to vector<64x256xbf16>
    %125 = arith.extf %124 : vector<64x256xbf16> to vector<64x256xf32>
    %126 = arith.addf %122, %125 : vector<64x256xf32>
    %cst_61 = arith.constant dense<0xFF800000> : vector<64xf32>
    %127 = vector.multi_reduction <maximumf>, %126, %cst_61 [1] : vector<64x256xf32> to vector<64xf32>
    %128 = vector.shape_cast %127 : vector<64xf32> to vector<64x1xf32>
    %129 = vector.broadcast %128 : vector<64x1xf32> to vector<64x256xf32>
    %130 = arith.subf %126, %129 : vector<64x256xf32>
    %131 = math.exp %130 : vector<64x256xf32>
    %cst_62 = arith.constant dense<0.000000e+00> : vector<64xf32>
    %132 = vector.multi_reduction <add>, %131, %cst_62 [1] : vector<64x256xf32> to vector<64xf32>
    %133 = vector.shape_cast %132 : vector<64xf32> to vector<64x1xf32>
    %134 = tpu.reciprocal %133 {approx = true} : vector<64x1xf32> -> vector<64x1xf32>
    %135 = vector.broadcast %134 : vector<64x1xf32> to vector<64x256xf32>
    %136 = arith.mulf %131, %135 : vector<64x256xf32>
    %137 = arith.truncf %136 : vector<64x256xf32> to vector<64x256xbf16>
    %cst_63 = arith.constant dense<0.000000e+00> : vector<8x64xf32>
    %138 = tpu.matmul %121, %137, %cst_63 {dimension_numbers = #tpu.dot_dimension_numbers<[1], [1], [0], [0], [0, 0, 1, 0], [], []>} : vector<8x256xbf16>, vector<64x256xbf16>, vector<8x64xf32> -> vector<8x64xf32>
    %cst_64 = arith.constant dense<0.000000e+00> : vector<64x256xf32>
    %139 = tpu.matmul %118, %119, %cst_64 {dimension_numbers = #tpu.dot_dimension_numbers<[1], [0], [0], [1], [0, 0, 1, 1], [], []>} : vector<64x8xbf16>, vector<8x256xbf16>, vector<64x256xf32> -> vector<64x256xf32>
    %c0_65 = arith.constant 0 : index
    %c2_66 = arith.constant 2 : index
    %c0_67 = arith.constant 0 : index
    %c0_68 = arith.constant 0 : index
    %140 = vector.load %arg11[%c0_65, %c2_66, %c0_67, %c0_68] : memref<1x4x64x256xbf16, #tpu.memory_space<vmem>>, vector<1x1x64x256xbf16>
    %141 = vector.shape_cast %140 : vector<1x1x64x256xbf16> to vector<64x256xbf16>
    %142 = arith.extf %141 : vector<64x256xbf16> to vector<64x256xf32>
    %143 = arith.addf %139, %142 : vector<64x256xf32>
    %cst_69 = arith.constant dense<0xFF800000> : vector<256xf32>
    %144 = vector.multi_reduction <maximumf>, %143, %cst_69 [0] : vector<64x256xf32> to vector<256xf32>
    %145 = vector.shape_cast %144 : vector<256xf32> to vector<1x256xf32>
    %146 = vector.broadcast %145 : vector<1x256xf32> to vector<64x256xf32>
    %147 = arith.subf %143, %146 : vector<64x256xf32>
    %148 = math.exp %147 : vector<64x256xf32>
    %cst_70 = arith.constant dense<0.000000e+00> : vector<256xf32>
    %149 = vector.multi_reduction <add>, %148, %cst_70 [0] : vector<64x256xf32> to vector<256xf32>
    %150 = vector.shape_cast %149 : vector<256xf32> to vector<1x256xf32>
    %151 = tpu.reciprocal %150 {approx = true} : vector<1x256xf32> -> vector<1x256xf32>
    %152 = vector.broadcast %151 : vector<1x256xf32> to vector<64x256xf32>
    %153 = arith.mulf %148, %152 : vector<64x256xf32>
    %154 = arith.truncf %138 : vector<8x64xf32> to vector<8x64xbf16>
    %155 = arith.truncf %153 : vector<64x256xf32> to vector<64x256xbf16>
    %cst_71 = arith.constant dense<0.000000e+00> : vector<8x256xf32>
    %156 = tpu.matmul %154, %155, %cst_71 {dimension_numbers = #tpu.dot_dimension_numbers<[1], [0], [0], [1], [0, 0, 1, 1], [], []>} : vector<8x64xbf16>, vector<64x256xbf16>, vector<8x256xf32> -> vector<8x256xf32>
    %c16 = arith.constant 16 : index
    %c0_72 = arith.constant 0 : index
    %157 = vector.load %arg19[%c16, %c0_72] : memref<32x256xf32, #tpu.memory_space<vmem>>, vector<8x256xf32>
    tpu.vector_store %arg19[%c16, %c0_72], %156 {strides = array<i32>} : memref<32x256xf32, #tpu.memory_space<vmem>>, vector<8x256xf32>,
    %158 = vector.extract_strided_slice %37 {offsets = [0, 24], sizes = [64, 8], strides = [1, 1]} : vector<64x32xbf16> to vector<64x8xbf16>
    %159 = vector.extract_strided_slice %31 {offsets = [24, 0], sizes = [8, 256], strides = [1, 1]} : vector<32x256xbf16> to vector<8x256xbf16>
    %160 = vector.extract_strided_slice %32 {offsets = [24, 0], sizes = [8, 256], strides = [1, 1]} : vector<32x256xbf16> to vector<8x256xbf16>
    %161 = vector.extract_strided_slice %33 {offsets = [24, 0], sizes = [8, 256], strides = [1, 1]} : vector<32x256xbf16> to vector<8x256xbf16>
    %cst_73 = arith.constant dense<0.000000e+00> : vector<64x256xf32>
    %162 = tpu.matmul %158, %160, %cst_73 {dimension_numbers = #tpu.dot_dimension_numbers<[1], [0], [0], [1], [0, 0, 1, 1], [], []>} : vector<64x8xbf16>, vector<8x256xbf16>, vector<64x256xf32> -> vector<64x256xf32>
    %c0_74 = arith.constant 0 : index
    %c3 = arith.constant 3 : index
    %c0_75 = arith.constant 0 : index
    %c0_76 = arith.constant 0 : index
    %163 = vector.load %arg10[%c0_74, %c3, %c0_75, %c0_76] : memref<1x4x64x256xbf16, #tpu.memory_space<vmem>>, vector<1x1x64x256xbf16>
    %164 = vector.shape_cast %163 : vector<1x1x64x256xbf16> to vector<64x256xbf16>
    %165 = arith.extf %164 : vector<64x256xbf16> to vector<64x256xf32>
    %166 = arith.addf %162, %165 : vector<64x256xf32>
    %cst_77 = arith.constant dense<0xFF800000> : vector<64xf32>
    %167 = vector.multi_reduction <maximumf>, %166, %cst_77 [1] : vector<64x256xf32> to vector<64xf32>
    %168 = vector.shape_cast %167 : vector<64xf32> to vector<64x1xf32>
    %169 = vector.broadcast %168 : vector<64x1xf32> to vector<64x256xf32>
    %170 = arith.subf %166, %169 : vector<64x256xf32>
    %171 = math.exp %170 : vector<64x256xf32>
    %cst_78 = arith.constant dense<0.000000e+00> : vector<64xf32>
    %172 = vector.multi_reduction <add>, %171, %cst_78 [1] : vector<64x256xf32> to vector<64xf32>
    %173 = vector.shape_cast %172 : vector<64xf32> to vector<64x1xf32>
    %174 = tpu.reciprocal %173 {approx = true} : vector<64x1xf32> -> vector<64x1xf32>
    %175 = vector.broadcast %174 : vector<64x1xf32> to vector<64x256xf32>
    %176 = arith.mulf %171, %175 : vector<64x256xf32>
    %177 = arith.truncf %176 : vector<64x256xf32> to vector<64x256xbf16>
    %cst_79 = arith.constant dense<0.000000e+00> : vector<8x64xf32>
    %178 = tpu.matmul %161, %177, %cst_79 {dimension_numbers = #tpu.dot_dimension_numbers<[1], [1], [0], [0], [0, 0, 1, 0], [], []>} : vector<8x256xbf16>, vector<64x256xbf16>, vector<8x64xf32> -> vector<8x64xf32>
    %cst_80 = arith.constant dense<0.000000e+00> : vector<64x256xf32>
    %179 = tpu.matmul %158, %159, %cst_80 {dimension_numbers = #tpu.dot_dimension_numbers<[1], [0], [0], [1], [0, 0, 1, 1], [], []>} : vector<64x8xbf16>, vector<8x256xbf16>, vector<64x256xf32> -> vector<64x256xf32>
    %c0_81 = arith.constant 0 : index
    %c3_82 = arith.constant 3 : index
    %c0_83 = arith.constant 0 : index
    %c0_84 = arith.constant 0 : index
    %180 = vector.load %arg11[%c0_81, %c3_82, %c0_83, %c0_84] : memref<1x4x64x256xbf16, #tpu.memory_space<vmem>>, vector<1x1x64x256xbf16>
    %181 = vector.shape_cast %180 : vector<1x1x64x256xbf16> to vector<64x256xbf16>
    %182 = arith.extf %181 : vector<64x256xbf16> to vector<64x256xf32>
    %183 = arith.addf %179, %182 : vector<64x256xf32>
    %cst_85 = arith.constant dense<0xFF800000> : vector<256xf32>
    %184 = vector.multi_reduction <maximumf>, %183, %cst_85 [0] : vector<64x256xf32> to vector<256xf32>
    %185 = vector.shape_cast %184 : vector<256xf32> to vector<1x256xf32>
    %186 = vector.broadcast %185 : vector<1x256xf32> to vector<64x256xf32>
    %187 = arith.subf %183, %186 : vector<64x256xf32>
    %188 = math.exp %187 : vector<64x256xf32>
    %cst_86 = arith.constant dense<0.000000e+00> : vector<256xf32>
    %189 = vector.multi_reduction <add>, %188, %cst_86 [0] : vector<64x256xf32> to vector<256xf32>
    %190 = vector.shape_cast %189 : vector<256xf32> to vector<1x256xf32>
    %191 = tpu.reciprocal %190 {approx = true} : vector<1x256xf32> -> vector<1x256xf32>
    %192 = vector.broadcast %191 : vector<1x256xf32> to vector<64x256xf32>
    %193 = arith.mulf %188, %192 : vector<64x256xf32>
    %194 = arith.truncf %178 : vector<8x64xf32> to vector<8x64xbf16>
    %195 = arith.truncf %193 : vector<64x256xf32> to vector<64x256xbf16>
    %cst_87 = arith.constant dense<0.000000e+00> : vector<8x256xf32>
    %196 = tpu.matmul %194, %195, %cst_87 {dimension_numbers = #tpu.dot_dimension_numbers<[1], [0], [0], [1], [0, 0, 1, 1], [], []>} : vector<8x64xbf16>, vector<64x256xbf16>, vector<8x256xf32> -> vector<8x256xf32>
    %c24 = arith.constant 24 : index
    %c0_88 = arith.constant 0 : index
    %197 = vector.load %arg19[%c24, %c0_88] : memref<32x256xf32, #tpu.memory_space<vmem>>, vector<8x256xf32>
    tpu.vector_store %arg19[%c24, %c0_88], %196 {strides = array<i32>} : memref<32x256xf32, #tpu.memory_space<vmem>>, vector<8x256xf32>,
    %c0_89 = arith.constant 0 : index
    %c0_90 = arith.constant 0 : index
    %c0_91 = arith.constant 0 : index
    %c0_92 = arith.constant 0 : index
    %198 = vector.load %arg12[%c0_89, %c0_90, %c0_91, %c0_92] : memref<1x9x32x1xf32, #tpu.memory_space<vmem>>, vector<1x9x32x1xf32>
    %199 = vector.shape_cast %198 : vector<1x9x32x1xf32> to vector<9x32x1xf32>
    %200 = vector.extract_strided_slice %199 {offsets = [4, 0, 0], sizes = [1, 32, 1], strides = [1, 1, 1]} : vector<9x32x1xf32> to vector<1x32x1xf32>
    %201 = vector.shape_cast %200 : vector<1x32x1xf32> to vector<32x1xf32>
    %202 = vector.broadcast %201 : vector<32x1xf32> to vector<32x256xf32>
    %203 = arith.mulf %30, %202 : vector<32x256xf32>
    %c0_93 = arith.constant 0 : index
    %c0_94 = arith.constant 0 : index
    %c0_95 = arith.constant 0 : index
    %204 = vector.load %arg13[%c0_93, %c0_94, %c0_95] : memref<1x32x1xf32, #tpu.memory_space<vmem>>, vector<1x32x1xf32>
    %205 = vector.shape_cast %204 : vector<1x32x1xf32> to vector<32x1xf32>
    %206 = vector.broadcast %205 : vector<32x1xf32> to vector<32x256xf32>
    %207 = arith.addf %203, %206 : vector<32x256xf32>
    %c17_i32 = arith.constant 17 : i32
    %208 = tpu.dynamic_rotate %30 by %c17_i32 dim 1 : vector<32x256xf32>, i32 -> vector<32x256xf32>
    %209 = vector.extract_strided_slice %17 {offsets = [0, 0, 0], sizes = [1, 1, 256], strides = [1, 1, 1]} : vector<9x1x256xf32> to vector<1x1x256xf32>
    %210 = vector.shape_cast %209 : vector<1x1x256xf32> to vector<1x256xf32>
    %211 = vector.broadcast %210 : vector<1x256xf32> to vector<32x256xf32>
    %212 = arith.mulf %208, %211 : vector<32x256xf32>
    %213 = vector.extract_strided_slice %199 {offsets = [0, 0, 0], sizes = [1, 32, 1], strides = [1, 1, 1]} : vector<9x32x1xf32> to vector<1x32x1xf32>
    %214 = vector.shape_cast %213 : vector<1x32x1xf32> to vector<32x1xf32>
    %215 = vector.broadcast %214 : vector<32x1xf32> to vector<32x256xf32>
    %216 = arith.mulf %212, %215 : vector<32x256xf32>
    %217 = arith.addf %207, %216 : vector<32x256xf32>
    %c16_i32 = arith.constant 16 : i32
    %218 = tpu.dynamic_rotate %30 by %c16_i32 dim 1 : vector<32x256xf32>, i32 -> vector<32x256xf32>
    %219 = vector.extract_strided_slice %17 {offsets = [1, 0, 0], sizes = [1, 1, 256], strides = [1, 1, 1]} : vector<9x1x256xf32> to vector<1x1x256xf32>
    %220 = vector.shape_cast %219 : vector<1x1x256xf32> to vector<1x256xf32>
    %221 = vector.broadcast %220 : vector<1x256xf32> to vector<32x256xf32>
    %222 = arith.mulf %218, %221 : vector<32x256xf32>
    %223 = vector.extract_strided_slice %199 {offsets = [1, 0, 0], sizes = [1, 32, 1], strides = [1, 1, 1]} : vector<9x32x1xf32> to vector<1x32x1xf32>
    %224 = vector.shape_cast %223 : vector<1x32x1xf32> to vector<32x1xf32>
    %225 = vector.broadcast %224 : vector<32x1xf32> to vector<32x256xf32>
    %226 = arith.mulf %222, %225 : vector<32x256xf32>
    %227 = arith.addf %217, %226 : vector<32x256xf32>
    %c15_i32 = arith.constant 15 : i32
    %228 = tpu.dynamic_rotate %30 by %c15_i32 dim 1 : vector<32x256xf32>, i32 -> vector<32x256xf32>
    %229 = vector.extract_strided_slice %17 {offsets = [2, 0, 0], sizes = [1, 1, 256], strides = [1, 1, 1]} : vector<9x1x256xf32> to vector<1x1x256xf32>
    %230 = vector.shape_cast %229 : vector<1x1x256xf32> to vector<1x256xf32>
    %231 = vector.broadcast %230 : vector<1x256xf32> to vector<32x256xf32>
    %232 = arith.mulf %228, %231 : vector<32x256xf32>
    %233 = vector.extract_strided_slice %199 {offsets = [2, 0, 0], sizes = [1, 32, 1], strides = [1, 1, 1]} : vector<9x32x1xf32> to vector<1x32x1xf32>
    %234 = vector.shape_cast %233 : vector<1x32x1xf32> to vector<32x1xf32>
    %235 = vector.broadcast %234 : vector<32x1xf32> to vector<32x256xf32>
    %236 = arith.mulf %232, %235 : vector<32x256xf32>
    %237 = arith.addf %227, %236 : vector<32x256xf32>
    %c1_i32 = arith.constant 1 : i32
    %238 = tpu.dynamic_rotate %30 by %c1_i32 dim 1 : vector<32x256xf32>, i32 -> vector<32x256xf32>
    %239 = vector.extract_strided_slice %17 {offsets = [3, 0, 0], sizes = [1, 1, 256], strides = [1, 1, 1]} : vector<9x1x256xf32> to vector<1x1x256xf32>
    %240 = vector.shape_cast %239 : vector<1x1x256xf32> to vector<1x256xf32>
    %241 = vector.broadcast %240 : vector<1x256xf32> to vector<32x256xf32>
    %242 = arith.mulf %238, %241 : vector<32x256xf32>
    %243 = vector.extract_strided_slice %199 {offsets = [3, 0, 0], sizes = [1, 32, 1], strides = [1, 1, 1]} : vector<9x32x1xf32> to vector<1x32x1xf32>
    %244 = vector.shape_cast %243 : vector<1x32x1xf32> to vector<32x1xf32>
    %245 = vector.broadcast %244 : vector<32x1xf32> to vector<32x256xf32>
    %246 = arith.mulf %242, %245 : vector<32x256xf32>
    %247 = arith.addf %237, %246 : vector<32x256xf32>
    %c255_i32 = arith.constant 255 : i32
    %248 = tpu.dynamic_rotate %30 by %c255_i32 dim 1 : vector<32x256xf32>, i32 -> vector<32x256xf32>
    %249 = vector.extract_strided_slice %17 {offsets = [5, 0, 0], sizes = [1, 1, 256], strides = [1, 1, 1]} : vector<9x1x256xf32> to vector<1x1x256xf32>
    %250 = vector.shape_cast %249 : vector<1x1x256xf32> to vector<1x256xf32>
    %251 = vector.broadcast %250 : vector<1x256xf32> to vector<32x256xf32>
    %252 = arith.mulf %248, %251 : vector<32x256xf32>
    %253 = vector.extract_strided_slice %199 {offsets = [5, 0, 0], sizes = [1, 32, 1], strides = [1, 1, 1]} : vector<9x32x1xf32> to vector<1x32x1xf32>
    %254 = vector.shape_cast %253 : vector<1x32x1xf32> to vector<32x1xf32>
    %255 = vector.broadcast %254 : vector<32x1xf32> to vector<32x256xf32>
    %256 = arith.mulf %252, %255 : vector<32x256xf32>
    %257 = arith.addf %247, %256 : vector<32x256xf32>
    %c241_i32 = arith.constant 241 : i32
    %258 = tpu.dynamic_rotate %30 by %c241_i32 dim 1 : vector<32x256xf32>, i32 -> vector<32x256xf32>
    %259 = vector.extract_strided_slice %17 {offsets = [6, 0, 0], sizes = [1, 1, 256], strides = [1, 1, 1]} : vector<9x1x256xf32> to vector<1x1x256xf32>
    %260 = vector.shape_cast %259 : vector<1x1x256xf32> to vector<1x256xf32>
    %261 = vector.broadcast %260 : vector<1x256xf32> to vector<32x256xf32>
    %262 = arith.mulf %258, %261 : vector<32x256xf32>
    %263 = vector.extract_strided_slice %199 {offsets = [6, 0, 0], sizes = [1, 32, 1], strides = [1, 1, 1]} : vector<9x32x1xf32> to vector<1x32x1xf32>
    %264 = vector.shape_cast %263 : vector<1x32x1xf32> to vector<32x1xf32>
    %265 = vector.broadcast %264 : vector<32x1xf32> to vector<32x256xf32>
    %266 = arith.mulf %262, %265 : vector<32x256xf32>
    %267 = arith.addf %257, %266 : vector<32x256xf32>
    %c240_i32 = arith.constant 240 : i32
    %268 = tpu.dynamic_rotate %30 by %c240_i32 dim 1 : vector<32x256xf32>, i32 -> vector<32x256xf32>
    %269 = vector.extract_strided_slice %17 {offsets = [7, 0, 0], sizes = [1, 1, 256], strides = [1, 1, 1]} : vector<9x1x256xf32> to vector<1x1x256xf32>
    %270 = vector.shape_cast %269 : vector<1x1x256xf32> to vector<1x256xf32>
    %271 = vector.broadcast %270 : vector<1x256xf32> to vector<32x256xf32>
    %272 = arith.mulf %268, %271 : vector<32x256xf32>
    %273 = vector.extract_strided_slice %199 {offsets = [7, 0, 0], sizes = [1, 32, 1], strides = [1, 1, 1]} : vector<9x32x1xf32> to vector<1x32x1xf32>
    %274 = vector.shape_cast %273 : vector<1x32x1xf32> to vector<32x1xf32>
    %275 = vector.broadcast %274 : vector<32x1xf32> to vector<32x256xf32>
    %276 = arith.mulf %272, %275 : vector<32x256xf32>
    %277 = arith.addf %267, %276 : vector<32x256xf32>
    %c239_i32 = arith.constant 239 : i32
    %278 = tpu.dynamic_rotate %30 by %c239_i32 dim 1 : vector<32x256xf32>, i32 -> vector<32x256xf32>
    %279 = vector.extract_strided_slice %17 {offsets = [8, 0, 0], sizes = [1, 1, 256], strides = [1, 1, 1]} : vector<9x1x256xf32> to vector<1x1x256xf32>
    %280 = vector.shape_cast %279 : vector<1x1x256xf32> to vector<1x256xf32>
    %281 = vector.broadcast %280 : vector<1x256xf32> to vector<32x256xf32>
    %282 = arith.mulf %278, %281 : vector<32x256xf32>
    %283 = vector.extract_strided_slice %199 {offsets = [8, 0, 0], sizes = [1, 32, 1], strides = [1, 1, 1]} : vector<9x32x1xf32> to vector<1x32x1xf32>
    %284 = vector.shape_cast %283 : vector<1x32x1xf32> to vector<32x1xf32>
    %285 = vector.broadcast %284 : vector<32x1xf32> to vector<32x256xf32>
    %286 = arith.mulf %282, %285 : vector<32x256xf32>
    %287 = arith.addf %277, %286 : vector<32x256xf32>
    %c0_96 = arith.constant 0 : index
    %c0_97 = arith.constant 0 : index
    %c0_98 = arith.constant 0 : index
    %288 = vector.load %arg7[%c0_96, %c0_97, %c0_98] : memref<1x8x32xbf16, #tpu.memory_space<vmem>>, vector<1x8x32xbf16>
    %289 = vector.shape_cast %288 : vector<1x8x32xbf16> to vector<8x32xbf16>
    %c0_99 = arith.constant 0 : index
    %c0_100 = arith.constant 0 : index
    %290 = vector.load %arg19[%c0_99, %c0_100] : memref<32x256xf32, #tpu.memory_space<vmem>>, vector<32x256xf32>
    %291 = arith.addf %290, %287 : vector<32x256xf32>
    %292 = arith.truncf %291 : vector<32x256xf32> to vector<32x256xbf16>
    %cst_101 = arith.constant dense<0.000000e+00> : vector<8x256xf32>
    %293 = tpu.matmul %289, %292, %cst_101 {dimension_numbers = #tpu.dot_dimension_numbers<[1], [0], [0], [1], [0, 0, 1, 1], [], []>} : vector<8x32xbf16>, vector<32x256xbf16>, vector<8x256xf32> -> vector<8x256xf32>
    %c0_102 = arith.constant 0 : index
    %c0_103 = arith.constant 0 : index
    %c0_104 = arith.constant 0 : index
    %294 = vector.load %arg8[%c0_102, %c0_103, %c0_104] : memref<1x8x1xf32, #tpu.memory_space<vmem>>, vector<1x8x1xf32>
    %295 = vector.shape_cast %294 : vector<1x8x1xf32> to vector<8x1xf32>
    %296 = vector.broadcast %295 : vector<8x1xf32> to vector<8x256xf32>
    %297 = arith.addf %293, %296 : vector<8x256xf32>
    %298 = arith.negf %297 : vector<8x256xf32>
    %299 = math.exp %298 : vector<8x256xf32>
    %cst_105 = arith.constant 1.000000e+00 : f32
    %300 = vector.broadcast %cst_105 : f32 to vector<8x256xf32>
    %301 = arith.addf %300, %299 : vector<8x256xf32>
    %302 = arith.divf %300, %301 : vector<8x256xf32>
    %303 = arith.mulf %19, %302 : vector<8x256xf32>
    %304 = tpu.concatenate %18, %19, %303 in 0 : vector<8x256xf32>, vector<8x256xf32>, vector<8x256xf32> -> vector<24x256xf32>
    %305 = arith.truncf %304 : vector<24x256xf32> to vector<24x256xbf16>
    %c0_106 = arith.constant 0 : index
    %c0_107 = arith.constant 0 : index
    %306 = vector.load %arg15[%c0_106, %c0_107] : memref<16x24xbf16, #tpu.memory_space<vmem>>, vector<16x24xbf16>
    %cst_108 = arith.constant dense<0.000000e+00> : vector<16x256xf32>
    %307 = tpu.matmul %306, %305, %cst_108 {dimension_numbers = #tpu.dot_dimension_numbers<[1], [0], [0], [1], [0, 0, 1, 1], [], []>} : vector<16x24xbf16>, vector<24x256xbf16>, vector<16x256xf32> -> vector<16x256xf32>
    %c0_109 = arith.constant 0 : index
    %c0_110 = arith.constant 0 : index
    %308 = vector.load %arg16[%c0_109, %c0_110] : memref<16x1xf32, #tpu.memory_space<vmem>>, vector<16x1xf32>
    %309 = vector.broadcast %308 : vector<16x1xf32> to vector<16x256xf32>
    %310 = arith.mulf %307, %309 : vector<16x256xf32>
    %c0_111 = arith.constant 0 : index
    %c0_112 = arith.constant 0 : index
    %311 = vector.load %arg17[%c0_111, %c0_112] : memref<16x1xf32, #tpu.memory_space<vmem>>, vector<16x1xf32>
    %312 = vector.broadcast %311 : vector<16x1xf32> to vector<16x256xf32>
    %313 = arith.addf %310, %312 : vector<16x256xf32>
    %314 = arith.negf %313 : vector<16x256xf32>
    %315 = math.exp %314 : vector<16x256xf32>
    %cst_113 = arith.constant 1.000000e+00 : f32
    %316 = vector.broadcast %cst_113 : f32 to vector<16x256xf32>
    %317 = arith.addf %316, %315 : vector<16x256xf32>
    %318 = arith.divf %316, %317 : vector<16x256xf32>
    %319 = arith.mulf %313, %318 : vector<16x256xf32>
    %320 = arith.truncf %319 : vector<16x256xf32> to vector<16x256xbf16>
    %c0_114 = arith.constant 0 : index
    %c0_115 = arith.constant 0 : index
    %c0_116 = arith.constant 0 : index
    %321 = vector.load %arg18[%c0_114, %c0_115, %c0_116] : memref<1x16x256xbf16, #tpu.memory_space<vmem>>, vector<1x16x256xbf16>
    %322 = vector.shape_cast %321 : vector<1x16x256xbf16> to vector<16x256xbf16>
    %323 = vector.shape_cast %320 : vector<16x256xbf16> to vector<1x16x256xbf16>
    tpu.vector_store %arg18[%c0_114, %c0_115, %c0_116], %323 {strides = array<i32>} : memref<1x16x256xbf16, #tpu.memory_space<vmem>>, vector<1x16x256xbf16>,
    return
  }
  func.func @transform_0(%arg0: i32) -> (i32, i32, i32) {
    %c0_i32 = arith.constant 0 : i32
    %c0_i32_0 = arith.constant 0 : i32
    %c0_i32_1 = arith.constant 0 : i32
    return %arg0, %c0_i32, %c0_i32_0 : i32, i32, i32
  }
  func.func @transform_1(%arg0: i32) -> (i32, i32) {
    %c0_i32 = arith.constant 0 : i32
    %c0_i32_0 = arith.constant 0 : i32
    %c0_i32_1 = arith.constant 0 : i32
    return %c0_i32, %c0_i32_0 : i32, i32
  }
  func.func @transform_2(%arg0: i32) -> (i32, i32) {
    %c0_i32 = arith.constant 0 : i32
    %c0_i32_0 = arith.constant 0 : i32
    %c0_i32_1 = arith.constant 0 : i32
    return %c0_i32, %c0_i32_0 : i32, i32
  }
  func.func @transform_3(%arg0: i32) -> (i32, i32) {
    %c0_i32 = arith.constant 0 : i32
    %c0_i32_0 = arith.constant 0 : i32
    %c0_i32_1 = arith.constant 0 : i32
    return %c0_i32, %c0_i32_0 : i32, i32
  }
  func.func @transform_4(%arg0: i32) -> (i32, i32, i32) {
    %c0_i32 = arith.constant 0 : i32
    %c0_i32_0 = arith.constant 0 : i32
    %c0_i32_1 = arith.constant 0 : i32
    %c0_i32_2 = arith.constant 0 : i32
    return %c0_i32, %c0_i32_0, %c0_i32_1 : i32, i32, i32
  }
  func.func @transform_5(%arg0: i32) -> (i32, i32, i32) {
    %c0_i32 = arith.constant 0 : i32
    %c0_i32_0 = arith.constant 0 : i32
    %c0_i32_1 = arith.constant 0 : i32
    %c0_i32_2 = arith.constant 0 : i32
    return %c0_i32, %c0_i32_0, %c0_i32_1 : i32, i32, i32
  }
  func.func @transform_6(%arg0: i32) -> (i32, i32, i32) {
    %c0_i32 = arith.constant 0 : i32
    %c0_i32_0 = arith.constant 0 : i32
    %c0_i32_1 = arith.constant 0 : i32
    %c0_i32_2 = arith.constant 0 : i32
    return %c0_i32, %c0_i32_0, %c0_i32_1 : i32, i32, i32
  }
  func.func @transform_7(%arg0: i32) -> (i32, i32, i32) {
    %c0_i32 = arith.constant 0 : i32
    %c0_i32_0 = arith.constant 0 : i32
    %c0_i32_1 = arith.constant 0 : i32
    %c0_i32_2 = arith.constant 0 : i32
    return %c0_i32, %c0_i32_0, %c0_i32_1 : i32, i32, i32
  }
  func.func @transform_8(%arg0: i32) -> (i32, i32) {
    %c0_i32 = arith.constant 0 : i32
    %c0_i32_0 = arith.constant 0 : i32
    %c0_i32_1 = arith.constant 0 : i32
    return %c0_i32, %c0_i32_0 : i32, i32
  }
  func.func @transform_9(%arg0: i32) -> (i32, i32, i32, i32) {
    %c0_i32 = arith.constant 0 : i32
    %c0_i32_0 = arith.constant 0 : i32
    %c0_i32_1 = arith.constant 0 : i32
    %c0_i32_2 = arith.constant 0 : i32
    %c0_i32_3 = arith.constant 0 : i32
    return %c0_i32, %c0_i32_0, %c0_i32_1, %c0_i32_2 : i32, i32, i32, i32
  }
  func.func @transform_10(%arg0: i32) -> (i32, i32, i32, i32) {
    %c0_i32 = arith.constant 0 : i32
    %c0_i32_0 = arith.constant 0 : i32
    %c0_i32_1 = arith.constant 0 : i32
    %c0_i32_2 = arith.constant 0 : i32
    %c0_i32_3 = arith.constant 0 : i32
    return %c0_i32, %c0_i32_0, %c0_i32_1, %c0_i32_2 : i32, i32, i32, i32
  }
  func.func @transform_11(%arg0: i32) -> (i32, i32, i32, i32) {
    %c0_i32 = arith.constant 0 : i32
    %c0_i32_0 = arith.constant 0 : i32
    %c0_i32_1 = arith.constant 0 : i32
    %c0_i32_2 = arith.constant 0 : i32
    %c0_i32_3 = arith.constant 0 : i32
    return %c0_i32, %c0_i32_0, %c0_i32_1, %c0_i32_2 : i32, i32, i32, i32
  }
  func.func @transform_12(%arg0: i32) -> (i32, i32, i32) {
    %c0_i32 = arith.constant 0 : i32
    %c0_i32_0 = arith.constant 0 : i32
    %c0_i32_1 = arith.constant 0 : i32
    %c0_i32_2 = arith.constant 0 : i32
    return %c0_i32, %c0_i32_0, %c0_i32_1 : i32, i32, i32
  }
  func.func @transform_13(%arg0: i32) -> (i32, i32, i32) {
    %c0_i32 = arith.constant 0 : i32
    %c0_i32_0 = arith.constant 0 : i32
    %c0_i32_1 = arith.constant 0 : i32
    %c0_i32_2 = arith.constant 0 : i32
    return %c0_i32, %c0_i32_0, %c0_i32_1 : i32, i32, i32
  }
  func.func @transform_14(%arg0: i32) -> (i32, i32) {
    %c0_i32 = arith.constant 0 : i32
    %c0_i32_0 = arith.constant 0 : i32
    %c0_i32_1 = arith.constant 0 : i32
    return %c0_i32, %c0_i32_0 : i32, i32
  }
  func.func @transform_15(%arg0: i32) -> (i32, i32) {
    %c0_i32 = arith.constant 0 : i32
    %c0_i32_0 = arith.constant 0 : i32
    %c0_i32_1 = arith.constant 0 : i32
    return %c0_i32, %c0_i32_0 : i32, i32
  }
  func.func @transform_16(%arg0: i32) -> (i32, i32) {
    %c0_i32 = arith.constant 0 : i32
    %c0_i32_0 = arith.constant 0 : i32
    %c0_i32_1 = arith.constant 0 : i32
    return %c0_i32, %c0_i32_0 : i32, i32
  }
  func.func @transform_17(%arg0: i32) -> (i32, i32, i32) {
    %c0_i32 = arith.constant 0 : i32
    %c0_i32_0 = arith.constant 0 : i32
    %c0_i32_1 = arith.constant 0 : i32
    return %arg0, %c0_i32, %c0_i32_0 : i32, i32, i32
  }
}

</mosaic_0001>

<llo_original>
// kernel: tpu_custom_call.1
$region0: #{tpu_custom_call.1}
  #allocation0 [shape = 'u32[]', space=smem, size = 0x4, offset = 0x4, fixed_abs, tag = 'smem constant byte address 0x4 - core index']
  #allocation1 [shape = 'u32[144,128]{1,0:T(1,128)}', space=vmem, size = 0x12000, scoped, tag = 'internal scratch']
  #allocation2 [shape = 'f32[32,256]{1,0:T(8,128)}', space=vmem, size = 0x8000, scoped, tag = 'scratch operand']
  %s0 = inlined_call_operand.hbm [shape: bf16[2,8,256], index: 0, kind: input, shape index: {}]
  %s1 = inlined_call_operand.vmem [shape: bf16[16,8], index: 1, kind: input, shape index: {}]
  %s2 = inlined_call_operand.vmem [shape: f32[16,1], index: 2, kind: input, shape index: {}]
  %s3 = inlined_call_operand.vmem [shape: f32[16,1], index: 3, kind: input, shape index: {}]
  %s4 = inlined_call_operand.vmem [shape: bf16[1,96,8], index: 4, kind: input, shape index: {}]
  %s5 = inlined_call_operand.vmem [shape: f32[1,96,1], index: 5, kind: input, shape index: {}]
  %s6 = inlined_call_operand.hbm [shape: bf16[1,8,32], index: 6, kind: input, shape index: {}]
  %s7 = inlined_call_operand.vmem [shape: f32[1,8,1], index: 7, kind: input, shape index: {}]
  %s8 = inlined_call_operand.vmem [shape: bf16[64,256], index: 8, kind: input, shape index: {}]
  %s9 = inlined_call_operand.vmem [shape: bf16[1,4,64,256], index: 9, kind: input, shape index: {}]
  %s10 = inlined_call_operand.vmem [shape: bf16[1,4,64,256], index: 10, kind: input, shape index: {}]
  %s11 = inlined_call_operand.vmem [shape: f32[1,9,32,1], index: 11, kind: input, shape index: {}]
  %s12 = inlined_call_operand.vmem [shape: f32[1,32,1], index: 12, kind: input, shape index: {}]
  %s13 = inlined_call_operand.hbm [shape: f32[9,1,256], index: 13, kind: input, shape index: {}]
  %s14 = inlined_call_operand.hbm [shape: bf16[16,24], index: 14, kind: input, shape index: {}]
  %s15 = inlined_call_operand.vmem [shape: f32[16,1], index: 15, kind: input, shape index: {}]
  %s16 = inlined_call_operand.vmem [shape: f32[16,1], index: 16, kind: input, shape index: {}]
  %s17 = inlined_call_operand.hbm [shape: bf16[2,16,256], index: 17, kind: output, shape index: {}]
  %s18 = sld [smem:[#allocation0]]
  $region117: #{tpu_custom_call.1} parent=0
    _
  %s20 = ssub.s32 1, %s18
  %s21 = scalar_select 0, %s20, %s18
  $region1: #{tpu_custom_call.1} parent=0
    #allocation3 [shape = 'u8[8192]{0}', space=vmem, size = 0x2000, scoped, tag = 'input window, operand 0']
    #allocation4 [shape = 's32[2]{0}', space=sflag, size = 0x8, scoped, tag = 'scoped memory for tpu_custom_call.1']
    #allocation5 [shape = 's32[2]{0}', space=sflag, size = 0x8, scoped, tag = 'scoped memory for tpu_custom_call.1']
    #allocation6 [shape = 'u8[2048]{0}', space=vmem, size = 0x800, scoped, tag = 'input window, operand 6, single buffered']
    #allocation7 [shape = 's32[1]{0}', space=sflag, size = 0x4, scoped, tag = 'scoped memory for tpu_custom_call.1']
    #allocation8 [shape = 'u8[9216]{0}', space=vmem, size = 0x2400, scoped, tag = 'input window, operand 13, single buffered']
    #allocation9 [shape = 'u8[4096]{0}', space=vmem, size = 0x1000, scoped, tag = 'input window, operand 14, single buffered']
    #allocation10 [shape = 's32[1]{0}', space=sflag, size = 0x4, scoped, tag = 'scoped memory for tpu_custom_call.1']
    #allocation11 [shape = 'u8[16384]{0}', space=vmem, size = 0x4000, scoped, tag = 'output window, operand 0']
    %22 = vsyncpa [#allocation4], 0
    %s23 = scalar_lea.sflag [#allocation4], 1
    %24 = vsyncpa %s23, 0
    %25 = vsyncpa [#allocation7], 0
    %26 = vsyncpa [#allocation10], 0
    %27 = vsyncpa [#allocation5], 0
    %s28 = scalar_lea.sflag [#allocation5], 1
    %29 = vsyncpa %s28, 0
    loop: start=0, step=1, limit=4
    $region2: #{tpu_custom_call.1} parent=1 // loop_pre_header
      _
    $region3: #{tpu_custom_call.1} parent=1 // loop_header
      %s31 = sphi 0, %s35
      %p32 = scmp.ge.s32.totalorder %s31, 4
      %s41 = sphi 0, %s43
      %s44 = sphi 0, %s41
      %s45 = sphi 0, %s44
      %s61 = sphi 0, %s45
      %s65 = sphi 0, %s65
      %s67 = sphi 0, %s65
      %s68 = sphi 0, %s67
      %s82 = sphi 0, %s68
      %s86 = sphi 0, %s86
      %s88 = sphi 0, %s86
      %s89 = sphi 0, %s88
      %s103 = sphi 0, %s89
      %s107 = sphi 0, %s107
      %s109 = sphi 0, %s107
      %s110 = sphi 0, %s109
      %s124 = sphi 0, %s110
      %s128 = sphi 0, %s128
      %s130 = sphi 0, %s128
      %s131 = sphi 0, %s130
      %s145 = sphi 0, %s131
      %s149 = sphi 0, %s149
      %s151 = sphi 0, %s149
      %s152 = sphi 0, %s151
      %s166 = sphi 0, %s152
      %s170 = sphi 0, %s170
      %s172 = sphi 0, %s170
      %s173 = sphi 0, %s172
      %s187 = sphi 0, %s173
      %s191 = sphi 0, %s191
      %s193 = sphi 0, %s191
      %s194 = sphi 0, %s193
      %s208 = sphi 0, %s194
      %s212 = sphi 0, %s212
      %s214 = sphi 0, %s212
      %s215 = sphi 0, %s214
      %s229 = sphi 0, %s215
      %s233 = sphi 0, %s233
      %s235 = sphi 0, %s233
      %s236 = sphi 0, %s235
      %s250 = sphi 0, %s236
      %s254 = sphi 0, %s254
      %s256 = sphi 0, %s254
      %s257 = sphi 0, %s256
      %s271 = sphi 0, %s257
      %s275 = sphi 0, %s275
      %s277 = sphi 0, %s275
      %s278 = sphi 0, %s277
      %s292 = sphi 0, %s278
      %s296 = sphi 0, %s296
      %s298 = sphi 0, %s296
      %s299 = sphi 0, %s298
      %s313 = sphi 0, %s299
      %s317 = sphi 0, %s317
      %s319 = sphi 0, %s317
      %s320 = sphi 0, %s319
      %s334 = sphi 0, %s320
      %s338 = sphi 0, %s338
      %s340 = sphi 0, %s338
      %s341 = sphi 0, %s340
      %s355 = sphi 0, %s341
      %s359 = sphi 0, %s359
      %s361 = sphi 0, %s359
      %s362 = sphi 0, %s361
      %s376 = sphi 0, %s362
      %s380 = sphi 0, %s380
      %s382 = sphi 0, %s380
      %s383 = sphi 0, %s382
      %s397 = sphi 0, %s383
      %s403 = sphi 0, %s405
      %s406 = sphi 0, %s403
      %s407 = sphi 0, %s406
      %s423 = sphi 0, %s407
    $region4: #{tpu_custom_call.1} parent=1 // loop_header_branch
      %34 = sbr.rel (%p32) target = $region8
    $region5: #{tpu_custom_call.1} parent=1 // loop_body
      %s36 = ssub.s32 %s31, 1
      %s37 = ssub.s32 %s31, 2
      %s38 = sadd.s32 %s31, 1
      %s39 = ssub.s32 %s31, %s38
      %p40 = scmp.eq.s32.totalorder %s39, 0
      %s42 = sadd.s32 %s41, 1
      %s43 = scalar_select %p40, %s41, %s42
      %p46 = pneg %p40
      %p47 = scmp.eq.s32.totalorder %s31, 1
      %p48 = por %p46, %p47
      %p49 = scmp.ne.s32.totalorder %s41, %s44
      %p50 = scmp.eq.s32.totalorder %s31, 0
      %p51 = por %p49, %p50
      %p52 = scmp.ne.s32.totalorder %s41, %s44
      %p53 = scmp.eq.s32.totalorder %s36, 1
      %p54 = por %p52, %p53
      %p55 = scmp.ne.s32.totalorder %s44, %s45
      %p56 = scmp.eq.s32.totalorder %s36, 0
      %p57 = por %p55, %p56
      %p58 = scmp.ne.s32.totalorder %s44, %s45
      %p59 = scmp.eq.s32.totalorder %s37, 1
      %p60 = por %p58, %p59
      %p62 = scmp.ne.s32.totalorder %s45, %s61
      %p63 = scmp.eq.s32.totalorder %s37, 0
      %p64 = por %p62, %p63
      %s66 = sadd.s32 %s65, 1
      %p69 = scmp.eq.s32.totalorder %s31, 1
      %p70 = scmp.ne.s32.totalorder %s65, %s67
      %p71 = scmp.eq.s32.totalorder %s31, 0
      %p72 = por %p70, %p71
      %p73 = scmp.ne.s32.totalorder %s65, %s67
      %p74 = scmp.eq.s32.totalorder %s36, 1
      %p75 = por %p73, %p74
      %p76 = scmp.ne.s32.totalorder %s67, %s68
      %p77 = scmp.eq.s32.totalorder %s36, 0
      %p78 = por %p76, %p77
      %p79 = scmp.ne.s32.totalorder %s67, %s68
      %p80 = scmp.eq.s32.totalorder %s37, 1
      %p81 = por %p79, %p80
      %p83 = scmp.ne.s32.totalorder %s68, %s82
      %p84 = scmp.eq.s32.totalorder %s37, 0
      %p85 = por %p83, %p84
      %s87 = sadd.s32 %s86, 1
      %p90 = scmp.eq.s32.totalorder %s31, 1
      %p91 = scmp.ne.s32.totalorder %s86, %s88
      %p92 = scmp.eq.s32.totalorder %s31, 0
      %p93 = por %p91, %p92
      %p94 = scmp.ne.s32.totalorder %s86, %s88
      %p95 = scmp.eq.s32.totalorder %s36, 1
      %p96 = por %p94, %p95
      %p97 = scmp.ne.s32.totalorder %s88, %s89
      %p98 = scmp.eq.s32.totalorder %s36, 0
      %p99 = por %p97, %p98
      %p100 = scmp.ne.s32.totalorder %s88, %s89
      %p101 = scmp.eq.s32.totalorder %s37, 1
      %p102 = por %p100, %p101
      %p104 = scmp.ne.s32.totalorder %s89, %s103
      %p105 = scmp.eq.s32.totalorder %s37, 0
      %p106 = por %p104, %p105
      %s108 = sadd.s32 %s107, 1
      %p111 = scmp.eq.s32.totalorder %s31, 1
      %p112 = scmp.ne.s32.totalorder %s107, %s109
      %p113 = scmp.eq.s32.totalorder %s31, 0
      %p114 = por %p112, %p113
      %p115 = scmp.ne.s32.totalorder %s107, %s109
      %p116 = scmp.eq.s32.totalorder %s36, 1
      %p117 = por %p115, %p116
      %p118 = scmp.ne.s32.totalorder %s109, %s110
      %p119 = scmp.eq.s32.totalorder %s36, 0
      %p120 = por %p118, %p119
      %p121 = scmp.ne.s32.totalorder %s109, %s110
      %p122 = scmp.eq.s32.totalorder %s37, 1
      %p123 = por %p121, %p122
      %p125 = scmp.ne.s32.totalorder %s110, %s124
      %p126 = scmp.eq.s32.totalorder %s37, 0
      %p127 = por %p125, %p126
      %s129 = sadd.s32 %s128, 1
      %p132 = scmp.eq.s32.totalorder %s31, 1
      %p133 = scmp.ne.s32.totalorder %s128, %s130
      %p134 = scmp.eq.s32.totalorder %s31, 0
      %p135 = por %p133, %p134
      %p136 = scmp.ne.s32.totalorder %s128, %s130
      %p137 = scmp.eq.s32.totalorder %s36, 1
      %p138 = por %p136, %p137
      %p139 = scmp.ne.s32.totalorder %s130, %s131
      %p140 = scmp.eq.s32.totalorder %s36, 0
      %p141 = por %p139, %p140
      %p142 = scmp.ne.s32.totalorder %s130, %s131
      %p143 = scmp.eq.s32.totalorder %s37, 1
      %p144 = por %p142, %p143
      %p146 = scmp.ne.s32.totalorder %s131, %s145
      %p147 = scmp.eq.s32.totalorder %s37, 0
      %p148 = por %p146, %p147
      %s150 = sadd.s32 %s149, 1
      %p153 = scmp.eq.s32.totalorder %s31, 1
      %p154 = scmp.ne.s32.totalorder %s149, %s151
      %p155 = scmp.eq.s32.totalorder %s31, 0
      %p156 = por %p154, %p155
      %p157 = scmp.ne.s32.totalorder %s149, %s151
      %p158 = scmp.eq.s32.totalorder %s36, 1
      %p159 = por %p157, %p158
      %p160 = scmp.ne.s32.totalorder %s151, %s152
      %p161 = scmp.eq.s32.totalorder %s36, 0
      %p162 = por %p160, %p161
      %p163 = scmp.ne.s32.totalorder %s151, %s152
      %p164 = scmp.eq.s32.totalorder %s37, 1
      %p165 = por %p163, %p164
      %p167 = scmp.ne.s32.totalorder %s152, %s166
      %p168 = scmp.eq.s32.totalorder %s37, 0
      %p169 = por %p167, %p168
      %s171 = sadd.s32 %s170, 1
      %p174 = scmp.eq.s32.totalorder %s31, 1
      %p175 = scmp.ne.s32.totalorder %s170, %s172
      %p176 = scmp.eq.s32.totalorder %s31, 0
      %p177 = por %p175, %p176
      %p178 = scmp.ne.s32.totalorder %s170, %s172
      %p179 = scmp.eq.s32.totalorder %s36, 1
      %p180 = por %p178, %p179
      %p181 = scmp.ne.s32.totalorder %s172, %s173
      %p182 = scmp.eq.s32.totalorder %s36, 0
      %p183 = por %p181, %p182
      %p184 = scmp.ne.s32.totalorder %s172, %s173
      %p185 = scmp.eq.s32.totalorder %s37, 1
      %p186 = por %p184, %p185
      %p188 = scmp.ne.s32.totalorder %s173, %s187
      %p189 = scmp.eq.s32.totalorder %s37, 0
      %p190 = por %p188, %p189
      %s192 = sadd.s32 %s191, 1
      %p195 = scmp.eq.s32.totalorder %s31, 1
      %p196 = scmp.ne.s32.totalorder %s191, %s193
      %p197 = scmp.eq.s32.totalorder %s31, 0
      %p198 = por %p196, %p197
      %p199 = scmp.ne.s32.totalorder %s191, %s193
      %p200 = scmp.eq.s32.totalorder %s36, 1
      %p201 = por %p199, %p200
      %p202 = scmp.ne.s32.totalorder %s193, %s194
      %p203 = scmp.eq.s32.totalorder %s36, 0
      %p204 = por %p202, %p203
      %p205 = scmp.ne.s32.totalorder %s193, %s194
      %p206 = scmp.eq.s32.totalorder %s37, 1
      %p207 = por %p205, %p206
      %p209 = scmp.ne.s32.totalorder %s194, %s208
      %p210 = scmp.eq.s32.totalorder %s37, 0
      %p211 = por %p209, %p210
      %s213 = sadd.s32 %s212, 1
      %p216 = scmp.eq.s32.totalorder %s31, 1
      %p217 = scmp.ne.s32.totalorder %s212, %s214
      %p218 = scmp.eq.s32.totalorder %s31, 0
      %p219 = por %p217, %p218
      %p220 = scmp.ne.s32.totalorder %s212, %s214
      %p221 = scmp.eq.s32.totalorder %s36, 1
      %p222 = por %p220, %p221
      %p223 = scmp.ne.s32.totalorder %s214, %s215
      %p224 = scmp.eq.s32.totalorder %s36, 0
      %p225 = por %p223, %p224
      %p226 = scmp.ne.s32.totalorder %s214, %s215
      %p227 = scmp.eq.s32.totalorder %s37, 1
      %p228 = por %p226, %p227
      %p230 = scmp.ne.s32.totalorder %s215, %s229
      %p231 = scmp.eq.s32.totalorder %s37, 0
      %p232 = por %p230, %p231
      %s234 = sadd.s32 %s233, 1
      %p237 = scmp.eq.s32.totalorder %s31, 1
      %p238 = scmp.ne.s32.totalorder %s233, %s235
      %p239 = scmp.eq.s32.totalorder %s31, 0
      %p240 = por %p238, %p239
      %p241 = scmp.ne.s32.totalorder %s233, %s235
      %p242 = scmp.eq.s32.totalorder %s36, 1
      %p243 = por %p241, %p242
      %p244 = scmp.ne.s32.totalorder %s235, %s236
      %p245 = scmp.eq.s32.totalorder %s36, 0
      %p246 = por %p244, %p245
      %p247 = scmp.ne.s32.totalorder %s235, %s236
      %p248 = scmp.eq.s32.totalorder %s37, 1
      %p249 = por %p247, %p248
      %p251 = scmp.ne.s32.totalorder %s236, %s250
      %p252 = scmp.eq.s32.totalorder %s37, 0
      %p253 = por %p251, %p252
      %s255 = sadd.s32 %s254, 1
      %p258 = scmp.eq.s32.totalorder %s31, 1
      %p259 = scmp.ne.s32.totalorder %s254, %s256
      %p260 = scmp.eq.s32.totalorder %s31, 0
      %p261 = por %p259, %p260
      %p262 = scmp.ne.s32.totalorder %s254, %s256
      %p263 = scmp.eq.s32.totalorder %s36, 1
      %p264 = por %p262, %p263
      %p265 = scmp.ne.s32.totalorder %s256, %s257
      %p266 = scmp.eq.s32.totalorder %s36, 0
      %p267 = por %p265, %p266
      %p268 = scmp.ne.s32.totalorder %s256, %s257
      %p269 = scmp.eq.s32.totalorder %s37, 1
      %p270 = por %p268, %p269
      %p272 = scmp.ne.s32.totalorder %s257, %s271
      %p273 = scmp.eq.s32.totalorder %s37, 0
      %p274 = por %p272, %p273
      %s276 = sadd.s32 %s275, 1
      %p279 = scmp.eq.s32.totalorder %s31, 1
      %p280 = scmp.ne.s32.totalorder %s275, %s277
      %p281 = scmp.eq.s32.totalorder %s31, 0
      %p282 = por %p280, %p281
      %p283 = scmp.ne.s32.totalorder %s275, %s277
      %p284 = scmp.eq.s32.totalorder %s36, 1
      %p285 = por %p283, %p284
      %p286 = scmp.ne.s32.totalorder %s277, %s278
      %p287 = scmp.eq.s32.totalorder %s36, 0
      %p288 = por %p286, %p287
      %p289 = scmp.ne.s32.totalorder %s277, %s278
      %p290 = scmp.eq.s32.totalorder %s37, 1
      %p291 = por %p289, %p290
      %p293 = scmp.ne.s32.totalorder %s278, %s292
      %p294 = scmp.eq.s32.totalorder %s37, 0
      %p295 = por %p293, %p294
      %s297 = sadd.s32 %s296, 1
      %p300 = scmp.eq.s32.totalorder %s31, 1
      %p301 = scmp.ne.s32.totalorder %s296, %s298
      %p302 = scmp.eq.s32.totalorder %s31, 0
      %p303 = por %p301, %p302
      %p304 = scmp.ne.s32.totalorder %s296, %s298
      %p305 = scmp.eq.s32.totalorder %s36, 1
      %p306 = por %p304, %p305
      %p307 = scmp.ne.s32.totalorder %s298, %s299
      %p308 = scmp.eq.s32.totalorder %s36, 0
      %p309 = por %p307, %p308
      %p310 = scmp.ne.s32.totalorder %s298, %s299
      %p311 = scmp.eq.s32.totalorder %s37, 1
      %p312 = por %p310, %p311
      %p314 = scmp.ne.s32.totalorder %s299, %s313
      %p315 = scmp.eq.s32.totalorder %s37, 0
      %p316 = por %p314, %p315
      %s318 = sadd.s32 %s317, 1
      %p321 = scmp.eq.s32.totalorder %s31, 1
      %p322 = scmp.ne.s32.totalorder %s317, %s319
      %p323 = scmp.eq.s32.totalorder %s31, 0
      %p324 = por %p322, %p323
      %p325 = scmp.ne.s32.totalorder %s317, %s319
      %p326 = scmp.eq.s32.totalorder %s36, 1
      %p327 = por %p325, %p326
      %p328 = scmp.ne.s32.totalorder %s319, %s320
      %p329 = scmp.eq.s32.totalorder %s36, 0
      %p330 = por %p328, %p329
      %p331 = scmp.ne.s32.totalorder %s319, %s320
      %p332 = scmp.eq.s32.totalorder %s37, 1
      %p333 = por %p331, %p332
      %p335 = scmp.ne.s32.totalorder %s320, %s334
      %p336 = scmp.eq.s32.totalorder %s37, 0
      %p337 = por %p335, %p336
      %s339 = sadd.s32 %s338, 1
      %p342 = scmp.eq.s32.totalorder %s31, 1
      %p343 = scmp.ne.s32.totalorder %s338, %s340
      %p344 = scmp.eq.s32.totalorder %s31, 0
      %p345 = por %p343, %p344
      %p346 = scmp.ne.s32.totalorder %s338, %s340
      %p347 = scmp.eq.s32.totalorder %s36, 1
      %p348 = por %p346, %p347
      %p349 = scmp.ne.s32.totalorder %s340, %s341
      %p350 = scmp.eq.s32.totalorder %s36, 0
      %p351 = por %p349, %p350
      %p352 = scmp.ne.s32.totalorder %s340, %s341
      %p353 = scmp.eq.s32.totalorder %s37, 1
      %p354 = por %p352, %p353
      %p356 = scmp.ne.s32.totalorder %s341, %s355
      %p357 = scmp.eq.s32.totalorder %s37, 0
      %p358 = por %p356, %p357
      %s360 = sadd.s32 %s359, 1
      %p363 = scmp.eq.s32.totalorder %s31, 1
      %p364 = scmp.ne.s32.totalorder %s359, %s361
      %p365 = scmp.eq.s32.totalorder %s31, 0
      %p366 = por %p364, %p365
      %p367 = scmp.ne.s32.totalorder %s359, %s361
      %p368 = scmp.eq.s32.totalorder %s36, 1
      %p369 = por %p367, %p368
      %p370 = scmp.ne.s32.totalorder %s361, %s362
      %p371 = scmp.eq.s32.totalorder %s36, 0
      %p372 = por %p370, %p371
      %p373 = scmp.ne.s32.totalorder %s361, %s362
      %p374 = scmp.eq.s32.totalorder %s37, 1
      %p375 = por %p373, %p374
      %p377 = scmp.ne.s32.totalorder %s362, %s376
      %p378 = scmp.eq.s32.totalorder %s37, 0
      %p379 = por %p377, %p378
      %s381 = sadd.s32 %s380, 1
      %p384 = scmp.eq.s32.totalorder %s31, 1
      %p385 = scmp.ne.s32.totalorder %s380, %s382
      %p386 = scmp.eq.s32.totalorder %s31, 0
      %p387 = por %p385, %p386
      %p388 = scmp.ne.s32.totalorder %s380, %s382
      %p389 = scmp.eq.s32.totalorder %s36, 1
      %p390 = por %p388, %p389
      %p391 = scmp.ne.s32.totalorder %s382, %s383
      %p392 = scmp.eq.s32.totalorder %s36, 0
      %p393 = por %p391, %p392
      %p394 = scmp.ne.s32.totalorder %s382, %s383
      %p395 = scmp.eq.s32.totalorder %s37, 1
      %p396 = por %p394, %p395
      %p398 = scmp.ne.s32.totalorder %s383, %s397
      %p399 = scmp.eq.s32.totalorder %s37, 0
      %p400 = por %p398, %p399
      %s401 = ssub.s32 %s31, %s38
      %p402 = scmp.eq.s32.totalorder %s401, 0
      %s404 = sadd.s32 %s403, 1
      %s405 = scalar_select %p402, %s403, %s404
      %p408 = pneg %p402
      %p409 = scmp.eq.s32.totalorder %s31, 1
      %p410 = por %p408, %p409
      %p411 = scmp.ne.s32.totalorder %s403, %s406
      %p412 = scmp.eq.s32.totalorder %s31, 0
      %p413 = por %p411, %p412
      %p414 = scmp.ne.s32.totalorder %s403, %s406
      %p415 = scmp.eq.s32.totalorder %s36, 1
      %p416 = por %p414, %p415
      %p417 = scmp.ne.s32.totalorder %s406, %s407
      %p418 = scmp.eq.s32.totalorder %s36, 0
      %p419 = por %p417, %p418
      %p420 = scmp.ne.s32.totalorder %s406, %s407
      %p421 = scmp.eq.s32.totalorder %s37, 1
      %p422 = por %p420, %p421
      %p424 = scmp.ne.s32.totalorder %s407, %s423
      %p425 = scmp.eq.s32.totalorder %s37, 0
      %p426 = por %p424, %p425
      %p427 = scmp.le.s32.totalorder 1, %s31
      %p428 = scmp.lt.s32.totalorder %s31, 3
      %p429 = pnand %p427, %p428
      %p430 = pneg %p429
      // Predicated region
      $region9: #{tpu_custom_call.1} parent=5 // pred_check
        _
      $region10: #{tpu_custom_call.1} parent=5 // pred_check_branch
        %432 = sbr.rel (%p429) target = $region12
      $region11: #{tpu_custom_call.1} parent=5 // pred_region
        %s433 = ssub.s32 %s31, 1
        // Predicated region
        $region13: #{tpu_custom_call.1} parent=11 // pred_check
          %p434 = pneg %p78
        $region14: #{tpu_custom_call.1} parent=11 // pred_check_branch
          %436 = sbr.rel (%p434) target = $region16
        $region15: #{tpu_custom_call.1} parent=11 // pred_region
          _
        $region16: #{tpu_custom_call.1} parent=11 // pred_fallthru
          _
        // Predicated region
        $region17: #{tpu_custom_call.1} parent=11 // pred_check
          %p437 = pneg %p99
        $region18: #{tpu_custom_call.1} parent=11 // pred_check_branch
          %439 = sbr.rel (%p437) target = $region20
        $region19: #{tpu_custom_call.1} parent=11 // pred_region
          _
        $region20: #{tpu_custom_call.1} parent=11 // pred_fallthru
          _
        // Predicated region
        $region21: #{tpu_custom_call.1} parent=11 // pred_check
          %p440 = pneg %p120
        $region22: #{tpu_custom_call.1} parent=11 // pred_check_branch
          %442 = sbr.rel (%p440) target = $region24
        $region23: #{tpu_custom_call.1} parent=11 // pred_region
          _
        $region24: #{tpu_custom_call.1} parent=11 // pred_fallthru
          _
        // Predicated region
        $region25: #{tpu_custom_call.1} parent=11 // pred_check
          %p443 = pneg %p141
        $region26: #{tpu_custom_call.1} parent=11 // pred_check_branch
          %445 = sbr.rel (%p443) target = $region28
        $region27: #{tpu_custom_call.1} parent=11 // pred_region
          _
        $region28: #{tpu_custom_call.1} parent=11 // pred_fallthru
          _
        // Predicated region
        $region29: #{tpu_custom_call.1} parent=11 // pred_check
          %p446 = pneg %p162
        $region30: #{tpu_custom_call.1} parent=11 // pred_check_branch
          %448 = sbr.rel (%p446) target = $region32
        $region31: #{tpu_custom_call.1} parent=11 // pred_region
          _
        $region32: #{tpu_custom_call.1} parent=11 // pred_fallthru
          _
        // Predicated region
        $region33: #{tpu_custom_call.1} parent=11 // pred_check
          %p449 = pneg %p183
        $region34: #{tpu_custom_call.1} parent=11 // pred_check_branch
          %451 = sbr.rel (%p449) target = $region36
        $region35: #{tpu_custom_call.1} parent=11 // pred_region
          %s453 = ssub.s32 64, 64
          %454 = vsyncadd [#allocation7], %s453
          %s456 = sshll.u32 [#allocation6], 4
          %s457 = int_to_ptr.vmem [resolvable:$true] %s456
          %459 = dma.hbm_to_vmem [thread:$0]  %s6, 64, %s457, [#allocation7]
        $region36: #{tpu_custom_call.1} parent=11 // pred_fallthru
          _
        // Predicated region
        $region37: #{tpu_custom_call.1} parent=11 // pred_check
          %p460 = pneg %p204
        $region38: #{tpu_custom_call.1} parent=11 // pred_check_branch
          %462 = sbr.rel (%p460) target = $region40
        $region39: #{tpu_custom_call.1} parent=11 // pred_region
          _
        $region40: #{tpu_custom_call.1} parent=11 // pred_fallthru
          _
        // Predicated region
        $region41: #{tpu_custom_call.1} parent=11 // pred_check
          %p463 = pneg %p225
        $region42: #{tpu_custom_call.1} parent=11 // pred_check_branch
          %465 = sbr.rel (%p463) target = $region44
        $region43: #{tpu_custom_call.1} parent=11 // pred_region
          _
        $region44: #{tpu_custom_call.1} parent=11 // pred_fallthru
          _
        // Predicated region
        $region45: #{tpu_custom_call.1} parent=11 // pred_check
          %p466 = pneg %p246
        $region46: #{tpu_custom_call.1} parent=11 // pred_check_branch
          %468 = sbr.rel (%p466) target = $region48
        $region47: #{tpu_custom_call.1} parent=11 // pred_region
          _
        $region48: #{tpu_custom_call.1} parent=11 // pred_fallthru
          _
        // Predicated region
        $region49: #{tpu_custom_call.1} parent=11 // pred_check
          %p469 = pneg %p267
        $region50: #{tpu_custom_call.1} parent=11 // pred_check_branch
          %471 = sbr.rel (%p469) target = $region52
        $region51: #{tpu_custom_call.1} parent=11 // pred_region
          _
        $region52: #{tpu_custom_call.1} parent=11 // pred_fallthru
          _
        // Predicated region
        $region53: #{tpu_custom_call.1} parent=11 // pred_check
          %p472 = pneg %p288
        $region54: #{tpu_custom_call.1} parent=11 // pred_check_branch
          %474 = sbr.rel (%p472) target = $region56
        $region55: #{tpu_custom_call.1} parent=11 // pred_region
          _
        $region56: #{tpu_custom_call.1} parent=11 // pred_fallthru
          _
        // Predicated region
        $region57: #{tpu_custom_call.1} parent=11 // pred_check
          %p475 = pneg %p309
        $region58: #{tpu_custom_call.1} parent=11 // pred_check_branch
          %477 = sbr.rel (%p475) target = $region60
        $region59: #{tpu_custom_call.1} parent=11 // pred_region
          _
        $region60: #{tpu_custom_call.1} parent=11 // pred_fallthru
          _
        // Predicated region
        $region61: #{tpu_custom_call.1} parent=11 // pred_check
          %p478 = pneg %p330
        $region62: #{tpu_custom_call.1} parent=11 // pred_check_branch
          %480 = sbr.rel (%p478) target = $region64
        $region63: #{tpu_custom_call.1} parent=11 // pred_region
          %s482 = ssub.s32 288, 288
          %483 = vsyncadd [#allocation7], %s482
          %s484 = sshll.u32 [#allocation8], 4
          %s485 = int_to_ptr.vmem [resolvable:$true] %s484
          %490 = dma.hbm_to_vmem [thread:$0]  %s13, 288, %s485, [#allocation7], 32, 32, 2
        $region64: #{tpu_custom_call.1} parent=11 // pred_fallthru
          _
        // Predicated region
        $region65: #{tpu_custom_call.1} parent=11 // pred_check
          %p491 = pneg %p351
        $region66: #{tpu_custom_call.1} parent=11 // pred_check_branch
          %493 = sbr.rel (%p491) target = $region68
        $region67: #{tpu_custom_call.1} parent=11 // pred_region
          %s495 = ssub.s32 128, 128
          %496 = vsyncadd [#allocation10], %s495
          %s497 = sshll.u32 [#allocation9], 4
          %s498 = int_to_ptr.vmem [resolvable:$true] %s497
          %503 = dma.hbm_to_vmem [thread:$0]  %s14, 128, %s498, [#allocation10], 64, 64, 4
        $region68: #{tpu_custom_call.1} parent=11 // pred_fallthru
          _
        // Predicated region
        $region69: #{tpu_custom_call.1} parent=11 // pred_check
          %p504 = pneg %p372
        $region70: #{tpu_custom_call.1} parent=11 // pred_check_branch
          %506 = sbr.rel (%p504) target = $region72
        $region71: #{tpu_custom_call.1} parent=11 // pred_region
          _
        $region72: #{tpu_custom_call.1} parent=11 // pred_fallthru
          _
        // Predicated region
        $region73: #{tpu_custom_call.1} parent=11 // pred_check
          %p507 = pneg %p393
        $region74: #{tpu_custom_call.1} parent=11 // pred_check_branch
          %509 = sbr.rel (%p507) target = $region76
        $region75: #{tpu_custom_call.1} parent=11 // pred_region
          _
        $region76: #{tpu_custom_call.1} parent=11 // pred_fallthru
          _
      $region12: #{tpu_custom_call.1} parent=5 // pred_fallthru
        _
      %p510 = scmp.lt.s32.totalorder %s31, 2
      // Predicated region
      $region77: #{tpu_custom_call.1} parent=5 // pred_check
        %p511 = pneg %p510
      $region78: #{tpu_custom_call.1} parent=5 // pred_check_branch
        %513 = sbr.rel (%p511) target = $region80
      $region79: #{tpu_custom_call.1} parent=5 // pred_region
        // Predicated region
        $region81: #{tpu_custom_call.1} parent=79 // pred_check
          %p514 = pneg %p51
        $region82: #{tpu_custom_call.1} parent=79 // pred_check_branch
          %516 = sbr.rel (%p514) target = $region84
        $region83: #{tpu_custom_call.1} parent=79 // pred_region
          %s517 = sand.u32 %s41, 1
          %s518 = scalar_lea.sflag [#allocation4], %s517
          %s519 = sand.u32 %s41, 1
          %s520 = smul.addr %s519, 8
          %s521 = scalar_lea.vmem [#allocation3], %s520
          %s523 = ssub.s32 128, 128
          %524 = vsyncadd %s518, %s523
          %s525 = smul.addr %s31, 2
          %s526 = smul.addr %s525, 64
          %s527 = scalar_lea.hbm %s0, %s526
          %s529 = sshll.u32 %s521, 4
          %s530 = int_to_ptr.vmem [resolvable:$true] %s529
          %532 = dma.hbm_to_vmem [thread:$0]  %s527, 128, %s530, %s518
        $region84: #{tpu_custom_call.1} parent=79 // pred_fallthru
          _
      $region80: #{tpu_custom_call.1} parent=5 // pred_fallthru
        _
      %p533 = scmp.le.s32.totalorder 1, %s31
      %p534 = scmp.lt.s32.totalorder %s31, 3
      %p535 = pnand %p533, %p534
      %p536 = pneg %p535
      // Predicated region
      $region85: #{tpu_custom_call.1} parent=5 // pred_check
        _
      $region86: #{tpu_custom_call.1} parent=5 // pred_check_branch
        %538 = sbr.rel (%p535) target = $region88
      $region87: #{tpu_custom_call.1} parent=5 // pred_region
        %s539 = ssub.s32 %s31, 1
        %s540 = sand.u32 %s44, 1
        %s541 = scalar_lea.sflag [#allocation4], %s540
        %s542 = sand.u32 %s44, 1
        %s543 = smul.addr %s542, 8
        %s544 = scalar_lea.vmem [#allocation3], %s543
        // Predicated region
        $region89: #{tpu_custom_call.1} parent=87 // pred_check
          %p545 = pneg %p57
        $region90: #{tpu_custom_call.1} parent=87 // pred_check_branch
          %547 = sbr.rel (%p545) target = $region92
        $region91: #{tpu_custom_call.1} parent=87 // pred_region
          %548 = dma.done %s541, 128
        $region92: #{tpu_custom_call.1} parent=87 // pred_fallthru
          _
        // Predicated region
        $region93: #{tpu_custom_call.1} parent=87 // pred_check
          %p549 = pneg %p183
        $region94: #{tpu_custom_call.1} parent=87 // pred_check_branch
          %551 = sbr.rel (%p549) target = $region96
        $region95: #{tpu_custom_call.1} parent=87 // pred_region
          %552 = dma.done [#allocation7], 64
        $region96: #{tpu_custom_call.1} parent=87 // pred_fallthru
          _
        // Predicated region
        $region97: #{tpu_custom_call.1} parent=87 // pred_check
          %p553 = pneg %p330
        $region98: #{tpu_custom_call.1} parent=87 // pred_check_branch
          %555 = sbr.rel (%p553) target = $region100
        $region99: #{tpu_custom_call.1} parent=87 // pred_region
          %556 = dma.done [#allocation7], 288
        $region100: #{tpu_custom_call.1} parent=87 // pred_fallthru
          _
        // Predicated region
        $region101: #{tpu_custom_call.1} parent=87 // pred_check
          %p557 = pneg %p351
        $region102: #{tpu_custom_call.1} parent=87 // pred_check_branch
          %559 = sbr.rel (%p557) target = $region104
        $region103: #{tpu_custom_call.1} parent=87 // pred_region
          %560 = dma.done [#allocation10], 128
        $region104: #{tpu_custom_call.1} parent=87 // pred_fallthru
          _
        %s561 = sand.u32 %s44, 1
        %s562 = scalar_lea.sflag [#allocation4], %s561
        %s563 = sand.u32 %s44, 1
        %s564 = smul.addr %s563, 8
        %s565 = scalar_lea.vmem [#allocation3], %s564
        %p566 = pneg %p57
        %p567 = pneg %p54
        %p568 = pneg %p78
        %p569 = pneg %p75
        %p570 = pneg %p99
        %p571 = pneg %p96
        %p572 = pneg %p120
        %p573 = pneg %p117
        %p574 = pneg %p141
        %p575 = pneg %p138
        %p576 = pneg %p162
        %p577 = pneg %p159
        %p578 = pneg %p183
        %p579 = pneg %p180
        %p580 = pneg %p204
        %p581 = pneg %p201
        %p582 = pneg %p225
        %p583 = pneg %p222
        %p584 = pneg %p246
        %p585 = pneg %p243
        %p586 = pneg %p267
        %p587 = pneg %p264
        %p588 = pneg %p288
        %p589 = pneg %p285
        %p590 = pneg %p309
        %p591 = pneg %p306
        %p592 = pneg %p330
        %p593 = pneg %p327
        %p594 = pneg %p351
        %p595 = pneg %p348
        %p596 = pneg %p372
        %p597 = pneg %p369
        %p598 = pneg %p393
        %p599 = pneg %p390
        %p600 = pneg %p419
        %p601 = pneg %p416
        %s602 = sand.u32 %s406, 1
        %s603 = scalar_lea.sflag [#allocation5], %s602
        %s604 = sand.u32 %s406, 1
        %s605 = smul.addr %s604, 16
        %s606 = scalar_lea.vmem [#allocation11], %s605
        %v608 = vld [vmem:[%s544] sm:$0xff]
        %v609 = vld [vmem:[%s1] sm:$0xf]
        %v610 = vld [vmem:[%s1 + $0x4] sm:$0xf]
        %v613 = vunpack.c.l.b16 %v609
        %v614 = vunpack.c.l.b16 %v610
        %v615 = vpack.c.b16 %v614, %v613
        %v617 = vunpack.c.l.b16 %v608
        %v618 = vunpack.c.h.b16 %v608
        %v619 = vpack.c.b16 %v617, %v617
        %v620 = vpack.c.b16 %v618, %v618
        %vm621 = vcmask 64512
        %v623 = vsel %vm621, %v615, 0
        %vm625 = vcmask 1043456
        %v627 = vsel %vm625, %v619, 0
        %v630 = vsel %vm625, %v620, 0
        %632 = vmatprep.subr.bf16.mxu0 0
        %633 = vmatpush1.bf16.msra.mxu0 0
        %634 = vmatprep.subr.bf16.mxu0 0
        %635 = vmatpush1.bf16.msra.mxu0 0
        %636 = vmatprep.subr.bf16.mxu0 0
        %637 = vmatpush1.bf16.msra.mxu0 0
        %638 = vmatprep.subr.bf16.mxu0 0
        %639 = vmatpush1.bf16.msra.mxu0 0
        %640 = vmatprep.subr.bf16.mxu0 0
        %641 = vmatpush1.bf16.msra.mxu0 0
        %642 = vmatprep.subr.bf16.mxu0 0
        %643 = vmatpush1.bf16.msra.mxu0 0
        %644 = vmatprep.subr.bf16.mxu0 0
        %645 = vmatpush1.bf16.msra.mxu0 0
        %646 = vmatprep.subr.bf16.mxu0 %v630
        %647 = vmatpush1.bf16.msra.mxu0 %v627
        %648 = vmatprep.subr.bf16.mxu0 0
        %649 = vmatpush2.bf16.msra.mxu0 0
        %650 = vmatprep.subr.bf16.mxu0 0
        %651 = vmatpush2.bf16.msra.mxu0 0
        %652 = vmatprep.subr.bf16.mxu0 0
        %653 = vmatpush2.bf16.msra.mxu0 0
        %654 = vmatprep.subr.bf16.mxu0 0
        %655 = vmatpush2.bf16.msra.mxu0 0
        %656 = vmatprep.subr.bf16.mxu0 0
        %657 = vmatpush2.bf16.msra.mxu0 0
        %658 = vmatprep.subr.bf16.mxu0 0
        %659 = vmatpush2.bf16.msra.mxu0 0
        %660 = vmatprep.subr.bf16.mxu0 0
        %661 = vmatpush2.bf16.msra.mxu0 0
        %662 = vmatprep.subr.bf16.mxu0 0
        %663 = vmatpush2.bf16.msra.mxu0 0
        %664 = vmatprep.mubr.bf16.mxu0 0
        %665 = vmatmul.mubr.bf16.gmra.mxu0 %v623
        %v666 = vpop.f32.mrf.mxu0
        %v667 = vadd.f32 0.0, %v666
        %v668 = vpop.f32.mrf.mxu0
        %v669 = vadd.f32 0.0, %v668
        %v670 = vpop.f32.mrf.mxu0
        %v671 = vadd.f32 0.0, %v670
        %v672 = vpop.f32.mrf.mxu0
        %v673 = vadd.f32 0.0, %v672
        %674 = vdwg.mxu0
        %v675 = vld [vmem:[%s2] sm:$0xff]
        %v676 = vld [vmem:[%s2 + $0x8] sm:$0xff]
        %678 = vset.pattern.permute.xlu0 0
        %679 = vperm.xlu0 %678, %v675
        %v680 = vpop.permute.xlu0 %679
        %683 = vset.pattern.permute.xlu0 0
        %684 = vperm.xlu0 %683, %v676
        %v685 = vpop.permute.xlu0 %684
        %v687 = vmul.f32 %v667, %v680
        %v688 = vmul.f32 %v669, %v680
        %v689 = vmul.f32 %v671, %v685
        %v690 = vmul.f32 %v673, %v685
        %v691 = vld [vmem:[%s3] sm:$0xff]
        %v692 = vld [vmem:[%s3 + $0x8] sm:$0xff]
        %694 = vset.pattern.permute.xlu0 0
        %695 = vperm.xlu0 %694, %v691
        %v696 = vpop.permute.xlu0 %695
        %699 = vset.pattern.permute.xlu0 0
        %700 = vperm.xlu0 %699, %v692
        %v701 = vpop.permute.xlu0 %700
        %v703 = vadd.f32 %v687, %v696
        %v704 = vadd.f32 %v688, %v696
        %v705 = vadd.f32 %v689, %v701
        %v706 = vadd.f32 %v690, %v701
        %v707 = vxor.u32 %v703, 2147483648
        %v708 = vxor.u32 %v704, 2147483648
        %v709 = vxor.u32 %v705, 2147483648
        %v710 = vxor.u32 %v706, 2147483648
        %v711 = vmul.f32 %v707, 1.442695
        %v712 = vpow.pop %v711
        %v713 = vmul.f32 %v708, 1.442695
        %v714 = vpow.pop %v713
        %v715 = vmul.f32 %v709, 1.442695
        %v716 = vpow.pop %v715
        %v717 = vmul.f32 %v710, 1.442695
        %v718 = vpow.pop %v717
        %v719 = vadd.f32 %v712, 1.0
        %v720 = vadd.f32 %v714, 1.0
        %v721 = vadd.f32 %v716, 1.0
        %v722 = vadd.f32 %v718, 1.0
        %v723 = vrcp.pop %v719
        %v724 = vmul.f32 1.0, %v723
        %v725 = vrcp.pop %v720
        %v726 = vmul.f32 1.0, %v725
        %v727 = vrcp.pop %v721
        %v728 = vmul.f32 1.0, %v727
        %v729 = vrcp.pop %v722
        %v730 = vmul.f32 1.0, %v729
        %v731 = vmul.f32 %v703, %v724
        %v732 = vmul.f32 %v704, %v726
        %v733 = vmul.f32 %v705, %v728
        %v734 = vmul.f32 %v706, %v730
        %v735 = vld [vmem:[%s8] sm:$0xff]
        %v736 = vld [vmem:[%s8 + $0x8] sm:$0xff]
        %v737 = vld [vmem:[%s8 + $0x10] sm:$0xff]
        %v738 = vld [vmem:[%s8 + $0x18] sm:$0xff]
        %v739 = vld [vmem:[%s8 + $0x20] sm:$0xff]
        %v740 = vld [vmem:[%s8 + $0x28] sm:$0xff]
        %v741 = vld [vmem:[%s8 + $0x30] sm:$0xff]
        %v742 = vld [vmem:[%s8 + $0x38] sm:$0xff]
        %v743 = vld [vmem:[#allocation8] sm:$0x3]
        %v744 = vld [vmem:[#allocation8 + $0x2] sm:$0x3]
        %v745 = vld [vmem:[#allocation8 + $0x4] sm:$0x3]
        %v746 = vld [vmem:[#allocation8 + $0x6] sm:$0x3]
        %v747 = vld [vmem:[#allocation8 + $0xa] sm:$0x3]
        %v748 = vld [vmem:[#allocation8 + $0xc] sm:$0x3]
        %v749 = vld [vmem:[#allocation8 + $0xe] sm:$0x3]
        %v750 = vld [vmem:[#allocation8 + $0x10] sm:$0x3]
        %v751 = vpack.c.bf16 %v733, %v733
        %v752 = vpack.c.bf16 %v734, %v734
        %v753 = vld [vmem:[%s4] sm:$0xf]
        %v754 = vld [vmem:[%s4 + $0x4] sm:$0xf]
        %v755 = vld [vmem:[%s4 + $0x8] sm:$0xf]
        %v756 = vld [vmem:[%s4 + $0xc] sm:$0xf]
        %v757 = vld [vmem:[%s4 + $0x10] sm:$0xf]
        %v758 = vld [vmem:[%s4 + $0x14] sm:$0xf]
        %v759 = vld [vmem:[%s4 + $0x18] sm:$0xf]
        %v760 = vld [vmem:[%s4 + $0x1c] sm:$0xf]
        %v761 = vld [vmem:[%s4 + $0x20] sm:$0xf]
        %v762 = vld [vmem:[%s4 + $0x24] sm:$0xf]
        %v763 = vld [vmem:[%s4 + $0x28] sm:$0xf]
        %v764 = vld [vmem:[%s4 + $0x2c] sm:$0xf]
        %v765 = vld [vmem:[%s5] sm:$0xff]
        %v766 = vld [vmem:[%s5 + $0x8] sm:$0xff]
        %v767 = vld [vmem:[%s5 + $0x10] sm:$0xff]
        %v768 = vld [vmem:[%s5 + $0x18] sm:$0xff]
        %v769 = vld [vmem:[%s5 + $0x20] sm:$0xff]
        %v770 = vld [vmem:[%s5 + $0x28] sm:$0xff]
        %v771 = vld [vmem:[%s5 + $0x30] sm:$0xff]
        %v772 = vld [vmem:[%s5 + $0x38] sm:$0xff]
        %v773 = vld [vmem:[%s5 + $0x40] sm:$0xff]
        %v774 = vld [vmem:[%s5 + $0x48] sm:$0xff]
        %v775 = vld [vmem:[%s5 + $0x50] sm:$0xff]
        %v776 = vld [vmem:[%s5 + $0x58] sm:$0xff]
        %778 = vset.pattern.permute.xlu0 0
        %779 = vperm.xlu0 %778, %v765
        %v780 = vpop.permute.xlu0 %779
        %783 = vset.pattern.permute.xlu0 0
        %784 = vperm.xlu0 %783, %v766
        %v785 = vpop.permute.xlu0 %784
        %788 = vset.pattern.permute.xlu0 0
        %789 = vperm.xlu0 %788, %v767
        %v790 = vpop.permute.xlu0 %789
        %793 = vset.pattern.permute.xlu0 0
        %794 = vperm.xlu0 %793, %v768
        %v795 = vpop.permute.xlu0 %794
        %798 = vset.pattern.permute.xlu0 0
        %799 = vperm.xlu0 %798, %v769
        %v800 = vpop.permute.xlu0 %799
        %803 = vset.pattern.permute.xlu0 0
        %804 = vperm.xlu0 %803, %v770
        %v805 = vpop.permute.xlu0 %804
        %808 = vset.pattern.permute.xlu0 0
        %809 = vperm.xlu0 %808, %v771
        %v810 = vpop.permute.xlu0 %809
        %813 = vset.pattern.permute.xlu0 0
        %814 = vperm.xlu0 %813, %v772
        %v815 = vpop.permute.xlu0 %814
        %818 = vset.pattern.permute.xlu0 0
        %819 = vperm.xlu0 %818, %v773
        %v820 = vpop.permute.xlu0 %819
        %823 = vset.pattern.permute.xlu0 0
        %824 = vperm.xlu0 %823, %v774
        %v825 = vpop.permute.xlu0 %824
        %828 = vset.pattern.permute.xlu0 0
        %829 = vperm.xlu0 %828, %v775
        %v830 = vpop.permute.xlu0 %829
        %833 = vset.pattern.permute.xlu0 0
        %834 = vperm.xlu0 %833, %v776
        %v835 = vpop.permute.xlu0 %834
        %v849 = vunpack.c.l.b16 %v753
        %v850 = vunpack.c.l.b16 %v754
        %v851 = vunpack.c.l.b16 %v755
        %v852 = vunpack.c.l.b16 %v756
        %v853 = vunpack.c.l.b16 %v757
        %v854 = vunpack.c.l.b16 %v758
        %v855 = vunpack.c.l.b16 %v759
        %v856 = vunpack.c.l.b16 %v760
        %v857 = vunpack.c.l.b16 %v761
        %v858 = vunpack.c.l.b16 %v762
        %v859 = vunpack.c.l.b16 %v763
        %v860 = vunpack.c.l.b16 %v764
        %v861 = vpack.c.b16 %v850, %v849
        %v862 = vpack.c.b16 %v852, %v851
        %v863 = vpack.c.b16 %v854, %v853
        %v864 = vpack.c.b16 %v856, %v855
        %v865 = vpack.c.b16 %v858, %v857
        %v866 = vpack.c.b16 %v860, %v859
        %v868 = vsel %vm621, %v861, 0
        %v871 = vsel %vm621, %v862, 0
        %v874 = vsel %vm621, %v863, 0
        %v877 = vsel %vm621, %v864, 0
        %v880 = vsel %vm621, %v865, 0
        %v883 = vsel %vm621, %v866, 0
        %v886 = vsel %vm625, %v751, 0
        %v889 = vsel %vm625, %v752, 0
        %891 = vmatprep.subr.bf16.mxu0 0
        %892 = vmatpush1.bf16.msra.mxu0 0
        %893 = vmatprep.subr.bf16.mxu0 0
        %894 = vmatpush1.bf16.msra.mxu0 0
        %895 = vmatprep.subr.bf16.mxu0 0
        %896 = vmatpush1.bf16.msra.mxu0 0
        %897 = vmatprep.subr.bf16.mxu0 0
        %898 = vmatpush1.bf16.msra.mxu0 0
        %899 = vmatprep.subr.bf16.mxu0 0
        %900 = vmatpush1.bf16.msra.mxu0 0
        %901 = vmatprep.subr.bf16.mxu0 0
        %902 = vmatpush1.bf16.msra.mxu0 0
        %903 = vmatprep.subr.bf16.mxu0 0
        %904 = vmatpush1.bf16.msra.mxu0 0
        %905 = vmatprep.subr.bf16.mxu0 %v889
        %906 = vmatpush1.bf16.msra.mxu0 %v886
        %907 = vmatprep.subr.bf16.mxu0 0
        %908 = vmatpush2.bf16.msra.mxu0 0
        %909 = vmatprep.subr.bf16.mxu0 0
        %910 = vmatpush2.bf16.msra.mxu0 0
        %911 = vmatprep.subr.bf16.mxu0 0
        %912 = vmatpush2.bf16.msra.mxu0 0
        %913 = vmatprep.subr.bf16.mxu0 0
        %914 = vmatpush2.bf16.msra.mxu0 0
        %915 = vmatprep.subr.bf16.mxu0 0
        %916 = vmatpush2.bf16.msra.mxu0 0
        %917 = vmatprep.subr.bf16.mxu0 0
        %918 = vmatpush2.bf16.msra.mxu0 0
        %919 = vmatprep.subr.bf16.mxu0 0
        %920 = vmatpush2.bf16.msra.mxu0 0
        %921 = vmatprep.subr.bf16.mxu0 0
        %922 = vmatpush2.bf16.msra.mxu0 0
        %923 = vmatprep.mubr.bf16.mxu0 0
        %924 = vmatmul.mubr.bf16.gmra.mxu0 %v868
        %v925 = vpop.f32.mrf.mxu0
        %v926 = vadd.f32 %v780, %v925
        %v927 = vpop.f32.mrf.mxu0
        %v928 = vadd.f32 %v780, %v927
        %v929 = vpop.f32.mrf.mxu0
        %v930 = vadd.f32 %v785, %v929
        %v931 = vpop.f32.mrf.mxu0
        %v932 = vadd.f32 %v785, %v931
        %933 = vmatprep.mubr.bf16.mxu0 0
        %934 = vmatmul.mubr.bf16.gmra.mxu0 %v871
        %v935 = vpop.f32.mrf.mxu0
        %v936 = vadd.f32 %v790, %v935
        %v937 = vpop.f32.mrf.mxu0
        %v938 = vadd.f32 %v790, %v937
        %v939 = vpop.f32.mrf.mxu0
        %v940 = vadd.f32 %v795, %v939
        %v941 = vpop.f32.mrf.mxu0
        %v942 = vadd.f32 %v795, %v941
        %943 = vmatprep.mubr.bf16.mxu0 0
        %944 = vmatmul.mubr.bf16.gmra.mxu0 %v874
        %v945 = vpop.f32.mrf.mxu0
        %v946 = vadd.f32 %v800, %v945
        %v947 = vpop.f32.mrf.mxu0
        %v948 = vadd.f32 %v800, %v947
        %v949 = vpop.f32.mrf.mxu0
        %v950 = vadd.f32 %v805, %v949
        %v951 = vpop.f32.mrf.mxu0
        %v952 = vadd.f32 %v805, %v951
        %953 = vmatprep.mubr.bf16.mxu0 0
        %954 = vmatmul.mubr.bf16.gmra.mxu0 %v877
        %v955 = vpop.f32.mrf.mxu0
        %v956 = vadd.f32 %v810, %v955
        %v957 = vpop.f32.mrf.mxu0
        %v958 = vadd.f32 %v810, %v957
        %v959 = vpop.f32.mrf.mxu0
        %v960 = vadd.f32 %v815, %v959
        %v961 = vpop.f32.mrf.mxu0
        %v962 = vadd.f32 %v815, %v961
        %963 = vmatprep.mubr.bf16.mxu0 0
        %964 = vmatmul.mubr.bf16.gmra.mxu0 %v880
        %v965 = vpop.f32.mrf.mxu0
        %v966 = vadd.f32 %v820, %v965
        %v967 = vpop.f32.mrf.mxu0
        %v968 = vadd.f32 %v820, %v967
        %v969 = vpop.f32.mrf.mxu0
        %v970 = vadd.f32 %v825, %v969
        %v971 = vpop.f32.mrf.mxu0
        %v972 = vadd.f32 %v825, %v971
        %973 = vmatprep.mubr.bf16.mxu0 0
        %974 = vmatmul.mubr.bf16.gmra.mxu0 %v883
        %v975 = vpop.f32.mrf.mxu0
        %v976 = vadd.f32 %v830, %v975
        %v977 = vpop.f32.mrf.mxu0
        %v978 = vadd.f32 %v830, %v977
        %v979 = vpop.f32.mrf.mxu0
        %v980 = vadd.f32 %v835, %v979
        %v981 = vpop.f32.mrf.mxu0
        %v982 = vadd.f32 %v835, %v981
        %983 = vdwg.mxu0
        %v984 = vpack.c.bf16 %v930, %v926
        %v985 = vpack.c.bf16 %v932, %v928
        %v986 = vpack.c.bf16 %v940, %v936
        %v987 = vpack.c.bf16 %v942, %v938
        %v988 = vpack.c.bf16 %v950, %v946
        %v989 = vpack.c.bf16 %v952, %v948
        %v990 = vpack.c.bf16 %v960, %v956
        %v991 = vpack.c.bf16 %v962, %v958
        %v992 = vpack.c.bf16 %v970, %v966
        %v993 = vpack.c.bf16 %v972, %v968
        %v994 = vpack.c.bf16 %v980, %v976
        %v995 = vpack.c.bf16 %v982, %v978
        %v1004 = vunpack.c.l.b16 %v735
        %v1005 = vunpack.c.h.b16 %v735
        %v1006 = vunpack.c.l.b16 %v736
        %v1007 = vunpack.c.h.b16 %v736
        %v1008 = vunpack.c.l.b16 %v737
        %v1009 = vunpack.c.h.b16 %v737
        %v1010 = vunpack.c.l.b16 %v738
        %v1011 = vunpack.c.h.b16 %v738
        %v1012 = vunpack.c.l.b16 %v739
        %v1013 = vunpack.c.h.b16 %v739
        %v1014 = vunpack.c.l.b16 %v740
        %v1015 = vunpack.c.h.b16 %v740
        %v1016 = vunpack.c.l.b16 %v741
        %v1017 = vunpack.c.h.b16 %v741
        %v1018 = vunpack.c.l.b16 %v742
        %v1019 = vunpack.c.h.b16 %v742
        %v1020 = vpack.c.b16 %v1006, %v1004
        %v1021 = vpack.c.b16 %v1007, %v1005
        %v1022 = vpack.c.b16 %v1010, %v1008
        %v1023 = vpack.c.b16 %v1011, %v1009
        %v1024 = vpack.c.b16 %v1014, %v1012
        %v1025 = vpack.c.b16 %v1015, %v1013
        %v1026 = vpack.c.b16 %v1018, %v1016
        %v1027 = vpack.c.b16 %v1019, %v1017
        %1036 = vmatprep.subr.bf16.mxu0 0
        %1037 = vmatpush1.bf16.xpose.msra.mxu0 0
        %1038 = vmatprep.subr.bf16.mxu0 0
        %1039 = vmatpush1.bf16.xpose.msra.mxu0 0
        %1040 = vmatprep.subr.bf16.mxu0 0
        %1041 = vmatpush1.bf16.xpose.msra.mxu0 0
        %1042 = vmatprep.subr.bf16.mxu0 0
        %1043 = vmatpush1.bf16.xpose.msra.mxu0 0
        %1044 = vmatprep.subr.bf16.mxu0 0
        %1045 = vmatpush1.bf16.xpose.msra.mxu0 0
        %1046 = vmatprep.subr.bf16.mxu0 0
        %1047 = vmatpush1.bf16.xpose.msra.mxu0 0
        %1048 = vmatprep.subr.bf16.mxu0 %v987
        %1049 = vmatpush1.bf16.xpose.msra.mxu0 %v986
        %1050 = vmatprep.subr.bf16.mxu0 %v985
        %1051 = vmatpush1.bf16.xpose.msra.mxu0 %v984
        %1052 = vmatprep.subr.bf16.mxu0 0
        %1053 = vmatpush2.bf16.xpose.msra.mxu0 0
        %1054 = vmatprep.subr.bf16.mxu0 0
        %1055 = vmatpush2.bf16.xpose.msra.mxu0 0
        %1056 = vmatprep.subr.bf16.mxu0 0
        %1057 = vmatpush2.bf16.xpose.msra.mxu0 0
        %1058 = vmatprep.subr.bf16.mxu0 0
        %1059 = vmatpush2.bf16.xpose.msra.mxu0 0
        %1060 = vmatprep.subr.bf16.mxu0 0
        %1061 = vmatpush2.bf16.xpose.msra.mxu0 0
        %1062 = vmatprep.subr.bf16.mxu0 0
        %1063 = vmatpush2.bf16.xpose.msra.mxu0 0
        %1064 = vmatprep.subr.bf16.mxu0 0
        %1065 = vmatpush2.bf16.xpose.msra.mxu0 0
        %1066 = vmatprep.subr.bf16.mxu0 0
        %1067 = vmatpush2.bf16.xpose.msra.mxu0 0
        %1068 = vmatprep.mubr.bf16.mxu0 %v1021
        %1069 = vmatmul.mubr.bf16.gmra.mxu0 %v1020
        %v1070 = vpop.f32.mrf.mxu0
        %v1071 = vadd.f32 0.0, %v1070
        %v1072 = vpop.f32.mrf.mxu0
        %v1073 = vpop.f32.mrf.mxu0
        %v1074 = vadd.f32 0.0, %v1073
        %v1075 = vpop.f32.mrf.mxu0
        %1076 = vmatprep.mubr.bf16.mxu0 %v1023
        %1077 = vmatmul.mubr.bf16.gmra.mxu0 %v1022
        %v1078 = vpop.f32.mrf.mxu0
        %v1079 = vadd.f32 0.0, %v1078
        %v1080 = vpop.f32.mrf.mxu0
        %v1081 = vpop.f32.mrf.mxu0
        %v1082 = vadd.f32 0.0, %v1081
        %v1083 = vpop.f32.mrf.mxu0
        %1084 = vmatprep.mubr.bf16.mxu0 %v1025
        %1085 = vmatmul.mubr.bf16.gmra.mxu0 %v1024
        %v1086 = vpop.f32.mrf.mxu0
        %v1087 = vadd.f32 0.0, %v1086
        %v1088 = vpop.f32.mrf.mxu0
        %v1089 = vpop.f32.mrf.mxu0
        %v1090 = vadd.f32 0.0, %v1089
        %v1091 = vpop.f32.mrf.mxu0
        %1092 = vmatprep.mubr.bf16.mxu0 %v1027
        %1093 = vmatmul.mubr.bf16.gmra.mxu0 %v1026
        %v1094 = vpop.f32.mrf.mxu0
        %v1095 = vadd.f32 0.0, %v1094
        %v1096 = vpop.f32.mrf.mxu0
        %v1097 = vpop.f32.mrf.mxu0
        %v1098 = vadd.f32 0.0, %v1097
        %v1099 = vpop.f32.mrf.mxu0
        %1100 = vdwg.mxu0
        %v1101 = vmul.f32 %v1071, 0.70710677
        %v1102 = vmul.f32 %v1074, 0.70710677
        %v1103 = vmul.f32 %v1079, 0.70710677
        %v1104 = vmul.f32 %v1082, 0.70710677
        %v1105 = vmul.f32 %v1087, 0.70710677
        %v1106 = vmul.f32 %v1090, 0.70710677
        %v1107 = vmul.f32 %v1095, 0.70710677
        %v1108 = vmul.f32 %v1098, 0.70710677
        %v1109 = vpack.c.bf16 %v1102, %v1101
        %v1110 = vpack.c.bf16 %v1104, %v1103
        %v1111 = vpack.c.bf16 %v1106, %v1105
        %v1112 = vpack.c.bf16 %v1108, %v1107
        %v1113 = vld [vmem:[%s9] sm:$0xff]
        %v1114 = vld [vmem:[%s9 + $0x8] sm:$0xff]
        %v1115 = vld [vmem:[%s9 + $0x10] sm:$0xff]
        %v1116 = vld [vmem:[%s9 + $0x18] sm:$0xff]
        %v1117 = vld [vmem:[%s9 + $0x20] sm:$0xff]
        %v1118 = vld [vmem:[%s9 + $0x28] sm:$0xff]
        %v1119 = vld [vmem:[%s9 + $0x30] sm:$0xff]
        %v1120 = vld [vmem:[%s9 + $0x38] sm:$0xff]
        %v1121 = vunpack.c.l.bf16 %v1113
        %v1122 = vunpack.c.h.bf16 %v1113
        %v1123 = vunpack.c.l.bf16 %v1114
        %v1124 = vunpack.c.h.bf16 %v1114
        %v1125 = vunpack.c.l.bf16 %v1115
        %v1126 = vunpack.c.h.bf16 %v1115
        %v1127 = vunpack.c.l.bf16 %v1116
        %v1128 = vunpack.c.h.bf16 %v1116
        %v1129 = vunpack.c.l.bf16 %v1117
        %v1130 = vunpack.c.h.bf16 %v1117
        %v1131 = vunpack.c.l.bf16 %v1118
        %v1132 = vunpack.c.h.bf16 %v1118
        %v1133 = vunpack.c.l.bf16 %v1119
        %v1134 = vunpack.c.h.bf16 %v1119
        %v1135 = vunpack.c.l.bf16 %v1120
        %v1136 = vunpack.c.h.bf16 %v1120
        %v1138 = vsel %vm621, %v1109, 0
        %v1141 = vsel %vm621, %v1110, 0
        %v1144 = vsel %vm621, %v1111, 0
        %v1147 = vsel %vm621, %v1112, 0
        %v1150 = vsel %vm625, %v988, 0
        %v1153 = vsel %vm625, %v989, 0
        %1155 = vmatprep.subr.bf16.mxu0 0
        %1156 = vmatpush1.bf16.msra.mxu0 0
        %1157 = vmatprep.subr.bf16.mxu0 0
        %1158 = vmatpush1.bf16.msra.mxu0 0
        %1159 = vmatprep.subr.bf16.mxu0 0
        %1160 = vmatpush1.bf16.msra.mxu0 0
        %1161 = vmatprep.subr.bf16.mxu0 0
        %1162 = vmatpush1.bf16.msra.mxu0 0
        %1163 = vmatprep.subr.bf16.mxu0 0
        %1164 = vmatpush1.bf16.msra.mxu0 0
        %1165 = vmatprep.subr.bf16.mxu0 0
        %1166 = vmatpush1.bf16.msra.mxu0 0
        %1167 = vmatprep.subr.bf16.mxu0 0
        %1168 = vmatpush1.bf16.msra.mxu0 0
        %1169 = vmatprep.subr.bf16.mxu0 %v1153
        %1170 = vmatpush1.bf16.msra.mxu0 %v1150
        %1171 = vmatprep.subr.bf16.mxu0 0
        %1172 = vmatpush2.bf16.msra.mxu0 0
        %1173 = vmatprep.subr.bf16.mxu0 0
        %1174 = vmatpush2.bf16.msra.mxu0 0
        %1175 = vmatprep.subr.bf16.mxu0 0
        %1176 = vmatpush2.bf16.msra.mxu0 0
        %1177 = vmatprep.subr.bf16.mxu0 0
        %1178 = vmatpush2.bf16.msra.mxu0 0
        %1179 = vmatprep.subr.bf16.mxu0 0
        %1180 = vmatpush2.bf16.msra.mxu0 0
        %1181 = vmatprep.subr.bf16.mxu0 0
        %1182 = vmatpush2.bf16.msra.mxu0 0
        %1183 = vmatprep.subr.bf16.mxu0 0
        %1184 = vmatpush2.bf16.msra.mxu0 0
        %1185 = vmatprep.subr.bf16.mxu0 0
        %1186 = vmatpush2.bf16.msra.mxu0 0
        %1187 = vmatprep.mubr.bf16.mxu0 0
        %1188 = vmatmul.mubr.bf16.gmra.mxu0 %v1138
        %v1189 = vpop.f32.mrf.mxu0
        %v1190 = vadd.f32 %v1121, %v1189
        %v1191 = vpop.f32.mrf.mxu0
        %v1192 = vadd.f32 %v1122, %v1191
        %v1193 = vpop.f32.mrf.mxu0
        %v1194 = vadd.f32 %v1123, %v1193
        %v1195 = vpop.f32.mrf.mxu0
        %v1196 = vadd.f32 %v1124, %v1195
        %1197 = vmatprep.mubr.bf16.mxu0 0
        %1198 = vmatmul.mubr.bf16.gmra.mxu0 %v1141
        %v1199 = vpop.f32.mrf.mxu0
        %v1200 = vadd.f32 %v1125, %v1199
        %v1201 = vpop.f32.mrf.mxu0
        %v1202 = vadd.f32 %v1126, %v1201
        %v1203 = vpop.f32.mrf.mxu0
        %v1204 = vadd.f32 %v1127, %v1203
        %v1205 = vpop.f32.mrf.mxu0
        %v1206 = vadd.f32 %v1128, %v1205
        %1207 = vmatprep.mubr.bf16.mxu0 0
        %1208 = vmatmul.mubr.bf16.gmra.mxu0 %v1144
        %v1209 = vpop.f32.mrf.mxu0
        %v1210 = vadd.f32 %v1129, %v1209
        %v1211 = vpop.f32.mrf.mxu0
        %v1212 = vadd.f32 %v1130, %v1211
        %v1213 = vpop.f32.mrf.mxu0
        %v1214 = vadd.f32 %v1131, %v1213
        %v1215 = vpop.f32.mrf.mxu0
        %v1216 = vadd.f32 %v1132, %v1215
        %1217 = vmatprep.mubr.bf16.mxu0 0
        %1218 = vmatmul.mubr.bf16.gmra.mxu0 %v1147
        %v1219 = vpop.f32.mrf.mxu0
        %v1220 = vadd.f32 %v1133, %v1219
        %v1221 = vpop.f32.mrf.mxu0
        %v1222 = vadd.f32 %v1134, %v1221
        %v1223 = vpop.f32.mrf.mxu0
        %v1224 = vadd.f32 %v1135, %v1223
        %v1225 = vpop.f32.mrf.mxu0
        %v1226 = vadd.f32 %v1136, %v1225
        %1227 = vdwg.mxu0
        %v1228 = vmax.f32 %v1190, %v1192
        %1229 = vmax.xlane.f32.xlu0 %v1228
        %v1230 = vpop.xlane.xlu0 %1229
        %v1231 = vmax.f32 %v1194, %v1196
        %1232 = vmax.xlane.f32.xlu0 %v1231
        %v1233 = vpop.xlane.xlu0 %1232
        %v1234 = vmax.f32 %v1200, %v1202
        %1235 = vmax.xlane.f32.xlu0 %v1234
        %v1236 = vpop.xlane.xlu0 %1235
        %v1237 = vmax.f32 %v1204, %v1206
        %1238 = vmax.xlane.f32.xlu0 %v1237
        %v1239 = vpop.xlane.xlu0 %1238
        %v1240 = vmax.f32 %v1210, %v1212
        %1241 = vmax.xlane.f32.xlu0 %v1240
        %v1242 = vpop.xlane.xlu0 %1241
        %v1243 = vmax.f32 %v1214, %v1216
        %1244 = vmax.xlane.f32.xlu0 %v1243
        %v1245 = vpop.xlane.xlu0 %1244
        %v1246 = vmax.f32 %v1220, %v1222
        %1247 = vmax.xlane.f32.xlu0 %v1246
        %v1248 = vpop.xlane.xlu0 %1247
        %v1249 = vmax.f32 %v1224, %v1226
        %1250 = vmax.xlane.f32.xlu0 %v1249
        %v1251 = vpop.xlane.xlu0 %1250
        %v1252 = vsub.f32 %v1190, %v1230
        %v1253 = vsub.f32 %v1192, %v1230
        %v1254 = vsub.f32 %v1194, %v1233
        %v1255 = vsub.f32 %v1196, %v1233
        %v1256 = vsub.f32 %v1200, %v1236
        %v1257 = vsub.f32 %v1202, %v1236
        %v1258 = vsub.f32 %v1204, %v1239
        %v1259 = vsub.f32 %v1206, %v1239
        %v1260 = vsub.f32 %v1210, %v1242
        %v1261 = vsub.f32 %v1212, %v1242
        %v1262 = vsub.f32 %v1214, %v1245
        %v1263 = vsub.f32 %v1216, %v1245
        %v1264 = vsub.f32 %v1220, %v1248
        %v1265 = vsub.f32 %v1222, %v1248
        %v1266 = vsub.f32 %v1224, %v1251
        %v1267 = vsub.f32 %v1226, %v1251
        %v1268 = vmul.f32 %v1252, 1.442695
        %v1269 = vpow.pop %v1268
        %v1270 = vmul.f32 %v1253, 1.442695
        %v1271 = vpow.pop %v1270
        %v1272 = vmul.f32 %v1254, 1.442695
        %v1273 = vpow.pop %v1272
        %v1274 = vmul.f32 %v1255, 1.442695
        %v1275 = vpow.pop %v1274
        %v1276 = vmul.f32 %v1256, 1.442695
        %v1277 = vpow.pop %v1276
        %v1278 = vmul.f32 %v1257, 1.442695
        %v1279 = vpow.pop %v1278
        %v1280 = vmul.f32 %v1258, 1.442695
        %v1281 = vpow.pop %v1280
        %v1282 = vmul.f32 %v1259, 1.442695
        %v1283 = vpow.pop %v1282
        %v1284 = vmul.f32 %v1260, 1.442695
        %v1285 = vpow.pop %v1284
        %v1286 = vmul.f32 %v1261, 1.442695
        %v1287 = vpow.pop %v1286
        %v1288 = vmul.f32 %v1262, 1.442695
        %v1289 = vpow.pop %v1288
        %v1290 = vmul.f32 %v1263, 1.442695
        %v1291 = vpow.pop %v1290
        %v1292 = vmul.f32 %v1264, 1.442695
        %v1293 = vpow.pop %v1292
        %v1294 = vmul.f32 %v1265, 1.442695
        %v1295 = vpow.pop %v1294
        %v1296 = vmul.f32 %v1266, 1.442695
        %v1297 = vpow.pop %v1296
        %v1298 = vmul.f32 %v1267, 1.442695
        %v1299 = vpow.pop %v1298
        %v1300 = vadd.f32 %v1269, %v1271
        %1301 = vadd.xlane.f32.xlu0 %v1300
        %v1302 = vpop.xlane.xlu0 %1301
        %v1303 = vadd.f32 %v1273, %v1275
        %1304 = vadd.xlane.f32.xlu0 %v1303
        %v1305 = vpop.xlane.xlu0 %1304
        %v1306 = vadd.f32 %v1277, %v1279
        %1307 = vadd.xlane.f32.xlu0 %v1306
        %v1308 = vpop.xlane.xlu0 %1307
        %v1309 = vadd.f32 %v1281, %v1283
        %1310 = vadd.xlane.f32.xlu0 %v1309
        %v1311 = vpop.xlane.xlu0 %1310
        %v1312 = vadd.f32 %v1285, %v1287
        %1313 = vadd.xlane.f32.xlu0 %v1312
        %v1314 = vpop.xlane.xlu0 %1313
        %v1315 = vadd.f32 %v1289, %v1291
        %1316 = vadd.xlane.f32.xlu0 %v1315
        %v1317 = vpop.xlane.xlu0 %1316
        %v1318 = vadd.f32 %v1293, %v1295
        %1319 = vadd.xlane.f32.xlu0 %v1318
        %v1320 = vpop.xlane.xlu0 %1319
        %v1321 = vadd.f32 %v1297, %v1299
        %1322 = vadd.xlane.f32.xlu0 %v1321
        %v1323 = vpop.xlane.xlu0 %1322
        %v1324 = vrcp.pop %v1302
        %v1325 = vrcp.pop %v1305
        %v1326 = vrcp.pop %v1308
        %v1327 = vrcp.pop %v1311
        %v1328 = vrcp.pop %v1314
        %v1329 = vrcp.pop %v1317
        %v1330 = vrcp.pop %v1320
        %v1331 = vrcp.pop %v1323
        %v1332 = vmul.f32 %v1269, %v1324
        %v1333 = vmul.f32 %v1271, %v1324
        %v1334 = vmul.f32 %v1273, %v1325
        %v1335 = vmul.f32 %v1275, %v1325
        %v1336 = vmul.f32 %v1277, %v1326
        %v1337 = vmul.f32 %v1279, %v1326
        %v1338 = vmul.f32 %v1281, %v1327
        %v1339 = vmul.f32 %v1283, %v1327
        %v1340 = vmul.f32 %v1285, %v1328
        %v1341 = vmul.f32 %v1287, %v1328
        %v1342 = vmul.f32 %v1289, %v1329
        %v1343 = vmul.f32 %v1291, %v1329
        %v1344 = vmul.f32 %v1293, %v1330
        %v1345 = vmul.f32 %v1295, %v1330
        %v1346 = vmul.f32 %v1297, %v1331
        %v1347 = vmul.f32 %v1299, %v1331
        %v1348 = vpack.c.bf16 %v1334, %v1332
        %v1349 = vpack.c.bf16 %v1335, %v1333
        %v1350 = vpack.c.bf16 %v1338, %v1336
        %v1351 = vpack.c.bf16 %v1339, %v1337
        %v1352 = vpack.c.bf16 %v1342, %v1340
        %v1353 = vpack.c.bf16 %v1343, %v1341
        %v1354 = vpack.c.bf16 %v1346, %v1344
        %v1355 = vpack.c.bf16 %v1347, %v1345
        %1356 = vmatprep.subr.bf16.mxu0 0
        %1357 = vmatpush1.bf16.xpose.msra.mxu0 0
        %1358 = vmatprep.subr.bf16.mxu0 0
        %1359 = vmatpush1.bf16.xpose.msra.mxu0 0
        %1360 = vmatprep.subr.bf16.mxu0 0
        %1361 = vmatpush1.bf16.xpose.msra.mxu0 0
        %1362 = vmatprep.subr.bf16.mxu0 0
        %1363 = vmatpush1.bf16.xpose.msra.mxu0 0
        %1364 = vmatprep.subr.bf16.mxu0 %v1355
        %1365 = vmatpush1.bf16.xpose.msra.mxu0 %v1354
        %1366 = vmatprep.subr.bf16.mxu0 %v1353
        %1367 = vmatpush1.bf16.xpose.msra.mxu0 %v1352
        %1368 = vmatprep.subr.bf16.mxu0 %v1351
        %1369 = vmatpush1.bf16.xpose.msra.mxu0 %v1350
        %1370 = vmatprep.subr.bf16.mxu0 %v1349
        %1371 = vmatpush1.bf16.xpose.msra.mxu0 %v1348
        %1372 = vmatprep.subr.bf16.mxu0 0
        %1373 = vmatpush2.bf16.xpose.msra.mxu0 0
        %1374 = vmatprep.subr.bf16.mxu0 0
        %1375 = vmatpush2.bf16.xpose.msra.mxu0 0
        %1376 = vmatprep.subr.bf16.mxu0 0
        %1377 = vmatpush2.bf16.xpose.msra.mxu0 0
        %1378 = vmatprep.subr.bf16.mxu0 0
        %1379 = vmatpush2.bf16.xpose.msra.mxu0 0
        %1380 = vmatprep.subr.bf16.mxu0 0
        %1381 = vmatpush2.bf16.xpose.msra.mxu0 0
        %1382 = vmatprep.subr.bf16.mxu0 0
        %1383 = vmatpush2.bf16.xpose.msra.mxu0 0
        %1384 = vmatprep.subr.bf16.mxu0 0
        %1385 = vmatpush2.bf16.xpose.msra.mxu0 0
        %1386 = vmatprep.subr.bf16.mxu0 0
        %1387 = vmatpush2.bf16.xpose.msra.mxu0 0
        %1388 = vmatprep.mubr.bf16.mxu0 %v993
        %1389 = vmatmul.mubr.bf16.gmra.mxu0 %v992
        %v1390 = vpop.f32.mrf.mxu0
        %v1391 = vadd.f32 0.0, %v1390
        %v1392 = vpop.f32.mrf.mxu0
        %v1393 = vpop.f32.mrf.mxu0
        %v1394 = vpop.f32.mrf.mxu0
        %1395 = vdwg.mxu0
        %v1396 = vld [vmem:[%s10] sm:$0xff]
        %v1397 = vld [vmem:[%s10 + $0x8] sm:$0xff]
        %v1398 = vld [vmem:[%s10 + $0x10] sm:$0xff]
        %v1399 = vld [vmem:[%s10 + $0x18] sm:$0xff]
        %v1400 = vld [vmem:[%s10 + $0x20] sm:$0xff]
        %v1401 = vld [vmem:[%s10 + $0x28] sm:$0xff]
        %v1402 = vld [vmem:[%s10 + $0x30] sm:$0xff]
        %v1403 = vld [vmem:[%s10 + $0x38] sm:$0xff]
        %v1404 = vunpack.c.l.bf16 %v1396
        %v1405 = vunpack.c.h.bf16 %v1396
        %v1406 = vunpack.c.l.bf16 %v1397
        %v1407 = vunpack.c.h.bf16 %v1397
        %v1408 = vunpack.c.l.bf16 %v1398
        %v1409 = vunpack.c.h.bf16 %v1398
        %v1410 = vunpack.c.l.bf16 %v1399
        %v1411 = vunpack.c.h.bf16 %v1399
        %v1412 = vunpack.c.l.bf16 %v1400
        %v1413 = vunpack.c.h.bf16 %v1400
        %v1414 = vunpack.c.l.bf16 %v1401
        %v1415 = vunpack.c.h.bf16 %v1401
        %v1416 = vunpack.c.l.bf16 %v1402
        %v1417 = vunpack.c.h.bf16 %v1402
        %v1418 = vunpack.c.l.bf16 %v1403
        %v1419 = vunpack.c.h.bf16 %v1403
        %v1421 = vsel %vm625, %v984, 0
        %v1424 = vsel %vm625, %v985, 0
        %1426 = vmatprep.subr.bf16.mxu0 0
        %1427 = vmatpush1.bf16.msra.mxu0 0
        %1428 = vmatprep.subr.bf16.mxu0 0
        %1429 = vmatpush1.bf16.msra.mxu0 0
        %1430 = vmatprep.subr.bf16.mxu0 0
        %1431 = vmatpush1.bf16.msra.mxu0 0
        %1432 = vmatprep.subr.bf16.mxu0 0
        %1433 = vmatpush1.bf16.msra.mxu0 0
        %1434 = vmatprep.subr.bf16.mxu0 0
        %1435 = vmatpush1.bf16.msra.mxu0 0
        %1436 = vmatprep.subr.bf16.mxu0 0
        %1437 = vmatpush1.bf16.msra.mxu0 0
        %1438 = vmatprep.subr.bf16.mxu0 0
        %1439 = vmatpush1.bf16.msra.mxu0 0
        %1440 = vmatprep.subr.bf16.mxu0 %v1424
        %1441 = vmatpush1.bf16.msra.mxu0 %v1421
        %1442 = vmatprep.subr.bf16.mxu0 0
        %1443 = vmatpush2.bf16.msra.mxu0 0
        %1444 = vmatprep.subr.bf16.mxu0 0
        %1445 = vmatpush2.bf16.msra.mxu0 0
        %1446 = vmatprep.subr.bf16.mxu0 0
        %1447 = vmatpush2.bf16.msra.mxu0 0
        %1448 = vmatprep.subr.bf16.mxu0 0
        %1449 = vmatpush2.bf16.msra.mxu0 0
        %1450 = vmatprep.subr.bf16.mxu0 0
        %1451 = vmatpush2.bf16.msra.mxu0 0
        %1452 = vmatprep.subr.bf16.mxu0 0
        %1453 = vmatpush2.bf16.msra.mxu0 0
        %1454 = vmatprep.subr.bf16.mxu0 0
        %1455 = vmatpush2.bf16.msra.mxu0 0
        %1456 = vmatprep.subr.bf16.mxu0 0
        %1457 = vmatpush2.bf16.msra.mxu0 0
        %1458 = vmatprep.mubr.bf16.mxu0 0
        %1459 = vmatmul.mubr.bf16.gmra.mxu0 %v1138
        %v1460 = vpop.f32.mrf.mxu0
        %v1461 = vadd.f32 %v1404, %v1460
        %v1462 = vpop.f32.mrf.mxu0
        %v1463 = vadd.f32 %v1405, %v1462
        %v1464 = vpop.f32.mrf.mxu0
        %v1465 = vadd.f32 %v1406, %v1464
        %v1466 = vpop.f32.mrf.mxu0
        %v1467 = vadd.f32 %v1407, %v1466
        %1468 = vmatprep.mubr.bf16.mxu0 0
        %1469 = vmatmul.mubr.bf16.gmra.mxu0 %v1141
        %v1470 = vpop.f32.mrf.mxu0
        %v1471 = vadd.f32 %v1408, %v1470
        %v1472 = vpop.f32.mrf.mxu0
        %v1473 = vadd.f32 %v1409, %v1472
        %v1474 = vpop.f32.mrf.mxu0
        %v1475 = vadd.f32 %v1410, %v1474
        %v1476 = vpop.f32.mrf.mxu0
        %v1477 = vadd.f32 %v1411, %v1476
        %1478 = vmatprep.mubr.bf16.mxu0 0
        %1479 = vmatmul.mubr.bf16.gmra.mxu0 %v1144
        %v1480 = vpop.f32.mrf.mxu0
        %v1481 = vadd.f32 %v1412, %v1480
        %v1482 = vpop.f32.mrf.mxu0
        %v1483 = vadd.f32 %v1413, %v1482
        %v1484 = vpop.f32.mrf.mxu0
        %v1485 = vadd.f32 %v1414, %v1484
        %v1486 = vpop.f32.mrf.mxu0
        %v1487 = vadd.f32 %v1415, %v1486
        %1488 = vmatprep.mubr.bf16.mxu0 0
        %1489 = vmatmul.mubr.bf16.gmra.mxu0 %v1147
        %v1490 = vpop.f32.mrf.mxu0
        %v1491 = vadd.f32 %v1416, %v1490
        %v1492 = vpop.f32.mrf.mxu0
        %v1493 = vadd.f32 %v1417, %v1492
        %v1494 = vpop.f32.mrf.mxu0
        %v1495 = vadd.f32 %v1418, %v1494
        %v1496 = vpop.f32.mrf.mxu0
        %v1497 = vadd.f32 %v1419, %v1496
        %1498 = vdwg.mxu0
        %v1499 = vmax.f32 %v1461, %v1471
        %v1500 = vmax.f32 %v1465, %v1475
        %v1501 = vmax.f32 %v1499, %v1481
        %v1502 = vmax.f32 %v1500, %v1485
        %v1503 = vmax.f32 %v1501, %v1491
        %v1504 = vmax.f32 %v1502, %v1495
        %v1505 = vmax.f32 %v1503, %v1504
        %v1506 = vrot.slane %v1505, 4
        %v1507 = vmax.f32 %v1505, %v1506
        %v1508 = vrot.slane %v1507, 2
        %v1509 = vmax.f32 %v1507, %v1508
        %v1510 = vrot.slane %v1509, 1
        %v1511 = vmax.f32 %v1509, %v1510
        %v1512 = vmax.f32 %v1463, %v1473
        %v1513 = vmax.f32 %v1467, %v1477
        %v1514 = vmax.f32 %v1512, %v1483
        %v1515 = vmax.f32 %v1513, %v1487
        %v1516 = vmax.f32 %v1514, %v1493
        %v1517 = vmax.f32 %v1515, %v1497
        %v1518 = vmax.f32 %v1516, %v1517
        %v1519 = vrot.slane %v1518, 4
        %v1520 = vmax.f32 %v1518, %v1519
        %v1521 = vrot.slane %v1520, 2
        %v1522 = vmax.f32 %v1520, %v1521
        %v1523 = vrot.slane %v1522, 1
        %v1524 = vmax.f32 %v1522, %v1523
        %v1525 = vsub.f32 %v1461, %v1511
        %v1526 = vsub.f32 %v1463, %v1524
        %v1527 = vsub.f32 %v1465, %v1511
        %v1528 = vsub.f32 %v1467, %v1524
        %v1529 = vsub.f32 %v1471, %v1511
        %v1530 = vsub.f32 %v1473, %v1524
        %v1531 = vsub.f32 %v1475, %v1511
        %v1532 = vsub.f32 %v1477, %v1524
        %v1533 = vsub.f32 %v1481, %v1511
        %v1534 = vsub.f32 %v1483, %v1524
        %v1535 = vsub.f32 %v1485, %v1511
        %v1536 = vsub.f32 %v1487, %v1524
        %v1537 = vsub.f32 %v1491, %v1511
        %v1538 = vsub.f32 %v1493, %v1524
        %v1539 = vsub.f32 %v1495, %v1511
        %v1540 = vsub.f32 %v1497, %v1524
        %v1541 = vmul.f32 %v1525, 1.442695
        %v1542 = vpow.pop %v1541
        %v1543 = vmul.f32 %v1526, 1.442695
        %v1544 = vpow.pop %v1543
        %v1545 = vmul.f32 %v1527, 1.442695
        %v1546 = vpow.pop %v1545
        %v1547 = vmul.f32 %v1528, 1.442695
        %v1548 = vpow.pop %v1547
        %v1549 = vmul.f32 %v1529, 1.442695
        %v1550 = vpow.pop %v1549
        %v1551 = vmul.f32 %v1530, 1.442695
        %v1552 = vpow.pop %v1551
        %v1553 = vmul.f32 %v1531, 1.442695
        %v1554 = vpow.pop %v1553
        %v1555 = vmul.f32 %v1532, 1.442695
        %v1556 = vpow.pop %v1555
        %v1557 = vmul.f32 %v1533, 1.442695
        %v1558 = vpow.pop %v1557
        %v1559 = vmul.f32 %v1534, 1.442695
        %v1560 = vpow.pop %v1559
        %v1561 = vmul.f32 %v1535, 1.442695
        %v1562 = vpow.pop %v1561
        %v1563 = vmul.f32 %v1536, 1.442695
        %v1564 = vpow.pop %v1563
        %v1565 = vmul.f32 %v1537, 1.442695
        %v1566 = vpow.pop %v1565
        %v1567 = vmul.f32 %v1538, 1.442695
        %v1568 = vpow.pop %v1567
        %v1569 = vmul.f32 %v1539, 1.442695
        %v1570 = vpow.pop %v1569
        %v1571 = vmul.f32 %v1540, 1.442695
        %v1572 = vpow.pop %v1571
        %v1573 = vadd.f32 %v1542, %v1546
        %v1574 = vadd.f32 %v1573, %v1550
        %v1575 = vadd.f32 %v1574, %v1554
        %v1576 = vadd.f32 %v1575, %v1558
        %v1577 = vadd.f32 %v1576, %v1562
        %v1578 = vadd.f32 %v1577, %v1566
        %v1579 = vadd.f32 %v1578, %v1570
        %v1580 = vrot.slane %v1579, 4
        %v1581 = vadd.f32 %v1579, %v1580
        %v1582 = vrot.slane %v1581, 2
        %v1583 = vadd.f32 %v1581, %v1582
        %v1584 = vrot.slane %v1583, 1
        %v1585 = vadd.f32 %v1583, %v1584
        %v1586 = vadd.f32 %v1544, %v1548
        %v1587 = vadd.f32 %v1586, %v1552
        %v1588 = vadd.f32 %v1587, %v1556
        %v1589 = vadd.f32 %v1588, %v1560
        %v1590 = vadd.f32 %v1589, %v1564
        %v1591 = vadd.f32 %v1590, %v1568
        %v1592 = vadd.f32 %v1591, %v1572
        %v1593 = vrot.slane %v1592, 4
        %v1594 = vadd.f32 %v1592, %v1593
        %v1595 = vrot.slane %v1594, 2
        %v1596 = vadd.f32 %v1594, %v1595
        %v1597 = vrot.slane %v1596, 1
        %v1598 = vadd.f32 %v1596, %v1597
        %v1599 = vrcp.pop %v1585
        %v1600 = vrcp.pop %v1598
        %v1601 = vmul.f32 %v1542, %v1599
        %v1602 = vmul.f32 %v1544, %v1600
        %v1603 = vmul.f32 %v1546, %v1599
        %v1604 = vmul.f32 %v1548, %v1600
        %v1605 = vmul.f32 %v1550, %v1599
        %v1606 = vmul.f32 %v1552, %v1600
        %v1607 = vmul.f32 %v1554, %v1599
        %v1608 = vmul.f32 %v1556, %v1600
        %v1609 = vmul.f32 %v1558, %v1599
        %v1610 = vmul.f32 %v1560, %v1600
        %v1611 = vmul.f32 %v1562, %v1599
        %v1612 = vmul.f32 %v1564, %v1600
        %v1613 = vmul.f32 %v1566, %v1599
        %v1614 = vmul.f32 %v1568, %v1600
        %v1615 = vmul.f32 %v1570, %v1599
        %v1616 = vmul.f32 %v1572, %v1600
        %v1617 = vpack.c.bf16 %v1391, %v1391
        %v1618 = vpack.c.bf16 %v1603, %v1601
        %v1619 = vpack.c.bf16 %v1604, %v1602
        %v1620 = vpack.c.bf16 %v1607, %v1605
        %v1621 = vpack.c.bf16 %v1608, %v1606
        %v1622 = vpack.c.bf16 %v1611, %v1609
        %v1623 = vpack.c.bf16 %v1612, %v1610
        %v1624 = vpack.c.bf16 %v1615, %v1613
        %v1625 = vpack.c.bf16 %v1616, %v1614
        %vm1626 = vcmask 523264
        %v1628 = vsel %vm1626, %v1617, 0
        %1630 = vmatprep.subr.bf16.mxu0 0
        %1631 = vmatpush1.bf16.msra.mxu0 0
        %1632 = vmatprep.subr.bf16.mxu0 0
        %1633 = vmatpush1.bf16.msra.mxu0 0
        %1634 = vmatprep.subr.bf16.mxu0 0
        %1635 = vmatpush1.bf16.msra.mxu0 0
        %1636 = vmatprep.subr.bf16.mxu0 0
        %1637 = vmatpush1.bf16.msra.mxu0 0
        %1638 = vmatprep.subr.bf16.mxu0 %v1625
        %1639 = vmatpush1.bf16.msra.mxu0 %v1624
        %1640 = vmatprep.subr.bf16.mxu0 %v1623
        %1641 = vmatpush1.bf16.msra.mxu0 %v1622
        %1642 = vmatprep.subr.bf16.mxu0 %v1621
        %1643 = vmatpush1.bf16.msra.mxu0 %v1620
        %1644 = vmatprep.subr.bf16.mxu0 %v1619
        %1645 = vmatpush1.bf16.msra.mxu0 %v1618
        %1646 = vmatprep.subr.bf16.mxu0 0
        %1647 = vmatpush2.bf16.msra.mxu0 0
        %1648 = vmatprep.subr.bf16.mxu0 0
        %1649 = vmatpush2.bf16.msra.mxu0 0
        %1650 = vmatprep.subr.bf16.mxu0 0
        %1651 = vmatpush2.bf16.msra.mxu0 0
        %1652 = vmatprep.subr.bf16.mxu0 0
        %1653 = vmatpush2.bf16.msra.mxu0 0
        %1654 = vmatprep.subr.bf16.mxu0 0
        %1655 = vmatpush2.bf16.msra.mxu0 0
        %1656 = vmatprep.subr.bf16.mxu0 0
        %1657 = vmatpush2.bf16.msra.mxu0 0
        %1658 = vmatprep.subr.bf16.mxu0 0
        %1659 = vmatpush2.bf16.msra.mxu0 0
        %1660 = vmatprep.subr.bf16.mxu0 0
        %1661 = vmatpush2.bf16.msra.mxu0 0
        %1662 = vmatprep.mubr.bf16.mxu0 0
        %1663 = vmatmul.mubr.bf16.gmra.mxu0 %v1628
        %v1664 = vpop.f32.mrf.mxu0
        %v1665 = vadd.f32 0.0, %v1664
        %v1666 = vpop.f32.mrf.mxu0
        %v1667 = vadd.f32 0.0, %v1666
        %v1668 = vpop.f32.mrf.mxu0
        %v1669 = vpop.f32.mrf.mxu0
        %1670 = vdwg.mxu0
        %1671 = vst [vmem:[#allocation2] sm:$0xff] %v1665
        %1672 = vst [vmem:[#allocation2 + $0x8] sm:$0xff] %v1667
        %s1673 = scalar_lea.vmem %s9, 64
        %v1674 = vld [vmem:[%s1673] sm:$0xff]
        %v1675 = vld [vmem:[%s1673 + $0x8] sm:$0xff]
        %v1676 = vld [vmem:[%s1673 + $0x10] sm:$0xff]
        %v1677 = vld [vmem:[%s1673 + $0x18] sm:$0xff]
        %v1678 = vld [vmem:[%s1673 + $0x20] sm:$0xff]
        %v1679 = vld [vmem:[%s1673 + $0x28] sm:$0xff]
        %v1680 = vld [vmem:[%s1673 + $0x30] sm:$0xff]
        %v1681 = vld [vmem:[%s1673 + $0x38] sm:$0xff]
        %v1682 = vunpack.c.l.bf16 %v1674
        %v1683 = vunpack.c.h.bf16 %v1674
        %v1684 = vunpack.c.l.bf16 %v1675
        %v1685 = vunpack.c.h.bf16 %v1675
        %v1686 = vunpack.c.l.bf16 %v1676
        %v1687 = vunpack.c.h.bf16 %v1676
        %v1688 = vunpack.c.l.bf16 %v1677
        %v1689 = vunpack.c.h.bf16 %v1677
        %v1690 = vunpack.c.l.bf16 %v1678
        %v1691 = vunpack.c.h.bf16 %v1678
        %v1692 = vunpack.c.l.bf16 %v1679
        %v1693 = vunpack.c.h.bf16 %v1679
        %v1694 = vunpack.c.l.bf16 %v1680
        %v1695 = vunpack.c.h.bf16 %v1680
        %v1696 = vunpack.c.l.bf16 %v1681
        %v1697 = vunpack.c.h.bf16 %v1681
        %1702 = vrot.lane.b32.xlu0 %v1109, 120
        %v1703 = vpop.permute.xlu0 %1702
        %1704 = vrot.lane.b32.xlu0 %v1110, 120
        %v1705 = vpop.permute.xlu0 %1704
        %1706 = vrot.lane.b32.xlu0 %v1111, 120
        %v1707 = vpop.permute.xlu0 %1706
        %1708 = vrot.lane.b32.xlu0 %v1112, 120
        %v1709 = vpop.permute.xlu0 %1708
        %v1712 = vrot.slane %v988, 4
        %v1713 = vrot.slane %v989, 4
        %v1715 = vsel %vm621, %v1703, 0
        %v1718 = vsel %vm621, %v1705, 0
        %v1721 = vsel %vm621, %v1707, 0
        %v1724 = vsel %vm621, %v1709, 0
        %v1727 = vsel %vm625, %v1712, 0
        %v1730 = vsel %vm625, %v1713, 0
        %1732 = vmatprep.subr.bf16.mxu0 0
        %1733 = vmatpush1.bf16.msra.mxu0 0
        %1734 = vmatprep.subr.bf16.mxu0 0
        %1735 = vmatpush1.bf16.msra.mxu0 0
        %1736 = vmatprep.subr.bf16.mxu0 0
        %1737 = vmatpush1.bf16.msra.mxu0 0
        %1738 = vmatprep.subr.bf16.mxu0 0
        %1739 = vmatpush1.bf16.msra.mxu0 0
        %1740 = vmatprep.subr.bf16.mxu0 0
        %1741 = vmatpush1.bf16.msra.mxu0 0
        %1742 = vmatprep.subr.bf16.mxu0 0
        %1743 = vmatpush1.bf16.msra.mxu0 0
        %1744 = vmatprep.subr.bf16.mxu0 0
        %1745 = vmatpush1.bf16.msra.mxu0 0
        %1746 = vmatprep.subr.bf16.mxu0 %v1730
        %1747 = vmatpush1.bf16.msra.mxu0 %v1727
        %1748 = vmatprep.subr.bf16.mxu0 0
        %1749 = vmatpush2.bf16.msra.mxu0 0
        %1750 = vmatprep.subr.bf16.mxu0 0
        %1751 = vmatpush2.bf16.msra.mxu0 0
        %1752 = vmatprep.subr.bf16.mxu0 0
        %1753 = vmatpush2.bf16.msra.mxu0 0
        %1754 = vmatprep.subr.bf16.mxu0 0
        %1755 = vmatpush2.bf16.msra.mxu0 0
        %1756 = vmatprep.subr.bf16.mxu0 0
        %1757 = vmatpush2.bf16.msra.mxu0 0
        %1758 = vmatprep.subr.bf16.mxu0 0
        %1759 = vmatpush2.bf16.msra.mxu0 0
        %1760 = vmatprep.subr.bf16.mxu0 0
        %1761 = vmatpush2.bf16.msra.mxu0 0
        %1762 = vmatprep.subr.bf16.mxu0 0
        %1763 = vmatpush2.bf16.msra.mxu0 0
        %1764 = vmatprep.mubr.bf16.mxu0 0
        %1765 = vmatmul.mubr.bf16.gmra.mxu0 %v1715
        %v1766 = vpop.f32.mrf.mxu0
        %v1767 = vadd.f32 %v1682, %v1766
        %v1768 = vpop.f32.mrf.mxu0
        %v1769 = vadd.f32 %v1683, %v1768
        %v1770 = vpop.f32.mrf.mxu0
        %v1771 = vadd.f32 %v1684, %v1770
        %v1772 = vpop.f32.mrf.mxu0
        %v1773 = vadd.f32 %v1685, %v1772
        %1774 = vmatprep.mubr.bf16.mxu0 0
        %1775 = vmatmul.mubr.bf16.gmra.mxu0 %v1718
        %v1776 = vpop.f32.mrf.mxu0
        %v1777 = vadd.f32 %v1686, %v1776
        %v1778 = vpop.f32.mrf.mxu0
        %v1779 = vadd.f32 %v1687, %v1778
        %v1780 = vpop.f32.mrf.mxu0
        %v1781 = vadd.f32 %v1688, %v1780
        %v1782 = vpop.f32.mrf.mxu0
        %v1783 = vadd.f32 %v1689, %v1782
        %1784 = vmatprep.mubr.bf16.mxu0 0
        %1785 = vmatmul.mubr.bf16.gmra.mxu0 %v1721
        %v1786 = vpop.f32.mrf.mxu0
        %v1787 = vadd.f32 %v1690, %v1786
        %v1788 = vpop.f32.mrf.mxu0
        %v1789 = vadd.f32 %v1691, %v1788
        %v1790 = vpop.f32.mrf.mxu0
        %v1791 = vadd.f32 %v1692, %v1790
        %v1792 = vpop.f32.mrf.mxu0
        %v1793 = vadd.f32 %v1693, %v1792
        %1794 = vmatprep.mubr.bf16.mxu0 0
        %1795 = vmatmul.mubr.bf16.gmra.mxu0 %v1724
        %v1796 = vpop.f32.mrf.mxu0
        %v1797 = vadd.f32 %v1694, %v1796
        %v1798 = vpop.f32.mrf.mxu0
        %v1799 = vadd.f32 %v1695, %v1798
        %v1800 = vpop.f32.mrf.mxu0
        %v1801 = vadd.f32 %v1696, %v1800
        %v1802 = vpop.f32.mrf.mxu0
        %v1803 = vadd.f32 %v1697, %v1802
        %1804 = vdwg.mxu0
        %v1805 = vmax.f32 %v1767, %v1769
        %1806 = vmax.xlane.f32.xlu0 %v1805
        %v1807 = vpop.xlane.xlu0 %1806
        %v1808 = vmax.f32 %v1771, %v1773
        %1809 = vmax.xlane.f32.xlu0 %v1808
        %v1810 = vpop.xlane.xlu0 %1809
        %v1811 = vmax.f32 %v1777, %v1779
        %1812 = vmax.xlane.f32.xlu0 %v1811
        %v1813 = vpop.xlane.xlu0 %1812
        %v1814 = vmax.f32 %v1781, %v1783
        %1815 = vmax.xlane.f32.xlu0 %v1814
        %v1816 = vpop.xlane.xlu0 %1815
        %v1817 = vmax.f32 %v1787, %v1789
        %1818 = vmax.xlane.f32.xlu0 %v1817
        %v1819 = vpop.xlane.xlu0 %1818
        %v1820 = vmax.f32 %v1791, %v1793
        %1821 = vmax.xlane.f32.xlu0 %v1820
        %v1822 = vpop.xlane.xlu0 %1821
        %v1823 = vmax.f32 %v1797, %v1799
        %1824 = vmax.xlane.f32.xlu0 %v1823
        %v1825 = vpop.xlane.xlu0 %1824
        %v1826 = vmax.f32 %v1801, %v1803
        %1827 = vmax.xlane.f32.xlu0 %v1826
        %v1828 = vpop.xlane.xlu0 %1827
        %v1829 = vsub.f32 %v1767, %v1807
        %v1830 = vsub.f32 %v1769, %v1807
        %v1831 = vsub.f32 %v1771, %v1810
        %v1832 = vsub.f32 %v1773, %v1810
        %v1833 = vsub.f32 %v1777, %v1813
        %v1834 = vsub.f32 %v1779, %v1813
        %v1835 = vsub.f32 %v1781, %v1816
        %v1836 = vsub.f32 %v1783, %v1816
        %v1837 = vsub.f32 %v1787, %v1819
        %v1838 = vsub.f32 %v1789, %v1819
        %v1839 = vsub.f32 %v1791, %v1822
        %v1840 = vsub.f32 %v1793, %v1822
        %v1841 = vsub.f32 %v1797, %v1825
        %v1842 = vsub.f32 %v1799, %v1825
        %v1843 = vsub.f32 %v1801, %v1828
        %v1844 = vsub.f32 %v1803, %v1828
        %v1845 = vmul.f32 %v1829, 1.442695
        %v1846 = vpow.pop %v1845
        %v1847 = vmul.f32 %v1830, 1.442695
        %v1848 = vpow.pop %v1847
        %v1849 = vmul.f32 %v1831, 1.442695
        %v1850 = vpow.pop %v1849
        %v1851 = vmul.f32 %v1832, 1.442695
        %v1852 = vpow.pop %v1851
        %v1853 = vmul.f32 %v1833, 1.442695
        %v1854 = vpow.pop %v1853
        %v1855 = vmul.f32 %v1834, 1.442695
        %v1856 = vpow.pop %v1855
        %v1857 = vmul.f32 %v1835, 1.442695
        %v1858 = vpow.pop %v1857
        %v1859 = vmul.f32 %v1836, 1.442695
        %v1860 = vpow.pop %v1859
        %v1861 = vmul.f32 %v1837, 1.442695
        %v1862 = vpow.pop %v1861
        %v1863 = vmul.f32 %v1838, 1.442695
        %v1864 = vpow.pop %v1863
        %v1865 = vmul.f32 %v1839, 1.442695
        %v1866 = vpow.pop %v1865
        %v1867 = vmul.f32 %v1840, 1.442695
        %v1868 = vpow.pop %v1867
        %v1869 = vmul.f32 %v1841, 1.442695
        %v1870 = vpow.pop %v1869
        %v1871 = vmul.f32 %v1842, 1.442695
        %v1872 = vpow.pop %v1871
        %v1873 = vmul.f32 %v1843, 1.442695
        %v1874 = vpow.pop %v1873
        %v1875 = vmul.f32 %v1844, 1.442695
        %v1876 = vpow.pop %v1875
        %v1877 = vadd.f32 %v1846, %v1848
        %1878 = vadd.xlane.f32.xlu0 %v1877
        %v1879 = vpop.xlane.xlu0 %1878
        %v1880 = vadd.f32 %v1850, %v1852
        %1881 = vadd.xlane.f32.xlu0 %v1880
        %v1882 = vpop.xlane.xlu0 %1881
        %v1883 = vadd.f32 %v1854, %v1856
        %1884 = vadd.xlane.f32.xlu0 %v1883
        %v1885 = vpop.xlane.xlu0 %1884
        %v1886 = vadd.f32 %v1858, %v1860
        %1887 = vadd.xlane.f32.xlu0 %v1886
        %v1888 = vpop.xlane.xlu0 %1887
        %v1889 = vadd.f32 %v1862, %v1864
        %1890 = vadd.xlane.f32.xlu0 %v1889
        %v1891 = vpop.xlane.xlu0 %1890
        %v1892 = vadd.f32 %v1866, %v1868
        %1893 = vadd.xlane.f32.xlu0 %v1892
        %v1894 = vpop.xlane.xlu0 %1893
        %v1895 = vadd.f32 %v1870, %v1872
        %1896 = vadd.xlane.f32.xlu0 %v1895
        %v1897 = vpop.xlane.xlu0 %1896
        %v1898 = vadd.f32 %v1874, %v1876
        %1899 = vadd.xlane.f32.xlu0 %v1898
        %v1900 = vpop.xlane.xlu0 %1899
        %v1901 = vrcp.pop %v1879
        %v1902 = vrcp.pop %v1882
        %v1903 = vrcp.pop %v1885
        %v1904 = vrcp.pop %v1888
        %v1905 = vrcp.pop %v1891
        %v1906 = vrcp.pop %v1894
        %v1907 = vrcp.pop %v1897
        %v1908 = vrcp.pop %v1900
        %v1909 = vmul.f32 %v1846, %v1901
        %v1910 = vmul.f32 %v1848, %v1901
        %v1911 = vmul.f32 %v1850, %v1902
        %v1912 = vmul.f32 %v1852, %v1902
        %v1913 = vmul.f32 %v1854, %v1903
        %v1914 = vmul.f32 %v1856, %v1903
        %v1915 = vmul.f32 %v1858, %v1904
        %v1916 = vmul.f32 %v1860, %v1904
        %v1917 = vmul.f32 %v1862, %v1905
        %v1918 = vmul.f32 %v1864, %v1905
        %v1919 = vmul.f32 %v1866, %v1906
        %v1920 = vmul.f32 %v1868, %v1906
        %v1921 = vmul.f32 %v1870, %v1907
        %v1922 = vmul.f32 %v1872, %v1907
        %v1923 = vmul.f32 %v1874, %v1908
        %v1924 = vmul.f32 %v1876, %v1908
        %v1925 = vpack.c.bf16 %v1911, %v1909
        %v1926 = vpack.c.bf16 %v1912, %v1910
        %v1927 = vpack.c.bf16 %v1915, %v1913
        %v1928 = vpack.c.bf16 %v1916, %v1914
        %v1929 = vpack.c.bf16 %v1919, %v1917
        %v1930 = vpack.c.bf16 %v1920, %v1918
        %v1931 = vpack.c.bf16 %v1923, %v1921
        %v1932 = vpack.c.bf16 %v1924, %v1922
        %v1935 = vrot.slane %v992, 4
        %v1936 = vrot.slane %v993, 4
        %1939 = vmatprep.subr.bf16.mxu0 0
        %1940 = vmatpush1.bf16.xpose.msra.mxu0 0
        %1941 = vmatprep.subr.bf16.mxu0 0
        %1942 = vmatpush1.bf16.xpose.msra.mxu0 0
        %1943 = vmatprep.subr.bf16.mxu0 0
        %1944 = vmatpush1.bf16.xpose.msra.mxu0 0
        %1945 = vmatprep.subr.bf16.mxu0 0
        %1946 = vmatpush1.bf16.xpose.msra.mxu0 0
        %1947 = vmatprep.subr.bf16.mxu0 %v1932
        %1948 = vmatpush1.bf16.xpose.msra.mxu0 %v1931
        %1949 = vmatprep.subr.bf16.mxu0 %v1930
        %1950 = vmatpush1.bf16.xpose.msra.mxu0 %v1929
        %1951 = vmatprep.subr.bf16.mxu0 %v1928
        %1952 = vmatpush1.bf16.xpose.msra.mxu0 %v1927
        %1953 = vmatprep.subr.bf16.mxu0 %v1926
        %1954 = vmatpush1.bf16.xpose.msra.mxu0 %v1925
        %1955 = vmatprep.subr.bf16.mxu0 0
        %1956 = vmatpush2.bf16.xpose.msra.mxu0 0
        %1957 = vmatprep.subr.bf16.mxu0 0
        %1958 = vmatpush2.bf16.xpose.msra.mxu0 0
        %1959 = vmatprep.subr.bf16.mxu0 0
        %1960 = vmatpush2.bf16.xpose.msra.mxu0 0
        %1961 = vmatprep.subr.bf16.mxu0 0
        %1962 = vmatpush2.bf16.xpose.msra.mxu0 0
        %1963 = vmatprep.subr.bf16.mxu0 0
        %1964 = vmatpush2.bf16.xpose.msra.mxu0 0
        %1965 = vmatprep.subr.bf16.mxu0 0
        %1966 = vmatpush2.bf16.xpose.msra.mxu0 0
        %1967 = vmatprep.subr.bf16.mxu0 0
        %1968 = vmatpush2.bf16.xpose.msra.mxu0 0
        %1969 = vmatprep.subr.bf16.mxu0 0
        %1970 = vmatpush2.bf16.xpose.msra.mxu0 0
        %1971 = vmatprep.mubr.bf16.mxu0 %v1936
        %1972 = vmatmul.mubr.bf16.gmra.mxu0 %v1935
        %v1973 = vpop.f32.mrf.mxu0
        %v1974 = vadd.f32 0.0, %v1973
        %v1975 = vpop.f32.mrf.mxu0
        %v1976 = vpop.f32.mrf.mxu0
        %v1977 = vpop.f32.mrf.mxu0
        %1978 = vdwg.mxu0
        %s1979 = scalar_lea.vmem %s10, 64
        %v1980 = vld [vmem:[%s1979] sm:$0xff]
        %v1981 = vld [vmem:[%s1979 + $0x8] sm:$0xff]
        %v1982 = vld [vmem:[%s1979 + $0x10] sm:$0xff]
        %v1983 = vld [vmem:[%s1979 + $0x18] sm:$0xff]
        %v1984 = vld [vmem:[%s1979 + $0x20] sm:$0xff]
        %v1985 = vld [vmem:[%s1979 + $0x28] sm:$0xff]
        %v1986 = vld [vmem:[%s1979 + $0x30] sm:$0xff]
        %v1987 = vld [vmem:[%s1979 + $0x38] sm:$0xff]
        %v1988 = vunpack.c.l.bf16 %v1980
        %v1989 = vunpack.c.h.bf16 %v1980
        %v1990 = vunpack.c.l.bf16 %v1981
        %v1991 = vunpack.c.h.bf16 %v1981
        %v1992 = vunpack.c.l.bf16 %v1982
        %v1993 = vunpack.c.h.bf16 %v1982
        %v1994 = vunpack.c.l.bf16 %v1983
        %v1995 = vunpack.c.h.bf16 %v1983
        %v1996 = vunpack.c.l.bf16 %v1984
        %v1997 = vunpack.c.h.bf16 %v1984
        %v1998 = vunpack.c.l.bf16 %v1985
        %v1999 = vunpack.c.h.bf16 %v1985
        %v2000 = vunpack.c.l.bf16 %v1986
        %v2001 = vunpack.c.h.bf16 %v1986
        %v2002 = vunpack.c.l.bf16 %v1987
        %v2003 = vunpack.c.h.bf16 %v1987
        %v2006 = vrot.slane %v984, 4
        %v2007 = vrot.slane %v985, 4
        %v2009 = vsel %vm625, %v2006, 0
        %v2012 = vsel %vm625, %v2007, 0
        %2014 = vmatprep.subr.bf16.mxu0 0
        %2015 = vmatpush1.bf16.msra.mxu0 0
        %2016 = vmatprep.subr.bf16.mxu0 0
        %2017 = vmatpush1.bf16.msra.mxu0 0
        %2018 = vmatprep.subr.bf16.mxu0 0
        %2019 = vmatpush1.bf16.msra.mxu0 0
        %2020 = vmatprep.subr.bf16.mxu0 0
        %2021 = vmatpush1.bf16.msra.mxu0 0
        %2022 = vmatprep.subr.bf16.mxu0 0
        %2023 = vmatpush1.bf16.msra.mxu0 0
        %2024 = vmatprep.subr.bf16.mxu0 0
        %2025 = vmatpush1.bf16.msra.mxu0 0
        %2026 = vmatprep.subr.bf16.mxu0 0
        %2027 = vmatpush1.bf16.msra.mxu0 0
        %2028 = vmatprep.subr.bf16.mxu0 %v2012
        %2029 = vmatpush1.bf16.msra.mxu0 %v2009
        %2030 = vmatprep.subr.bf16.mxu0 0
        %2031 = vmatpush2.bf16.msra.mxu0 0
        %2032 = vmatprep.subr.bf16.mxu0 0
        %2033 = vmatpush2.bf16.msra.mxu0 0
        %2034 = vmatprep.subr.bf16.mxu0 0
        %2035 = vmatpush2.bf16.msra.mxu0 0
        %2036 = vmatprep.subr.bf16.mxu0 0
        %2037 = vmatpush2.bf16.msra.mxu0 0
        %2038 = vmatprep.subr.bf16.mxu0 0
        %2039 = vmatpush2.bf16.msra.mxu0 0
        %2040 = vmatprep.subr.bf16.mxu0 0
        %2041 = vmatpush2.bf16.msra.mxu0 0
        %2042 = vmatprep.subr.bf16.mxu0 0
        %2043 = vmatpush2.bf16.msra.mxu0 0
        %2044 = vmatprep.subr.bf16.mxu0 0
        %2045 = vmatpush2.bf16.msra.mxu0 0
        %2046 = vmatprep.mubr.bf16.mxu0 0
        %2047 = vmatmul.mubr.bf16.gmra.mxu0 %v1715
        %v2048 = vpop.f32.mrf.mxu0
        %v2049 = vadd.f32 %v1988, %v2048
        %v2050 = vpop.f32.mrf.mxu0
        %v2051 = vadd.f32 %v1989, %v2050
        %v2052 = vpop.f32.mrf.mxu0
        %v2053 = vadd.f32 %v1990, %v2052
        %v2054 = vpop.f32.mrf.mxu0
        %v2055 = vadd.f32 %v1991, %v2054
        %2056 = vmatprep.mubr.bf16.mxu0 0
        %2057 = vmatmul.mubr.bf16.gmra.mxu0 %v1718
        %v2058 = vpop.f32.mrf.mxu0
        %v2059 = vadd.f32 %v1992, %v2058
        %v2060 = vpop.f32.mrf.mxu0
        %v2061 = vadd.f32 %v1993, %v2060
        %v2062 = vpop.f32.mrf.mxu0
        %v2063 = vadd.f32 %v1994, %v2062
        %v2064 = vpop.f32.mrf.mxu0
        %v2065 = vadd.f32 %v1995, %v2064
        %2066 = vmatprep.mubr.bf16.mxu0 0
        %2067 = vmatmul.mubr.bf16.gmra.mxu0 %v1721
        %v2068 = vpop.f32.mrf.mxu0
        %v2069 = vadd.f32 %v1996, %v2068
        %v2070 = vpop.f32.mrf.mxu0
        %v2071 = vadd.f32 %v1997, %v2070
        %v2072 = vpop.f32.mrf.mxu0
        %v2073 = vadd.f32 %v1998, %v2072
        %v2074 = vpop.f32.mrf.mxu0
        %v2075 = vadd.f32 %v1999, %v2074
        %2076 = vmatprep.mubr.bf16.mxu0 0
        %2077 = vmatmul.mubr.bf16.gmra.mxu0 %v1724
        %v2078 = vpop.f32.mrf.mxu0
        %v2079 = vadd.f32 %v2000, %v2078
        %v2080 = vpop.f32.mrf.mxu0
        %v2081 = vadd.f32 %v2001, %v2080
        %v2082 = vpop.f32.mrf.mxu0
        %v2083 = vadd.f32 %v2002, %v2082
        %v2084 = vpop.f32.mrf.mxu0
        %v2085 = vadd.f32 %v2003, %v2084
        %2086 = vdwg.mxu0
        %v2087 = vmax.f32 %v2049, %v2059
        %v2088 = vmax.f32 %v2053, %v2063
        %v2089 = vmax.f32 %v2087, %v2069
        %v2090 = vmax.f32 %v2088, %v2073
        %v2091 = vmax.f32 %v2089, %v2079
        %v2092 = vmax.f32 %v2090, %v2083
        %v2093 = vmax.f32 %v2091, %v2092
        %v2094 = vrot.slane %v2093, 4
        %v2095 = vmax.f32 %v2093, %v2094
        %v2096 = vrot.slane %v2095, 2
        %v2097 = vmax.f32 %v2095, %v2096
        %v2098 = vrot.slane %v2097, 1
        %v2099 = vmax.f32 %v2097, %v2098
        %v2100 = vmax.f32 %v2051, %v2061
        %v2101 = vmax.f32 %v2055, %v2065
        %v2102 = vmax.f32 %v2100, %v2071
        %v2103 = vmax.f32 %v2101, %v2075
        %v2104 = vmax.f32 %v2102, %v2081
        %v2105 = vmax.f32 %v2103, %v2085
        %v2106 = vmax.f32 %v2104, %v2105
        %v2107 = vrot.slane %v2106, 4
        %v2108 = vmax.f32 %v2106, %v2107
        %v2109 = vrot.slane %v2108, 2
        %v2110 = vmax.f32 %v2108, %v2109
        %v2111 = vrot.slane %v2110, 1
        %v2112 = vmax.f32 %v2110, %v2111
        %v2113 = vsub.f32 %v2049, %v2099
        %v2114 = vsub.f32 %v2051, %v2112
        %v2115 = vsub.f32 %v2053, %v2099
        %v2116 = vsub.f32 %v2055, %v2112
        %v2117 = vsub.f32 %v2059, %v2099
        %v2118 = vsub.f32 %v2061, %v2112
        %v2119 = vsub.f32 %v2063, %v2099
        %v2120 = vsub.f32 %v2065, %v2112
        %v2121 = vsub.f32 %v2069, %v2099
        %v2122 = vsub.f32 %v2071, %v2112
        %v2123 = vsub.f32 %v2073, %v2099
        %v2124 = vsub.f32 %v2075, %v2112
        %v2125 = vsub.f32 %v2079, %v2099
        %v2126 = vsub.f32 %v2081, %v2112
        %v2127 = vsub.f32 %v2083, %v2099
        %v2128 = vsub.f32 %v2085, %v2112
        %v2129 = vmul.f32 %v2113, 1.442695
        %v2130 = vpow.pop %v2129
        %v2131 = vmul.f32 %v2114, 1.442695
        %v2132 = vpow.pop %v2131
        %v2133 = vmul.f32 %v2115, 1.442695
        %v2134 = vpow.pop %v2133
        %v2135 = vmul.f32 %v2116, 1.442695
        %v2136 = vpow.pop %v2135
        %v2137 = vmul.f32 %v2117, 1.442695
        %v2138 = vpow.pop %v2137
        %v2139 = vmul.f32 %v2118, 1.442695
        %v2140 = vpow.pop %v2139
        %v2141 = vmul.f32 %v2119, 1.442695
        %v2142 = vpow.pop %v2141
        %v2143 = vmul.f32 %v2120, 1.442695
        %v2144 = vpow.pop %v2143
        %v2145 = vmul.f32 %v2121, 1.442695
        %v2146 = vpow.pop %v2145
        %v2147 = vmul.f32 %v2122, 1.442695
        %v2148 = vpow.pop %v2147
        %v2149 = vmul.f32 %v2123, 1.442695
        %v2150 = vpow.pop %v2149
        %v2151 = vmul.f32 %v2124, 1.442695
        %v2152 = vpow.pop %v2151
        %v2153 = vmul.f32 %v2125, 1.442695
        %v2154 = vpow.pop %v2153
        %v2155 = vmul.f32 %v2126, 1.442695
        %v2156 = vpow.pop %v2155
        %v2157 = vmul.f32 %v2127, 1.442695
        %v2158 = vpow.pop %v2157
        %v2159 = vmul.f32 %v2128, 1.442695
        %v2160 = vpow.pop %v2159
        %v2161 = vadd.f32 %v2130, %v2134
        %v2162 = vadd.f32 %v2161, %v2138
        %v2163 = vadd.f32 %v2162, %v2142
        %v2164 = vadd.f32 %v2163, %v2146
        %v2165 = vadd.f32 %v2164, %v2150
        %v2166 = vadd.f32 %v2165, %v2154
        %v2167 = vadd.f32 %v2166, %v2158
        %v2168 = vrot.slane %v2167, 4
        %v2169 = vadd.f32 %v2167, %v2168
        %v2170 = vrot.slane %v2169, 2
        %v2171 = vadd.f32 %v2169, %v2170
        %v2172 = vrot.slane %v2171, 1
        %v2173 = vadd.f32 %v2171, %v2172
        %v2174 = vadd.f32 %v2132, %v2136
        %v2175 = vadd.f32 %v2174, %v2140
        %v2176 = vadd.f32 %v2175, %v2144
        %v2177 = vadd.f32 %v2176, %v2148
        %v2178 = vadd.f32 %v2177, %v2152
        %v2179 = vadd.f32 %v2178, %v2156
        %v2180 = vadd.f32 %v2179, %v2160
        %v2181 = vrot.slane %v2180, 4
        %v2182 = vadd.f32 %v2180, %v2181
        %v2183 = vrot.slane %v2182, 2
        %v2184 = vadd.f32 %v2182, %v2183
        %v2185 = vrot.slane %v2184, 1
        %v2186 = vadd.f32 %v2184, %v2185
        %v2187 = vrcp.pop %v2173
        %v2188 = vrcp.pop %v2186
        %v2189 = vmul.f32 %v2130, %v2187
        %v2190 = vmul.f32 %v2132, %v2188
        %v2191 = vmul.f32 %v2134, %v2187
        %v2192 = vmul.f32 %v2136, %v2188
        %v2193 = vmul.f32 %v2138, %v2187
        %v2194 = vmul.f32 %v2140, %v2188
        %v2195 = vmul.f32 %v2142, %v2187
        %v2196 = vmul.f32 %v2144, %v2188
        %v2197 = vmul.f32 %v2146, %v2187
        %v2198 = vmul.f32 %v2148, %v2188
        %v2199 = vmul.f32 %v2150, %v2187
        %v2200 = vmul.f32 %v2152, %v2188
        %v2201 = vmul.f32 %v2154, %v2187
        %v2202 = vmul.f32 %v2156, %v2188
        %v2203 = vmul.f32 %v2158, %v2187
        %v2204 = vmul.f32 %v2160, %v2188
        %v2205 = vpack.c.bf16 %v1974, %v1974
        %v2206 = vpack.c.bf16 %v2191, %v2189
        %v2207 = vpack.c.bf16 %v2192, %v2190
        %v2208 = vpack.c.bf16 %v2195, %v2193
        %v2209 = vpack.c.bf16 %v2196, %v2194
        %v2210 = vpack.c.bf16 %v2199, %v2197
        %v2211 = vpack.c.bf16 %v2200, %v2198
        %v2212 = vpack.c.bf16 %v2203, %v2201
        %v2213 = vpack.c.bf16 %v2204, %v2202
        %v2215 = vsel %vm1626, %v2205, 0
        %2217 = vmatprep.subr.bf16.mxu0 0
        %2218 = vmatpush1.bf16.msra.mxu0 0
        %2219 = vmatprep.subr.bf16.mxu0 0
        %2220 = vmatpush1.bf16.msra.mxu0 0
        %2221 = vmatprep.subr.bf16.mxu0 0
        %2222 = vmatpush1.bf16.msra.mxu0 0
        %2223 = vmatprep.subr.bf16.mxu0 0
        %2224 = vmatpush1.bf16.msra.mxu0 0
        %2225 = vmatprep.subr.bf16.mxu0 %v2213
        %2226 = vmatpush1.bf16.msra.mxu0 %v2212
        %2227 = vmatprep.subr.bf16.mxu0 %v2211
        %2228 = vmatpush1.bf16.msra.mxu0 %v2210
        %2229 = vmatprep.subr.bf16.mxu0 %v2209
        %2230 = vmatpush1.bf16.msra.mxu0 %v2208
        %2231 = vmatprep.subr.bf16.mxu0 %v2207
        %2232 = vmatpush1.bf16.msra.mxu0 %v2206
        %2233 = vmatprep.subr.bf16.mxu0 0
        %2234 = vmatpush2.bf16.msra.mxu0 0
        %2235 = vmatprep.subr.bf16.mxu0 0
        %2236 = vmatpush2.bf16.msra.mxu0 0
        %2237 = vmatprep.subr.bf16.mxu0 0
        %2238 = vmatpush2.bf16.msra.mxu0 0
        %2239 = vmatprep.subr.bf16.mxu0 0
        %2240 = vmatpush2.bf16.msra.mxu0 0
        %2241 = vmatprep.subr.bf16.mxu0 0
        %2242 = vmatpush2.bf16.msra.mxu0 0
        %2243 = vmatprep.subr.bf16.mxu0 0
        %2244 = vmatpush2.bf16.msra.mxu0 0
        %2245 = vmatprep.subr.bf16.mxu0 0
        %2246 = vmatpush2.bf16.msra.mxu0 0
        %2247 = vmatprep.subr.bf16.mxu0 0
        %2248 = vmatpush2.bf16.msra.mxu0 0
        %2249 = vmatprep.mubr.bf16.mxu0 0
        %2250 = vmatmul.mubr.bf16.gmra.mxu0 %v2215
        %v2251 = vpop.f32.mrf.mxu0
        %v2252 = vadd.f32 0.0, %v2251
        %v2253 = vpop.f32.mrf.mxu0
        %v2254 = vadd.f32 0.0, %v2253
        %v2255 = vpop.f32.mrf.mxu0
        %v2256 = vpop.f32.mrf.mxu0
        %2257 = vdwg.mxu0
        %2258 = vst [vmem:[#allocation2 + $0x10] sm:$0xff] %v2252
        %2259 = vst [vmem:[#allocation2 + $0x18] sm:$0xff] %v2254
        %s2260 = scalar_lea.vmem %s9, 128
        %v2261 = vld [vmem:[%s2260] sm:$0xff]
        %v2262 = vld [vmem:[%s2260 + $0x8] sm:$0xff]
        %v2263 = vld [vmem:[%s2260 + $0x10] sm:$0xff]
        %v2264 = vld [vmem:[%s2260 + $0x18] sm:$0xff]
        %v2265 = vld [vmem:[%s2260 + $0x20] sm:$0xff]
        %v2266 = vld [vmem:[%s2260 + $0x28] sm:$0xff]
        %v2267 = vld [vmem:[%s2260 + $0x30] sm:$0xff]
        %v2268 = vld [vmem:[%s2260 + $0x38] sm:$0xff]
        %v2269 = vunpack.c.l.bf16 %v2261
        %v2270 = vunpack.c.h.bf16 %v2261
        %v2271 = vunpack.c.l.bf16 %v2262
        %v2272 = vunpack.c.h.bf16 %v2262
        %v2273 = vunpack.c.l.bf16 %v2263
        %v2274 = vunpack.c.h.bf16 %v2263
        %v2275 = vunpack.c.l.bf16 %v2264
        %v2276 = vunpack.c.h.bf16 %v2264
        %v2277 = vunpack.c.l.bf16 %v2265
        %v2278 = vunpack.c.h.bf16 %v2265
        %v2279 = vunpack.c.l.bf16 %v2266
        %v2280 = vunpack.c.h.bf16 %v2266
        %v2281 = vunpack.c.l.bf16 %v2267
        %v2282 = vunpack.c.h.bf16 %v2267
        %v2283 = vunpack.c.l.bf16 %v2268
        %v2284 = vunpack.c.h.bf16 %v2268
        %2285 = vrot.lane.b32.xlu0 %v1109, 112
        %v2286 = vpop.permute.xlu0 %2285
        %2287 = vrot.lane.b32.xlu0 %v1110, 112
        %v2288 = vpop.permute.xlu0 %2287
        %2289 = vrot.lane.b32.xlu0 %v1111, 112
        %v2290 = vpop.permute.xlu0 %2289
        %2291 = vrot.lane.b32.xlu0 %v1112, 112
        %v2292 = vpop.permute.xlu0 %2291
        %v2294 = vsel %vm621, %v2286, 0
        %v2297 = vsel %vm621, %v2288, 0
        %v2300 = vsel %vm621, %v2290, 0
        %v2303 = vsel %vm621, %v2292, 0
        %v2306 = vsel %vm625, %v990, 0
        %v2309 = vsel %vm625, %v991, 0
        %2311 = vmatprep.subr.bf16.mxu0 0
        %2312 = vmatpush1.bf16.msra.mxu0 0
        %2313 = vmatprep.subr.bf16.mxu0 0
        %2314 = vmatpush1.bf16.msra.mxu0 0
        %2315 = vmatprep.subr.bf16.mxu0 0
        %2316 = vmatpush1.bf16.msra.mxu0 0
        %2317 = vmatprep.subr.bf16.mxu0 0
        %2318 = vmatpush1.bf16.msra.mxu0 0
        %2319 = vmatprep.subr.bf16.mxu0 0
        %2320 = vmatpush1.bf16.msra.mxu0 0
        %2321 = vmatprep.subr.bf16.mxu0 0
        %2322 = vmatpush1.bf16.msra.mxu0 0
        %2323 = vmatprep.subr.bf16.mxu0 0
        %2324 = vmatpush1.bf16.msra.mxu0 0
        %2325 = vmatprep.subr.bf16.mxu0 %v2309
        %2326 = vmatpush1.bf16.msra.mxu0 %v2306
        %2327 = vmatprep.subr.bf16.mxu0 0
        %2328 = vmatpush2.bf16.msra.mxu0 0
        %2329 = vmatprep.subr.bf16.mxu0 0
        %2330 = vmatpush2.bf16.msra.mxu0 0
        %2331 = vmatprep.subr.bf16.mxu0 0
        %2332 = vmatpush2.bf16.msra.mxu0 0
        %2333 = vmatprep.subr.bf16.mxu0 0
        %2334 = vmatpush2.bf16.msra.mxu0 0
        %2335 = vmatprep.subr.bf16.mxu0 0
        %2336 = vmatpush2.bf16.msra.mxu0 0
        %2337 = vmatprep.subr.bf16.mxu0 0
        %2338 = vmatpush2.bf16.msra.mxu0 0
        %2339 = vmatprep.subr.bf16.mxu0 0
        %2340 = vmatpush2.bf16.msra.mxu0 0
        %2341 = vmatprep.subr.bf16.mxu0 0
        %2342 = vmatpush2.bf16.msra.mxu0 0
        %2343 = vmatprep.mubr.bf16.mxu0 0
        %2344 = vmatmul.mubr.bf16.gmra.mxu0 %v2294
        %v2345 = vpop.f32.mrf.mxu0
        %v2346 = vadd.f32 %v2269, %v2345
        %v2347 = vpop.f32.mrf.mxu0
        %v2348 = vadd.f32 %v2270, %v2347
        %v2349 = vpop.f32.mrf.mxu0
        %v2350 = vadd.f32 %v2271, %v2349
        %v2351 = vpop.f32.mrf.mxu0
        %v2352 = vadd.f32 %v2272, %v2351
        %2353 = vmatprep.mubr.bf16.mxu0 0
        %2354 = vmatmul.mubr.bf16.gmra.mxu0 %v2297
        %v2355 = vpop.f32.mrf.mxu0
        %v2356 = vadd.f32 %v2273, %v2355
        %v2357 = vpop.f32.mrf.mxu0
        %v2358 = vadd.f32 %v2274, %v2357
        %v2359 = vpop.f32.mrf.mxu0
        %v2360 = vadd.f32 %v2275, %v2359
        %v2361 = vpop.f32.mrf.mxu0
        %v2362 = vadd.f32 %v2276, %v2361
        %2363 = vmatprep.mubr.bf16.mxu0 0
        %2364 = vmatmul.mubr.bf16.gmra.mxu0 %v2300
        %v2365 = vpop.f32.mrf.mxu0
        %v2366 = vadd.f32 %v2277, %v2365
        %v2367 = vpop.f32.mrf.mxu0
        %v2368 = vadd.f32 %v2278, %v2367
        %v2369 = vpop.f32.mrf.mxu0
        %v2370 = vadd.f32 %v2279, %v2369
        %v2371 = vpop.f32.mrf.mxu0
        %v2372 = vadd.f32 %v2280, %v2371
        %2373 = vmatprep.mubr.bf16.mxu0 0
        %2374 = vmatmul.mubr.bf16.gmra.mxu0 %v2303
        %v2375 = vpop.f32.mrf.mxu0
        %v2376 = vadd.f32 %v2281, %v2375
        %v2377 = vpop.f32.mrf.mxu0
        %v2378 = vadd.f32 %v2282, %v2377
        %v2379 = vpop.f32.mrf.mxu0
        %v2380 = vadd.f32 %v2283, %v2379
        %v2381 = vpop.f32.mrf.mxu0
        %v2382 = vadd.f32 %v2284, %v2381
        %2383 = vdwg.mxu0
        %v2384 = vmax.f32 %v2346, %v2348
        %2385 = vmax.xlane.f32.xlu0 %v2384
        %v2386 = vpop.xlane.xlu0 %2385
        %v2387 = vmax.f32 %v2350, %v2352
        %2388 = vmax.xlane.f32.xlu0 %v2387
        %v2389 = vpop.xlane.xlu0 %2388
        %v2390 = vmax.f32 %v2356, %v2358
        %2391 = vmax.xlane.f32.xlu0 %v2390
        %v2392 = vpop.xlane.xlu0 %2391
        %v2393 = vmax.f32 %v2360, %v2362
        %2394 = vmax.xlane.f32.xlu0 %v2393
        %v2395 = vpop.xlane.xlu0 %2394
        %v2396 = vmax.f32 %v2366, %v2368
        %2397 = vmax.xlane.f32.xlu0 %v2396
        %v2398 = vpop.xlane.xlu0 %2397
        %v2399 = vmax.f32 %v2370, %v2372
        %2400 = vmax.xlane.f32.xlu0 %v2399
        %v2401 = vpop.xlane.xlu0 %2400
        %v2402 = vmax.f32 %v2376, %v2378
        %2403 = vmax.xlane.f32.xlu0 %v2402
        %v2404 = vpop.xlane.xlu0 %2403
        %v2405 = vmax.f32 %v2380, %v2382
        %2406 = vmax.xlane.f32.xlu0 %v2405
        %v2407 = vpop.xlane.xlu0 %2406
        %v2408 = vsub.f32 %v2346, %v2386
        %v2409 = vsub.f32 %v2348, %v2386
        %v2410 = vsub.f32 %v2350, %v2389
        %v2411 = vsub.f32 %v2352, %v2389
        %v2412 = vsub.f32 %v2356, %v2392
        %v2413 = vsub.f32 %v2358, %v2392
        %v2414 = vsub.f32 %v2360, %v2395
        %v2415 = vsub.f32 %v2362, %v2395
        %v2416 = vsub.f32 %v2366, %v2398
        %v2417 = vsub.f32 %v2368, %v2398
        %v2418 = vsub.f32 %v2370, %v2401
        %v2419 = vsub.f32 %v2372, %v2401
        %v2420 = vsub.f32 %v2376, %v2404
        %v2421 = vsub.f32 %v2378, %v2404
        %v2422 = vsub.f32 %v2380, %v2407
        %v2423 = vsub.f32 %v2382, %v2407
        %v2424 = vmul.f32 %v2408, 1.442695
        %v2425 = vpow.pop %v2424
        %v2426 = vmul.f32 %v2409, 1.442695
        %v2427 = vpow.pop %v2426
        %v2428 = vmul.f32 %v2410, 1.442695
        %v2429 = vpow.pop %v2428
        %v2430 = vmul.f32 %v2411, 1.442695
        %v2431 = vpow.pop %v2430
        %v2432 = vmul.f32 %v2412, 1.442695
        %v2433 = vpow.pop %v2432
        %v2434 = vmul.f32 %v2413, 1.442695
        %v2435 = vpow.pop %v2434
        %v2436 = vmul.f32 %v2414, 1.442695
        %v2437 = vpow.pop %v2436
        %v2438 = vmul.f32 %v2415, 1.442695
        %v2439 = vpow.pop %v2438
        %v2440 = vmul.f32 %v2416, 1.442695
        %v2441 = vpow.pop %v2440
        %v2442 = vmul.f32 %v2417, 1.442695
        %v2443 = vpow.pop %v2442
        %v2444 = vmul.f32 %v2418, 1.442695
        %v2445 = vpow.pop %v2444
        %v2446 = vmul.f32 %v2419, 1.442695
        %v2447 = vpow.pop %v2446
        %v2448 = vmul.f32 %v2420, 1.442695
        %v2449 = vpow.pop %v2448
        %v2450 = vmul.f32 %v2421, 1.442695
        %v2451 = vpow.pop %v2450
        %v2452 = vmul.f32 %v2422, 1.442695
        %v2453 = vpow.pop %v2452
        %v2454 = vmul.f32 %v2423, 1.442695
        %v2455 = vpow.pop %v2454
        %v2456 = vadd.f32 %v2425, %v2427
        %2457 = vadd.xlane.f32.xlu0 %v2456
        %v2458 = vpop.xlane.xlu0 %2457
        %v2459 = vadd.f32 %v2429, %v2431
        %2460 = vadd.xlane.f32.xlu0 %v2459
        %v2461 = vpop.xlane.xlu0 %2460
        %v2462 = vadd.f32 %v2433, %v2435
        %2463 = vadd.xlane.f32.xlu0 %v2462
        %v2464 = vpop.xlane.xlu0 %2463
        %v2465 = vadd.f32 %v2437, %v2439
        %2466 = vadd.xlane.f32.xlu0 %v2465
        %v2467 = vpop.xlane.xlu0 %2466
        %v2468 = vadd.f32 %v2441, %v2443
        %2469 = vadd.xlane.f32.xlu0 %v2468
        %v2470 = vpop.xlane.xlu0 %2469
        %v2471 = vadd.f32 %v2445, %v2447
        %2472 = vadd.xlane.f32.xlu0 %v2471
        %v2473 = vpop.xlane.xlu0 %2472
        %v2474 = vadd.f32 %v2449, %v2451
        %2475 = vadd.xlane.f32.xlu0 %v2474
        %v2476 = vpop.xlane.xlu0 %2475
        %v2477 = vadd.f32 %v2453, %v2455
        %2478 = vadd.xlane.f32.xlu0 %v2477
        %v2479 = vpop.xlane.xlu0 %2478
        %v2480 = vrcp.pop %v2458
        %v2481 = vrcp.pop %v2461
        %v2482 = vrcp.pop %v2464
        %v2483 = vrcp.pop %v2467
        %v2484 = vrcp.pop %v2470
        %v2485 = vrcp.pop %v2473
        %v2486 = vrcp.pop %v2476
        %v2487 = vrcp.pop %v2479
        %v2488 = vmul.f32 %v2425, %v2480
        %v2489 = vmul.f32 %v2427, %v2480
        %v2490 = vmul.f32 %v2429, %v2481
        %v2491 = vmul.f32 %v2431, %v2481
        %v2492 = vmul.f32 %v2433, %v2482
        %v2493 = vmul.f32 %v2435, %v2482
        %v2494 = vmul.f32 %v2437, %v2483
        %v2495 = vmul.f32 %v2439, %v2483
        %v2496 = vmul.f32 %v2441, %v2484
        %v2497 = vmul.f32 %v2443, %v2484
        %v2498 = vmul.f32 %v2445, %v2485
        %v2499 = vmul.f32 %v2447, %v2485
        %v2500 = vmul.f32 %v2449, %v2486
        %v2501 = vmul.f32 %v2451, %v2486
        %v2502 = vmul.f32 %v2453, %v2487
        %v2503 = vmul.f32 %v2455, %v2487
        %v2504 = vpack.c.bf16 %v2490, %v2488
        %v2505 = vpack.c.bf16 %v2491, %v2489
        %v2506 = vpack.c.bf16 %v2494, %v2492
        %v2507 = vpack.c.bf16 %v2495, %v2493
        %v2508 = vpack.c.bf16 %v2498, %v2496
        %v2509 = vpack.c.bf16 %v2499, %v2497
        %v2510 = vpack.c.bf16 %v2502, %v2500
        %v2511 = vpack.c.bf16 %v2503, %v2501
        %2512 = vmatprep.subr.bf16.mxu0 0
        %2513 = vmatpush1.bf16.xpose.msra.mxu0 0
        %2514 = vmatprep.subr.bf16.mxu0 0
        %2515 = vmatpush1.bf16.xpose.msra.mxu0 0
        %2516 = vmatprep.subr.bf16.mxu0 0
        %2517 = vmatpush1.bf16.xpose.msra.mxu0 0
        %2518 = vmatprep.subr.bf16.mxu0 0
        %2519 = vmatpush1.bf16.xpose.msra.mxu0 0
        %2520 = vmatprep.subr.bf16.mxu0 %v2511
        %2521 = vmatpush1.bf16.xpose.msra.mxu0 %v2510
        %2522 = vmatprep.subr.bf16.mxu0 %v2509
        %2523 = vmatpush1.bf16.xpose.msra.mxu0 %v2508
        %2524 = vmatprep.subr.bf16.mxu0 %v2507
        %2525 = vmatpush1.bf16.xpose.msra.mxu0 %v2506
        %2526 = vmatprep.subr.bf16.mxu0 %v2505
        %2527 = vmatpush1.bf16.xpose.msra.mxu0 %v2504
        %2528 = vmatprep.subr.bf16.mxu0 0
        %2529 = vmatpush2.bf16.xpose.msra.mxu0 0
        %2530 = vmatprep.subr.bf16.mxu0 0
        %2531 = vmatpush2.bf16.xpose.msra.mxu0 0
        %2532 = vmatprep.subr.bf16.mxu0 0
        %2533 = vmatpush2.bf16.xpose.msra.mxu0 0
        %2534 = vmatprep.subr.bf16.mxu0 0
        %2535 = vmatpush2.bf16.xpose.msra.mxu0 0
        %2536 = vmatprep.subr.bf16.mxu0 0
        %2537 = vmatpush2.bf16.xpose.msra.mxu0 0
        %2538 = vmatprep.subr.bf16.mxu0 0
        %2539 = vmatpush2.bf16.xpose.msra.mxu0 0
        %2540 = vmatprep.subr.bf16.mxu0 0
        %2541 = vmatpush2.bf16.xpose.msra.mxu0 0
        %2542 = vmatprep.subr.bf16.mxu0 0
        %2543 = vmatpush2.bf16.xpose.msra.mxu0 0
        %2544 = vmatprep.mubr.bf16.mxu0 %v995
        %2545 = vmatmul.mubr.bf16.gmra.mxu0 %v994
        %v2546 = vpop.f32.mrf.mxu0
        %v2547 = vadd.f32 0.0, %v2546
        %v2548 = vpop.f32.mrf.mxu0
        %v2549 = vpop.f32.mrf.mxu0
        %v2550 = vpop.f32.mrf.mxu0
        %2551 = vdwg.mxu0
        %s2552 = scalar_lea.vmem %s10, 128
        %v2553 = vld [vmem:[%s2552] sm:$0xff]
        %v2554 = vld [vmem:[%s2552 + $0x8] sm:$0xff]
        %v2555 = vld [vmem:[%s2552 + $0x10] sm:$0xff]
        %v2556 = vld [vmem:[%s2552 + $0x18] sm:$0xff]
        %v2557 = vld [vmem:[%s2552 + $0x20] sm:$0xff]
        %v2558 = vld [vmem:[%s2552 + $0x28] sm:$0xff]
        %v2559 = vld [vmem:[%s2552 + $0x30] sm:$0xff]
        %v2560 = vld [vmem:[%s2552 + $0x38] sm:$0xff]
        %v2561 = vunpack.c.l.bf16 %v2553
        %v2562 = vunpack.c.h.bf16 %v2553
        %v2563 = vunpack.c.l.bf16 %v2554
        %v2564 = vunpack.c.h.bf16 %v2554
        %v2565 = vunpack.c.l.bf16 %v2555
        %v2566 = vunpack.c.h.bf16 %v2555
        %v2567 = vunpack.c.l.bf16 %v2556
        %v2568 = vunpack.c.h.bf16 %v2556
        %v2569 = vunpack.c.l.bf16 %v2557
        %v2570 = vunpack.c.h.bf16 %v2557
        %v2571 = vunpack.c.l.bf16 %v2558
        %v2572 = vunpack.c.h.bf16 %v2558
        %v2573 = vunpack.c.l.bf16 %v2559
        %v2574 = vunpack.c.h.bf16 %v2559
        %v2575 = vunpack.c.l.bf16 %v2560
        %v2576 = vunpack.c.h.bf16 %v2560
        %v2578 = vsel %vm625, %v986, 0
        %v2581 = vsel %vm625, %v987, 0
        %2583 = vmatprep.subr.bf16.mxu0 0
        %2584 = vmatpush1.bf16.msra.mxu0 0
        %2585 = vmatprep.subr.bf16.mxu0 0
        %2586 = vmatpush1.bf16.msra.mxu0 0
        %2587 = vmatprep.subr.bf16.mxu0 0
        %2588 = vmatpush1.bf16.msra.mxu0 0
        %2589 = vmatprep.subr.bf16.mxu0 0
        %2590 = vmatpush1.bf16.msra.mxu0 0
        %2591 = vmatprep.subr.bf16.mxu0 0
        %2592 = vmatpush1.bf16.msra.mxu0 0
        %2593 = vmatprep.subr.bf16.mxu0 0
        %2594 = vmatpush1.bf16.msra.mxu0 0
        %2595 = vmatprep.subr.bf16.mxu0 0
        %2596 = vmatpush1.bf16.msra.mxu0 0
        %2597 = vmatprep.subr.bf16.mxu0 %v2581
        %2598 = vmatpush1.bf16.msra.mxu0 %v2578
        %2599 = vmatprep.subr.bf16.mxu0 0
        %2600 = vmatpush2.bf16.msra.mxu0 0
        %2601 = vmatprep.subr.bf16.mxu0 0
        %2602 = vmatpush2.bf16.msra.mxu0 0
        %2603 = vmatprep.subr.bf16.mxu0 0
        %2604 = vmatpush2.bf16.msra.mxu0 0
        %2605 = vmatprep.subr.bf16.mxu0 0
        %2606 = vmatpush2.bf16.msra.mxu0 0
        %2607 = vmatprep.subr.bf16.mxu0 0
        %2608 = vmatpush2.bf16.msra.mxu0 0
        %2609 = vmatprep.subr.bf16.mxu0 0
        %2610 = vmatpush2.bf16.msra.mxu0 0
        %2611 = vmatprep.subr.bf16.mxu0 0
        %2612 = vmatpush2.bf16.msra.mxu0 0
        %2613 = vmatprep.subr.bf16.mxu0 0
        %2614 = vmatpush2.bf16.msra.mxu0 0
        %2615 = vmatprep.mubr.bf16.mxu0 0
        %2616 = vmatmul.mubr.bf16.gmra.mxu0 %v2294
        %v2617 = vpop.f32.mrf.mxu0
        %v2618 = vadd.f32 %v2561, %v2617
        %v2619 = vpop.f32.mrf.mxu0
        %v2620 = vadd.f32 %v2562, %v2619
        %v2621 = vpop.f32.mrf.mxu0
        %v2622 = vadd.f32 %v2563, %v2621
        %v2623 = vpop.f32.mrf.mxu0
        %v2624 = vadd.f32 %v2564, %v2623
        %2625 = vmatprep.mubr.bf16.mxu0 0
        %2626 = vmatmul.mubr.bf16.gmra.mxu0 %v2297
        %v2627 = vpop.f32.mrf.mxu0
        %v2628 = vadd.f32 %v2565, %v2627
        %v2629 = vpop.f32.mrf.mxu0
        %v2630 = vadd.f32 %v2566, %v2629
        %v2631 = vpop.f32.mrf.mxu0
        %v2632 = vadd.f32 %v2567, %v2631
        %v2633 = vpop.f32.mrf.mxu0
        %v2634 = vadd.f32 %v2568, %v2633
        %2635 = vmatprep.mubr.bf16.mxu0 0
        %2636 = vmatmul.mubr.bf16.gmra.mxu0 %v2300
        %v2637 = vpop.f32.mrf.mxu0
        %v2638 = vadd.f32 %v2569, %v2637
        %v2639 = vpop.f32.mrf.mxu0
        %v2640 = vadd.f32 %v2570, %v2639
        %v2641 = vpop.f32.mrf.mxu0
        %v2642 = vadd.f32 %v2571, %v2641
        %v2643 = vpop.f32.mrf.mxu0
        %v2644 = vadd.f32 %v2572, %v2643
        %2645 = vmatprep.mubr.bf16.mxu0 0
        %2646 = vmatmul.mubr.bf16.gmra.mxu0 %v2303
        %v2647 = vpop.f32.mrf.mxu0
        %v2648 = vadd.f32 %v2573, %v2647
        %v2649 = vpop.f32.mrf.mxu0
        %v2650 = vadd.f32 %v2574, %v2649
        %v2651 = vpop.f32.mrf.mxu0
        %v2652 = vadd.f32 %v2575, %v2651
        %v2653 = vpop.f32.mrf.mxu0
        %v2654 = vadd.f32 %v2576, %v2653
        %2655 = vdwg.mxu0
        %v2656 = vmax.f32 %v2618, %v2628
        %v2657 = vmax.f32 %v2622, %v2632
        %v2658 = vmax.f32 %v2656, %v2638
        %v2659 = vmax.f32 %v2657, %v2642
        %v2660 = vmax.f32 %v2658, %v2648
        %v2661 = vmax.f32 %v2659, %v2652
        %v2662 = vmax.f32 %v2660, %v2661
        %v2663 = vrot.slane %v2662, 4
        %v2664 = vmax.f32 %v2662, %v2663
        %v2665 = vrot.slane %v2664, 2
        %v2666 = vmax.f32 %v2664, %v2665
        %v2667 = vrot.slane %v2666, 1
        %v2668 = vmax.f32 %v2666, %v2667
        %v2669 = vmax.f32 %v2620, %v2630
        %v2670 = vmax.f32 %v2624, %v2634
        %v2671 = vmax.f32 %v2669, %v2640
        %v2672 = vmax.f32 %v2670, %v2644
        %v2673 = vmax.f32 %v2671, %v2650
        %v2674 = vmax.f32 %v2672, %v2654
        %v2675 = vmax.f32 %v2673, %v2674
        %v2676 = vrot.slane %v2675, 4
        %v2677 = vmax.f32 %v2675, %v2676
        %v2678 = vrot.slane %v2677, 2
        %v2679 = vmax.f32 %v2677, %v2678
        %v2680 = vrot.slane %v2679, 1
        %v2681 = vmax.f32 %v2679, %v2680
        %v2682 = vsub.f32 %v2618, %v2668
        %v2683 = vsub.f32 %v2620, %v2681
        %v2684 = vsub.f32 %v2622, %v2668
        %v2685 = vsub.f32 %v2624, %v2681
        %v2686 = vsub.f32 %v2628, %v2668
        %v2687 = vsub.f32 %v2630, %v2681
        %v2688 = vsub.f32 %v2632, %v2668
        %v2689 = vsub.f32 %v2634, %v2681
        %v2690 = vsub.f32 %v2638, %v2668
        %v2691 = vsub.f32 %v2640, %v2681
        %v2692 = vsub.f32 %v2642, %v2668
        %v2693 = vsub.f32 %v2644, %v2681
        %v2694 = vsub.f32 %v2648, %v2668
        %v2695 = vsub.f32 %v2650, %v2681
        %v2696 = vsub.f32 %v2652, %v2668
        %v2697 = vsub.f32 %v2654, %v2681
        %v2698 = vmul.f32 %v2682, 1.442695
        %v2699 = vpow.pop %v2698
        %v2700 = vmul.f32 %v2683, 1.442695
        %v2701 = vpow.pop %v2700
        %v2702 = vmul.f32 %v2684, 1.442695
        %v2703 = vpow.pop %v2702
        %v2704 = vmul.f32 %v2685, 1.442695
        %v2705 = vpow.pop %v2704
        %v2706 = vmul.f32 %v2686, 1.442695
        %v2707 = vpow.pop %v2706
        %v2708 = vmul.f32 %v2687, 1.442695
        %v2709 = vpow.pop %v2708
        %v2710 = vmul.f32 %v2688, 1.442695
        %v2711 = vpow.pop %v2710
        %v2712 = vmul.f32 %v2689, 1.442695
        %v2713 = vpow.pop %v2712
        %v2714 = vmul.f32 %v2690, 1.442695
        %v2715 = vpow.pop %v2714
        %v2716 = vmul.f32 %v2691, 1.442695
        %v2717 = vpow.pop %v2716
        %v2718 = vmul.f32 %v2692, 1.442695
        %v2719 = vpow.pop %v2718
        %v2720 = vmul.f32 %v2693, 1.442695
        %v2721 = vpow.pop %v2720
        %v2722 = vmul.f32 %v2694, 1.442695
        %v2723 = vpow.pop %v2722
        %v2724 = vmul.f32 %v2695, 1.442695
        %v2725 = vpow.pop %v2724
        %v2726 = vmul.f32 %v2696, 1.442695
        %v2727 = vpow.pop %v2726
        %v2728 = vmul.f32 %v2697, 1.442695
        %v2729 = vpow.pop %v2728
        %v2730 = vadd.f32 %v2699, %v2703
        %v2731 = vadd.f32 %v2730, %v2707
        %v2732 = vadd.f32 %v2731, %v2711
        %v2733 = vadd.f32 %v2732, %v2715
        %v2734 = vadd.f32 %v2733, %v2719
        %v2735 = vadd.f32 %v2734, %v2723
        %v2736 = vadd.f32 %v2735, %v2727
        %v2737 = vrot.slane %v2736, 4
        %v2738 = vadd.f32 %v2736, %v2737
        %v2739 = vrot.slane %v2738, 2
        %v2740 = vadd.f32 %v2738, %v2739
        %v2741 = vrot.slane %v2740, 1
        %v2742 = vadd.f32 %v2740, %v2741
        %v2743 = vadd.f32 %v2701, %v2705
        %v2744 = vadd.f32 %v2743, %v2709
        %v2745 = vadd.f32 %v2744, %v2713
        %v2746 = vadd.f32 %v2745, %v2717
        %v2747 = vadd.f32 %v2746, %v2721
        %v2748 = vadd.f32 %v2747, %v2725
        %v2749 = vadd.f32 %v2748, %v2729
        %v2750 = vrot.slane %v2749, 4
        %v2751 = vadd.f32 %v2749, %v2750
        %v2752 = vrot.slane %v2751, 2
        %v2753 = vadd.f32 %v2751, %v2752
        %v2754 = vrot.slane %v2753, 1
        %v2755 = vadd.f32 %v2753, %v2754
        %v2756 = vrcp.pop %v2742
        %v2757 = vrcp.pop %v2755
        %v2758 = vmul.f32 %v2699, %v2756
        %v2759 = vmul.f32 %v2701, %v2757
        %v2760 = vmul.f32 %v2703, %v2756
        %v2761 = vmul.f32 %v2705, %v2757
        %v2762 = vmul.f32 %v2707, %v2756
        %v2763 = vmul.f32 %v2709, %v2757
        %v2764 = vmul.f32 %v2711, %v2756
        %v2765 = vmul.f32 %v2713, %v2757
        %v2766 = vmul.f32 %v2715, %v2756
        %v2767 = vmul.f32 %v2717, %v2757
        %v2768 = vmul.f32 %v2719, %v2756
        %v2769 = vmul.f32 %v2721, %v2757
        %v2770 = vmul.f32 %v2723, %v2756
        %v2771 = vmul.f32 %v2725, %v2757
        %v2772 = vmul.f32 %v2727, %v2756
        %v2773 = vmul.f32 %v2729, %v2757
        %v2774 = vpack.c.bf16 %v2547, %v2547
        %v2775 = vpack.c.bf16 %v2760, %v2758
        %v2776 = vpack.c.bf16 %v2761, %v2759
        %v2777 = vpack.c.bf16 %v2764, %v2762
        %v2778 = vpack.c.bf16 %v2765, %v2763
        %v2779 = vpack.c.bf16 %v2768, %v2766
        %v2780 = vpack.c.bf16 %v2769, %v2767
        %v2781 = vpack.c.bf16 %v2772, %v2770
        %v2782 = vpack.c.bf16 %v2773, %v2771
        %v2784 = vsel %vm1626, %v2774, 0
        %2786 = vmatprep.subr.bf16.mxu0 0
        %2787 = vmatpush1.bf16.msra.mxu0 0
        %2788 = vmatprep.subr.bf16.mxu0 0
        %2789 = vmatpush1.bf16.msra.mxu0 0
        %2790 = vmatprep.subr.bf16.mxu0 0
        %2791 = vmatpush1.bf16.msra.mxu0 0
        %2792 = vmatprep.subr.bf16.mxu0 0
        %2793 = vmatpush1.bf16.msra.mxu0 0
        %2794 = vmatprep.subr.bf16.mxu0 %v2782
        %2795 = vmatpush1.bf16.msra.mxu0 %v2781
        %2796 = vmatprep.subr.bf16.mxu0 %v2780
        %2797 = vmatpush1.bf16.msra.mxu0 %v2779
        %2798 = vmatprep.subr.bf16.mxu0 %v2778
        %2799 = vmatpush1.bf16.msra.mxu0 %v2777
        %2800 = vmatprep.subr.bf16.mxu0 %v2776
        %2801 = vmatpush1.bf16.msra.mxu0 %v2775
        %2802 = vmatprep.subr.bf16.mxu0 0
        %2803 = vmatpush2.bf16.msra.mxu0 0
        %2804 = vmatprep.subr.bf16.mxu0 0
        %2805 = vmatpush2.bf16.msra.mxu0 0
        %2806 = vmatprep.subr.bf16.mxu0 0
        %2807 = vmatpush2.bf16.msra.mxu0 0
        %2808 = vmatprep.subr.bf16.mxu0 0
        %2809 = vmatpush2.bf16.msra.mxu0 0
        %2810 = vmatprep.subr.bf16.mxu0 0
        %2811 = vmatpush2.bf16.msra.mxu0 0
        %2812 = vmatprep.subr.bf16.mxu0 0
        %2813 = vmatpush2.bf16.msra.mxu0 0
        %2814 = vmatprep.subr.bf16.mxu0 0
        %2815 = vmatpush2.bf16.msra.mxu0 0
        %2816 = vmatprep.subr.bf16.mxu0 0
        %2817 = vmatpush2.bf16.msra.mxu0 0
        %2818 = vmatprep.mubr.bf16.mxu0 0
        %2819 = vmatmul.mubr.bf16.gmra.mxu0 %v2784
        %v2820 = vpop.f32.mrf.mxu0
        %v2821 = vadd.f32 0.0, %v2820
        %v2822 = vpop.f32.mrf.mxu0
        %v2823 = vadd.f32 0.0, %v2822
        %v2824 = vpop.f32.mrf.mxu0
        %v2825 = vpop.f32.mrf.mxu0
        %2826 = vdwg.mxu0
        %2827 = vst [vmem:[#allocation2 + $0x20] sm:$0xff] %v2821
        %2828 = vst [vmem:[#allocation2 + $0x28] sm:$0xff] %v2823
        %s2829 = scalar_lea.vmem %s9, 192
        %v2830 = vld [vmem:[%s2829] sm:$0xff]
        %v2831 = vld [vmem:[%s2829 + $0x8] sm:$0xff]
        %v2832 = vld [vmem:[%s2829 + $0x10] sm:$0xff]
        %v2833 = vld [vmem:[%s2829 + $0x18] sm:$0xff]
        %v2834 = vld [vmem:[%s2829 + $0x20] sm:$0xff]
        %v2835 = vld [vmem:[%s2829 + $0x28] sm:$0xff]
        %v2836 = vld [vmem:[%s2829 + $0x30] sm:$0xff]
        %v2837 = vld [vmem:[%s2829 + $0x38] sm:$0xff]
        %v2838 = vunpack.c.l.bf16 %v2830
        %v2839 = vunpack.c.h.bf16 %v2830
        %v2840 = vunpack.c.l.bf16 %v2831
        %v2841 = vunpack.c.h.bf16 %v2831
        %v2842 = vunpack.c.l.bf16 %v2832
        %v2843 = vunpack.c.h.bf16 %v2832
        %v2844 = vunpack.c.l.bf16 %v2833
        %v2845 = vunpack.c.h.bf16 %v2833
        %v2846 = vunpack.c.l.bf16 %v2834
        %v2847 = vunpack.c.h.bf16 %v2834
        %v2848 = vunpack.c.l.bf16 %v2835
        %v2849 = vunpack.c.h.bf16 %v2835
        %v2850 = vunpack.c.l.bf16 %v2836
        %v2851 = vunpack.c.h.bf16 %v2836
        %v2852 = vunpack.c.l.bf16 %v2837
        %v2853 = vunpack.c.h.bf16 %v2837
        %2854 = vrot.lane.b32.xlu0 %v1109, 104
        %v2855 = vpop.permute.xlu0 %2854
        %2856 = vrot.lane.b32.xlu0 %v1110, 104
        %v2857 = vpop.permute.xlu0 %2856
        %2858 = vrot.lane.b32.xlu0 %v1111, 104
        %v2859 = vpop.permute.xlu0 %2858
        %2860 = vrot.lane.b32.xlu0 %v1112, 104
        %v2861 = vpop.permute.xlu0 %2860
        %v2864 = vrot.slane %v990, 4
        %v2865 = vrot.slane %v991, 4
        %v2867 = vsel %vm621, %v2855, 0
        %v2870 = vsel %vm621, %v2857, 0
        %v2873 = vsel %vm621, %v2859, 0
        %v2876 = vsel %vm621, %v2861, 0
        %v2879 = vsel %vm625, %v2864, 0
        %v2882 = vsel %vm625, %v2865, 0
        %2884 = vmatprep.subr.bf16.mxu0 0
        %2885 = vmatpush1.bf16.msra.mxu0 0
        %2886 = vmatprep.subr.bf16.mxu0 0
        %2887 = vmatpush1.bf16.msra.mxu0 0
        %2888 = vmatprep.subr.bf16.mxu0 0
        %2889 = vmatpush1.bf16.msra.mxu0 0
        %2890 = vmatprep.subr.bf16.mxu0 0
        %2891 = vmatpush1.bf16.msra.mxu0 0
        %2892 = vmatprep.subr.bf16.mxu0 0
        %2893 = vmatpush1.bf16.msra.mxu0 0
        %2894 = vmatprep.subr.bf16.mxu0 0
        %2895 = vmatpush1.bf16.msra.mxu0 0
        %2896 = vmatprep.subr.bf16.mxu0 0
        %2897 = vmatpush1.bf16.msra.mxu0 0
        %2898 = vmatprep.subr.bf16.mxu0 %v2882
        %2899 = vmatpush1.bf16.msra.mxu0 %v2879
        %2900 = vmatprep.subr.bf16.mxu0 0
        %2901 = vmatpush2.bf16.msra.mxu0 0
        %2902 = vmatprep.subr.bf16.mxu0 0
        %2903 = vmatpush2.bf16.msra.mxu0 0
        %2904 = vmatprep.subr.bf16.mxu0 0
        %2905 = vmatpush2.bf16.msra.mxu0 0
        %2906 = vmatprep.subr.bf16.mxu0 0
        %2907 = vmatpush2.bf16.msra.mxu0 0
        %2908 = vmatprep.subr.bf16.mxu0 0
        %2909 = vmatpush2.bf16.msra.mxu0 0
        %2910 = vmatprep.subr.bf16.mxu0 0
        %2911 = vmatpush2.bf16.msra.mxu0 0
        %2912 = vmatprep.subr.bf16.mxu0 0
        %2913 = vmatpush2.bf16.msra.mxu0 0
        %2914 = vmatprep.subr.bf16.mxu0 0
        %2915 = vmatpush2.bf16.msra.mxu0 0
        %2916 = vmatprep.mubr.bf16.mxu0 0
        %2917 = vmatmul.mubr.bf16.gmra.mxu0 %v2867
        %v2918 = vpop.f32.mrf.mxu0
        %v2919 = vadd.f32 %v2838, %v2918
        %v2920 = vpop.f32.mrf.mxu0
        %v2921 = vadd.f32 %v2839, %v2920
        %v2922 = vpop.f32.mrf.mxu0
        %v2923 = vadd.f32 %v2840, %v2922
        %v2924 = vpop.f32.mrf.mxu0
        %v2925 = vadd.f32 %v2841, %v2924
        %2926 = vmatprep.mubr.bf16.mxu0 0
        %2927 = vmatmul.mubr.bf16.gmra.mxu0 %v2870
        %v2928 = vpop.f32.mrf.mxu0
        %v2929 = vadd.f32 %v2842, %v2928
        %v2930 = vpop.f32.mrf.mxu0
        %v2931 = vadd.f32 %v2843, %v2930
        %v2932 = vpop.f32.mrf.mxu0
        %v2933 = vadd.f32 %v2844, %v2932
        %v2934 = vpop.f32.mrf.mxu0
        %v2935 = vadd.f32 %v2845, %v2934
        %2936 = vmatprep.mubr.bf16.mxu0 0
        %2937 = vmatmul.mubr.bf16.gmra.mxu0 %v2873
        %v2938 = vpop.f32.mrf.mxu0
        %v2939 = vadd.f32 %v2846, %v2938
        %v2940 = vpop.f32.mrf.mxu0
        %v2941 = vadd.f32 %v2847, %v2940
        %v2942 = vpop.f32.mrf.mxu0
        %v2943 = vadd.f32 %v2848, %v2942
        %v2944 = vpop.f32.mrf.mxu0
        %v2945 = vadd.f32 %v2849, %v2944
        %2946 = vmatprep.mubr.bf16.mxu0 0
        %2947 = vmatmul.mubr.bf16.gmra.mxu0 %v2876
        %v2948 = vpop.f32.mrf.mxu0
        %v2949 = vadd.f32 %v2850, %v2948
        %v2950 = vpop.f32.mrf.mxu0
        %v2951 = vadd.f32 %v2851, %v2950
        %v2952 = vpop.f32.mrf.mxu0
        %v2953 = vadd.f32 %v2852, %v2952
        %v2954 = vpop.f32.mrf.mxu0
        %v2955 = vadd.f32 %v2853, %v2954
        %2956 = vdwg.mxu0
        %v2957 = vmax.f32 %v2919, %v2921
        %2958 = vmax.xlane.f32.xlu0 %v2957
        %v2959 = vpop.xlane.xlu0 %2958
        %v2960 = vmax.f32 %v2923, %v2925
        %2961 = vmax.xlane.f32.xlu0 %v2960
        %v2962 = vpop.xlane.xlu0 %2961
        %v2963 = vmax.f32 %v2929, %v2931
        %2964 = vmax.xlane.f32.xlu0 %v2963
        %v2965 = vpop.xlane.xlu0 %2964
        %v2966 = vmax.f32 %v2933, %v2935
        %2967 = vmax.xlane.f32.xlu0 %v2966
        %v2968 = vpop.xlane.xlu0 %2967
        %v2969 = vmax.f32 %v2939, %v2941
        %2970 = vmax.xlane.f32.xlu0 %v2969
        %v2971 = vpop.xlane.xlu0 %2970
        %v2972 = vmax.f32 %v2943, %v2945
        %2973 = vmax.xlane.f32.xlu0 %v2972
        %v2974 = vpop.xlane.xlu0 %2973
        %v2975 = vmax.f32 %v2949, %v2951
        %2976 = vmax.xlane.f32.xlu0 %v2975
        %v2977 = vpop.xlane.xlu0 %2976
        %v2978 = vmax.f32 %v2953, %v2955
        %2979 = vmax.xlane.f32.xlu0 %v2978
        %v2980 = vpop.xlane.xlu0 %2979
        %v2981 = vsub.f32 %v2919, %v2959
        %v2982 = vsub.f32 %v2921, %v2959
        %v2983 = vsub.f32 %v2923, %v2962
        %v2984 = vsub.f32 %v2925, %v2962
        %v2985 = vsub.f32 %v2929, %v2965
        %v2986 = vsub.f32 %v2931, %v2965
        %v2987 = vsub.f32 %v2933, %v2968
        %v2988 = vsub.f32 %v2935, %v2968
        %v2989 = vsub.f32 %v2939, %v2971
        %v2990 = vsub.f32 %v2941, %v2971
        %v2991 = vsub.f32 %v2943, %v2974
        %v2992 = vsub.f32 %v2945, %v2974
        %v2993 = vsub.f32 %v2949, %v2977
        %v2994 = vsub.f32 %v2951, %v2977
        %v2995 = vsub.f32 %v2953, %v2980
        %v2996 = vsub.f32 %v2955, %v2980
        %v2997 = vmul.f32 %v2981, 1.442695
        %v2998 = vpow.pop %v2997
        %v2999 = vmul.f32 %v2982, 1.442695
        %v3000 = vpow.pop %v2999
        %v3001 = vmul.f32 %v2983, 1.442695
        %v3002 = vpow.pop %v3001
        %v3003 = vmul.f32 %v2984, 1.442695
        %v3004 = vpow.pop %v3003
        %v3005 = vmul.f32 %v2985, 1.442695
        %v3006 = vpow.pop %v3005
        %v3007 = vmul.f32 %v2986, 1.442695
        %v3008 = vpow.pop %v3007
        %v3009 = vmul.f32 %v2987, 1.442695
        %v3010 = vpow.pop %v3009
        %v3011 = vmul.f32 %v2988, 1.442695
        %v3012 = vpow.pop %v3011
        %v3013 = vmul.f32 %v2989, 1.442695
        %v3014 = vpow.pop %v3013
        %v3015 = vmul.f32 %v2990, 1.442695
        %v3016 = vpow.pop %v3015
        %v3017 = vmul.f32 %v2991, 1.442695
        %v3018 = vpow.pop %v3017
        %v3019 = vmul.f32 %v2992, 1.442695
        %v3020 = vpow.pop %v3019
        %v3021 = vmul.f32 %v2993, 1.442695
        %v3022 = vpow.pop %v3021
        %v3023 = vmul.f32 %v2994, 1.442695
        %v3024 = vpow.pop %v3023
        %v3025 = vmul.f32 %v2995, 1.442695
        %v3026 = vpow.pop %v3025
        %v3027 = vmul.f32 %v2996, 1.442695
        %v3028 = vpow.pop %v3027
        %v3029 = vadd.f32 %v2998, %v3000
        %3030 = vadd.xlane.f32.xlu0 %v3029
        %v3031 = vpop.xlane.xlu0 %3030
        %v3032 = vadd.f32 %v3002, %v3004
        %3033 = vadd.xlane.f32.xlu0 %v3032
        %v3034 = vpop.xlane.xlu0 %3033
        %v3035 = vadd.f32 %v3006, %v3008
        %3036 = vadd.xlane.f32.xlu0 %v3035
        %v3037 = vpop.xlane.xlu0 %3036
        %v3038 = vadd.f32 %v3010, %v3012
        %3039 = vadd.xlane.f32.xlu0 %v3038
        %v3040 = vpop.xlane.xlu0 %3039
        %v3041 = vadd.f32 %v3014, %v3016
        %3042 = vadd.xlane.f32.xlu0 %v3041
        %v3043 = vpop.xlane.xlu0 %3042
        %v3044 = vadd.f32 %v3018, %v3020
        %3045 = vadd.xlane.f32.xlu0 %v3044
        %v3046 = vpop.xlane.xlu0 %3045
        %v3047 = vadd.f32 %v3022, %v3024
        %3048 = vadd.xlane.f32.xlu0 %v3047
        %v3049 = vpop.xlane.xlu0 %3048
        %v3050 = vadd.f32 %v3026, %v3028
        %3051 = vadd.xlane.f32.xlu0 %v3050
        %v3052 = vpop.xlane.xlu0 %3051
        %v3053 = vrcp.pop %v3031
        %v3054 = vrcp.pop %v3034
        %v3055 = vrcp.pop %v3037
        %v3056 = vrcp.pop %v3040
        %v3057 = vrcp.pop %v3043
        %v3058 = vrcp.pop %v3046
        %v3059 = vrcp.pop %v3049
        %v3060 = vrcp.pop %v3052
        %v3061 = vmul.f32 %v2998, %v3053
        %v3062 = vmul.f32 %v3000, %v3053
        %v3063 = vmul.f32 %v3002, %v3054
        %v3064 = vmul.f32 %v3004, %v3054
        %v3065 = vmul.f32 %v3006, %v3055
        %v3066 = vmul.f32 %v3008, %v3055
        %v3067 = vmul.f32 %v3010, %v3056
        %v3068 = vmul.f32 %v3012, %v3056
        %v3069 = vmul.f32 %v3014, %v3057
        %v3070 = vmul.f32 %v3016, %v3057
        %v3071 = vmul.f32 %v3018, %v3058
        %v3072 = vmul.f32 %v3020, %v3058
        %v3073 = vmul.f32 %v3022, %v3059
        %v3074 = vmul.f32 %v3024, %v3059
        %v3075 = vmul.f32 %v3026, %v3060
        %v3076 = vmul.f32 %v3028, %v3060
        %v3077 = vpack.c.bf16 %v3063, %v3061
        %v3078 = vpack.c.bf16 %v3064, %v3062
        %v3079 = vpack.c.bf16 %v3067, %v3065
        %v3080 = vpack.c.bf16 %v3068, %v3066
        %v3081 = vpack.c.bf16 %v3071, %v3069
        %v3082 = vpack.c.bf16 %v3072, %v3070
        %v3083 = vpack.c.bf16 %v3075, %v3073
        %v3084 = vpack.c.bf16 %v3076, %v3074
        %v3087 = vrot.slane %v994, 4
        %v3088 = vrot.slane %v995, 4
        %3091 = vmatprep.subr.bf16.mxu0 0
        %3092 = vmatpush1.bf16.xpose.msra.mxu0 0
        %3093 = vmatprep.subr.bf16.mxu0 0
        %3094 = vmatpush1.bf16.xpose.msra.mxu0 0
        %3095 = vmatprep.subr.bf16.mxu0 0
        %3096 = vmatpush1.bf16.xpose.msra.mxu0 0
        %3097 = vmatprep.subr.bf16.mxu0 0
        %3098 = vmatpush1.bf16.xpose.msra.mxu0 0
        %3099 = vmatprep.subr.bf16.mxu0 %v3084
        %3100 = vmatpush1.bf16.xpose.msra.mxu0 %v3083
        %3101 = vmatprep.subr.bf16.mxu0 %v3082
        %3102 = vmatpush1.bf16.xpose.msra.mxu0 %v3081
        %3103 = vmatprep.subr.bf16.mxu0 %v3080
        %3104 = vmatpush1.bf16.xpose.msra.mxu0 %v3079
        %3105 = vmatprep.subr.bf16.mxu0 %v3078
        %3106 = vmatpush1.bf16.xpose.msra.mxu0 %v3077
        %3107 = vmatprep.subr.bf16.mxu0 0
        %3108 = vmatpush2.bf16.xpose.msra.mxu0 0
        %3109 = vmatprep.subr.bf16.mxu0 0
        %3110 = vmatpush2.bf16.xpose.msra.mxu0 0
        %3111 = vmatprep.subr.bf16.mxu0 0
        %3112 = vmatpush2.bf16.xpose.msra.mxu0 0
        %3113 = vmatprep.subr.bf16.mxu0 0
        %3114 = vmatpush2.bf16.xpose.msra.mxu0 0
        %3115 = vmatprep.subr.bf16.mxu0 0
        %3116 = vmatpush2.bf16.xpose.msra.mxu0 0
        %3117 = vmatprep.subr.bf16.mxu0 0
        %3118 = vmatpush2.bf16.xpose.msra.mxu0 0
        %3119 = vmatprep.subr.bf16.mxu0 0
        %3120 = vmatpush2.bf16.xpose.msra.mxu0 0
        %3121 = vmatprep.subr.bf16.mxu0 0
        %3122 = vmatpush2.bf16.xpose.msra.mxu0 0
        %3123 = vmatprep.mubr.bf16.mxu0 %v3088
        %3124 = vmatmul.mubr.bf16.gmra.mxu0 %v3087
        %v3125 = vpop.f32.mrf.mxu0
        %v3126 = vadd.f32 0.0, %v3125
        %v3127 = vpop.f32.mrf.mxu0
        %v3128 = vpop.f32.mrf.mxu0
        %v3129 = vpop.f32.mrf.mxu0
        %3130 = vdwg.mxu0
        %s3131 = scalar_lea.vmem %s10, 192
        %v3132 = vld [vmem:[%s3131] sm:$0xff]
        %v3133 = vld [vmem:[%s3131 + $0x8] sm:$0xff]
        %v3134 = vld [vmem:[%s3131 + $0x10] sm:$0xff]
        %v3135 = vld [vmem:[%s3131 + $0x18] sm:$0xff]
        %v3136 = vld [vmem:[%s3131 + $0x20] sm:$0xff]
        %v3137 = vld [vmem:[%s3131 + $0x28] sm:$0xff]
        %v3138 = vld [vmem:[%s3131 + $0x30] sm:$0xff]
        %v3139 = vld [vmem:[%s3131 + $0x38] sm:$0xff]
        %v3140 = vunpack.c.l.bf16 %v3132
        %v3141 = vunpack.c.h.bf16 %v3132
        %v3142 = vunpack.c.l.bf16 %v3133
        %v3143 = vunpack.c.h.bf16 %v3133
        %v3144 = vunpack.c.l.bf16 %v3134
        %v3145 = vunpack.c.h.bf16 %v3134
        %v3146 = vunpack.c.l.bf16 %v3135
        %v3147 = vunpack.c.h.bf16 %v3135
        %v3148 = vunpack.c.l.bf16 %v3136
        %v3149 = vunpack.c.h.bf16 %v3136
        %v3150 = vunpack.c.l.bf16 %v3137
        %v3151 = vunpack.c.h.bf16 %v3137
        %v3152 = vunpack.c.l.bf16 %v3138
        %v3153 = vunpack.c.h.bf16 %v3138
        %v3154 = vunpack.c.l.bf16 %v3139
        %v3155 = vunpack.c.h.bf16 %v3139
        %v3158 = vrot.slane %v986, 4
        %v3159 = vrot.slane %v987, 4
        %v3161 = vsel %vm625, %v3158, 0
        %v3164 = vsel %vm625, %v3159, 0
        %3166 = vmatprep.subr.bf16.mxu0 0
        %3167 = vmatpush1.bf16.msra.mxu0 0
        %3168 = vmatprep.subr.bf16.mxu0 0
        %3169 = vmatpush1.bf16.msra.mxu0 0
        %3170 = vmatprep.subr.bf16.mxu0 0
        %3171 = vmatpush1.bf16.msra.mxu0 0
        %3172 = vmatprep.subr.bf16.mxu0 0
        %3173 = vmatpush1.bf16.msra.mxu0 0
        %3174 = vmatprep.subr.bf16.mxu0 0
        %3175 = vmatpush1.bf16.msra.mxu0 0
        %3176 = vmatprep.subr.bf16.mxu0 0
        %3177 = vmatpush1.bf16.msra.mxu0 0
        %3178 = vmatprep.subr.bf16.mxu0 0
        %3179 = vmatpush1.bf16.msra.mxu0 0
        %3180 = vmatprep.subr.bf16.mxu0 %v3164
        %3181 = vmatpush1.bf16.msra.mxu0 %v3161
        %3182 = vmatprep.subr.bf16.mxu0 0
        %3183 = vmatpush2.bf16.msra.mxu0 0
        %3184 = vmatprep.subr.bf16.mxu0 0
        %3185 = vmatpush2.bf16.msra.mxu0 0
        %3186 = vmatprep.subr.bf16.mxu0 0
        %3187 = vmatpush2.bf16.msra.mxu0 0
        %3188 = vmatprep.subr.bf16.mxu0 0
        %3189 = vmatpush2.bf16.msra.mxu0 0
        %3190 = vmatprep.subr.bf16.mxu0 0
        %3191 = vmatpush2.bf16.msra.mxu0 0
        %3192 = vmatprep.subr.bf16.mxu0 0
        %3193 = vmatpush2.bf16.msra.mxu0 0
        %3194 = vmatprep.subr.bf16.mxu0 0
        %3195 = vmatpush2.bf16.msra.mxu0 0
        %3196 = vmatprep.subr.bf16.mxu0 0
        %3197 = vmatpush2.bf16.msra.mxu0 0
        %3198 = vmatprep.mubr.bf16.mxu0 0
        %3199 = vmatmul.mubr.bf16.gmra.mxu0 %v2867
        %v3200 = vpop.f32.mrf.mxu0
        %v3201 = vadd.f32 %v3140, %v3200
        %v3202 = vpop.f32.mrf.mxu0
        %v3203 = vadd.f32 %v3141, %v3202
        %v3204 = vpop.f32.mrf.mxu0
        %v3205 = vadd.f32 %v3142, %v3204
        %v3206 = vpop.f32.mrf.mxu0
        %v3207 = vadd.f32 %v3143, %v3206
        %3208 = vmatprep.mubr.bf16.mxu0 0
        %3209 = vmatmul.mubr.bf16.gmra.mxu0 %v2870
        %v3210 = vpop.f32.mrf.mxu0
        %v3211 = vadd.f32 %v3144, %v3210
        %v3212 = vpop.f32.mrf.mxu0
        %v3213 = vadd.f32 %v3145, %v3212
        %v3214 = vpop.f32.mrf.mxu0
        %v3215 = vadd.f32 %v3146, %v3214
        %v3216 = vpop.f32.mrf.mxu0
        %v3217 = vadd.f32 %v3147, %v3216
        %3218 = vmatprep.mubr.bf16.mxu0 0
        %3219 = vmatmul.mubr.bf16.gmra.mxu0 %v2873
        %v3220 = vpop.f32.mrf.mxu0
        %v3221 = vadd.f32 %v3148, %v3220
        %v3222 = vpop.f32.mrf.mxu0
        %v3223 = vadd.f32 %v3149, %v3222
        %v3224 = vpop.f32.mrf.mxu0
        %v3225 = vadd.f32 %v3150, %v3224
        %v3226 = vpop.f32.mrf.mxu0
        %v3227 = vadd.f32 %v3151, %v3226
        %3228 = vmatprep.mubr.bf16.mxu0 0
        %3229 = vmatmul.mubr.bf16.gmra.mxu0 %v2876
        %v3230 = vpop.f32.mrf.mxu0
        %v3231 = vadd.f32 %v3152, %v3230
        %v3232 = vpop.f32.mrf.mxu0
        %v3233 = vadd.f32 %v3153, %v3232
        %v3234 = vpop.f32.mrf.mxu0
        %v3235 = vadd.f32 %v3154, %v3234
        %v3236 = vpop.f32.mrf.mxu0
        %v3237 = vadd.f32 %v3155, %v3236
        %3238 = vdwg.mxu0
        %v3239 = vmax.f32 %v3201, %v3211
        %v3240 = vmax.f32 %v3205, %v3215
        %v3241 = vmax.f32 %v3239, %v3221
        %v3242 = vmax.f32 %v3240, %v3225
        %v3243 = vmax.f32 %v3241, %v3231
        %v3244 = vmax.f32 %v3242, %v3235
        %v3245 = vmax.f32 %v3243, %v3244
        %v3246 = vrot.slane %v3245, 4
        %v3247 = vmax.f32 %v3245, %v3246
        %v3248 = vrot.slane %v3247, 2
        %v3249 = vmax.f32 %v3247, %v3248
        %v3250 = vrot.slane %v3249, 1
        %v3251 = vmax.f32 %v3249, %v3250
        %v3252 = vmax.f32 %v3203, %v3213
        %v3253 = vmax.f32 %v3207, %v3217
        %v3254 = vmax.f32 %v3252, %v3223
        %v3255 = vmax.f32 %v3253, %v3227
        %v3256 = vmax.f32 %v3254, %v3233
        %v3257 = vmax.f32 %v3255, %v3237
        %v3258 = vmax.f32 %v3256, %v3257
        %v3259 = vrot.slane %v3258, 4
        %v3260 = vmax.f32 %v3258, %v3259
        %v3261 = vrot.slane %v3260, 2
        %v3262 = vmax.f32 %v3260, %v3261
        %v3263 = vrot.slane %v3262, 1
        %v3264 = vmax.f32 %v3262, %v3263
        %v3265 = vsub.f32 %v3201, %v3251
        %v3266 = vsub.f32 %v3203, %v3264
        %v3267 = vsub.f32 %v3205, %v3251
        %v3268 = vsub.f32 %v3207, %v3264
        %v3269 = vsub.f32 %v3211, %v3251
        %v3270 = vsub.f32 %v3213, %v3264
        %v3271 = vsub.f32 %v3215, %v3251
        %v3272 = vsub.f32 %v3217, %v3264
        %v3273 = vsub.f32 %v3221, %v3251
        %v3274 = vsub.f32 %v3223, %v3264
        %v3275 = vsub.f32 %v3225, %v3251
        %v3276 = vsub.f32 %v3227, %v3264
        %v3277 = vsub.f32 %v3231, %v3251
        %v3278 = vsub.f32 %v3233, %v3264
        %v3279 = vsub.f32 %v3235, %v3251
        %v3280 = vsub.f32 %v3237, %v3264
        %v3281 = vmul.f32 %v3265, 1.442695
        %v3282 = vpow.pop %v3281
        %v3283 = vmul.f32 %v3266, 1.442695
        %v3284 = vpow.pop %v3283
        %v3285 = vmul.f32 %v3267, 1.442695
        %v3286 = vpow.pop %v3285
        %v3287 = vmul.f32 %v3268, 1.442695
        %v3288 = vpow.pop %v3287
        %v3289 = vmul.f32 %v3269, 1.442695
        %v3290 = vpow.pop %v3289
        %v3291 = vmul.f32 %v3270, 1.442695
        %v3292 = vpow.pop %v3291
        %v3293 = vmul.f32 %v3271, 1.442695
        %v3294 = vpow.pop %v3293
        %v3295 = vmul.f32 %v3272, 1.442695
        %v3296 = vpow.pop %v3295
        %v3297 = vmul.f32 %v3273, 1.442695
        %v3298 = vpow.pop %v3297
        %v3299 = vmul.f32 %v3274, 1.442695
        %v3300 = vpow.pop %v3299
        %v3301 = vmul.f32 %v3275, 1.442695
        %v3302 = vpow.pop %v3301
        %v3303 = vmul.f32 %v3276, 1.442695
        %v3304 = vpow.pop %v3303
        %v3305 = vmul.f32 %v3277, 1.442695
        %v3306 = vpow.pop %v3305
        %v3307 = vmul.f32 %v3278, 1.442695
        %v3308 = vpow.pop %v3307
        %v3309 = vmul.f32 %v3279, 1.442695
        %v3310 = vpow.pop %v3309
        %v3311 = vmul.f32 %v3280, 1.442695
        %v3312 = vpow.pop %v3311
        %v3313 = vadd.f32 %v3282, %v3286
        %v3314 = vadd.f32 %v3313, %v3290
        %v3315 = vadd.f32 %v3314, %v3294
        %v3316 = vadd.f32 %v3315, %v3298
        %v3317 = vadd.f32 %v3316, %v3302
        %v3318 = vadd.f32 %v3317, %v3306
        %v3319 = vadd.f32 %v3318, %v3310
        %v3320 = vrot.slane %v3319, 4
        %v3321 = vadd.f32 %v3319, %v3320
        %v3322 = vrot.slane %v3321, 2
        %v3323 = vadd.f32 %v3321, %v3322
        %v3324 = vrot.slane %v3323, 1
        %v3325 = vadd.f32 %v3323, %v3324
        %v3326 = vadd.f32 %v3284, %v3288
        %v3327 = vadd.f32 %v3326, %v3292
        %v3328 = vadd.f32 %v3327, %v3296
        %v3329 = vadd.f32 %v3328, %v3300
        %v3330 = vadd.f32 %v3329, %v3304
        %v3331 = vadd.f32 %v3330, %v3308
        %v3332 = vadd.f32 %v3331, %v3312
        %v3333 = vrot.slane %v3332, 4
        %v3334 = vadd.f32 %v3332, %v3333
        %v3335 = vrot.slane %v3334, 2
        %v3336 = vadd.f32 %v3334, %v3335
        %v3337 = vrot.slane %v3336, 1
        %v3338 = vadd.f32 %v3336, %v3337
        %v3339 = vrcp.pop %v3325
        %v3340 = vrcp.pop %v3338
        %v3341 = vmul.f32 %v3282, %v3339
        %v3342 = vmul.f32 %v3284, %v3340
        %v3343 = vmul.f32 %v3286, %v3339
        %v3344 = vmul.f32 %v3288, %v3340
        %v3345 = vmul.f32 %v3290, %v3339
        %v3346 = vmul.f32 %v3292, %v3340
        %v3347 = vmul.f32 %v3294, %v3339
        %v3348 = vmul.f32 %v3296, %v3340
        %v3349 = vmul.f32 %v3298, %v3339
        %v3350 = vmul.f32 %v3300, %v3340
        %v3351 = vmul.f32 %v3302, %v3339
        %v3352 = vmul.f32 %v3304, %v3340
        %v3353 = vmul.f32 %v3306, %v3339
        %v3354 = vmul.f32 %v3308, %v3340
        %v3355 = vmul.f32 %v3310, %v3339
        %v3356 = vmul.f32 %v3312, %v3340
        %v3357 = vpack.c.bf16 %v3126, %v3126
        %v3358 = vpack.c.bf16 %v3343, %v3341
        %v3359 = vpack.c.bf16 %v3344, %v3342
        %v3360 = vpack.c.bf16 %v3347, %v3345
        %v3361 = vpack.c.bf16 %v3348, %v3346
        %v3362 = vpack.c.bf16 %v3351, %v3349
        %v3363 = vpack.c.bf16 %v3352, %v3350
        %v3364 = vpack.c.bf16 %v3355, %v3353
        %v3365 = vpack.c.bf16 %v3356, %v3354
        %v3367 = vsel %vm1626, %v3357, 0
        %3369 = vmatprep.subr.bf16.mxu0 0
        %3370 = vmatpush1.bf16.msra.mxu0 0
        %3371 = vmatprep.subr.bf16.mxu0 0
        %3372 = vmatpush1.bf16.msra.mxu0 0
        %3373 = vmatprep.subr.bf16.mxu0 0
        %3374 = vmatpush1.bf16.msra.mxu0 0
        %3375 = vmatprep.subr.bf16.mxu0 0
        %3376 = vmatpush1.bf16.msra.mxu0 0
        %3377 = vmatprep.subr.bf16.mxu0 %v3365
        %3378 = vmatpush1.bf16.msra.mxu0 %v3364
        %3379 = vmatprep.subr.bf16.mxu0 %v3363
        %3380 = vmatpush1.bf16.msra.mxu0 %v3362
        %3381 = vmatprep.subr.bf16.mxu0 %v3361
        %3382 = vmatpush1.bf16.msra.mxu0 %v3360
        %3383 = vmatprep.subr.bf16.mxu0 %v3359
        %3384 = vmatpush1.bf16.msra.mxu0 %v3358
        %3385 = vmatprep.subr.bf16.mxu0 0
        %3386 = vmatpush2.bf16.msra.mxu0 0
        %3387 = vmatprep.subr.bf16.mxu0 0
        %3388 = vmatpush2.bf16.msra.mxu0 0
        %3389 = vmatprep.subr.bf16.mxu0 0
        %3390 = vmatpush2.bf16.msra.mxu0 0
        %3391 = vmatprep.subr.bf16.mxu0 0
        %3392 = vmatpush2.bf16.msra.mxu0 0
        %3393 = vmatprep.subr.bf16.mxu0 0
        %3394 = vmatpush2.bf16.msra.mxu0 0
        %3395 = vmatprep.subr.bf16.mxu0 0
        %3396 = vmatpush2.bf16.msra.mxu0 0
        %3397 = vmatprep.subr.bf16.mxu0 0
        %3398 = vmatpush2.bf16.msra.mxu0 0
        %3399 = vmatprep.subr.bf16.mxu0 0
        %3400 = vmatpush2.bf16.msra.mxu0 0
        %3401 = vmatprep.mubr.bf16.mxu0 0
        %3402 = vmatmul.mubr.bf16.gmra.mxu0 %v3367
        %v3403 = vpop.f32.mrf.mxu0
        %v3404 = vadd.f32 0.0, %v3403
        %v3405 = vpop.f32.mrf.mxu0
        %v3406 = vadd.f32 0.0, %v3405
        %v3407 = vpop.f32.mrf.mxu0
        %v3408 = vpop.f32.mrf.mxu0
        %3409 = vdwg.mxu0
        %3410 = vst [vmem:[#allocation2 + $0x30] sm:$0xff] %v3404
        %3411 = vst [vmem:[#allocation2 + $0x38] sm:$0xff] %v3406
        %v3412 = vld [vmem:[%s11] sm:$0xff]
        %v3413 = vld [vmem:[%s11 + $0x8] sm:$0xff]
        %v3414 = vld [vmem:[%s11 + $0x10] sm:$0xff]
        %v3415 = vld [vmem:[%s11 + $0x18] sm:$0xff]
        %v3416 = vld [vmem:[%s11 + $0x20] sm:$0xff]
        %v3417 = vld [vmem:[%s11 + $0x28] sm:$0xff]
        %v3418 = vld [vmem:[%s11 + $0x30] sm:$0xff]
        %v3419 = vld [vmem:[%s11 + $0x38] sm:$0xff]
        %v3420 = vld [vmem:[%s11 + $0x40] sm:$0xff]
        %v3421 = vld [vmem:[%s11 + $0x48] sm:$0xff]
        %v3422 = vld [vmem:[%s11 + $0x50] sm:$0xff]
        %v3423 = vld [vmem:[%s11 + $0x58] sm:$0xff]
        %v3424 = vld [vmem:[%s11 + $0x60] sm:$0xff]
        %v3425 = vld [vmem:[%s11 + $0x68] sm:$0xff]
        %v3426 = vld [vmem:[%s11 + $0x70] sm:$0xff]
        %v3427 = vld [vmem:[%s11 + $0x78] sm:$0xff]
        %v3428 = vld [vmem:[%s11 + $0x80] sm:$0xff]
        %v3429 = vld [vmem:[%s11 + $0x88] sm:$0xff]
        %v3430 = vld [vmem:[%s11 + $0x90] sm:$0xff]
        %v3431 = vld [vmem:[%s11 + $0x98] sm:$0xff]
        %v3432 = vld [vmem:[%s11 + $0xa0] sm:$0xff]
        %v3433 = vld [vmem:[%s11 + $0xa8] sm:$0xff]
        %v3434 = vld [vmem:[%s11 + $0xb0] sm:$0xff]
        %v3435 = vld [vmem:[%s11 + $0xb8] sm:$0xff]
        %v3436 = vld [vmem:[%s11 + $0xc0] sm:$0xff]
        %v3437 = vld [vmem:[%s11 + $0xc8] sm:$0xff]
        %v3438 = vld [vmem:[%s11 + $0xd0] sm:$0xff]
        %v3439 = vld [vmem:[%s11 + $0xd8] sm:$0xff]
        %v3440 = vld [vmem:[%s11 + $0xe0] sm:$0xff]
        %v3441 = vld [vmem:[%s11 + $0xe8] sm:$0xff]
        %v3442 = vld [vmem:[%s11 + $0xf0] sm:$0xff]
        %v3443 = vld [vmem:[%s11 + $0xf8] sm:$0xff]
        %v3444 = vld [vmem:[%s11 + $0x100] sm:$0xff]
        %v3445 = vld [vmem:[%s11 + $0x108] sm:$0xff]
        %v3446 = vld [vmem:[%s11 + $0x110] sm:$0xff]
        %v3447 = vld [vmem:[%s11 + $0x118] sm:$0xff]
        %3449 = vset.pattern.permute.xlu0 0
        %3450 = vperm.xlu0 %3449, %v3428
        %v3451 = vpop.permute.xlu0 %3450
        %3454 = vset.pattern.permute.xlu0 0
        %3455 = vperm.xlu0 %3454, %v3429
        %v3456 = vpop.permute.xlu0 %3455
        %3459 = vset.pattern.permute.xlu0 0
        %3460 = vperm.xlu0 %3459, %v3430
        %v3461 = vpop.permute.xlu0 %3460
        %3464 = vset.pattern.permute.xlu0 0
        %3465 = vperm.xlu0 %3464, %v3431
        %v3466 = vpop.permute.xlu0 %3465
        %v3468 = vmul.f32 %v966, %v3451
        %v3469 = vmul.f32 %v968, %v3451
        %v3470 = vmul.f32 %v970, %v3456
        %v3471 = vmul.f32 %v972, %v3456
        %v3472 = vmul.f32 %v976, %v3461
        %v3473 = vmul.f32 %v978, %v3461
        %v3474 = vmul.f32 %v980, %v3466
        %v3475 = vmul.f32 %v982, %v3466
        %v3476 = vld [vmem:[%s12] sm:$0xff]
        %v3477 = vld [vmem:[%s12 + $0x8] sm:$0xff]
        %v3478 = vld [vmem:[%s12 + $0x10] sm:$0xff]
        %v3479 = vld [vmem:[%s12 + $0x18] sm:$0xff]
        %3481 = vset.pattern.permute.xlu0 0
        %3482 = vperm.xlu0 %3481, %v3476
        %v3483 = vpop.permute.xlu0 %3482
        %3486 = vset.pattern.permute.xlu0 0
        %3487 = vperm.xlu0 %3486, %v3477
        %v3488 = vpop.permute.xlu0 %3487
        %3491 = vset.pattern.permute.xlu0 0
        %3492 = vperm.xlu0 %3491, %v3478
        %v3493 = vpop.permute.xlu0 %3492
        %3496 = vset.pattern.permute.xlu0 0
        %3497 = vperm.xlu0 %3496, %v3479
        %v3498 = vpop.permute.xlu0 %3497
        %v3500 = vadd.f32 %v3468, %v3483
        %v3501 = vadd.f32 %v3469, %v3483
        %v3502 = vadd.f32 %v3470, %v3488
        %v3503 = vadd.f32 %v3471, %v3488
        %v3504 = vadd.f32 %v3472, %v3493
        %v3505 = vadd.f32 %v3473, %v3493
        %v3506 = vadd.f32 %v3474, %v3498
        %v3507 = vadd.f32 %v3475, %v3498
        %3508 = vrot.lane.b32.xlu0 %v966, 17
        %v3509 = vpop.permute.xlu0 %3508
        %3510 = vrot.lane.b32.xlu0 %v970, 17
        %v3511 = vpop.permute.xlu0 %3510
        %3512 = vrot.lane.b32.xlu0 %v976, 17
        %v3513 = vpop.permute.xlu0 %3512
        %3514 = vrot.lane.b32.xlu0 %v980, 17
        %v3515 = vpop.permute.xlu0 %3514
        %3516 = vrot.lane.b32.xlu0 %v968, 17
        %v3517 = vpop.permute.xlu0 %3516
        %3518 = vrot.lane.b32.xlu0 %v972, 17
        %v3519 = vpop.permute.xlu0 %3518
        %3520 = vrot.lane.b32.xlu0 %v978, 17
        %v3521 = vpop.permute.xlu0 %3520
        %3522 = vrot.lane.b32.xlu0 %v982, 17
        %v3523 = vpop.permute.xlu0 %3522
        %v3524 = vlaneseq
        %v3525 = vand.u32 %v3524, 127
        %vm3526 = vcmp.lt.s32.totalorder %v3525, 17
        %v3527 = vsel %vm3526, %v3509, %v3517
        %v3528 = vsel %vm3526, %v3511, %v3519
        %v3529 = vsel %vm3526, %v3513, %v3521
        %v3530 = vsel %vm3526, %v3515, %v3523
        %v3531 = vsel %vm3526, %v3517, %v3509
        %v3532 = vsel %vm3526, %v3519, %v3511
        %v3533 = vsel %vm3526, %v3521, %v3513
        %v3534 = vsel %vm3526, %v3523, %v3515
        %v3536 = vlaneseq
        %v3537 = vshrl.u32 %v3536, 7
        %v3538 = vsub.s32 0, %v3537
        %v3539 = vrot.slane %v743, %v3538
        %v3540 = vlaneseq
        %v3541 = vshrl.u32 %v3540, 7
        %v3542 = vsub.s32 1, %v3541
        %v3543 = vrot.slane %v743, %v3542
        %v3546 = vmul.f32 %v3531, %v3539
        %v3547 = vmul.f32 %v3527, %v3543
        %v3548 = vmul.f32 %v3532, %v3539
        %v3549 = vmul.f32 %v3528, %v3543
        %v3550 = vmul.f32 %v3533, %v3539
        %v3551 = vmul.f32 %v3529, %v3543
        %v3552 = vmul.f32 %v3534, %v3539
        %v3553 = vmul.f32 %v3530, %v3543
        %3555 = vset.pattern.permute.xlu0 0
        %3556 = vperm.xlu0 %3555, %v3412
        %v3557 = vpop.permute.xlu0 %3556
        %3560 = vset.pattern.permute.xlu0 0
        %3561 = vperm.xlu0 %3560, %v3413
        %v3562 = vpop.permute.xlu0 %3561
        %3565 = vset.pattern.permute.xlu0 0
        %3566 = vperm.xlu0 %3565, %v3414
        %v3567 = vpop.permute.xlu0 %3566
        %3570 = vset.pattern.permute.xlu0 0
        %3571 = vperm.xlu0 %3570, %v3415
        %v3572 = vpop.permute.xlu0 %3571
        %v3574 = vmul.f32 %v3546, %v3557
        %v3575 = vmul.f32 %v3547, %v3557
        %v3576 = vmul.f32 %v3548, %v3562
        %v3577 = vmul.f32 %v3549, %v3562
        %v3578 = vmul.f32 %v3550, %v3567
        %v3579 = vmul.f32 %v3551, %v3567
        %v3580 = vmul.f32 %v3552, %v3572
        %v3581 = vmul.f32 %v3553, %v3572
        %v3582 = vadd.f32 %v3500, %v3574
        %v3583 = vadd.f32 %v3501, %v3575
        %v3584 = vadd.f32 %v3502, %v3576
        %v3585 = vadd.f32 %v3503, %v3577
        %v3586 = vadd.f32 %v3504, %v3578
        %v3587 = vadd.f32 %v3505, %v3579
        %v3588 = vadd.f32 %v3506, %v3580
        %v3589 = vadd.f32 %v3507, %v3581
        %3590 = vrot.lane.b32.xlu0 %v966, 16
        %v3591 = vpop.permute.xlu0 %3590
        %3592 = vrot.lane.b32.xlu0 %v970, 16
        %v3593 = vpop.permute.xlu0 %3592
        %3594 = vrot.lane.b32.xlu0 %v976, 16
        %v3595 = vpop.permute.xlu0 %3594
        %3596 = vrot.lane.b32.xlu0 %v980, 16
        %v3597 = vpop.permute.xlu0 %3596
        %3598 = vrot.lane.b32.xlu0 %v968, 16
        %v3599 = vpop.permute.xlu0 %3598
        %3600 = vrot.lane.b32.xlu0 %v972, 16
        %v3601 = vpop.permute.xlu0 %3600
        %3602 = vrot.lane.b32.xlu0 %v978, 16
        %v3603 = vpop.permute.xlu0 %3602
        %3604 = vrot.lane.b32.xlu0 %v982, 16
        %v3605 = vpop.permute.xlu0 %3604
        %vm3606 = vcmp.lt.s32.totalorder %v3525, 16
        %v3607 = vsel %vm3606, %v3591, %v3599
        %v3608 = vsel %vm3606, %v3593, %v3601
        %v3609 = vsel %vm3606, %v3595, %v3603
        %v3610 = vsel %vm3606, %v3597, %v3605
        %v3611 = vsel %vm3606, %v3599, %v3591
        %v3612 = vsel %vm3606, %v3601, %v3593
        %v3613 = vsel %vm3606, %v3603, %v3595
        %v3614 = vsel %vm3606, %v3605, %v3597
        %v3616 = vlaneseq
        %v3617 = vshrl.u32 %v3616, 7
        %v3618 = vsub.s32 0, %v3617
        %v3619 = vrot.slane %v744, %v3618
        %v3620 = vlaneseq
        %v3621 = vshrl.u32 %v3620, 7
        %v3622 = vsub.s32 1, %v3621
        %v3623 = vrot.slane %v744, %v3622
        %v3626 = vmul.f32 %v3611, %v3619
        %v3627 = vmul.f32 %v3607, %v3623
        %v3628 = vmul.f32 %v3612, %v3619
        %v3629 = vmul.f32 %v3608, %v3623
        %v3630 = vmul.f32 %v3613, %v3619
        %v3631 = vmul.f32 %v3609, %v3623
        %v3632 = vmul.f32 %v3614, %v3619
        %v3633 = vmul.f32 %v3610, %v3623
        %3635 = vset.pattern.permute.xlu0 0
        %3636 = vperm.xlu0 %3635, %v3416
        %v3637 = vpop.permute.xlu0 %3636
        %3640 = vset.pattern.permute.xlu0 0
        %3641 = vperm.xlu0 %3640, %v3417
        %v3642 = vpop.permute.xlu0 %3641
        %3645 = vset.pattern.permute.xlu0 0
        %3646 = vperm.xlu0 %3645, %v3418
        %v3647 = vpop.permute.xlu0 %3646
        %3650 = vset.pattern.permute.xlu0 0
        %3651 = vperm.xlu0 %3650, %v3419
        %v3652 = vpop.permute.xlu0 %3651
        %v3654 = vmul.f32 %v3626, %v3637
        %v3655 = vmul.f32 %v3627, %v3637
        %v3656 = vmul.f32 %v3628, %v3642
        %v3657 = vmul.f32 %v3629, %v3642
        %v3658 = vmul.f32 %v3630, %v3647
        %v3659 = vmul.f32 %v3631, %v3647
        %v3660 = vmul.f32 %v3632, %v3652
        %v3661 = vmul.f32 %v3633, %v3652
        %v3662 = vadd.f32 %v3582, %v3654
        %v3663 = vadd.f32 %v3583, %v3655
        %v3664 = vadd.f32 %v3584, %v3656
        %v3665 = vadd.f32 %v3585, %v3657
        %v3666 = vadd.f32 %v3586, %v3658
        %v3667 = vadd.f32 %v3587, %v3659
        %v3668 = vadd.f32 %v3588, %v3660
        %v3669 = vadd.f32 %v3589, %v3661
        %3670 = vrot.lane.b32.xlu0 %v966, 15
        %v3671 = vpop.permute.xlu0 %3670
        %3672 = vrot.lane.b32.xlu0 %v970, 15
        %v3673 = vpop.permute.xlu0 %3672
        %3674 = vrot.lane.b32.xlu0 %v976, 15
        %v3675 = vpop.permute.xlu0 %3674
        %3676 = vrot.lane.b32.xlu0 %v980, 15
        %v3677 = vpop.permute.xlu0 %3676
        %3678 = vrot.lane.b32.xlu0 %v968, 15
        %v3679 = vpop.permute.xlu0 %3678
        %3680 = vrot.lane.b32.xlu0 %v972, 15
        %v3681 = vpop.permute.xlu0 %3680
        %3682 = vrot.lane.b32.xlu0 %v978, 15
        %v3683 = vpop.permute.xlu0 %3682
        %3684 = vrot.lane.b32.xlu0 %v982, 15
        %v3685 = vpop.permute.xlu0 %3684
        %vm3686 = vcmp.lt.s32.totalorder %v3525, 15
        %v3687 = vsel %vm3686, %v3671, %v3679
        %v3688 = vsel %vm3686, %v3673, %v3681
        %v3689 = vsel %vm3686, %v3675, %v3683
        %v3690 = vsel %vm3686, %v3677, %v3685
        %v3691 = vsel %vm3686, %v3679, %v3671
        %v3692 = vsel %vm3686, %v3681, %v3673
        %v3693 = vsel %vm3686, %v3683, %v3675
        %v3694 = vsel %vm3686, %v3685, %v3677
        %v3696 = vlaneseq
        %v3697 = vshrl.u32 %v3696, 7
        %v3698 = vsub.s32 0, %v3697
        %v3699 = vrot.slane %v745, %v3698
        %v3700 = vlaneseq
        %v3701 = vshrl.u32 %v3700, 7
        %v3702 = vsub.s32 1, %v3701
        %v3703 = vrot.slane %v745, %v3702
        %v3706 = vmul.f32 %v3691, %v3699
        %v3707 = vmul.f32 %v3687, %v3703
        %v3708 = vmul.f32 %v3692, %v3699
        %v3709 = vmul.f32 %v3688, %v3703
        %v3710 = vmul.f32 %v3693, %v3699
        %v3711 = vmul.f32 %v3689, %v3703
        %v3712 = vmul.f32 %v3694, %v3699
        %v3713 = vmul.f32 %v3690, %v3703
        %3715 = vset.pattern.permute.xlu0 0
        %3716 = vperm.xlu0 %3715, %v3420
        %v3717 = vpop.permute.xlu0 %3716
        %3720 = vset.pattern.permute.xlu0 0
        %3721 = vperm.xlu0 %3720, %v3421
        %v3722 = vpop.permute.xlu0 %3721
        %3725 = vset.pattern.permute.xlu0 0
        %3726 = vperm.xlu0 %3725, %v3422
        %v3727 = vpop.permute.xlu0 %3726
        %3730 = vset.pattern.permute.xlu0 0
        %3731 = vperm.xlu0 %3730, %v3423
        %v3732 = vpop.permute.xlu0 %3731
        %v3734 = vmul.f32 %v3706, %v3717
        %v3735 = vmul.f32 %v3707, %v3717
        %v3736 = vmul.f32 %v3708, %v3722
        %v3737 = vmul.f32 %v3709, %v3722
        %v3738 = vmul.f32 %v3710, %v3727
        %v3739 = vmul.f32 %v3711, %v3727
        %v3740 = vmul.f32 %v3712, %v3732
        %v3741 = vmul.f32 %v3713, %v3732
        %v3742 = vadd.f32 %v3662, %v3734
        %v3743 = vadd.f32 %v3663, %v3735
        %v3744 = vadd.f32 %v3664, %v3736
        %v3745 = vadd.f32 %v3665, %v3737
        %v3746 = vadd.f32 %v3666, %v3738
        %v3747 = vadd.f32 %v3667, %v3739
        %v3748 = vadd.f32 %v3668, %v3740
        %v3749 = vadd.f32 %v3669, %v3741
        %3750 = vrot.lane.b32.xlu0 %v966, 1
        %v3751 = vpop.permute.xlu0 %3750
        %3752 = vrot.lane.b32.xlu0 %v970, 1
        %v3753 = vpop.permute.xlu0 %3752
        %3754 = vrot.lane.b32.xlu0 %v976, 1
        %v3755 = vpop.permute.xlu0 %3754
        %3756 = vrot.lane.b32.xlu0 %v980, 1
        %v3757 = vpop.permute.xlu0 %3756
        %3758 = vrot.lane.b32.xlu0 %v968, 1
        %v3759 = vpop.permute.xlu0 %3758
        %3760 = vrot.lane.b32.xlu0 %v972, 1
        %v3761 = vpop.permute.xlu0 %3760
        %3762 = vrot.lane.b32.xlu0 %v978, 1
        %v3763 = vpop.permute.xlu0 %3762
        %3764 = vrot.lane.b32.xlu0 %v982, 1
        %v3765 = vpop.permute.xlu0 %3764
        %vm3766 = vcmp.lt.s32.totalorder %v3525, 1
        %v3767 = vsel %vm3766, %v3751, %v3759
        %v3768 = vsel %vm3766, %v3753, %v3761
        %v3769 = vsel %vm3766, %v3755, %v3763
        %v3770 = vsel %vm3766, %v3757, %v3765
        %v3771 = vsel %vm3766, %v3759, %v3751
        %v3772 = vsel %vm3766, %v3761, %v3753
        %v3773 = vsel %vm3766, %v3763, %v3755
        %v3774 = vsel %vm3766, %v3765, %v3757
        %v3776 = vlaneseq
        %v3777 = vshrl.u32 %v3776, 7
        %v3778 = vsub.s32 0, %v3777
        %v3779 = vrot.slane %v746, %v3778
        %v3780 = vlaneseq
        %v3781 = vshrl.u32 %v3780, 7
        %v3782 = vsub.s32 1, %v3781
        %v3783 = vrot.slane %v746, %v3782
        %v3786 = vmul.f32 %v3771, %v3779
        %v3787 = vmul.f32 %v3767, %v3783
        %v3788 = vmul.f32 %v3772, %v3779
        %v3789 = vmul.f32 %v3768, %v3783
        %v3790 = vmul.f32 %v3773, %v3779
        %v3791 = vmul.f32 %v3769, %v3783
        %v3792 = vmul.f32 %v3774, %v3779
        %v3793 = vmul.f32 %v3770, %v3783
        %3795 = vset.pattern.permute.xlu0 0
        %3796 = vperm.xlu0 %3795, %v3424
        %v3797 = vpop.permute.xlu0 %3796
        %3800 = vset.pattern.permute.xlu0 0
        %3801 = vperm.xlu0 %3800, %v3425
        %v3802 = vpop.permute.xlu0 %3801
        %3805 = vset.pattern.permute.xlu0 0
        %3806 = vperm.xlu0 %3805, %v3426
        %v3807 = vpop.permute.xlu0 %3806
        %3810 = vset.pattern.permute.xlu0 0
        %3811 = vperm.xlu0 %3810, %v3427
        %v3812 = vpop.permute.xlu0 %3811
        %v3814 = vmul.f32 %v3786, %v3797
        %v3815 = vmul.f32 %v3787, %v3797
        %v3816 = vmul.f32 %v3788, %v3802
        %v3817 = vmul.f32 %v3789, %v3802
        %v3818 = vmul.f32 %v3790, %v3807
        %v3819 = vmul.f32 %v3791, %v3807
        %v3820 = vmul.f32 %v3792, %v3812
        %v3821 = vmul.f32 %v3793, %v3812
        %v3822 = vadd.f32 %v3742, %v3814
        %v3823 = vadd.f32 %v3743, %v3815
        %v3824 = vadd.f32 %v3744, %v3816
        %v3825 = vadd.f32 %v3745, %v3817
        %v3826 = vadd.f32 %v3746, %v3818
        %v3827 = vadd.f32 %v3747, %v3819
        %v3828 = vadd.f32 %v3748, %v3820
        %v3829 = vadd.f32 %v3749, %v3821
        %3830 = vrot.lane.b32.xlu0 %v966, 127
        %v3831 = vpop.permute.xlu0 %3830
        %3832 = vrot.lane.b32.xlu0 %v970, 127
        %v3833 = vpop.permute.xlu0 %3832
        %3834 = vrot.lane.b32.xlu0 %v976, 127
        %v3835 = vpop.permute.xlu0 %3834
        %3836 = vrot.lane.b32.xlu0 %v980, 127
        %v3837 = vpop.permute.xlu0 %3836
        %3838 = vrot.lane.b32.xlu0 %v968, 127
        %v3839 = vpop.permute.xlu0 %3838
        %3840 = vrot.lane.b32.xlu0 %v972, 127
        %v3841 = vpop.permute.xlu0 %3840
        %3842 = vrot.lane.b32.xlu0 %v978, 127
        %v3843 = vpop.permute.xlu0 %3842
        %3844 = vrot.lane.b32.xlu0 %v982, 127
        %v3845 = vpop.permute.xlu0 %3844
        %vm3846 = vcmp.lt.s32.totalorder %v3525, 127
        %v3847 = vsel %vm3846, %v3831, %v3839
        %v3848 = vsel %vm3846, %v3833, %v3841
        %v3849 = vsel %vm3846, %v3835, %v3843
        %v3850 = vsel %vm3846, %v3837, %v3845
        %v3851 = vsel %vm3846, %v3839, %v3831
        %v3852 = vsel %vm3846, %v3841, %v3833
        %v3853 = vsel %vm3846, %v3843, %v3835
        %v3854 = vsel %vm3846, %v3845, %v3837
        %v3856 = vlaneseq
        %v3857 = vshrl.u32 %v3856, 7
        %v3858 = vsub.s32 0, %v3857
        %v3859 = vrot.slane %v747, %v3858
        %v3860 = vlaneseq
        %v3861 = vshrl.u32 %v3860, 7
        %v3862 = vsub.s32 1, %v3861
        %v3863 = vrot.slane %v747, %v3862
        %v3866 = vmul.f32 %v3847, %v3859
        %v3867 = vmul.f32 %v3851, %v3863
        %v3868 = vmul.f32 %v3848, %v3859
        %v3869 = vmul.f32 %v3852, %v3863
        %v3870 = vmul.f32 %v3849, %v3859
        %v3871 = vmul.f32 %v3853, %v3863
        %v3872 = vmul.f32 %v3850, %v3859
        %v3873 = vmul.f32 %v3854, %v3863
        %3875 = vset.pattern.permute.xlu0 0
        %3876 = vperm.xlu0 %3875, %v3432
        %v3877 = vpop.permute.xlu0 %3876
        %3880 = vset.pattern.permute.xlu0 0
        %3881 = vperm.xlu0 %3880, %v3433
        %v3882 = vpop.permute.xlu0 %3881
        %3885 = vset.pattern.permute.xlu0 0
        %3886 = vperm.xlu0 %3885, %v3434
        %v3887 = vpop.permute.xlu0 %3886
        %3890 = vset.pattern.permute.xlu0 0
        %3891 = vperm.xlu0 %3890, %v3435
        %v3892 = vpop.permute.xlu0 %3891
        %v3894 = vmul.f32 %v3866, %v3877
        %v3895 = vmul.f32 %v3867, %v3877
        %v3896 = vmul.f32 %v3868, %v3882
        %v3897 = vmul.f32 %v3869, %v3882
        %v3898 = vmul.f32 %v3870, %v3887
        %v3899 = vmul.f32 %v3871, %v3887
        %v3900 = vmul.f32 %v3872, %v3892
        %v3901 = vmul.f32 %v3873, %v3892
        %v3902 = vadd.f32 %v3822, %v3894
        %v3903 = vadd.f32 %v3823, %v3895
        %v3904 = vadd.f32 %v3824, %v3896
        %v3905 = vadd.f32 %v3825, %v3897
        %v3906 = vadd.f32 %v3826, %v3898
        %v3907 = vadd.f32 %v3827, %v3899
        %v3908 = vadd.f32 %v3828, %v3900
        %v3909 = vadd.f32 %v3829, %v3901
        %3910 = vrot.lane.b32.xlu0 %v966, 113
        %v3911 = vpop.permute.xlu0 %3910
        %3912 = vrot.lane.b32.xlu0 %v970, 113
        %v3913 = vpop.permute.xlu0 %3912
        %3914 = vrot.lane.b32.xlu0 %v976, 113
        %v3915 = vpop.permute.xlu0 %3914
        %3916 = vrot.lane.b32.xlu0 %v980, 113
        %v3917 = vpop.permute.xlu0 %3916
        %3918 = vrot.lane.b32.xlu0 %v968, 113
        %v3919 = vpop.permute.xlu0 %3918
        %3920 = vrot.lane.b32.xlu0 %v972, 113
        %v3921 = vpop.permute.xlu0 %3920
        %3922 = vrot.lane.b32.xlu0 %v978, 113
        %v3923 = vpop.permute.xlu0 %3922
        %3924 = vrot.lane.b32.xlu0 %v982, 113
        %v3925 = vpop.permute.xlu0 %3924
        %vm3926 = vcmp.lt.s32.totalorder %v3525, 113
        %v3927 = vsel %vm3926, %v3911, %v3919
        %v3928 = vsel %vm3926, %v3913, %v3921
        %v3929 = vsel %vm3926, %v3915, %v3923
        %v3930 = vsel %vm3926, %v3917, %v3925
        %v3931 = vsel %vm3926, %v3919, %v3911
        %v3932 = vsel %vm3926, %v3921, %v3913
        %v3933 = vsel %vm3926, %v3923, %v3915
        %v3934 = vsel %vm3926, %v3925, %v3917
        %v3936 = vlaneseq
        %v3937 = vshrl.u32 %v3936, 7
        %v3938 = vsub.s32 0, %v3937
        %v3939 = vrot.slane %v748, %v3938
        %v3940 = vlaneseq
        %v3941 = vshrl.u32 %v3940, 7
        %v3942 = vsub.s32 1, %v3941
        %v3943 = vrot.slane %v748, %v3942
        %v3946 = vmul.f32 %v3927, %v3939
        %v3947 = vmul.f32 %v3931, %v3943
        %v3948 = vmul.f32 %v3928, %v3939
        %v3949 = vmul.f32 %v3932, %v3943
        %v3950 = vmul.f32 %v3929, %v3939
        %v3951 = vmul.f32 %v3933, %v3943
        %v3952 = vmul.f32 %v3930, %v3939
        %v3953 = vmul.f32 %v3934, %v3943
        %3955 = vset.pattern.permute.xlu0 0
        %3956 = vperm.xlu0 %3955, %v3436
        %v3957 = vpop.permute.xlu0 %3956
        %3960 = vset.pattern.permute.xlu0 0
        %3961 = vperm.xlu0 %3960, %v3437
        %v3962 = vpop.permute.xlu0 %3961
        %3965 = vset.pattern.permute.xlu0 0
        %3966 = vperm.xlu0 %3965, %v3438
        %v3967 = vpop.permute.xlu0 %3966
        %3970 = vset.pattern.permute.xlu0 0
        %3971 = vperm.xlu0 %3970, %v3439
        %v3972 = vpop.permute.xlu0 %3971
        %v3974 = vmul.f32 %v3946, %v3957
        %v3975 = vmul.f32 %v3947, %v3957
        %v3976 = vmul.f32 %v3948, %v3962
        %v3977 = vmul.f32 %v3949, %v3962
        %v3978 = vmul.f32 %v3950, %v3967
        %v3979 = vmul.f32 %v3951, %v3967
        %v3980 = vmul.f32 %v3952, %v3972
        %v3981 = vmul.f32 %v3953, %v3972
        %v3982 = vadd.f32 %v3902, %v3974
        %v3983 = vadd.f32 %v3903, %v3975
        %v3984 = vadd.f32 %v3904, %v3976
        %v3985 = vadd.f32 %v3905, %v3977
        %v3986 = vadd.f32 %v3906, %v3978
        %v3987 = vadd.f32 %v3907, %v3979
        %v3988 = vadd.f32 %v3908, %v3980
        %v3989 = vadd.f32 %v3909, %v3981
        %3990 = vrot.lane.b32.xlu0 %v966, 112
        %v3991 = vpop.permute.xlu0 %3990
        %3992 = vrot.lane.b32.xlu0 %v970, 112
        %v3993 = vpop.permute.xlu0 %3992
        %3994 = vrot.lane.b32.xlu0 %v976, 112
        %v3995 = vpop.permute.xlu0 %3994
        %3996 = vrot.lane.b32.xlu0 %v980, 112
        %v3997 = vpop.permute.xlu0 %3996
        %3998 = vrot.lane.b32.xlu0 %v968, 112
        %v3999 = vpop.permute.xlu0 %3998
        %4000 = vrot.lane.b32.xlu0 %v972, 112
        %v4001 = vpop.permute.xlu0 %4000
        %4002 = vrot.lane.b32.xlu0 %v978, 112
        %v4003 = vpop.permute.xlu0 %4002
        %4004 = vrot.lane.b32.xlu0 %v982, 112
        %v4005 = vpop.permute.xlu0 %4004
        %vm4006 = vcmp.lt.s32.totalorder %v3525, 112
        %v4007 = vsel %vm4006, %v3991, %v3999
        %v4008 = vsel %vm4006, %v3993, %v4001
        %v4009 = vsel %vm4006, %v3995, %v4003
        %v4010 = vsel %vm4006, %v3997, %v4005
        %v4011 = vsel %vm4006, %v3999, %v3991
        %v4012 = vsel %vm4006, %v4001, %v3993
        %v4013 = vsel %vm4006, %v4003, %v3995
        %v4014 = vsel %vm4006, %v4005, %v3997
        %v4016 = vlaneseq
        %v4017 = vshrl.u32 %v4016, 7
        %v4018 = vsub.s32 0, %v4017
        %v4019 = vrot.slane %v749, %v4018
        %v4020 = vlaneseq
        %v4021 = vshrl.u32 %v4020, 7
        %v4022 = vsub.s32 1, %v4021
        %v4023 = vrot.slane %v749, %v4022
        %v4026 = vmul.f32 %v4007, %v4019
        %v4027 = vmul.f32 %v4011, %v4023
        %v4028 = vmul.f32 %v4008, %v4019
        %v4029 = vmul.f32 %v4012, %v4023
        %v4030 = vmul.f32 %v4009, %v4019
        %v4031 = vmul.f32 %v4013, %v4023
        %v4032 = vmul.f32 %v4010, %v4019
        %v4033 = vmul.f32 %v4014, %v4023
        %4035 = vset.pattern.permute.xlu0 0
        %4036 = vperm.xlu0 %4035, %v3440
        %v4037 = vpop.permute.xlu0 %4036
        %4040 = vset.pattern.permute.xlu0 0
        %4041 = vperm.xlu0 %4040, %v3441
        %v4042 = vpop.permute.xlu0 %4041
        %4045 = vset.pattern.permute.xlu0 0
        %4046 = vperm.xlu0 %4045, %v3442
        %v4047 = vpop.permute.xlu0 %4046
        %4050 = vset.pattern.permute.xlu0 0
        %4051 = vperm.xlu0 %4050, %v3443
        %v4052 = vpop.permute.xlu0 %4051
        %v4054 = vmul.f32 %v4026, %v4037
        %v4055 = vmul.f32 %v4027, %v4037
        %v4056 = vmul.f32 %v4028, %v4042
        %v4057 = vmul.f32 %v4029, %v4042
        %v4058 = vmul.f32 %v4030, %v4047
        %v4059 = vmul.f32 %v4031, %v4047
        %v4060 = vmul.f32 %v4032, %v4052
        %v4061 = vmul.f32 %v4033, %v4052
        %v4062 = vadd.f32 %v3982, %v4054
        %v4063 = vadd.f32 %v3983, %v4055
        %v4064 = vadd.f32 %v3984, %v4056
        %v4065 = vadd.f32 %v3985, %v4057
        %v4066 = vadd.f32 %v3986, %v4058
        %v4067 = vadd.f32 %v3987, %v4059
        %v4068 = vadd.f32 %v3988, %v4060
        %v4069 = vadd.f32 %v3989, %v4061
        %4070 = vrot.lane.b32.xlu0 %v966, 111
        %v4071 = vpop.permute.xlu0 %4070
        %4072 = vrot.lane.b32.xlu0 %v970, 111
        %v4073 = vpop.permute.xlu0 %4072
        %4074 = vrot.lane.b32.xlu0 %v976, 111
        %v4075 = vpop.permute.xlu0 %4074
        %4076 = vrot.lane.b32.xlu0 %v980, 111
        %v4077 = vpop.permute.xlu0 %4076
        %4078 = vrot.lane.b32.xlu0 %v968, 111
        %v4079 = vpop.permute.xlu0 %4078
        %4080 = vrot.lane.b32.xlu0 %v972, 111
        %v4081 = vpop.permute.xlu0 %4080
        %4082 = vrot.lane.b32.xlu0 %v978, 111
        %v4083 = vpop.permute.xlu0 %4082
        %4084 = vrot.lane.b32.xlu0 %v982, 111
        %v4085 = vpop.permute.xlu0 %4084
        %vm4086 = vcmp.lt.s32.totalorder %v3525, 111
        %v4087 = vsel %vm4086, %v4071, %v4079
        %v4088 = vsel %vm4086, %v4073, %v4081
        %v4089 = vsel %vm4086, %v4075, %v4083
        %v4090 = vsel %vm4086, %v4077, %v4085
        %v4091 = vsel %vm4086, %v4079, %v4071
        %v4092 = vsel %vm4086, %v4081, %v4073
        %v4093 = vsel %vm4086, %v4083, %v4075
        %v4094 = vsel %vm4086, %v4085, %v4077
        %v4096 = vlaneseq
        %v4097 = vshrl.u32 %v4096, 7
        %v4098 = vsub.s32 0, %v4097
        %v4099 = vrot.slane %v750, %v4098
        %v4100 = vlaneseq
        %v4101 = vshrl.u32 %v4100, 7
        %v4102 = vsub.s32 1, %v4101
        %v4103 = vrot.slane %v750, %v4102
        %v4106 = vmul.f32 %v4087, %v4099
        %v4107 = vmul.f32 %v4091, %v4103
        %v4108 = vmul.f32 %v4088, %v4099
        %v4109 = vmul.f32 %v4092, %v4103
        %v4110 = vmul.f32 %v4089, %v4099
        %v4111 = vmul.f32 %v4093, %v4103
        %v4112 = vmul.f32 %v4090, %v4099
        %v4113 = vmul.f32 %v4094, %v4103
        %4115 = vset.pattern.permute.xlu0 0
        %4116 = vperm.xlu0 %4115, %v3444
        %v4117 = vpop.permute.xlu0 %4116
        %4120 = vset.pattern.permute.xlu0 0
        %4121 = vperm.xlu0 %4120, %v3445
        %v4122 = vpop.permute.xlu0 %4121
        %4125 = vset.pattern.permute.xlu0 0
        %4126 = vperm.xlu0 %4125, %v3446
        %v4127 = vpop.permute.xlu0 %4126
        %4130 = vset.pattern.permute.xlu0 0
        %4131 = vperm.xlu0 %4130, %v3447
        %v4132 = vpop.permute.xlu0 %4131
        %v4134 = vmul.f32 %v4106, %v4117
        %v4135 = vmul.f32 %v4107, %v4117
        %v4136 = vmul.f32 %v4108, %v4122
        %v4137 = vmul.f32 %v4109, %v4122
        %v4138 = vmul.f32 %v4110, %v4127
        %v4139 = vmul.f32 %v4111, %v4127
        %v4140 = vmul.f32 %v4112, %v4132
        %v4141 = vmul.f32 %v4113, %v4132
        %v4142 = vadd.f32 %v4062, %v4134
        %v4143 = vadd.f32 %v4063, %v4135
        %v4144 = vadd.f32 %v4064, %v4136
        %v4145 = vadd.f32 %v4065, %v4137
        %v4146 = vadd.f32 %v4066, %v4138
        %v4147 = vadd.f32 %v4067, %v4139
        %v4148 = vadd.f32 %v4068, %v4140
        %v4149 = vadd.f32 %v4069, %v4141
        %v4150 = vld [vmem:[#allocation6] sm:$0xf]
        %v4151 = vld [vmem:[#allocation2] sm:$0xff]
        %v4152 = vld [vmem:[#allocation2 + $0x8] sm:$0xff]
        %v4153 = vld [vmem:[#allocation2 + $0x10] sm:$0xff]
        %v4154 = vld [vmem:[#allocation2 + $0x18] sm:$0xff]
        %v4155 = vld [vmem:[#allocation2 + $0x20] sm:$0xff]
        %v4156 = vld [vmem:[#allocation2 + $0x28] sm:$0xff]
        %v4157 = vld [vmem:[#allocation2 + $0x30] sm:$0xff]
        %v4158 = vld [vmem:[#allocation2 + $0x38] sm:$0xff]
        %v4159 = vadd.f32 %v4151, %v4142
        %v4160 = vadd.f32 %v4152, %v4143
        %v4161 = vadd.f32 %v4153, %v4144
        %v4162 = vadd.f32 %v4154, %v4145
        %v4163 = vadd.f32 %v4155, %v4146
        %v4164 = vadd.f32 %v4156, %v4147
        %v4165 = vadd.f32 %v4157, %v4148
        %v4166 = vadd.f32 %v4158, %v4149
        %v4167 = vpack.c.bf16 %v4161, %v4159
        %v4168 = vpack.c.bf16 %v4162, %v4160
        %v4169 = vpack.c.bf16 %v4165, %v4163
        %v4170 = vpack.c.bf16 %v4166, %v4164
        %v4171 = vld [vmem:[%s7] sm:$0xff]
        %4173 = vset.pattern.permute.xlu0 0
        %4174 = vperm.xlu0 %4173, %v4171
        %v4175 = vpop.permute.xlu0 %4174
        %vm4177 = vcmask 261120
        %v4179 = vsel %vm4177, %v4150, 0
        %4181 = vmatprep.subr.bf16.mxu0 0
        %4182 = vmatpush1.bf16.msra.mxu0 0
        %4183 = vmatprep.subr.bf16.mxu0 0
        %4184 = vmatpush1.bf16.msra.mxu0 0
        %4185 = vmatprep.subr.bf16.mxu0 0
        %4186 = vmatpush1.bf16.msra.mxu0 0
        %4187 = vmatprep.subr.bf16.mxu0 0
        %4188 = vmatpush1.bf16.msra.mxu0 0
        %4189 = vmatprep.subr.bf16.mxu0 0
        %4190 = vmatpush1.bf16.msra.mxu0 0
        %4191 = vmatprep.subr.bf16.mxu0 0
        %4192 = vmatpush1.bf16.msra.mxu0 0
        %4193 = vmatprep.subr.bf16.mxu0 %v4170
        %4194 = vmatpush1.bf16.msra.mxu0 %v4169
        %4195 = vmatprep.subr.bf16.mxu0 %v4168
        %4196 = vmatpush1.bf16.msra.mxu0 %v4167
        %4197 = vmatprep.subr.bf16.mxu0 0
        %4198 = vmatpush2.bf16.msra.mxu0 0
        %4199 = vmatprep.subr.bf16.mxu0 0
        %4200 = vmatpush2.bf16.msra.mxu0 0
        %4201 = vmatprep.subr.bf16.mxu0 0
        %4202 = vmatpush2.bf16.msra.mxu0 0
        %4203 = vmatprep.subr.bf16.mxu0 0
        %4204 = vmatpush2.bf16.msra.mxu0 0
        %4205 = vmatprep.subr.bf16.mxu0 0
        %4206 = vmatpush2.bf16.msra.mxu0 0
        %4207 = vmatprep.subr.bf16.mxu0 0
        %4208 = vmatpush2.bf16.msra.mxu0 0
        %4209 = vmatprep.subr.bf16.mxu0 0
        %4210 = vmatpush2.bf16.msra.mxu0 0
        %4211 = vmatprep.subr.bf16.mxu0 0
        %4212 = vmatpush2.bf16.msra.mxu0 0
        %4213 = vmatprep.mubr.bf16.mxu0 0
        %4214 = vmatmul.mubr.bf16.gmra.mxu0 %v4179
        %v4215 = vpop.f32.mrf.mxu0
        %v4216 = vadd.f32 %v4175, %v4215
        %v4217 = vpop.f32.mrf.mxu0
        %v4218 = vadd.f32 %v4175, %v4217
        %v4219 = vpop.f32.mrf.mxu0
        %v4220 = vpop.f32.mrf.mxu0
        %4221 = vdwg.mxu0
        %v4222 = vxor.u32 %v4216, 2147483648
        %v4223 = vxor.u32 %v4218, 2147483648
        %v4224 = vmul.f32 %v4222, 1.442695
        %v4225 = vpow.pop %v4224
        %v4226 = vmul.f32 %v4223, 1.442695
        %v4227 = vpow.pop %v4226
        %v4228 = vadd.f32 %v4225, 1.0
        %v4229 = vadd.f32 %v4227, 1.0
        %v4230 = vrcp.pop %v4228
        %v4231 = vmul.f32 1.0, %v4230
        %v4232 = vrcp.pop %v4229
        %v4233 = vmul.f32 1.0, %v4232
        %v4234 = vmul.f32 %v733, %v4231
        %v4235 = vmul.f32 %v734, %v4233
        %v4236 = vpack.c.bf16 %v733, %v731
        %v4237 = vpack.c.bf16 %v734, %v732
        %v4238 = vpack.c.bf16 %v4234, %v4234
        %v4239 = vpack.c.bf16 %v4235, %v4235
        %v4240 = vld [vmem:[#allocation9] sm:$0xf]
        %v4241 = vld [vmem:[#allocation9 + $0x4] sm:$0xf]
        %v4244 = vunpack.c.l.b16 %v4240
        %v4245 = vunpack.c.l.b16 %v4241
        %v4246 = vpack.c.b16 %v4245, %v4244
        %vm4247 = vcmask 195584
        %v4249 = vsel %vm4247, %v4246, 0
        %v4252 = vsel %vm625, %v4238, 0
        %v4255 = vsel %vm625, %v4239, 0
        %4257 = vmatprep.subr.bf16.mxu0 0
        %4258 = vmatpush1.bf16.msra.mxu0 0
        %4259 = vmatprep.subr.bf16.mxu0 0
        %4260 = vmatpush1.bf16.msra.mxu0 0
        %4261 = vmatprep.subr.bf16.mxu0 0
        %4262 = vmatpush1.bf16.msra.mxu0 0
        %4263 = vmatprep.subr.bf16.mxu0 0
        %4264 = vmatpush1.bf16.msra.mxu0 0
        %4265 = vmatprep.subr.bf16.mxu0 0
        %4266 = vmatpush1.bf16.msra.mxu0 0
        %4267 = vmatprep.subr.bf16.mxu0 0
        %4268 = vmatpush1.bf16.msra.mxu0 0
        %4269 = vmatprep.subr.bf16.mxu0 %v4255
        %4270 = vmatpush1.bf16.msra.mxu0 %v4252
        %4271 = vmatprep.subr.bf16.mxu0 %v4237
        %4272 = vmatpush1.bf16.msra.mxu0 %v4236
        %4273 = vmatprep.subr.bf16.mxu0 0
        %4274 = vmatpush2.bf16.msra.mxu0 0
        %4275 = vmatprep.subr.bf16.mxu0 0
        %4276 = vmatpush2.bf16.msra.mxu0 0
        %4277 = vmatprep.subr.bf16.mxu0 0
        %4278 = vmatpush2.bf16.msra.mxu0 0
        %4279 = vmatprep.subr.bf16.mxu0 0
        %4280 = vmatpush2.bf16.msra.mxu0 0
        %4281 = vmatprep.subr.bf16.mxu0 0
        %4282 = vmatpush2.bf16.msra.mxu0 0
        %4283 = vmatprep.subr.bf16.mxu0 0
        %4284 = vmatpush2.bf16.msra.mxu0 0
        %4285 = vmatprep.subr.bf16.mxu0 0
        %4286 = vmatpush2.bf16.msra.mxu0 0
        %4287 = vmatprep.subr.bf16.mxu0 0
        %4288 = vmatpush2.bf16.msra.mxu0 0
        %4289 = vmatprep.mubr.bf16.mxu0 0
        %4290 = vmatmul.mubr.bf16.gmra.mxu0 %v4249
        %v4291 = vpop.f32.mrf.mxu0
        %v4292 = vadd.f32 0.0, %v4291
        %v4293 = vpop.f32.mrf.mxu0
        %v4294 = vadd.f32 0.0, %v4293
        %v4295 = vpop.f32.mrf.mxu0
        %v4296 = vadd.f32 0.0, %v4295
        %v4297 = vpop.f32.mrf.mxu0
        %v4298 = vadd.f32 0.0, %v4297
        %4299 = vdwg.mxu0
        %v4300 = vld [vmem:[%s15] sm:$0xff]
        %v4301 = vld [vmem:[%s15 + $0x8] sm:$0xff]
        %4303 = vset.pattern.permute.xlu0 0
        %4304 = vperm.xlu0 %4303, %v4300
        %v4305 = vpop.permute.xlu0 %4304
        %4308 = vset.pattern.permute.xlu0 0
        %4309 = vperm.xlu0 %4308, %v4301
        %v4310 = vpop.permute.xlu0 %4309
        %v4312 = vmul.f32 %v4292, %v4305
        %v4313 = vmul.f32 %v4294, %v4305
        %v4314 = vmul.f32 %v4296, %v4310
        %v4315 = vmul.f32 %v4298, %v4310
        %v4316 = vld [vmem:[%s16] sm:$0xff]
        %v4317 = vld [vmem:[%s16 + $0x8] sm:$0xff]
        %4319 = vset.pattern.permute.xlu0 0
        %4320 = vperm.xlu0 %4319, %v4316
        %v4321 = vpop.permute.xlu0 %4320
        %4324 = vset.pattern.permute.xlu0 0
        %4325 = vperm.xlu0 %4324, %v4317
        %v4326 = vpop.permute.xlu0 %4325
        %v4328 = vadd.f32 %v4312, %v4321
        %v4329 = vadd.f32 %v4313, %v4321
        %v4330 = vadd.f32 %v4314, %v4326
        %v4331 = vadd.f32 %v4315, %v4326
        %v4332 = vxor.u32 %v4328, 2147483648
        %v4333 = vxor.u32 %v4329, 2147483648
        %v4334 = vxor.u32 %v4330, 2147483648
        %v4335 = vxor.u32 %v4331, 2147483648
        %v4336 = vmul.f32 %v4332, 1.442695
        %v4337 = vpow.pop %v4336
        %v4338 = vmul.f32 %v4333, 1.442695
        %v4339 = vpow.pop %v4338
        %v4340 = vmul.f32 %v4334, 1.442695
        %v4341 = vpow.pop %v4340
        %v4342 = vmul.f32 %v4335, 1.442695
        %v4343 = vpow.pop %v4342
        %v4344 = vadd.f32 %v4337, 1.0
        %v4345 = vadd.f32 %v4339, 1.0
        %v4346 = vadd.f32 %v4341, 1.0
        %v4347 = vadd.f32 %v4343, 1.0
        %v4348 = vrcp.pop %v4344
        %v4349 = vmul.f32 1.0, %v4348
        %v4350 = vrcp.pop %v4345
        %v4351 = vmul.f32 1.0, %v4350
        %v4352 = vrcp.pop %v4346
        %v4353 = vmul.f32 1.0, %v4352
        %v4354 = vrcp.pop %v4347
        %v4355 = vmul.f32 1.0, %v4354
        %v4356 = vmul.f32 %v4328, %v4349
        %v4357 = vmul.f32 %v4329, %v4351
        %v4358 = vmul.f32 %v4330, %v4353
        %v4359 = vmul.f32 %v4331, %v4355
        %v4360 = vpack.c.bf16 %v4358, %v4356
        %v4361 = vpack.c.bf16 %v4359, %v4357
        %v4364 = vunpack.c.l.b16 %v4360
        %v4365 = vunpack.c.l.b16 %v4361
        %v4366 = vunpack.c.h.b16 %v4360
        %v4367 = vunpack.c.h.b16 %v4361
        %v4368 = vpack.c.b16 %v4365, %v4364
        %v4369 = vpack.c.b16 %v4367, %v4366
        %4372 = vst [vmem:[%s606] sm:$0xff] %v4368
        %4373 = vst [vmem:[%s606 + $0x8] sm:$0xff] %v4369
        %s4374 = sand.u32 %s406, 1
        %s4375 = scalar_lea.sflag [#allocation5], %s4374
        %s4376 = sand.u32 %s406, 1
        %s4377 = smul.addr %s4376, 16
        %s4378 = scalar_lea.vmem [#allocation11], %s4377
        // Predicated region
        $region105: #{tpu_custom_call.1} parent=87 // pred_check
          %p4379 = pneg %p416
        $region106: #{tpu_custom_call.1} parent=87 // pred_check_branch
          %4381 = sbr.rel (%p4379) target = $region108
        $region107: #{tpu_custom_call.1} parent=87 // pred_region
          %s4383 = ssub.s32 256, 256
          %4384 = vsyncadd %s4375, %s4383
          %s4385 = smul.addr %s36, 4
          %s4386 = smul.addr %s4385, 64
          %s4387 = scalar_lea.hbm %s17, %s4386
          %s4388 = sshll.u32 %s4378, 4
          %s4389 = int_to_ptr.vmem [resolvable:$true] %s4388
          %4394 = dma.vmem_to_hbm [thread:$0]  %s4389, 256, %s4387, %s4375, 128, 128, 8
        $region108: #{tpu_custom_call.1} parent=87 // pred_fallthru
          _
      $region88: #{tpu_custom_call.1} parent=5 // pred_fallthru
        _
      %p4395 = scmp.le.s32.totalorder 2, %s31
      // Predicated region
      $region109: #{tpu_custom_call.1} parent=5 // pred_check
        %p4396 = pneg %p4395
      $region110: #{tpu_custom_call.1} parent=5 // pred_check_branch
        %4398 = sbr.rel (%p4396) target = $region112
      $region111: #{tpu_custom_call.1} parent=5 // pred_region
        %s4399 = ssub.s32 %s31, 2
        // Predicated region
        $region113: #{tpu_custom_call.1} parent=111 // pred_check
          %p4400 = pneg %p422
        $region114: #{tpu_custom_call.1} parent=111 // pred_check_branch
          %4402 = sbr.rel (%p4400) target = $region116
        $region115: #{tpu_custom_call.1} parent=111 // pred_region
          %s4403 = sand.u32 %s407, 1
          %s4404 = scalar_lea.sflag [#allocation5], %s4403
          %s4405 = sand.u32 %s407, 1
          %s4406 = smul.addr %s4405, 16
          %s4407 = scalar_lea.vmem [#allocation11], %s4406
          %4408 = dma.done %s4404, 256
        $region116: #{tpu_custom_call.1} parent=111 // pred_fallthru
          _
      $region112: #{tpu_custom_call.1} parent=5 // pred_fallthru
        _
    $region6: #{tpu_custom_call.1} parent=1 // loop_footer
      %s35 = sadd.s32 1, %s31
    $region7: #{tpu_custom_call.1} parent=1 // loop_footer_branch
      %30 = sbr.rel target = $region3
    $region8: #{tpu_custom_call.1} parent=1 // loop_exit
      _
    %4409 = vsyncpa [#allocation4], 1
    %s4410 = scalar_lea.sflag [#allocation4], 1
    %4411 = vsyncpa %s4410, 1
    %4412 = vsyncpa [#allocation7], 1
    %4413 = vsyncpa [#allocation10], 1
    %4414 = vsyncpa [#allocation5], 1
    %s4415 = scalar_lea.sflag [#allocation5], 1
    %4416 = vsyncpa %s4415, 1

// kernel: tpu_custom_call.1
$region0: #{tpu_custom_call.1}
  #allocation0 [shape = 'u32[]', space=smem, size = 0x4, offset = 0x4, fixed_abs, tag = 'smem constant byte address 0x4 - core index']
  #allocation1 [shape = 'u32[144,128]{1,0:T(1,128)}', space=vmem, size = 0x12000, scoped, tag = 'internal scratch']
  #allocation2 [shape = 'f32[32,256]{1,0:T(8,128)}', space=vmem, size = 0x8000, scoped, tag = 'scratch operand']
  %s0 = inlined_call_operand.hbm [shape: bf16[2,8,256], index: 0, kind: input, shape index: {}]
  %s1 = inlined_call_operand.vmem [shape: bf16[16,8], index: 1, kind: input, shape index: {}]
  %s2 = inlined_call_operand.vmem [shape: f32[16,1], index: 2, kind: input, shape index: {}]
  %s3 = inlined_call_operand.vmem [shape: f32[16,1], index: 3, kind: input, shape index: {}]
  %s4 = inlined_call_operand.vmem [shape: bf16[1,96,8], index: 4, kind: input, shape index: {}]
  %s5 = inlined_call_operand.vmem [shape: f32[1,96,1], index: 5, kind: input, shape index: {}]
  %s6 = inlined_call_operand.hbm [shape: bf16[1,8,32], index: 6, kind: input, shape index: {}]
  %s7 = inlined_call_operand.vmem [shape: f32[1,8,1], index: 7, kind: input, shape index: {}]
  %s8 = inlined_call_operand.vmem [shape: bf16[64,256], index: 8, kind: input, shape index: {}]
  %s9 = inlined_call_operand.vmem [shape: bf16[1,4,64,256], index: 9, kind: input, shape index: {}]
  %s10 = inlined_call_operand.vmem [shape: bf16[1,4,64,256], index: 10, kind: input, shape index: {}]
  %s11 = inlined_call_operand.vmem [shape: f32[1,9,32,1], index: 11, kind: input, shape index: {}]
  %s12 = inlined_call_operand.vmem [shape: f32[1,32,1], index: 12, kind: input, shape index: {}]
  %s13 = inlined_call_operand.hbm [shape: f32[9,1,256], index: 13, kind: input, shape index: {}]
  %s14 = inlined_call_operand.hbm [shape: bf16[16,24], index: 14, kind: input, shape index: {}]
  %s15 = inlined_call_operand.vmem [shape: f32[16,1], index: 15, kind: input, shape index: {}]
  %s16 = inlined_call_operand.vmem [shape: f32[16,1], index: 16, kind: input, shape index: {}]
  %s17 = inlined_call_operand.hbm [shape: bf16[2,16,256], index: 17, kind: output, shape index: {}]
  %s18 = sld [smem:[#allocation0]]
  $region117: #{tpu_custom_call.1} parent=0
    _
  %s20 = ssub.s32 1, %s18
  %s21 = scalar_select 0, %s20, %s18
  $region1: #{tpu_custom_call.1} parent=0
    #allocation3 [shape = 'u8[8192]{0}', space=vmem, size = 0x2000, scoped, tag = 'input window, operand 0']
    #allocation4 [shape = 's32[2]{0}', space=sflag, size = 0x8, scoped, tag = 'scoped memory for tpu_custom_call.1']
    #allocation5 [shape = 's32[2]{0}', space=sflag, size = 0x8, scoped, tag = 'scoped memory for tpu_custom_call.1']
    #allocation6 [shape = 'u8[2048]{0}', space=vmem, size = 0x800, scoped, tag = 'input window, operand 6, single buffered']
    #allocation7 [shape = 's32[1]{0}', space=sflag, size = 0x4, scoped, tag = 'scoped memory for tpu_custom_call.1']
    #allocation8 [shape = 'u8[9216]{0}', space=vmem, size = 0x2400, scoped, tag = 'input window, operand 13, single buffered']
    #allocation9 [shape = 'u8[4096]{0}', space=vmem, size = 0x1000, scoped, tag = 'input window, operand 14, single buffered']
    #allocation10 [shape = 's32[1]{0}', space=sflag, size = 0x4, scoped, tag = 'scoped memory for tpu_custom_call.1']
    #allocation11 [shape = 'u8[16384]{0}', space=vmem, size = 0x4000, scoped, tag = 'output window, operand 0']
    %22 = vsyncpa [#allocation4], 0
    %s23 = scalar_lea.sflag [#allocation4], 1
    %24 = vsyncpa %s23, 0
    %25 = vsyncpa [#allocation7], 0
    %26 = vsyncpa [#allocation10], 0
    %27 = vsyncpa [#allocation5], 0
    %s28 = scalar_lea.sflag [#allocation5], 1
    %29 = vsyncpa %s28, 0
    loop: start=0, step=1, limit=4
    $region2: #{tpu_custom_call.1} parent=1 // loop_pre_header
      _
    $region3: #{tpu_custom_call.1} parent=1 // loop_header
      %s31 = sphi 0, %s35
      %p32 = scmp.ge.s32.totalorder %s31, 4
      %s41 = sphi 0, %s43
      %s44 = sphi 0, %s41
      %s45 = sphi 0, %s44
      %s61 = sphi 0, %s45
      %s65 = sphi 0, %s65
      %s67 = sphi 0, %s65
      %s68 = sphi 0, %s67
      %s82 = sphi 0, %s68
      %s86 = sphi 0, %s86
      %s88 = sphi 0, %s86
      %s89 = sphi 0, %s88
      %s103 = sphi 0, %s89
      %s107 = sphi 0, %s107
      %s109 = sphi 0, %s107
      %s110 = sphi 0, %s109
      %s124 = sphi 0, %s110
      %s128 = sphi 0, %s128
      %s130 = sphi 0, %s128
      %s131 = sphi 0, %s130
      %s145 = sphi 0, %s131
      %s149 = sphi 0, %s149
      %s151 = sphi 0, %s149
      %s152 = sphi 0, %s151
      %s166 = sphi 0, %s152
      %s170 = sphi 0, %s170
      %s172 = sphi 0, %s170
      %s173 = sphi 0, %s172
      %s187 = sphi 0, %s173
      %s191 = sphi 0, %s191
      %s193 = sphi 0, %s191
      %s194 = sphi 0, %s193
      %s208 = sphi 0, %s194
      %s212 = sphi 0, %s212
      %s214 = sphi 0, %s212
      %s215 = sphi 0, %s214
      %s229 = sphi 0, %s215
      %s233 = sphi 0, %s233
      %s235 = sphi 0, %s233
      %s236 = sphi 0, %s235
      %s250 = sphi 0, %s236
      %s254 = sphi 0, %s254
      %s256 = sphi 0, %s254
      %s257 = sphi 0, %s256
      %s271 = sphi 0, %s257
      %s275 = sphi 0, %s275
      %s277 = sphi 0, %s275
      %s278 = sphi 0, %s277
      %s292 = sphi 0, %s278
      %s296 = sphi 0, %s296
      %s298 = sphi 0, %s296
      %s299 = sphi 0, %s298
      %s313 = sphi 0, %s299
      %s317 = sphi 0, %s317
      %s319 = sphi 0, %s317
      %s320 = sphi 0, %s319
      %s334 = sphi 0, %s320
      %s338 = sphi 0, %s338
      %s340 = sphi 0, %s338
      %s341 = sphi 0, %s340
      %s355 = sphi 0, %s341
      %s359 = sphi 0, %s359
      %s361 = sphi 0, %s359
      %s362 = sphi 0, %s361
      %s376 = sphi 0, %s362
      %s380 = sphi 0, %s380
      %s382 = sphi 0, %s380
      %s383 = sphi 0, %s382
      %s397 = sphi 0, %s383
      %s403 = sphi 0, %s405
      %s406 = sphi 0, %s403
      %s407 = sphi 0, %s406
      %s423 = sphi 0, %s407
    $region4: #{tpu_custom_call.1} parent=1 // loop_header_branch
      %34 = sbr.rel (%p32) target = $region8
    $region5: #{tpu_custom_call.1} parent=1 // loop_body
      %s36 = ssub.s32 %s31, 1
      %s37 = ssub.s32 %s31, 2
      %s38 = sadd.s32 %s31, 1
      %s39 = ssub.s32 %s31, %s38
      %p40 = scmp.eq.s32.totalorder %s39, 0
      %s42 = sadd.s32 %s41, 1
      %s43 = scalar_select %p40, %s41, %s42
      %p46 = pneg %p40
      %p47 = scmp.eq.s32.totalorder %s31, 1
      %p48 = por %p46, %p47
      %p49 = scmp.ne.s32.totalorder %s41, %s44
      %p50 = scmp.eq.s32.totalorder %s31, 0
      %p51 = por %p49, %p50
      %p52 = scmp.ne.s32.totalorder %s41, %s44
      %p53 = scmp.eq.s32.totalorder %s36, 1
      %p54 = por %p52, %p53
      %p55 = scmp.ne.s32.totalorder %s44, %s45
      %p56 = scmp.eq.s32.totalorder %s36, 0
      %p57 = por %p55, %p56
      %p58 = scmp.ne.s32.totalorder %s44, %s45
      %p59 = scmp.eq.s32.totalorder %s37, 1
      %p60 = por %p58, %p59
      %p62 = scmp.ne.s32.totalorder %s45, %s61
      %p63 = scmp.eq.s32.totalorder %s37, 0
      %p64 = por %p62, %p63
      %s66 = sadd.s32 %s65, 1
      %p69 = scmp.eq.s32.totalorder %s31, 1
      %p70 = scmp.ne.s32.totalorder %s65, %s67
      %p71 = scmp.eq.s32.totalorder %s31, 0
      %p72 = por %p70, %p71
      %p73 = scmp.ne.s32.totalorder %s65, %s67
      %p74 = scmp.eq.s32.totalorder %s36, 1
      %p75 = por %p73, %p74
      %p76 = scmp.ne.s32.totalorder %s67, %s68
      %p77 = scmp.eq.s32.totalorder %s36, 0
      %p78 = por %p76, %p77
      %p79 = scmp.ne.s32.totalorder %s67, %s68
      %p80 = scmp.eq.s32.totalorder %s37, 1
      %p81 = por %p79, %p80
      %p83 = scmp.ne.s32.totalorder %s68, %s82
      %p84 = scmp.eq.s32.totalorder %s37, 0
      %p85 = por %p83, %p84
      %s87 = sadd.s32 %s86, 1
      %p90 = scmp.eq.s32.totalorder %s31, 1
      %p91 = scmp.ne.s32.totalorder %s86, %s88
      %p92 = scmp.eq.s32.totalorder %s31, 0
      %p93 = por %p91, %p92
      %p94 = scmp.ne.s32.totalorder %s86, %s88
      %p95 = scmp.eq.s32.totalorder %s36, 1
      %p96 = por %p94, %p95
      %p97 = scmp.ne.s32.totalorder %s88, %s89
      %p98 = scmp.eq.s32.totalorder %s36, 0
      %p99 = por %p97, %p98
      %p100 = scmp.ne.s32.totalorder %s88, %s89
      %p101 = scmp.eq.s32.totalorder %s37, 1
      %p102 = por %p100, %p101
      %p104 = scmp.ne.s32.totalorder %s89, %s103
      %p105 = scmp.eq.s32.totalorder %s37, 0
      %p106 = por %p104, %p105
      %s108 = sadd.s32 %s107, 1
      %p111 = scmp.eq.s32.totalorder %s31, 1
      %p112 = scmp.ne.s32.totalorder %s107, %s109
      %p113 = scmp.eq.s32.totalorder %s31, 0
      %p114 = por %p112, %p113
      %p115 = scmp.ne.s32.totalorder %s107, %s109
      %p116 = scmp.eq.s32.totalorder %s36, 1
      %p117 = por %p115, %p116
      %p118 = scmp.ne.s32.totalorder %s109, %s110
      %p119 = scmp.eq.s32.totalorder %s36, 0
      %p120 = por %p118, %p119
      %p121 = scmp.ne.s32.totalorder %s109, %s110
      %p122 = scmp.eq.s32.totalorder %s37, 1
      %p123 = por %p121, %p122
      %p125 = scmp.ne.s32.totalorder %s110, %s124
      %p126 = scmp.eq.s32.totalorder %s37, 0
      %p127 = por %p125, %p126
      %s129 = sadd.s32 %s128, 1
      %p132 = scmp.eq.s32.totalorder %s31, 1
      %p133 = scmp.ne.s32.totalorder %s128, %s130
      %p134 = scmp.eq.s32.totalorder %s31, 0
      %p135 = por %p133, %p134
      %p136 = scmp.ne.s32.totalorder %s128, %s130
      %p137 = scmp.eq.s32.totalorder %s36, 1
      %p138 = por %p136, %p137
      %p139 = scmp.ne.s32.totalorder %s130, %s131
      %p140 = scmp.eq.s32.totalorder %s36, 0
      %p141 = por %p139, %p140
      %p142 = scmp.ne.s32.totalorder %s130, %s131
      %p143 = scmp.eq.s32.totalorder %s37, 1
      %p144 = por %p142, %p143
      %p146 = scmp.ne.s32.totalorder %s131, %s145
      %p147 = scmp.eq.s32.totalorder %s37, 0
      %p148 = por %p146, %p147
      %s150 = sadd.s32 %s149, 1
      %p153 = scmp.eq.s32.totalorder %s31, 1
      %p154 = scmp.ne.s32.totalorder %s149, %s151
      %p155 = scmp.eq.s32.totalorder %s31, 0
      %p156 = por %p154, %p155
      %p157 = scmp.ne.s32.totalorder %s149, %s151
      %p158 = scmp.eq.s32.totalorder %s36, 1
      %p159 = por %p157, %p158
      %p160 = scmp.ne.s32.totalorder %s151, %s152
      %p161 = scmp.eq.s32.totalorder %s36, 0
      %p162 = por %p160, %p161
      %p163 = scmp.ne.s32.totalorder %s151, %s152
      %p164 = scmp.eq.s32.totalorder %s37, 1
      %p165 = por %p163, %p164
      %p167 = scmp.ne.s32.totalorder %s152, %s166
      %p168 = scmp.eq.s32.totalorder %s37, 0
      %p169 = por %p167, %p168
      %s171 = sadd.s32 %s170, 1
      %p174 = scmp.eq.s32.totalorder %s31, 1
      %p175 = scmp.ne.s32.totalorder %s170, %s172
      %p176 = scmp.eq.s32.totalorder %s31, 0
      %p177 = por %p175, %p176
      %p178 = scmp.ne.s32.totalorder %s170, %s172
      %p179 = scmp.eq.s32.totalorder %s36, 1
      %p180 = por %p178, %p179
      %p181 = scmp.ne.s32.totalorder %s172, %s173
      %p182 = scmp.eq.s32.totalorder %s36, 0
      %p183 = por %p181, %p182
      %p184 = scmp.ne.s32.totalorder %s172, %s173
      %p185 = scmp.eq.s32.totalorder %s37, 1
      %p186 = por %p184, %p185
      %p188 = scmp.ne.s32.totalorder %s173, %s187
      %p189 = scmp.eq.s32.totalorder %s37, 0
      %p190 = por %p188, %p189
      %s192 = sadd.s32 %s191, 1
      %p195 = scmp.eq.s32.totalorder %s31, 1
      %p196 = scmp.ne.s32.totalorder %s191, %s193
      %p197 = scmp.eq.s32.totalorder %s31, 0
      %p198 = por %p196, %p197
      %p199 = scmp.ne.s32.totalorder %s191, %s193
      %p200 = scmp.eq.s32.totalorder %s36, 1
      %p201 = por %p199, %p200
      %p202 = scmp.ne.s32.totalorder %s193, %s194
      %p203 = scmp.eq.s32.totalorder %s36, 0
      %p204 = por %p202, %p203
      %p205 = scmp.ne.s32.totalorder %s193, %s194
      %p206 = scmp.eq.s32.totalorder %s37, 1
      %p207 = por %p205, %p206
      %p209 = scmp.ne.s32.totalorder %s194, %s208
      %p210 = scmp.eq.s32.totalorder %s37, 0
      %p211 = por %p209, %p210
      %s213 = sadd.s32 %s212, 1
      %p216 = scmp.eq.s32.totalorder %s31, 1
      %p217 = scmp.ne.s32.totalorder %s212, %s214
      %p218 = scmp.eq.s32.totalorder %s31, 0
      %p219 = por %p217, %p218
      %p220 = scmp.ne.s32.totalorder %s212, %s214
      %p221 = scmp.eq.s32.totalorder %s36, 1
      %p222 = por %p220, %p221
      %p223 = scmp.ne.s32.totalorder %s214, %s215
      %p224 = scmp.eq.s32.totalorder %s36, 0
      %p225 = por %p223, %p224
      %p226 = scmp.ne.s32.totalorder %s214, %s215
      %p227 = scmp.eq.s32.totalorder %s37, 1
      %p228 = por %p226, %p227
      %p230 = scmp.ne.s32.totalorder %s215, %s229
      %p231 = scmp.eq.s32.totalorder %s37, 0
      %p232 = por %p230, %p231
      %s234 = sadd.s32 %s233, 1
      %p237 = scmp.eq.s32.totalorder %s31, 1
      %p238 = scmp.ne.s32.totalorder %s233, %s235
      %p239 = scmp.eq.s32.totalorder %s31, 0
      %p240 = por %p238, %p239
      %p241 = scmp.ne.s32.totalorder %s233, %s235
      %p242 = scmp.eq.s32.totalorder %s36, 1
      %p243 = por %p241, %p242
      %p244 = scmp.ne.s32.totalorder %s235, %s236
      %p245 = scmp.eq.s32.totalorder %s36, 0
      %p246 = por %p244, %p245
      %p247 = scmp.ne.s32.totalorder %s235, %s236
      %p248 = scmp.eq.s32.totalorder %s37, 1
      %p249 = por %p247, %p248
      %p251 = scmp.ne.s32.totalorder %s236, %s250
      %p252 = scmp.eq.s32.totalorder %s37, 0
      %p253 = por %p251, %p252
      %s255 = sadd.s32 %s254, 1
      %p258 = scmp.eq.s32.totalorder %s31, 1
      %p259 = scmp.ne.s32.totalorder %s254, %s256
      %p260 = scmp.eq.s32.totalorder %s31, 0
      %p261 = por %p259, %p260
      %p262 = scmp.ne.s32.totalorder %s254, %s256
      %p263 = scmp.eq.s32.totalorder %s36, 1
      %p264 = por %p262, %p263
      %p265 = scmp.ne.s32.totalorder %s256, %s257
      %p266 = scmp.eq.s32.totalorder %s36, 0
      %p267 = por %p265, %p266
      %p268 = scmp.ne.s32.totalorder %s256, %s257
      %p269 = scmp.eq.s32.totalorder %s37, 1
      %p270 = por %p268, %p269
      %p272 = scmp.ne.s32.totalorder %s257, %s271
      %p273 = scmp.eq.s32.totalorder %s37, 0
      %p274 = por %p272, %p273
      %s276 = sadd.s32 %s275, 1
      %p279 = scmp.eq.s32.totalorder %s31, 1
      %p280 = scmp.ne.s32.totalorder %s275, %s277
      %p281 = scmp.eq.s32.totalorder %s31, 0
      %p282 = por %p280, %p281
      %p283 = scmp.ne.s32.totalorder %s275, %s277
      %p284 = scmp.eq.s32.totalorder %s36, 1
      %p285 = por %p283, %p284
      %p286 = scmp.ne.s32.totalorder %s277, %s278
      %p287 = scmp.eq.s32.totalorder %s36, 0
      %p288 = por %p286, %p287
      %p289 = scmp.ne.s32.totalorder %s277, %s278
      %p290 = scmp.eq.s32.totalorder %s37, 1
      %p291 = por %p289, %p290
      %p293 = scmp.ne.s32.totalorder %s278, %s292
      %p294 = scmp.eq.s32.totalorder %s37, 0
      %p295 = por %p293, %p294
      %s297 = sadd.s32 %s296, 1
      %p300 = scmp.eq.s32.totalorder %s31, 1
      %p301 = scmp.ne.s32.totalorder %s296, %s298
      %p302 = scmp.eq.s32.totalorder %s31, 0
      %p303 = por %p301, %p302
      %p304 = scmp.ne.s32.totalorder %s296, %s298
      %p305 = scmp.eq.s32.totalorder %s36, 1
      %p306 = por %p304, %p305
      %p307 = scmp.ne.s32.totalorder %s298, %s299
      %p308 = scmp.eq.s32.totalorder %s36, 0
      %p309 = por %p307, %p308
      %p310 = scmp.ne.s32.totalorder %s298, %s299
      %p311 = scmp.eq.s32.totalorder %s37, 1
      %p312 = por %p310, %p311
      %p314 = scmp.ne.s32.totalorder %s299, %s313
      %p315 = scmp.eq.s32.totalorder %s37, 0
      %p316 = por %p314, %p315
      %s318 = sadd.s32 %s317, 1
      %p321 = scmp.eq.s32.totalorder %s31, 1
      %p322 = scmp.ne.s32.totalorder %s317, %s319
      %p323 = scmp.eq.s32.totalorder %s31, 0
      %p324 = por %p322, %p323
      %p325 = scmp.ne.s32.totalorder %s317, %s319
      %p326 = scmp.eq.s32.totalorder %s36, 1
      %p327 = por %p325, %p326
      %p328 = scmp.ne.s32.totalorder %s319, %s320
      %p329 = scmp.eq.s32.totalorder %s36, 0
      %p330 = por %p328, %p329
      %p331 = scmp.ne.s32.totalorder %s319, %s320
      %p332 = scmp.eq.s32.totalorder %s37, 1
      %p333 = por %p331, %p332
      %p335 = scmp.ne.s32.totalorder %s320, %s334
      %p336 = scmp.eq.s32.totalorder %s37, 0
      %p337 = por %p335, %p336
      %s339 = sadd.s32 %s338, 1
      %p342 = scmp.eq.s32.totalorder %s31, 1
      %p343 = scmp.ne.s32.totalorder %s338, %s340
      %p344 = scmp.eq.s32.totalorder %s31, 0
      %p345 = por %p343, %p344
      %p346 = scmp.ne.s32.totalorder %s338, %s340
      %p347 = scmp.eq.s32.totalorder %s36, 1
      %p348 = por %p346, %p347
      %p349 = scmp.ne.s32.totalorder %s340, %s341
      %p350 = scmp.eq.s32.totalorder %s36, 0
      %p351 = por %p349, %p350
      %p352 = scmp.ne.s32.totalorder %s340, %s341
      %p353 = scmp.eq.s32.totalorder %s37, 1
      %p354 = por %p352, %p353
      %p356 = scmp.ne.s32.totalorder %s341, %s355
      %p357 = scmp.eq.s32.totalorder %s37, 0
      %p358 = por %p356, %p357
      %s360 = sadd.s32 %s359, 1
      %p363 = scmp.eq.s32.totalorder %s31, 1
      %p364 = scmp.ne.s32.totalorder %s359, %s361
      %p365 = scmp.eq.s32.totalorder %s31, 0
      %p366 = por %p364, %p365
      %p367 = scmp.ne.s32.totalorder %s359, %s361
      %p368 = scmp.eq.s32.totalorder %s36, 1
      %p369 = por %p367, %p368
      %p370 = scmp.ne.s32.totalorder %s361, %s362
      %p371 = scmp.eq.s32.totalorder %s36, 0
      %p372 = por %p370, %p371
      %p373 = scmp.ne.s32.totalorder %s361, %s362
      %p374 = scmp.eq.s32.totalorder %s37, 1
      %p375 = por %p373, %p374
      %p377 = scmp.ne.s32.totalorder %s362, %s376
      %p378 = scmp.eq.s32.totalorder %s37, 0
      %p379 = por %p377, %p378
      %s381 = sadd.s32 %s380, 1
      %p384 = scmp.eq.s32.totalorder %s31, 1
      %p385 = scmp.ne.s32.totalorder %s380, %s382
      %p386 = scmp.eq.s32.totalorder %s31, 0
      %p387 = por %p385, %p386
      %p388 = scmp.ne.s32.totalorder %s380, %s382
      %p389 = scmp.eq.s32.totalorder %s36, 1
      %p390 = por %p388, %p389
      %p391 = scmp.ne.s32.totalorder %s382, %s383
      %p392 = scmp.eq.s32.totalorder %s36, 0
      %p393 = por %p391, %p392
      %p394 = scmp.ne.s32.totalorder %s382, %s383
      %p395 = scmp.eq.s32.totalorder %s37, 1
      %p396 = por %p394, %p395
      %p398 = scmp.ne.s32.totalorder %s383, %s397
      %p399 = scmp.eq.s32.totalorder %s37, 0
      %p400 = por %p398, %p399
      %s401 = ssub.s32 %s31, %s38
      %p402 = scmp.eq.s32.totalorder %s401, 0
      %s404 = sadd.s32 %s403, 1
      %s405 = scalar_select %p402, %s403, %s404
      %p408 = pneg %p402
      %p409 = scmp.eq.s32.totalorder %s31, 1
      %p410 = por %p408, %p409
      %p411 = scmp.ne.s32.totalorder %s403, %s406
      %p412 = scmp.eq.s32.totalorder %s31, 0
      %p413 = por %p411, %p412
      %p414 = scmp.ne.s32.totalorder %s403, %s406
      %p415 = scmp.eq.s32.totalorder %s36, 1
      %p416 = por %p414, %p415
      %p417 = scmp.ne.s32.totalorder %s406, %s407
      %p418 = scmp.eq.s32.totalorder %s36, 0
      %p419 = por %p417, %p418
      %p420 = scmp.ne.s32.totalorder %s406, %s407
      %p421 = scmp.eq.s32.totalorder %s37, 1
      %p422 = por %p420, %p421
      %p424 = scmp.ne.s32.totalorder %s407, %s423
      %p425 = scmp.eq.s32.totalorder %s37, 0
      %p426 = por %p424, %p425
      %p427 = scmp.le.s32.totalorder 1, %s31
      %p428 = scmp.lt.s32.totalorder %s31, 3
      %p429 = pnand %p427, %p428
      %p430 = pneg %p429
      // Predicated region
      $region9: #{tpu_custom_call.1} parent=5 // pred_check
        _
      $region10: #{tpu_custom_call.1} parent=5 // pred_check_branch
        %432 = sbr.rel (%p429) target = $region12
      $region11: #{tpu_custom_call.1} parent=5 // pred_region
        %s433 = ssub.s32 %s31, 1
        // Predicated region
        $region13: #{tpu_custom_call.1} parent=11 // pred_check
          %p434 = pneg %p78
        $region14: #{tpu_custom_call.1} parent=11 // pred_check_branch
          %436 = sbr.rel (%p434) target = $region16
        $region15: #{tpu_custom_call.1} parent=11 // pred_region
          _
        $region16: #{tpu_custom_call.1} parent=11 // pred_fallthru
          _
        // Predicated region
        $region17: #{tpu_custom_call.1} parent=11 // pred_check
          %p437 = pneg %p99
        $region18: #{tpu_custom_call.1} parent=11 // pred_check_branch
          %439 = sbr.rel (%p437) target = $region20
        $region19: #{tpu_custom_call.1} parent=11 // pred_region
          _
        $region20: #{tpu_custom_call.1} parent=11 // pred_fallthru
          _
        // Predicated region
        $region21: #{tpu_custom_call.1} parent=11 // pred_check
          %p440 = pneg %p120
        $region22: #{tpu_custom_call.1} parent=11 // pred_check_branch
          %442 = sbr.rel (%p440) target = $region24
        $region23: #{tpu_custom_call.1} parent=11 // pred_region
          _
        $region24: #{tpu_custom_call.1} parent=11 // pred_fallthru
          _
        // Predicated region
        $region25: #{tpu_custom_call.1} parent=11 // pred_check
          %p443 = pneg %p141
        $region26: #{tpu_custom_call.1} parent=11 // pred_check_branch
          %445 = sbr.rel (%p443) target = $region28
        $region27: #{tpu_custom_call.1} parent=11 // pred_region
          _
        $region28: #{tpu_custom_call.1} parent=11 // pred_fallthru
          _
        // Predicated region
        $region29: #{tpu_custom_call.1} parent=11 // pred_check
          %p446 = pneg %p162
        $region30: #{tpu_custom_call.1} parent=11 // pred_check_branch
          %448 = sbr.rel (%p446) target = $region32
        $region31: #{tpu_custom_call.1} parent=11 // pred_region
          _
        $region32: #{tpu_custom_call.1} parent=11 // pred_fallthru
          _
        // Predicated region
        $region33: #{tpu_custom_call.1} parent=11 // pred_check
          %p449 = pneg %p183
        $region34: #{tpu_custom_call.1} parent=11 // pred_check_branch
          %451 = sbr.rel (%p449) target = $region36
        $region35: #{tpu_custom_call.1} parent=11 // pred_region
          %s453 = ssub.s32 64, 64
          %454 = vsyncadd [#allocation7], %s453
          %s456 = sshll.u32 [#allocation6], 4
          %s457 = int_to_ptr.vmem [resolvable:$true] %s456
          %459 = dma.hbm_to_vmem [thread:$0]  %s6, 64, %s457, [#allocation7]
        $region36: #{tpu_custom_call.1} parent=11 // pred_fallthru
          _
        // Predicated region
        $region37: #{tpu_custom_call.1} parent=11 // pred_check
          %p460 = pneg %p204
        $region38: #{tpu_custom_call.1} parent=11 // pred_check_branch
          %462 = sbr.rel (%p460) target = $region40
        $region39: #{tpu_custom_call.1} parent=11 // pred_region
          _
        $region40: #{tpu_custom_call.1} parent=11 // pred_fallthru
          _
        // Predicated region
        $region41: #{tpu_custom_call.1} parent=11 // pred_check
          %p463 = pneg %p225
        $region42: #{tpu_custom_call.1} parent=11 // pred_check_branch
          %465 = sbr.rel (%p463) target = $region44
        $region43: #{tpu_custom_call.1} parent=11 // pred_region
          _
        $region44: #{tpu_custom_call.1} parent=11 // pred_fallthru
          _
        // Predicated region
        $region45: #{tpu_custom_call.1} parent=11 // pred_check
          %p466 = pneg %p246
        $region46: #{tpu_custom_call.1} parent=11 // pred_check_branch
          %468 = sbr.rel (%p466) target = $region48
        $region47: #{tpu_custom_call.1} parent=11 // pred_region
          _
        $region48: #{tpu_custom_call.1} parent=11 // pred_fallthru
          _
        // Predicated region
        $region49: #{tpu_custom_call.1} parent=11 // pred_check
          %p469 = pneg %p267
        $region50: #{tpu_custom_call.1} parent=11 // pred_check_branch
          %471 = sbr.rel (%p469) target = $region52
        $region51: #{tpu_custom_call.1} parent=11 // pred_region
          _
        $region52: #{tpu_custom_call.1} parent=11 // pred_fallthru
          _
        // Predicated region
        $region53: #{tpu_custom_call.1} parent=11 // pred_check
          %p472 = pneg %p288
        $region54: #{tpu_custom_call.1} parent=11 // pred_check_branch
          %474 = sbr.rel (%p472) target = $region56
        $region55: #{tpu_custom_call.1} parent=11 // pred_region
          _
        $region56: #{tpu_custom_call.1} parent=11 // pred_fallthru
          _
        // Predicated region
        $region57: #{tpu_custom_call.1} parent=11 // pred_check
          %p475 = pneg %p309
        $region58: #{tpu_custom_call.1} parent=11 // pred_check_branch
          %477 = sbr.rel (%p475) target = $region60
        $region59: #{tpu_custom_call.1} parent=11 // pred_region
          _
        $region60: #{tpu_custom_call.1} parent=11 // pred_fallthru
          _
        // Predicated region
        $region61: #{tpu_custom_call.1} parent=11 // pred_check
          %p478 = pneg %p330
        $region62: #{tpu_custom_call.1} parent=11 // pred_check_branch
          %480 = sbr.rel (%p478) target = $region64
        $region63: #{tpu_custom_call.1} parent=11 // pred_region
          %s482 = ssub.s32 288, 288
          %483 = vsyncadd [#allocation7], %s482
          %s484 = sshll.u32 [#allocation8], 4
          %s485 = int_to_ptr.vmem [resolvable:$true] %s484
          %490 = dma.hbm_to_vmem [thread:$0]  %s13, 288, %s485, [#allocation7], 32, 32, 2
        $region64: #{tpu_custom_call.1} parent=11 // pred_fallthru
          _
        // Predicated region
        $region65: #{tpu_custom_call.1} parent=11 // pred_check
          %p491 = pneg %p351
        $region66: #{tpu_custom_call.1} parent=11 // pred_check_branch
          %493 = sbr.rel (%p491) target = $region68
        $region67: #{tpu_custom_call.1} parent=11 // pred_region
          %s495 = ssub.s32 128, 128
          %496 = vsyncadd [#allocation10], %s495
          %s497 = sshll.u32 [#allocation9], 4
          %s498 = int_to_ptr.vmem [resolvable:$true] %s497
          %503 = dma.hbm_to_vmem [thread:$0]  %s14, 128, %s498, [#allocation10], 64, 64, 4
        $region68: #{tpu_custom_call.1} parent=11 // pred_fallthru
          _
        // Predicated region
        $region69: #{tpu_custom_call.1} parent=11 // pred_check
          %p504 = pneg %p372
        $region70: #{tpu_custom_call.1} parent=11 // pred_check_branch
          %506 = sbr.rel (%p504) target = $region72
        $region71: #{tpu_custom_call.1} parent=11 // pred_region
          _
        $region72: #{tpu_custom_call.1} parent=11 // pred_fallthru
          _
        // Predicated region
        $region73: #{tpu_custom_call.1} parent=11 // pred_check
          %p507 = pneg %p393
        $region74: #{tpu_custom_call.1} parent=11 // pred_check_branch
          %509 = sbr.rel (%p507) target = $region76
        $region75: #{tpu_custom_call.1} parent=11 // pred_region
          _
        $region76: #{tpu_custom_call.1} parent=11 // pred_fallthru
          _
      $region12: #{tpu_custom_call.1} parent=5 // pred_fallthru
        _
      %p510 = scmp.lt.s32.totalorder %s31, 2
      // Predicated region
      $region77: #{tpu_custom_call.1} parent=5 // pred_check
        %p511 = pneg %p510
      $region78: #{tpu_custom_call.1} parent=5 // pred_check_branch
        %513 = sbr.rel (%p511) target = $region80
      $region79: #{tpu_custom_call.1} parent=5 // pred_region
        // Predicated region
        $region81: #{tpu_custom_call.1} parent=79 // pred_check
          %p514 = pneg %p51
        $region82: #{tpu_custom_call.1} parent=79 // pred_check_branch
          %516 = sbr.rel (%p514) target = $region84
        $region83: #{tpu_custom_call.1} parent=79 // pred_region
          %s517 = sand.u32 %s41, 1
          %s518 = scalar_lea.sflag [#allocation4], %s517
          %s519 = sand.u32 %s41, 1
          %s520 = smul.addr %s519, 8
          %s521 = scalar_lea.vmem [#allocation3], %s520
          %s523 = ssub.s32 128, 128
          %524 = vsyncadd %s518, %s523
          %s525 = smul.addr %s31, 2
          %s526 = smul.addr %s525, 64
          %s527 = scalar_lea.hbm %s0, %s526
          %s529 = sshll.u32 %s521, 4
          %s530 = int_to_ptr.vmem [resolvable:$true] %s529
          %532 = dma.hbm_to_vmem [thread:$0]  %s527, 128, %s530, %s518
        $region84: #{tpu_custom_call.1} parent=79 // pred_fallthru
          _
      $region80: #{tpu_custom_call.1} parent=5 // pred_fallthru
        _
      %p533 = scmp.le.s32.totalorder 1, %s31
      %p534 = scmp.lt.s32.totalorder %s31, 3
      %p535 = pnand %p533, %p534
      %p536 = pneg %p535
      // Predicated region
      $region85: #{tpu_custom_call.1} parent=5 // pred_check
        _
      $region86: #{tpu_custom_call.1} parent=5 // pred_check_branch
        %538 = sbr.rel (%p535) target = $region88
      $region87: #{tpu_custom_call.1} parent=5 // pred_region
        %s539 = ssub.s32 %s31, 1
        %s540 = sand.u32 %s44, 1
        %s541 = scalar_lea.sflag [#allocation4], %s540
        %s542 = sand.u32 %s44, 1
        %s543 = smul.addr %s542, 8
        %s544 = scalar_lea.vmem [#allocation3], %s543
        // Predicated region
        $region89: #{tpu_custom_call.1} parent=87 // pred_check
          %p545 = pneg %p57
        $region90: #{tpu_custom_call.1} parent=87 // pred_check_branch
          %547 = sbr.rel (%p545) target = $region92
        $region91: #{tpu_custom_call.1} parent=87 // pred_region
          %548 = dma.done %s541, 128
        $region92: #{tpu_custom_call.1} parent=87 // pred_fallthru
          _
        // Predicated region
        $region93: #{tpu_custom_call.1} parent=87 // pred_check
          %p549 = pneg %p183
        $region94: #{tpu_custom_call.1} parent=87 // pred_check_branch
          %551 = sbr.rel (%p549) target = $region96
        $region95: #{tpu_custom_call.1} parent=87 // pred_region
          %552 = dma.done [#allocation7], 64
        $region96: #{tpu_custom_call.1} parent=87 // pred_fallthru
          _
        // Predicated region
        $region97: #{tpu_custom_call.1} parent=87 // pred_check
          %p553 = pneg %p330
        $region98: #{tpu_custom_call.1} parent=87 // pred_check_branch
          %555 = sbr.rel (%p553) target = $region100
        $region99: #{tpu_custom_call.1} parent=87 // pred_region
          %556 = dma.done [#allocation7], 288
        $region100: #{tpu_custom_call.1} parent=87 // pred_fallthru
          _
        // Predicated region
        $region101: #{tpu_custom_call.1} parent=87 // pred_check
          %p557 = pneg %p351
        $region102: #{tpu_custom_call.1} parent=87 // pred_check_branch
          %559 = sbr.rel (%p557) target = $region104
        $region103: #{tpu_custom_call.1} parent=87 // pred_region
          %560 = dma.done [#allocation10], 128
        $region104: #{tpu_custom_call.1} parent=87 // pred_fallthru
          _
        %s561 = sand.u32 %s44, 1
        %s562 = scalar_lea.sflag [#allocation4], %s561
        %s563 = sand.u32 %s44, 1
        %s564 = smul.addr %s563, 8
        %s565 = scalar_lea.vmem [#allocation3], %s564
        %p566 = pneg %p57
        %p567 = pneg %p54
        %p568 = pneg %p78
        %p569 = pneg %p75
        %p570 = pneg %p99
        %p571 = pneg %p96
        %p572 = pneg %p120
        %p573 = pneg %p117
        %p574 = pneg %p141
        %p575 = pneg %p138
        %p576 = pneg %p162
        %p577 = pneg %p159
        %p578 = pneg %p183
        %p579 = pneg %p180
        %p580 = pneg %p204
        %p581 = pneg %p201
        %p582 = pneg %p225
        %p583 = pneg %p222
        %p584 = pneg %p246
        %p585 = pneg %p243
        %p586 = pneg %p267
        %p587 = pneg %p264
        %p588 = pneg %p288
        %p589 = pneg %p285
        %p590 = pneg %p309
        %p591 = pneg %p306
        %p592 = pneg %p330
        %p593 = pneg %p327
        %p594 = pneg %p351
        %p595 = pneg %p348
        %p596 = pneg %p372
        %p597 = pneg %p369
        %p598 = pneg %p393
        %p599 = pneg %p390
        %p600 = pneg %p419
        %p601 = pneg %p416
        %s602 = sand.u32 %s406, 1
        %s603 = scalar_lea.sflag [#allocation5], %s602
        %s604 = sand.u32 %s406, 1
        %s605 = smul.addr %s604, 16
        %s606 = scalar_lea.vmem [#allocation11], %s605
        %v608 = vld [vmem:[%s544] sm:$0xff]
        %v609 = vld [vmem:[%s1] sm:$0xf]
        %v610 = vld [vmem:[%s1 + $0x4] sm:$0xf]
        %v613 = vunpack.c.l.b16 %v609
        %v614 = vunpack.c.l.b16 %v610
        %v615 = vpack.c.b16 %v614, %v613
        %v617 = vunpack.c.l.b16 %v608
        %v618 = vunpack.c.h.b16 %v608
        %v619 = vpack.c.b16 %v617, %v617
        %v620 = vpack.c.b16 %v618, %v618
        %vm621 = vcmask 64512
        %v623 = vsel %vm621, %v615, 0
        %vm625 = vcmask 1043456
        %v627 = vsel %vm625, %v619, 0
        %v630 = vsel %vm625, %v620, 0
        %632 = vmatprep.subr.bf16.mxu0 0
        %633 = vmatpush1.bf16.msra.mxu0 0
        %634 = vmatprep.subr.bf16.mxu0 0
        %635 = vmatpush1.bf16.msra.mxu0 0
        %636 = vmatprep.subr.bf16.mxu0 0
        %637 = vmatpush1.bf16.msra.mxu0 0
        %638 = vmatprep.subr.bf16.mxu0 0
        %639 = vmatpush1.bf16.msra.mxu0 0
        %640 = vmatprep.subr.bf16.mxu0 0
        %641 = vmatpush1.bf16.msra.mxu0 0
        %642 = vmatprep.subr.bf16.mxu0 0
        %643 = vmatpush1.bf16.msra.mxu0 0
        %644 = vmatprep.subr.bf16.mxu0 0
        %645 = vmatpush1.bf16.msra.mxu0 0
        %646 = vmatprep.subr.bf16.mxu0 %v630
        %647 = vmatpush1.bf16.msra.mxu0 %v627
        %648 = vmatprep.subr.bf16.mxu0 0
        %649 = vmatpush2.bf16.msra.mxu0 0
        %650 = vmatprep.subr.bf16.mxu0 0
        %651 = vmatpush2.bf16.msra.mxu0 0
        %652 = vmatprep.subr.bf16.mxu0 0
        %653 = vmatpush2.bf16.msra.mxu0 0
        %654 = vmatprep.subr.bf16.mxu0 0
        %655 = vmatpush2.bf16.msra.mxu0 0
        %656 = vmatprep.subr.bf16.mxu0 0
        %657 = vmatpush2.bf16.msra.mxu0 0
        %658 = vmatprep.subr.bf16.mxu0 0
        %659 = vmatpush2.bf16.msra.mxu0 0
        %660 = vmatprep.subr.bf16.mxu0 0
        %661 = vmatpush2.bf16.msra.mxu0 0
        %662 = vmatprep.subr.bf16.mxu0 0
        %663 = vmatpush2.bf16.msra.mxu0 0
        %664 = vmatprep.mubr.bf16.mxu0 0
        %665 = vmatmul.mubr.bf16.gmra.mxu0 %v623
        %v666 = vpop.f32.mrf.mxu0
        %v667 = vadd.f32 0.0, %v666
        %v668 = vpop.f32.mrf.mxu0
        %v669 = vadd.f32 0.0, %v668
        %v670 = vpop.f32.mrf.mxu0
        %v671 = vadd.f32 0.0, %v670
        %v672 = vpop.f32.mrf.mxu0
        %v673 = vadd.f32 0.0, %v672
        %674 = vdwg.mxu0
        %v675 = vld [vmem:[%s2] sm:$0xff]
        %v676 = vld [vmem:[%s2 + $0x8] sm:$0xff]
        %678 = vset.pattern.permute.xlu0 0
        %679 = vperm.xlu0 %678, %v675
        %v680 = vpop.permute.xlu0 %679
        %683 = vset.pattern.permute.xlu0 0
        %684 = vperm.xlu0 %683, %v676
        %v685 = vpop.permute.xlu0 %684
        %v687 = vmul.f32 %v667, %v680
        %v688 = vmul.f32 %v669, %v680
        %v689 = vmul.f32 %v671, %v685
        %v690 = vmul.f32 %v673, %v685
        %v691 = vld [vmem:[%s3] sm:$0xff]
        %v692 = vld [vmem:[%s3 + $0x8] sm:$0xff]
        %694 = vset.pattern.permute.xlu0 0
        %695 = vperm.xlu0 %694, %v691
        %v696 = vpop.permute.xlu0 %695
        %699 = vset.pattern.permute.xlu0 0
        %700 = vperm.xlu0 %699, %v692
        %v701 = vpop.permute.xlu0 %700
        %v703 = vadd.f32 %v687, %v696
        %v704 = vadd.f32 %v688, %v696
        %v705 = vadd.f32 %v689, %v701
        %v706 = vadd.f32 %v690, %v701
        %v707 = vxor.u32 %v703, 2147483648
        %v708 = vxor.u32 %v704, 2147483648
        %v709 = vxor.u32 %v705, 2147483648
        %v710 = vxor.u32 %v706, 2147483648
        %v711 = vmul.f32 %v707, 1.442695
        %v712 = vpow.pop %v711
        %v713 = vmul.f32 %v708, 1.442695
        %v714 = vpow.pop %v713
        %v715 = vmul.f32 %v709, 1.442695
        %v716 = vpow.pop %v715
        %v717 = vmul.f32 %v710, 1.442695
        %v718 = vpow.pop %v717
        %v719 = vadd.f32 %v712, 1.0
        %v720 = vadd.f32 %v714, 1.0
        %v721 = vadd.f32 %v716, 1.0
        %v722 = vadd.f32 %v718, 1.0
        %v723 = vrcp.pop %v719
        %v724 = vmul.f32 1.0, %v723
        %v725 = vrcp.pop %v720
        %v726 = vmul.f32 1.0, %v725
        %v727 = vrcp.pop %v721
        %v728 = vmul.f32 1.0, %v727
        %v729 = vrcp.pop %v722
        %v730 = vmul.f32 1.0, %v729
        %v731 = vmul.f32 %v703, %v724
        %v732 = vmul.f32 %v704, %v726
        %v733 = vmul.f32 %v705, %v728
        %v734 = vmul.f32 %v706, %v730
        %v735 = vld [vmem:[%s8] sm:$0xff]
        %v736 = vld [vmem:[%s8 + $0x8] sm:$0xff]
        %v737 = vld [vmem:[%s8 + $0x10] sm:$0xff]
        %v738 = vld [vmem:[%s8 + $0x18] sm:$0xff]
        %v739 = vld [vmem:[%s8 + $0x20] sm:$0xff]
        %v740 = vld [vmem:[%s8 + $0x28] sm:$0xff]
        %v741 = vld [vmem:[%s8 + $0x30] sm:$0xff]
        %v742 = vld [vmem:[%s8 + $0x38] sm:$0xff]
        %v743 = vld [vmem:[#allocation8] sm:$0x3]
        %v744 = vld [vmem:[#allocation8 + $0x2] sm:$0x3]
        %v745 = vld [vmem:[#allocation8 + $0x4] sm:$0x3]
        %v746 = vld [vmem:[#allocation8 + $0x6] sm:$0x3]
        %v747 = vld [vmem:[#allocation8 + $0xa] sm:$0x3]
        %v748 = vld [vmem:[#allocation8 + $0xc] sm:$0x3]
        %v749 = vld [vmem:[#allocation8 + $0xe] sm:$0x3]
        %v750 = vld [vmem:[#allocation8 + $0x10] sm:$0x3]
        %v751 = vpack.c.bf16 %v733, %v733
        %v752 = vpack.c.bf16 %v734, %v734
        %v753 = vld [vmem:[%s4] sm:$0xf]
        %v754 = vld [vmem:[%s4 + $0x4] sm:$0xf]
        %v755 = vld [vmem:[%s4 + $0x8] sm:$0xf]
        %v756 = vld [vmem:[%s4 + $0xc] sm:$0xf]
        %v757 = vld [vmem:[%s4 + $0x10] sm:$0xf]
        %v758 = vld [vmem:[%s4 + $0x14] sm:$0xf]
        %v759 = vld [vmem:[%s4 + $0x18] sm:$0xf]
        %v760 = vld [vmem:[%s4 + $0x1c] sm:$0xf]
        %v761 = vld [vmem:[%s4 + $0x20] sm:$0xf]
        %v762 = vld [vmem:[%s4 + $0x24] sm:$0xf]
        %v763 = vld [vmem:[%s4 + $0x28] sm:$0xf]
        %v764 = vld [vmem:[%s4 + $0x2c] sm:$0xf]
        %v765 = vld [vmem:[%s5] sm:$0xff]
        %v766 = vld [vmem:[%s5 + $0x8] sm:$0xff]
        %v767 = vld [vmem:[%s5 + $0x10] sm:$0xff]
        %v768 = vld [vmem:[%s5 + $0x18] sm:$0xff]
        %v769 = vld [vmem:[%s5 + $0x20] sm:$0xff]
        %v770 = vld [vmem:[%s5 + $0x28] sm:$0xff]
        %v771 = vld [vmem:[%s5 + $0x30] sm:$0xff]
        %v772 = vld [vmem:[%s5 + $0x38] sm:$0xff]
        %v773 = vld [vmem:[%s5 + $0x40] sm:$0xff]
        %v774 = vld [vmem:[%s5 + $0x48] sm:$0xff]
        %v775 = vld [vmem:[%s5 + $0x50] sm:$0xff]
        %v776 = vld [vmem:[%s5 + $0x58] sm:$0xff]
        %778 = vset.pattern.permute.xlu0 0
        %779 = vperm.xlu0 %778, %v765
        %v780 = vpop.permute.xlu0 %779
        %783 = vset.pattern.permute.xlu0 0
        %784 = vperm.xlu0 %783, %v766
        %v785 = vpop.permute.xlu0 %784
        %788 = vset.pattern.permute.xlu0 0
        %789 = vperm.xlu0 %788, %v767
        %v790 = vpop.permute.xlu0 %789
        %793 = vset.pattern.permute.xlu0 0
        %794 = vperm.xlu0 %793, %v768
        %v795 = vpop.permute.xlu0 %794
        %798 = vset.pattern.permute.xlu0 0
        %799 = vperm.xlu0 %798, %v769
        %v800 = vpop.permute.xlu0 %799
        %803 = vset.pattern.permute.xlu0 0
        %804 = vperm.xlu0 %803, %v770
        %v805 = vpop.permute.xlu0 %804
        %808 = vset.pattern.permute.xlu0 0
        %809 = vperm.xlu0 %808, %v771
        %v810 = vpop.permute.xlu0 %809
        %813 = vset.pattern.permute.xlu0 0
        %814 = vperm.xlu0 %813, %v772
        %v815 = vpop.permute.xlu0 %814
        %818 = vset.pattern.permute.xlu0 0
        %819 = vperm.xlu0 %818, %v773
        %v820 = vpop.permute.xlu0 %819
        %823 = vset.pattern.permute.xlu0 0
        %824 = vperm.xlu0 %823, %v774
        %v825 = vpop.permute.xlu0 %824
        %828 = vset.pattern.permute.xlu0 0
        %829 = vperm.xlu0 %828, %v775
        %v830 = vpop.permute.xlu0 %829
        %833 = vset.pattern.permute.xlu0 0
        %834 = vperm.xlu0 %833, %v776
        %v835 = vpop.permute.xlu0 %834
        %v849 = vunpack.c.l.b16 %v753
        %v850 = vunpack.c.l.b16 %v754
        %v851 = vunpack.c.l.b16 %v755
        %v852 = vunpack.c.l.b16 %v756
        %v853 = vunpack.c.l.b16 %v757
        %v854 = vunpack.c.l.b16 %v758
        %v855 = vunpack.c.l.b16 %v759
        %v856 = vunpack.c.l.b16 %v760
        %v857 = vunpack.c.l.b16 %v761
        %v858 = vunpack.c.l.b16 %v762
        %v859 = vunpack.c.l.b16 %v763
        %v860 = vunpack.c.l.b16 %v764
        %v861 = vpack.c.b16 %v850, %v849
        %v862 = vpack.c.b16 %v852, %v851
        %v863 = vpack.c.b16 %v854, %v853
        %v864 = vpack.c.b16 %v856, %v855
        %v865 = vpack.c.b16 %v858, %v857
        %v866 = vpack.c.b16 %v860, %v859
        %v868 = vsel %vm621, %v861, 0
        %v871 = vsel %vm621, %v862, 0
        %v874 = vsel %vm621, %v863, 0
        %v877 = vsel %vm621, %v864, 0
        %v880 = vsel %vm621, %v865, 0
        %v883 = vsel %vm621, %v866, 0
        %v886 = vsel %vm625, %v751, 0
        %v889 = vsel %vm625, %v752, 0
        %891 = vmatprep.subr.bf16.mxu0 0
        %892 = vmatpush1.bf16.msra.mxu0 0
        %893 = vmatprep.subr.bf16.mxu0 0
        %894 = vmatpush1.bf16.msra.mxu0 0
        %895 = vmatprep.subr.bf16.mxu0 0
        %896 = vmatpush1.bf16.msra.mxu0 0
        %897 = vmatprep.subr.bf16.mxu0 0
        %898 = vmatpush1.bf16.msra.mxu0 0
        %899 = vmatprep.subr.bf16.mxu0 0
        %900 = vmatpush1.bf16.msra.mxu0 0
        %901 = vmatprep.subr.bf16.mxu0 0
        %902 = vmatpush1.bf16.msra.mxu0 0
        %903 = vmatprep.subr.bf16.mxu0 0
        %904 = vmatpush1.bf16.msra.mxu0 0
        %905 = vmatprep.subr.bf16.mxu0 %v889
        %906 = vmatpush1.bf16.msra.mxu0 %v886
        %907 = vmatprep.subr.bf16.mxu0 0
        %908 = vmatpush2.bf16.msra.mxu0 0
        %909 = vmatprep.subr.bf16.mxu0 0
        %910 = vmatpush2.bf16.msra.mxu0 0
        %911 = vmatprep.subr.bf16.mxu0 0
        %912 = vmatpush2.bf16.msra.mxu0 0
        %913 = vmatprep.subr.bf16.mxu0 0
        %914 = vmatpush2.bf16.msra.mxu0 0
        %915 = vmatprep.subr.bf16.mxu0 0
        %916 = vmatpush2.bf16.msra.mxu0 0
        %917 = vmatprep.subr.bf16.mxu0 0
        %918 = vmatpush2.bf16.msra.mxu0 0
        %919 = vmatprep.subr.bf16.mxu0 0
        %920 = vmatpush2.bf16.msra.mxu0 0
        %921 = vmatprep.subr.bf16.mxu0 0
        %922 = vmatpush2.bf16.msra.mxu0 0
        %923 = vmatprep.mubr.bf16.mxu0 0
        %924 = vmatmul.mubr.bf16.gmra.mxu0 %v868
        %v925 = vpop.f32.mrf.mxu0
        %v926 = vadd.f32 %v780, %v925
        %v927 = vpop.f32.mrf.mxu0
        %v928 = vadd.f32 %v780, %v927
        %v929 = vpop.f32.mrf.mxu0
        %v930 = vadd.f32 %v785, %v929
        %v931 = vpop.f32.mrf.mxu0
        %v932 = vadd.f32 %v785, %v931
        %933 = vmatprep.mubr.bf16.mxu0 0
        %934 = vmatmul.mubr.bf16.gmra.mxu0 %v871
        %v935 = vpop.f32.mrf.mxu0
        %v936 = vadd.f32 %v790, %v935
        %v937 = vpop.f32.mrf.mxu0
        %v938 = vadd.f32 %v790, %v937
        %v939 = vpop.f32.mrf.mxu0
        %v940 = vadd.f32 %v795, %v939
        %v941 = vpop.f32.mrf.mxu0
        %v942 = vadd.f32 %v795, %v941
        %943 = vmatprep.mubr.bf16.mxu0 0
        %944 = vmatmul.mubr.bf16.gmra.mxu0 %v874
        %v945 = vpop.f32.mrf.mxu0
        %v946 = vadd.f32 %v800, %v945
        %v947 = vpop.f32.mrf.mxu0
        %v948 = vadd.f32 %v800, %v947
        %v949 = vpop.f32.mrf.mxu0
        %v950 = vadd.f32 %v805, %v949
        %v951 = vpop.f32.mrf.mxu0
        %v952 = vadd.f32 %v805, %v951
        %953 = vmatprep.mubr.bf16.mxu0 0
        %954 = vmatmul.mubr.bf16.gmra.mxu0 %v877
        %v955 = vpop.f32.mrf.mxu0
        %v956 = vadd.f32 %v810, %v955
        %v957 = vpop.f32.mrf.mxu0
        %v958 = vadd.f32 %v810, %v957
        %v959 = vpop.f32.mrf.mxu0
        %v960 = vadd.f32 %v815, %v959
        %v961 = vpop.f32.mrf.mxu0
        %v962 = vadd.f32 %v815, %v961
        %963 = vmatprep.mubr.bf16.mxu0 0
        %964 = vmatmul.mubr.bf16.gmra.mxu0 %v880
        %v965 = vpop.f32.mrf.mxu0
        %v966 = vadd.f32 %v820, %v965
        %v967 = vpop.f32.mrf.mxu0
        %v968 = vadd.f32 %v820, %v967
        %v969 = vpop.f32.mrf.mxu0
        %v970 = vadd.f32 %v825, %v969
        %v971 = vpop.f32.mrf.mxu0
        %v972 = vadd.f32 %v825, %v971
        %973 = vmatprep.mubr.bf16.mxu0 0
        %974 = vmatmul.mubr.bf16.gmra.mxu0 %v883
        %v975 = vpop.f32.mrf.mxu0
        %v976 = vadd.f32 %v830, %v975
        %v977 = vpop.f32.mrf.mxu0
        %v978 = vadd.f32 %v830, %v977
        %v979 = vpop.f32.mrf.mxu0
        %v980 = vadd.f32 %v835, %v979
        %v981 = vpop.f32.mrf.mxu0
        %v982 = vadd.f32 %v835, %v981
        %983 = vdwg.mxu0
        %v984 = vpack.c.bf16 %v930, %v926
        %v985 = vpack.c.bf16 %v932, %v928
        %v986 = vpack.c.bf16 %v940, %v936
        %v987 = vpack.c.bf16 %v942, %v938
        %v988 = vpack.c.bf16 %v950, %v946
        %v989 = vpack.c.bf16 %v952, %v948
        %v990 = vpack.c.bf16 %v960, %v956
        %v991 = vpack.c.bf16 %v962, %v958
        %v992 = vpack.c.bf16 %v970, %v966
        %v993 = vpack.c.bf16 %v972, %v968
        %v994 = vpack.c.bf16 %v980, %v976
        %v995 = vpack.c.bf16 %v982, %v978
        %v1004 = vunpack.c.l.b16 %v735
        %v1005 = vunpack.c.h.b16 %v735
        %v1006 = vunpack.c.l.b16 %v736
        %v1007 = vunpack.c.h.b16 %v736
        %v1008 = vunpack.c.l.b16 %v737
        %v1009 = vunpack.c.h.b16 %v737
        %v1010 = vunpack.c.l.b16 %v738
        %v1011 = vunpack.c.h.b16 %v738
        %v1012 = vunpack.c.l.b16 %v739
        %v1013 = vunpack.c.h.b16 %v739
        %v1014 = vunpack.c.l.b16 %v740
        %v1015 = vunpack.c.h.b16 %v740
        %v1016 = vunpack.c.l.b16 %v741
        %v1017 = vunpack.c.h.b16 %v741
        %v1018 = vunpack.c.l.b16 %v742
        %v1019 = vunpack.c.h.b16 %v742
        %v1020 = vpack.c.b16 %v1006, %v1004
        %v1021 = vpack.c.b16 %v1007, %v1005
        %v1022 = vpack.c.b16 %v1010, %v1008
        %v1023 = vpack.c.b16 %v1011, %v1009
        %v1024 = vpack.c.b16 %v1014, %v1012
        %v1025 = vpack.c.b16 %v1015, %v1013
        %v1026 = vpack.c.b16 %v1018, %v1016
        %v1027 = vpack.c.b16 %v1019, %v1017
        %1036 = vmatprep.subr.bf16.mxu0 0
        %1037 = vmatpush1.bf16.xpose.msra.mxu0 0
        %1038 = vmatprep.subr.bf16.mxu0 0
        %1039 = vmatpush1.bf16.xpose.msra.mxu0 0
        %1040 = vmatprep.subr.bf16.mxu0 0
        %1041 = vmatpush1.bf16.xpose.msra.mxu0 0
        %1042 = vmatprep.subr.bf16.mxu0 0
        %1043 = vmatpush1.bf16.xpose.msra.mxu0 0
        %1044 = vmatprep.subr.bf16.mxu0 0
        %1045 = vmatpush1.bf16.xpose.msra.mxu0 0
        %1046 = vmatprep.subr.bf16.mxu0 0
        %1047 = vmatpush1.bf16.xpose.msra.mxu0 0
        %1048 = vmatprep.subr.bf16.mxu0 %v987
        %1049 = vmatpush1.bf16.xpose.msra.mxu0 %v986
        %1050 = vmatprep.subr.bf16.mxu0 %v985
        %1051 = vmatpush1.bf16.xpose.msra.mxu0 %v984
        %1052 = vmatprep.subr.bf16.mxu0 0
        %1053 = vmatpush2.bf16.xpose.msra.mxu0 0
        %1054 = vmatprep.subr.bf16.mxu0 0
        %1055 = vmatpush2.bf16.xpose.msra.mxu0 0
        %1056 = vmatprep.subr.bf16.mxu0 0
        %1057 = vmatpush2.bf16.xpose.msra.mxu0 0
        %1058 = vmatprep.subr.bf16.mxu0 0
        %1059 = vmatpush2.bf16.xpose.msra.mxu0 0
        %1060 = vmatprep.subr.bf16.mxu0 0
        %1061 = vmatpush2.bf16.xpose.msra.mxu0 0
        %1062 = vmatprep.subr.bf16.mxu0 0
        %1063 = vmatpush2.bf16.xpose.msra.mxu0 0
        %1064 = vmatprep.subr.bf16.mxu0 0
        %1065 = vmatpush2.bf16.xpose.msra.mxu0 0
        %1066 = vmatprep.subr.bf16.mxu0 0
        %1067 = vmatpush2.bf16.xpose.msra.mxu0 0
        %1068 = vmatprep.mubr.bf16.mxu0 %v1021
        %1069 = vmatmul.mubr.bf16.gmra.mxu0 %v1020
        %v1070 = vpop.f32.mrf.mxu0
        %v1071 = vadd.f32 0.0, %v1070
        %v1072 = vpop.f32.mrf.mxu0
        %v1073 = vpop.f32.mrf.mxu0
        %v1074 = vadd.f32 0.0, %v1073
        %v1075 = vpop.f32.mrf.mxu0
        %1076 = vmatprep.mubr.bf16.mxu0 %v1023
        %1077 = vmatmul.mubr.bf16.gmra.mxu0 %v1022
        %v1078 = vpop.f32.mrf.mxu0
        %v1079 = vadd.f32 0.0, %v1078
        %v1080 = vpop.f32.mrf.mxu0
        %v1081 = vpop.f32.mrf.mxu0
        %v1082 = vadd.f32 0.0, %v1081
        %v1083 = vpop.f32.mrf.mxu0
        %1084 = vmatprep.mubr.bf16.mxu0 %v1025
        %1085 = vmatmul.mubr.bf16.gmra.mxu0 %v1024
        %v1086 = vpop.f32.mrf.mxu0
        %v1087 = vadd.f32 0.0, %v1086
        %v1088 = vpop.f32.mrf.mxu0
        %v1089 = vpop.f32.mrf.mxu0
        %v1090 = vadd.f32 0.0, %v1089
        %v1091 = vpop.f32.mrf.mxu0
        %1092 = vmatprep.mubr.bf16.mxu0 %v1027
        %1093 = vmatmul.mubr.bf16.gmra.mxu0 %v1026
        %v1094 = vpop.f32.mrf.mxu0
        %v1095 = vadd.f32 0.0, %v1094
        %v1096 = vpop.f32.mrf.mxu0
        %v1097 = vpop.f32.mrf.mxu0
        %v1098 = vadd.f32 0.0, %v1097
        %v1099 = vpop.f32.mrf.mxu0
        %1100 = vdwg.mxu0
        %v1101 = vmul.f32 %v1071, 0.70710677
        %v1102 = vmul.f32 %v1074, 0.70710677
        %v1103 = vmul.f32 %v1079, 0.70710677
        %v1104 = vmul.f32 %v1082, 0.70710677
        %v1105 = vmul.f32 %v1087, 0.70710677
        %v1106 = vmul.f32 %v1090, 0.70710677
        %v1107 = vmul.f32 %v1095, 0.70710677
        %v1108 = vmul.f32 %v1098, 0.70710677
        %v1109 = vpack.c.bf16 %v1102, %v1101
        %v1110 = vpack.c.bf16 %v1104, %v1103
        %v1111 = vpack.c.bf16 %v1106, %v1105
        %v1112 = vpack.c.bf16 %v1108, %v1107
        %v1113 = vld [vmem:[%s9] sm:$0xff]
        %v1114 = vld [vmem:[%s9 + $0x8] sm:$0xff]
        %v1115 = vld [vmem:[%s9 + $0x10] sm:$0xff]
        %v1116 = vld [vmem:[%s9 + $0x18] sm:$0xff]
        %v1117 = vld [vmem:[%s9 + $0x20] sm:$0xff]
        %v1118 = vld [vmem:[%s9 + $0x28] sm:$0xff]
        %v1119 = vld [vmem:[%s9 + $0x30] sm:$0xff]
        %v1120 = vld [vmem:[%s9 + $0x38] sm:$0xff]
        %v1121 = vunpack.c.l.bf16 %v1113
        %v1122 = vunpack.c.h.bf16 %v1113
        %v1123 = vunpack.c.l.bf16 %v1114
        %v1124 = vunpack.c.h.bf16 %v1114
        %v1125 = vunpack.c.l.bf16 %v1115
        %v1126 = vunpack.c.h.bf16 %v1115
        %v1127 = vunpack.c.l.bf16 %v1116
        %v1128 = vunpack.c.h.bf16 %v1116
        %v1129 = vunpack.c.l.bf16 %v1117
        %v1130 = vunpack.c.h.bf16 %v1117
        %v1131 = vunpack.c.l.bf16 %v1118
        %v1132 = vunpack.c.h.bf16 %v1118
        %v1133 = vunpack.c.l.bf16 %v1119
        %v1134 = vunpack.c.h.bf16 %v1119
        %v1135 = vunpack.c.l.bf16 %v1120
        %v1136 = vunpack.c.h.bf16 %v1120
        %v1138 = vsel %vm621, %v1109, 0
        %v1141 = vsel %vm621, %v1110, 0
        %v1144 = vsel %vm621, %v1111, 0
        %v1147 = vsel %vm621, %v1112, 0
        %v1150 = vsel %vm625, %v988, 0
        %v1153 = vsel %vm625, %v989, 0
        %1155 = vmatprep.subr.bf16.mxu0 0
        %1156 = vmatpush1.bf16.msra.mxu0 0
        %1157 = vmatprep.subr.bf16.mxu0 0
        %1158 = vmatpush1.bf16.msra.mxu0 0
        %1159 = vmatprep.subr.bf16.mxu0 0
        %1160 = vmatpush1.bf16.msra.mxu0 0
        %1161 = vmatprep.subr.bf16.mxu0 0
        %1162 = vmatpush1.bf16.msra.mxu0 0
        %1163 = vmatprep.subr.bf16.mxu0 0
        %1164 = vmatpush1.bf16.msra.mxu0 0
        %1165 = vmatprep.subr.bf16.mxu0 0
        %1166 = vmatpush1.bf16.msra.mxu0 0
        %1167 = vmatprep.subr.bf16.mxu0 0
        %1168 = vmatpush1.bf16.msra.mxu0 0
        %1169 = vmatprep.subr.bf16.mxu0 %v1153
        %1170 = vmatpush1.bf16.msra.mxu0 %v1150
        %1171 = vmatprep.subr.bf16.mxu0 0
        %1172 = vmatpush2.bf16.msra.mxu0 0
        %1173 = vmatprep.subr.bf16.mxu0 0
        %1174 = vmatpush2.bf16.msra.mxu0 0
        %1175 = vmatprep.subr.bf16.mxu0 0
        %1176 = vmatpush2.bf16.msra.mxu0 0
        %1177 = vmatprep.subr.bf16.mxu0 0
        %1178 = vmatpush2.bf16.msra.mxu0 0
        %1179 = vmatprep.subr.bf16.mxu0 0
        %1180 = vmatpush2.bf16.msra.mxu0 0
        %1181 = vmatprep.subr.bf16.mxu0 0
        %1182 = vmatpush2.bf16.msra.mxu0 0
        %1183 = vmatprep.subr.bf16.mxu0 0
        %1184 = vmatpush2.bf16.msra.mxu0 0
        %1185 = vmatprep.subr.bf16.mxu0 0
        %1186 = vmatpush2.bf16.msra.mxu0 0
        %1187 = vmatprep.mubr.bf16.mxu0 0
        %1188 = vmatmul.mubr.bf16.gmra.mxu0 %v1138
        %v1189 = vpop.f32.mrf.mxu0
        %v1190 = vadd.f32 %v1121, %v1189
        %v1191 = vpop.f32.mrf.mxu0
        %v1192 = vadd.f32 %v1122, %v1191
        %v1193 = vpop.f32.mrf.mxu0
        %v1194 = vadd.f32 %v1123, %v1193
        %v1195 = vpop.f32.mrf.mxu0
        %v1196 = vadd.f32 %v1124, %v1195
        %1197 = vmatprep.mubr.bf16.mxu0 0
        %1198 = vmatmul.mubr.bf16.gmra.mxu0 %v1141
        %v1199 = vpop.f32.mrf.mxu0
        %v1200 = vadd.f32 %v1125, %v1199
        %v1201 = vpop.f32.mrf.mxu0
        %v1202 = vadd.f32 %v1126, %v1201
        %v1203 = vpop.f32.mrf.mxu0
        %v1204 = vadd.f32 %v1127, %v1203
        %v1205 = vpop.f32.mrf.mxu0
        %v1206 = vadd.f32 %v1128, %v1205
        %1207 = vmatprep.mubr.bf16.mxu0 0
        %1208 = vmatmul.mubr.bf16.gmra.mxu0 %v1144
        %v1209 = vpop.f32.mrf.mxu0
        %v1210 = vadd.f32 %v1129, %v1209
        %v1211 = vpop.f32.mrf.mxu0
        %v1212 = vadd.f32 %v1130, %v1211
        %v1213 = vpop.f32.mrf.mxu0
        %v1214 = vadd.f32 %v1131, %v1213
        %v1215 = vpop.f32.mrf.mxu0
        %v1216 = vadd.f32 %v1132, %v1215
        %1217 = vmatprep.mubr.bf16.mxu0 0
        %1218 = vmatmul.mubr.bf16.gmra.mxu0 %v1147
        %v1219 = vpop.f32.mrf.mxu0
        %v1220 = vadd.f32 %v1133, %v1219
        %v1221 = vpop.f32.mrf.mxu0
        %v1222 = vadd.f32 %v1134, %v1221
        %v1223 = vpop.f32.mrf.mxu0
        %v1224 = vadd.f32 %v1135, %v1223
        %v1225 = vpop.f32.mrf.mxu0
        %v1226 = vadd.f32 %v1136, %v1225
        %1227 = vdwg.mxu0
        %v1228 = vmax.f32 %v1190, %v1192
        %1229 = vmax.xlane.f32.xlu0 %v1228
        %v1230 = vpop.xlane.xlu0 %1229
        %v1231 = vmax.f32 %v1194, %v1196
        %1232 = vmax.xlane.f32.xlu0 %v1231
        %v1233 = vpop.xlane.xlu0 %1232
        %v1234 = vmax.f32 %v1200, %v1202
        %1235 = vmax.xlane.f32.xlu0 %v1234
        %v1236 = vpop.xlane.xlu0 %1235
        %v1237 = vmax.f32 %v1204, %v1206
        %1238 = vmax.xlane.f32.xlu0 %v1237
        %v1239 = vpop.xlane.xlu0 %1238
        %v1240 = vmax.f32 %v1210, %v1212
        %1241 = vmax.xlane.f32.xlu0 %v1240
        %v1242 = vpop.xlane.xlu0 %1241
        %v1243 = vmax.f32 %v1214, %v1216
        %1244 = vmax.xlane.f32.xlu0 %v1243
        %v1245 = vpop.xlane.xlu0 %1244
        %v1246 = vmax.f32 %v1220, %v1222
        %1247 = vmax.xlane.f32.xlu0 %v1246
        %v1248 = vpop.xlane.xlu0 %1247
        %v1249 = vmax.f32 %v1224, %v1226
        %1250 = vmax.xlane.f32.xlu0 %v1249
        %v1251 = vpop.xlane.xlu0 %1250
        %v1252 = vsub.f32 %v1190, %v1230
        %v1253 = vsub.f32 %v1192, %v1230
        %v1254 = vsub.f32 %v1194, %v1233
        %v1255 = vsub.f32 %v1196, %v1233
        %v1256 = vsub.f32 %v1200, %v1236
        %v1257 = vsub.f32 %v1202, %v1236
        %v1258 = vsub.f32 %v1204, %v1239
        %v1259 = vsub.f32 %v1206, %v1239
        %v1260 = vsub.f32 %v1210, %v1242
        %v1261 = vsub.f32 %v1212, %v1242
        %v1262 = vsub.f32 %v1214, %v1245
        %v1263 = vsub.f32 %v1216, %v1245
        %v1264 = vsub.f32 %v1220, %v1248
        %v1265 = vsub.f32 %v1222, %v1248
        %v1266 = vsub.f32 %v1224, %v1251
        %v1267 = vsub.f32 %v1226, %v1251
        %v1268 = vmul.f32 %v1252, 1.442695
        %v1269 = vpow.pop %v1268
        %v1270 = vmul.f32 %v1253, 1.442695
        %v1271 = vpow.pop %v1270
        %v1272 = vmul.f32 %v1254, 1.442695
        %v1273 = vpow.pop %v1272
        %v1274 = vmul.f32 %v1255, 1.442695
        %v1275 = vpow.pop %v1274
        %v1276 = vmul.f32 %v1256, 1.442695
        %v1277 = vpow.pop %v1276
        %v1278 = vmul.f32 %v1257, 1.442695
        %v1279 = vpow.pop %v1278
        %v1280 = vmul.f32 %v1258, 1.442695
        %v1281 = vpow.pop %v1280
        %v1282 = vmul.f32 %v1259, 1.442695
        %v1283 = vpow.pop %v1282
        %v1284 = vmul.f32 %v1260, 1.442695
        %v1285 = vpow.pop %v1284
        %v1286 = vmul.f32 %v1261, 1.442695
        %v1287 = vpow.pop %v1286
        %v1288 = vmul.f32 %v1262, 1.442695
        %v1289 = vpow.pop %v1288
        %v1290 = vmul.f32 %v1263, 1.442695
        %v1291 = vpow.pop %v1290
        %v1292 = vmul.f32 %v1264, 1.442695
        %v1293 = vpow.pop %v1292
        %v1294 = vmul.f32 %v1265, 1.442695
        %v1295 = vpow.pop %v1294
        %v1296 = vmul.f32 %v1266, 1.442695
        %v1297 = vpow.pop %v1296
        %v1298 = vmul.f32 %v1267, 1.442695
        %v1299 = vpow.pop %v1298
        %v1300 = vadd.f32 %v1269, %v1271
        %1301 = vadd.xlane.f32.xlu0 %v1300
        %v1302 = vpop.xlane.xlu0 %1301
        %v1303 = vadd.f32 %v1273, %v1275
        %1304 = vadd.xlane.f32.xlu0 %v1303
        %v1305 = vpop.xlane.xlu0 %1304
        %v1306 = vadd.f32 %v1277, %v1279
        %1307 = vadd.xlane.f32.xlu0 %v1306
        %v1308 = vpop.xlane.xlu0 %1307
        %v1309 = vadd.f32 %v1281, %v1283
        %1310 = vadd.xlane.f32.xlu0 %v1309
        %v1311 = vpop.xlane.xlu0 %1310
        %v1312 = vadd.f32 %v1285, %v1287
        %1313 = vadd.xlane.f32.xlu0 %v1312
        %v1314 = vpop.xlane.xlu0 %1313
        %v1315 = vadd.f32 %v1289, %v1291
        %1316 = vadd.xlane.f32.xlu0 %v1315
        %v1317 = vpop.xlane.xlu0 %1316
        %v1318 = vadd.f32 %v1293, %v1295
        %1319 = vadd.xlane.f32.xlu0 %v1318
        %v1320 = vpop.xlane.xlu0 %1319
        %v1321 = vadd.f32 %v1297, %v1299
        %1322 = vadd.xlane.f32.xlu0 %v1321
        %v1323 = vpop.xlane.xlu0 %1322
        %v1324 = vrcp.pop %v1302
        %v1325 = vrcp.pop %v1305
        %v1326 = vrcp.pop %v1308
        %v1327 = vrcp.pop %v1311
        %v1328 = vrcp.pop %v1314
        %v1329 = vrcp.pop %v1317
        %v1330 = vrcp.pop %v1320
        %v1331 = vrcp.pop %v1323
        %v1332 = vmul.f32 %v1269, %v1324
        %v1333 = vmul.f32 %v1271, %v1324
        %v1334 = vmul.f32 %v1273, %v1325
        %v1335 = vmul.f32 %v1275, %v1325
        %v1336 = vmul.f32 %v1277, %v1326
        %v1337 = vmul.f32 %v1279, %v1326
        %v1338 = vmul.f32 %v1281, %v1327
        %v1339 = vmul.f32 %v1283, %v1327
        %v1340 = vmul.f32 %v1285, %v1328
        %v1341 = vmul.f32 %v1287, %v1328
        %v1342 = vmul.f32 %v1289, %v1329
        %v1343 = vmul.f32 %v1291, %v1329
        %v1344 = vmul.f32 %v1293, %v1330
        %v1345 = vmul.f32 %v1295, %v1330
        %v1346 = vmul.f32 %v1297, %v1331
        %v1347 = vmul.f32 %v1299, %v1331
        %v1348 = vpack.c.bf16 %v1334, %v1332
        %v1349 = vpack.c.bf16 %v1335, %v1333
        %v1350 = vpack.c.bf16 %v1338, %v1336
        %v1351 = vpack.c.bf16 %v1339, %v1337
        %v1352 = vpack.c.bf16 %v1342, %v1340
        %v1353 = vpack.c.bf16 %v1343, %v1341
        %v1354 = vpack.c.bf16 %v1346, %v1344
        %v1355 = vpack.c.bf16 %v1347, %v1345
        %1356 = vmatprep.subr.bf16.mxu0 0
        %1357 = vmatpush1.bf16.xpose.msra.mxu0 0
        %1358 = vmatprep.subr.bf16.mxu0 0
        %1359 = vmatpush1.bf16.xpose.msra.mxu0 0
        %1360 = vmatprep.subr.bf16.mxu0 0
        %1361 = vmatpush1.bf16.xpose.msra.mxu0 0
        %1362 = vmatprep.subr.bf16.mxu0 0
        %1363 = vmatpush1.bf16.xpose.msra.mxu0 0
        %1364 = vmatprep.subr.bf16.mxu0 %v1355
        %1365 = vmatpush1.bf16.xpose.msra.mxu0 %v1354
        %1366 = vmatprep.subr.bf16.mxu0 %v1353
        %1367 = vmatpush1.bf16.xpose.msra.mxu0 %v1352
        %1368 = vmatprep.subr.bf16.mxu0 %v1351
        %1369 = vmatpush1.bf16.xpose.msra.mxu0 %v1350
        %1370 = vmatprep.subr.bf16.mxu0 %v1349
        %1371 = vmatpush1.bf16.xpose.msra.mxu0 %v1348
        %1372 = vmatprep.subr.bf16.mxu0 0
        %1373 = vmatpush2.bf16.xpose.msra.mxu0 0
        %1374 = vmatprep.subr.bf16.mxu0 0
        %1375 = vmatpush2.bf16.xpose.msra.mxu0 0
        %1376 = vmatprep.subr.bf16.mxu0 0
        %1377 = vmatpush2.bf16.xpose.msra.mxu0 0
        %1378 = vmatprep.subr.bf16.mxu0 0
        %1379 = vmatpush2.bf16.xpose.msra.mxu0 0
        %1380 = vmatprep.subr.bf16.mxu0 0
        %1381 = vmatpush2.bf16.xpose.msra.mxu0 0
        %1382 = vmatprep.subr.bf16.mxu0 0
        %1383 = vmatpush2.bf16.xpose.msra.mxu0 0
        %1384 = vmatprep.subr.bf16.mxu0 0
        %1385 = vmatpush2.bf16.xpose.msra.mxu0 0
        %1386 = vmatprep.subr.bf16.mxu0 0
        %1387 = vmatpush2.bf16.xpose.msra.mxu0 0
        %1388 = vmatprep.mubr.bf16.mxu0 %v993
        %1389 = vmatmul.mubr.bf16.gmra.mxu0 %v992
        %v1390 = vpop.f32.mrf.mxu0
        %v1391 = vadd.f32 0.0, %v1390
        %v1392 = vpop.f32.mrf.mxu0
        %v1393 = vpop.f32.mrf.mxu0
        %v1394 = vpop.f32.mrf.mxu0
        %1395 = vdwg.mxu0
        %v1396 = vld [vmem:[%s10] sm:$0xff]
        %v1397 = vld [vmem:[%s10 + $0x8] sm:$0xff]
        %v1398 = vld [vmem:[%s10 + $0x10] sm:$0xff]
        %v1399 = vld [vmem:[%s10 + $0x18] sm:$0xff]
        %v1400 = vld [vmem:[%s10 + $0x20] sm:$0xff]
        %v1401 = vld [vmem:[%s10 + $0x28] sm:$0xff]
        %v1402 = vld [vmem:[%s10 + $0x30] sm:$0xff]
        %v1403 = vld [vmem:[%s10 + $0x38] sm:$0xff]
        %v1404 = vunpack.c.l.bf16 %v1396
        %v1405 = vunpack.c.h.bf16 %v1396
        %v1406 = vunpack.c.l.bf16 %v1397
        %v1407 = vunpack.c.h.bf16 %v1397
        %v1408 = vunpack.c.l.bf16 %v1398
        %v1409 = vunpack.c.h.bf16 %v1398
        %v1410 = vunpack.c.l.bf16 %v1399
        %v1411 = vunpack.c.h.bf16 %v1399
        %v1412 = vunpack.c.l.bf16 %v1400
        %v1413 = vunpack.c.h.bf16 %v1400
        %v1414 = vunpack.c.l.bf16 %v1401
        %v1415 = vunpack.c.h.bf16 %v1401
        %v1416 = vunpack.c.l.bf16 %v1402
        %v1417 = vunpack.c.h.bf16 %v1402
        %v1418 = vunpack.c.l.bf16 %v1403
        %v1419 = vunpack.c.h.bf16 %v1403
        %v1421 = vsel %vm625, %v984, 0
        %v1424 = vsel %vm625, %v985, 0
        %1426 = vmatprep.subr.bf16.mxu0 0
        %1427 = vmatpush1.bf16.msra.mxu0 0
        %1428 = vmatprep.subr.bf16.mxu0 0
        %1429 = vmatpush1.bf16.msra.mxu0 0
        %1430 = vmatprep.subr.bf16.mxu0 0
        %1431 = vmatpush1.bf16.msra.mxu0 0
        %1432 = vmatprep.subr.bf16.mxu0 0
        %1433 = vmatpush1.bf16.msra.mxu0 0
        %1434 = vmatprep.subr.bf16.mxu0 0
        %1435 = vmatpush1.bf16.msra.mxu0 0
        %1436 = vmatprep.subr.bf16.mxu0 0
        %1437 = vmatpush1.bf16.msra.mxu0 0
        %1438 = vmatprep.subr.bf16.mxu0 0
        %1439 = vmatpush1.bf16.msra.mxu0 0
        %1440 = vmatprep.subr.bf16.mxu0 %v1424
        %1441 = vmatpush1.bf16.msra.mxu0 %v1421
        %1442 = vmatprep.subr.bf16.mxu0 0
        %1443 = vmatpush2.bf16.msra.mxu0 0
        %1444 = vmatprep.subr.bf16.mxu0 0
        %1445 = vmatpush2.bf16.msra.mxu0 0
        %1446 = vmatprep.subr.bf16.mxu0 0
        %1447 = vmatpush2.bf16.msra.mxu0 0
        %1448 = vmatprep.subr.bf16.mxu0 0
        %1449 = vmatpush2.bf16.msra.mxu0 0
        %1450 = vmatprep.subr.bf16.mxu0 0
        %1451 = vmatpush2.bf16.msra.mxu0 0
        %1452 = vmatprep.subr.bf16.mxu0 0
        %1453 = vmatpush2.bf16.msra.mxu0 0
        %1454 = vmatprep.subr.bf16.mxu0 0
        %1455 = vmatpush2.bf16.msra.mxu0 0
        %1456 = vmatprep.subr.bf16.mxu0 0
        %1457 = vmatpush2.bf16.msra.mxu0 0
        %1458 = vmatprep.mubr.bf16.mxu0 0
        %1459 = vmatmul.mubr.bf16.gmra.mxu0 %v1138
        %v1460 = vpop.f32.mrf.mxu0
        %v1461 = vadd.f32 %v1404, %v1460
        %v1462 = vpop.f32.mrf.mxu0
        %v1463 = vadd.f32 %v1405, %v1462
        %v1464 = vpop.f32.mrf.mxu0
        %v1465 = vadd.f32 %v1406, %v1464
        %v1466 = vpop.f32.mrf.mxu0
        %v1467 = vadd.f32 %v1407, %v1466
        %1468 = vmatprep.mubr.bf16.mxu0 0
        %1469 = vmatmul.mubr.bf16.gmra.mxu0 %v1141
        %v1470 = vpop.f32.mrf.mxu0
        %v1471 = vadd.f32 %v1408, %v1470
        %v1472 = vpop.f32.mrf.mxu0
        %v1473 = vadd.f32 %v1409, %v1472
        %v1474 = vpop.f32.mrf.mxu0
        %v1475 = vadd.f32 %v1410, %v1474
        %v1476 = vpop.f32.mrf.mxu0
        %v1477 = vadd.f32 %v1411, %v1476
        %1478 = vmatprep.mubr.bf16.mxu0 0
        %1479 = vmatmul.mubr.bf16.gmra.mxu0 %v1144
        %v1480 = vpop.f32.mrf.mxu0
        %v1481 = vadd.f32 %v1412, %v1480
        %v1482 = vpop.f32.mrf.mxu0
        %v1483 = vadd.f32 %v1413, %v1482
        %v1484 = vpop.f32.mrf.mxu0
        %v1485 = vadd.f32 %v1414, %v1484
        %v1486 = vpop.f32.mrf.mxu0
        %v1487 = vadd.f32 %v1415, %v1486
        %1488 = vmatprep.mubr.bf16.mxu0 0
        %1489 = vmatmul.mubr.bf16.gmra.mxu0 %v1147
        %v1490 = vpop.f32.mrf.mxu0
        %v1491 = vadd.f32 %v1416, %v1490
        %v1492 = vpop.f32.mrf.mxu0
        %v1493 = vadd.f32 %v1417, %v1492
        %v1494 = vpop.f32.mrf.mxu0
        %v1495 = vadd.f32 %v1418, %v1494
        %v1496 = vpop.f32.mrf.mxu0
        %v1497 = vadd.f32 %v1419, %v1496
        %1498 = vdwg.mxu0
        %v1499 = vmax.f32 %v1461, %v1471
        %v1500 = vmax.f32 %v1465, %v1475
        %v1501 = vmax.f32 %v1499, %v1481
        %v1502 = vmax.f32 %v1500, %v1485
        %v1503 = vmax.f32 %v1501, %v1491
        %v1504 = vmax.f32 %v1502, %v1495
        %v1505 = vmax.f32 %v1503, %v1504
        %v1506 = vrot.slane %v1505, 4
        %v1507 = vmax.f32 %v1505, %v1506
        %v1508 = vrot.slane %v1507, 2
        %v1509 = vmax.f32 %v1507, %v1508
        %v1510 = vrot.slane %v1509, 1
        %v1511 = vmax.f32 %v1509, %v1510
        %v1512 = vmax.f32 %v1463, %v1473
        %v1513 = vmax.f32 %v1467, %v1477
        %v1514 = vmax.f32 %v1512, %v1483
        %v1515 = vmax.f32 %v1513, %v1487
        %v1516 = vmax.f32 %v1514, %v1493
        %v1517 = vmax.f32 %v1515, %v1497
        %v1518 = vmax.f32 %v1516, %v1517
        %v1519 = vrot.slane %v1518, 4
        %v1520 = vmax.f32 %v1518, %v1519
        %v1521 = vrot.slane %v1520, 2
        %v1522 = vmax.f32 %v1520, %v1521
        %v1523 = vrot.slane %v1522, 1
        %v1524 = vmax.f32 %v1522, %v1523
        %v1525 = vsub.f32 %v1461, %v1511
        %v1526 = vsub.f32 %v1463, %v1524
        %v1527 = vsub.f32 %v1465, %v1511
        %v1528 = vsub.f32 %v1467, %v1524
        %v1529 = vsub.f32 %v1471, %v1511
        %v1530 = vsub.f32 %v1473, %v1524
        %v1531 = vsub.f32 %v1475, %v1511
        %v1532 = vsub.f32 %v1477, %v1524
        %v1533 = vsub.f32 %v1481, %v1511
        %v1534 = vsub.f32 %v1483, %v1524
        %v1535 = vsub.f32 %v1485, %v1511
        %v1536 = vsub.f32 %v1487, %v1524
        %v1537 = vsub.f32 %v1491, %v1511
        %v1538 = vsub.f32 %v1493, %v1524
        %v1539 = vsub.f32 %v1495, %v1511
        %v1540 = vsub.f32 %v1497, %v1524
        %v1541 = vmul.f32 %v1525, 1.442695
        %v1542 = vpow.pop %v1541
        %v1543 = vmul.f32 %v1526, 1.442695
        %v1544 = vpow.pop %v1543
        %v1545 = vmul.f32 %v1527, 1.442695
        %v1546 = vpow.pop %v1545
        %v1547 = vmul.f32 %v1528, 1.442695
        %v1548 = vpow.pop %v1547
        %v1549 = vmul.f32 %v1529, 1.442695
        %v1550 = vpow.pop %v1549
        %v1551 = vmul.f32 %v1530, 1.442695
        %v1552 = vpow.pop %v1551
        %v1553 = vmul.f32 %v1531, 1.442695
        %v1554 = vpow.pop %v1553
        %v1555 = vmul.f32 %v1532, 1.442695
        %v1556 = vpow.pop %v1555
        %v1557 = vmul.f32 %v1533, 1.442695
        %v1558 = vpow.pop %v1557
        %v1559 = vmul.f32 %v1534, 1.442695
        %v1560 = vpow.pop %v1559
        %v1561 = vmul.f32 %v1535, 1.442695
        %v1562 = vpow.pop %v1561
        %v1563 = vmul.f32 %v1536, 1.442695
        %v1564 = vpow.pop %v1563
        %v1565 = vmul.f32 %v1537, 1.442695
        %v1566 = vpow.pop %v1565
        %v1567 = vmul.f32 %v1538, 1.442695
        %v1568 = vpow.pop %v1567
        %v1569 = vmul.f32 %v1539, 1.442695
        %v1570 = vpow.pop %v1569
        %v1571 = vmul.f32 %v1540, 1.442695
        %v1572 = vpow.pop %v1571
        %v1573 = vadd.f32 %v1542, %v1546
        %v1574 = vadd.f32 %v1573, %v1550
        %v1575 = vadd.f32 %v1574, %v1554
        %v1576 = vadd.f32 %v1575, %v1558
        %v1577 = vadd.f32 %v1576, %v1562
        %v1578 = vadd.f32 %v1577, %v1566
        %v1579 = vadd.f32 %v1578, %v1570
        %v1580 = vrot.slane %v1579, 4
        %v1581 = vadd.f32 %v1579, %v1580
        %v1582 = vrot.slane %v1581, 2
        %v1583 = vadd.f32 %v1581, %v1582
        %v1584 = vrot.slane %v1583, 1
        %v1585 = vadd.f32 %v1583, %v1584
        %v1586 = vadd.f32 %v1544, %v1548
        %v1587 = vadd.f32 %v1586, %v1552
        %v1588 = vadd.f32 %v1587, %v1556
        %v1589 = vadd.f32 %v1588, %v1560
        %v1590 = vadd.f32 %v1589, %v1564
        %v1591 = vadd.f32 %v1590, %v1568
        %v1592 = vadd.f32 %v1591, %v1572
        %v1593 = vrot.slane %v1592, 4
        %v1594 = vadd.f32 %v1592, %v1593
        %v1595 = vrot.slane %v1594, 2
        %v1596 = vadd.f32 %v1594, %v1595
        %v1597 = vrot.slane %v1596, 1
        %v1598 = vadd.f32 %v1596, %v1597
        %v1599 = vrcp.pop %v1585
        %v1600 = vrcp.pop %v1598
        %v1601 = vmul.f32 %v1542, %v1599
        %v1602 = vmul.f32 %v1544, %v1600
        %v1603 = vmul.f32 %v1546, %v1599
        %v1604 = vmul.f32 %v1548, %v1600
        %v1605 = vmul.f32 %v1550, %v1599
        %v1606 = vmul.f32 %v1552, %v1600
        %v1607 = vmul.f32 %v1554, %v1599
        %v1608 = vmul.f32 %v1556, %v1600
        %v1609 = vmul.f32 %v1558, %v1599
        %v1610 = vmul.f32 %v1560, %v1600
        %v1611 = vmul.f32 %v1562, %v1599
        %v1612 = vmul.f32 %v1564, %v1600
        %v1613 = vmul.f32 %v1566, %v1599
        %v1614 = vmul.f32 %v1568, %v1600
        %v1615 = vmul.f32 %v1570, %v1599
        %v1616 = vmul.f32 %v1572, %v1600
        %v1617 = vpack.c.bf16 %v1391, %v1391
        %v1618 = vpack.c.bf16 %v1603, %v1601
        %v1619 = vpack.c.bf16 %v1604, %v1602
        %v1620 = vpack.c.bf16 %v1607, %v1605
        %v1621 = vpack.c.bf16 %v1608, %v1606
        %v1622 = vpack.c.bf16 %v1611, %v1609
        %v1623 = vpack.c.bf16 %v1612, %v1610
        %v1624 = vpack.c.bf16 %v1615, %v1613
        %v1625 = vpack.c.bf16 %v1616, %v1614
        %vm1626 = vcmask 523264
        %v1628 = vsel %vm1626, %v1617, 0
        %1630 = vmatprep.subr.bf16.mxu0 0
        %1631 = vmatpush1.bf16.msra.mxu0 0
        %1632 = vmatprep.subr.bf16.mxu0 0
        %1633 = vmatpush1.bf16.msra.mxu0 0
        %1634 = vmatprep.subr.bf16.mxu0 0
        %1635 = vmatpush1.bf16.msra.mxu0 0
        %1636 = vmatprep.subr.bf16.mxu0 0
        %1637 = vmatpush1.bf16.msra.mxu0 0
        %1638 = vmatprep.subr.bf16.mxu0 %v1625
        %1639 = vmatpush1.bf16.msra.mxu0 %v1624
        %1640 = vmatprep.subr.bf16.mxu0 %v1623
        %1641 = vmatpush1.bf16.msra.mxu0 %v1622
        %1642 = vmatprep.subr.bf16.mxu0 %v1621
        %1643 = vmatpush1.bf16.msra.mxu0 %v1620
        %1644 = vmatprep.subr.bf16.mxu0 %v1619
        %1645 = vmatpush1.bf16.msra.mxu0 %v1618
        %1646 = vmatprep.subr.bf16.mxu0 0
        %1647 = vmatpush2.bf16.msra.mxu0 0
        %1648 = vmatprep.subr.bf16.mxu0 0
        %1649 = vmatpush2.bf16.msra.mxu0 0
        %1650 = vmatprep.subr.bf16.mxu0 0
        %1651 = vmatpush2.bf16.msra.mxu0 0
        %1652 = vmatprep.subr.bf16.mxu0 0
        %1653 = vmatpush2.bf16.msra.mxu0 0
        %1654 = vmatprep.subr.bf16.mxu0 0
        %1655 = vmatpush2.bf16.msra.mxu0 0
        %1656 = vmatprep.subr.bf16.mxu0 0
        %1657 = vmatpush2.bf16.msra.mxu0 0
        %1658 = vmatprep.subr.bf16.mxu0 0
        %1659 = vmatpush2.bf16.msra.mxu0 0
        %1660 = vmatprep.subr.bf16.mxu0 0
        %1661 = vmatpush2.bf16.msra.mxu0 0
        %1662 = vmatprep.mubr.bf16.mxu0 0
        %1663 = vmatmul.mubr.bf16.gmra.mxu0 %v1628
        %v1664 = vpop.f32.mrf.mxu0
        %v1665 = vadd.f32 0.0, %v1664
        %v1666 = vpop.f32.mrf.mxu0
        %v1667 = vadd.f32 0.0, %v1666
        %v1668 = vpop.f32.mrf.mxu0
        %v1669 = vpop.f32.mrf.mxu0
        %1670 = vdwg.mxu0
        %1671 = vst [vmem:[#allocation2] sm:$0xff] %v1665
        %1672 = vst [vmem:[#allocation2 + $0x8] sm:$0xff] %v1667
        %s1673 = scalar_lea.vmem %s9, 64
        %v1674 = vld [vmem:[%s1673] sm:$0xff]
        %v1675 = vld [vmem:[%s1673 + $0x8] sm:$0xff]
        %v1676 = vld [vmem:[%s1673 + $0x10] sm:$0xff]
        %v1677 = vld [vmem:[%s1673 + $0x18] sm:$0xff]
        %v1678 = vld [vmem:[%s1673 + $0x20] sm:$0xff]
        %v1679 = vld [vmem:[%s1673 + $0x28] sm:$0xff]
        %v1680 = vld [vmem:[%s1673 + $0x30] sm:$0xff]
        %v1681 = vld [vmem:[%s1673 + $0x38] sm:$0xff]
        %v1682 = vunpack.c.l.bf16 %v1674
        %v1683 = vunpack.c.h.bf16 %v1674
        %v1684 = vunpack.c.l.bf16 %v1675
        %v1685 = vunpack.c.h.bf16 %v1675
        %v1686 = vunpack.c.l.bf16 %v1676
        %v1687 = vunpack.c.h.bf16 %v1676
        %v1688 = vunpack.c.l.bf16 %v1677
        %v1689 = vunpack.c.h.bf16 %v1677
        %v1690 = vunpack.c.l.bf16 %v1678
        %v1691 = vunpack.c.h.bf16 %v1678
        %v1692 = vunpack.c.l.bf16 %v1679
        %v1693 = vunpack.c.h.bf16 %v1679
        %v1694 = vunpack.c.l.bf16 %v1680
        %v1695 = vunpack.c.h.bf16 %v1680
        %v1696 = vunpack.c.l.bf16 %v1681
        %v1697 = vunpack.c.h.bf16 %v1681
        %1702 = vrot.lane.b32.xlu0 %v1109, 120
        %v1703 = vpop.permute.xlu0 %1702
        %1704 = vrot.lane.b32.xlu0 %v1110, 120
        %v1705 = vpop.permute.xlu0 %1704
        %1706 = vrot.lane.b32.xlu0 %v1111, 120
        %v1707 = vpop.permute.xlu0 %1706
        %1708 = vrot.lane.b32.xlu0 %v1112, 120
        %v1709 = vpop.permute.xlu0 %1708
        %v1712 = vrot.slane %v988, 4
        %v1713 = vrot.slane %v989, 4
        %v1715 = vsel %vm621, %v1703, 0
        %v1718 = vsel %vm621, %v1705, 0
        %v1721 = vsel %vm621, %v1707, 0
        %v1724 = vsel %vm621, %v1709, 0
        %v1727 = vsel %vm625, %v1712, 0
        %v1730 = vsel %vm625, %v1713, 0
        %1732 = vmatprep.subr.bf16.mxu0 0
        %1733 = vmatpush1.bf16.msra.mxu0 0
        %1734 = vmatprep.subr.bf16.mxu0 0
        %1735 = vmatpush1.bf16.msra.mxu0 0
        %1736 = vmatprep.subr.bf16.mxu0 0
        %1737 = vmatpush1.bf16.msra.mxu0 0
        %1738 = vmatprep.subr.bf16.mxu0 0
        %1739 = vmatpush1.bf16.msra.mxu0 0
        %1740 = vmatprep.subr.bf16.mxu0 0
        %1741 = vmatpush1.bf16.msra.mxu0 0
        %1742 = vmatprep.subr.bf16.mxu0 0
        %1743 = vmatpush1.bf16.msra.mxu0 0
        %1744 = vmatprep.subr.bf16.mxu0 0
        %1745 = vmatpush1.bf16.msra.mxu0 0
        %1746 = vmatprep.subr.bf16.mxu0 %v1730
        %1747 = vmatpush1.bf16.msra.mxu0 %v1727
        %1748 = vmatprep.subr.bf16.mxu0 0
        %1749 = vmatpush2.bf16.msra.mxu0 0
        %1750 = vmatprep.subr.bf16.mxu0 0
        %1751 = vmatpush2.bf16.msra.mxu0 0
        %1752 = vmatprep.subr.bf16.mxu0 0
        %1753 = vmatpush2.bf16.msra.mxu0 0
        %1754 = vmatprep.subr.bf16.mxu0 0
        %1755 = vmatpush2.bf16.msra.mxu0 0
        %1756 = vmatprep.subr.bf16.mxu0 0
        %1757 = vmatpush2.bf16.msra.mxu0 0
        %1758 = vmatprep.subr.bf16.mxu0 0
        %1759 = vmatpush2.bf16.msra.mxu0 0
        %1760 = vmatprep.subr.bf16.mxu0 0
        %1761 = vmatpush2.bf16.msra.mxu0 0
        %1762 = vmatprep.subr.bf16.mxu0 0
        %1763 = vmatpush2.bf16.msra.mxu0 0
        %1764 = vmatprep.mubr.bf16.mxu0 0
        %1765 = vmatmul.mubr.bf16.gmra.mxu0 %v1715
        %v1766 = vpop.f32.mrf.mxu0
        %v1767 = vadd.f32 %v1682, %v1766
        %v1768 = vpop.f32.mrf.mxu0
        %v1769 = vadd.f32 %v1683, %v1768
        %v1770 = vpop.f32.mrf.mxu0
        %v1771 = vadd.f32 %v1684, %v1770
        %v1772 = vpop.f32.mrf.mxu0
        %v1773 = vadd.f32 %v1685, %v1772
        %1774 = vmatprep.mubr.bf16.mxu0 0
        %1775 = vmatmul.mubr.bf16.gmra.mxu0 %v1718
        %v1776 = vpop.f32.mrf.mxu0
        %v1777 = vadd.f32 %v1686, %v1776
        %v1778 = vpop.f32.mrf.mxu0
        %v1779 = vadd.f32 %v1687, %v1778
        %v1780 = vpop.f32.mrf.mxu0
        %v1781 = vadd.f32 %v1688, %v1780
        %v1782 = vpop.f32.mrf.mxu0
        %v1783 = vadd.f32 %v1689, %v1782
        %1784 = vmatprep.mubr.bf16.mxu0 0
        %1785 = vmatmul.mubr.bf16.gmra.mxu0 %v1721
        %v1786 = vpop.f32.mrf.mxu0
        %v1787 = vadd.f32 %v1690, %v1786
        %v1788 = vpop.f32.mrf.mxu0
        %v1789 = vadd.f32 %v1691, %v1788
        %v1790 = vpop.f32.mrf.mxu0
        %v1791 = vadd.f32 %v1692, %v1790
        %v1792 = vpop.f32.mrf.mxu0
        %v1793 = vadd.f32 %v1693, %v1792
        %1794 = vmatprep.mubr.bf16.mxu0 0
        %1795 = vmatmul.mubr.bf16.gmra.mxu0 %v1724
        %v1796 = vpop.f32.mrf.mxu0
        %v1797 = vadd.f32 %v1694, %v1796
        %v1798 = vpop.f32.mrf.mxu0
        %v1799 = vadd.f32 %v1695, %v1798
        %v1800 = vpop.f32.mrf.mxu0
        %v1801 = vadd.f32 %v1696, %v1800
        %v1802 = vpop.f32.mrf.mxu0
        %v1803 = vadd.f32 %v1697, %v1802
        %1804 = vdwg.mxu0
        %v1805 = vmax.f32 %v1767, %v1769
        %1806 = vmax.xlane.f32.xlu0 %v1805
        %v1807 = vpop.xlane.xlu0 %1806
        %v1808 = vmax.f32 %v1771, %v1773
        %1809 = vmax.xlane.f32.xlu0 %v1808
        %v1810 = vpop.xlane.xlu0 %1809
        %v1811 = vmax.f32 %v1777, %v1779
        %1812 = vmax.xlane.f32.xlu0 %v1811
        %v1813 = vpop.xlane.xlu0 %1812
        %v1814 = vmax.f32 %v1781, %v1783
        %1815 = vmax.xlane.f32.xlu0 %v1814
        %v1816 = vpop.xlane.xlu0 %1815
        %v1817 = vmax.f32 %v1787, %v1789
        %1818 = vmax.xlane.f32.xlu0 %v1817
        %v1819 = vpop.xlane.xlu0 %1818
        %v1820 = vmax.f32 %v1791, %v1793
        %1821 = vmax.xlane.f32.xlu0 %v1820
        %v1822 = vpop.xlane.xlu0 %1821
        %v1823 = vmax.f32 %v1797, %v1799
        %1824 = vmax.xlane.f32.xlu0 %v1823
        %v1825 = vpop.xlane.xlu0 %1824
        %v1826 = vmax.f32 %v1801, %v1803
        %1827 = vmax.xlane.f32.xlu0 %v1826
        %v1828 = vpop.xlane.xlu0 %1827
        %v1829 = vsub.f32 %v1767, %v1807
        %v1830 = vsub.f32 %v1769, %v1807
        %v1831 = vsub.f32 %v1771, %v1810
        %v1832 = vsub.f32 %v1773, %v1810
        %v1833 = vsub.f32 %v1777, %v1813
        %v1834 = vsub.f32 %v1779, %v1813
        %v1835 = vsub.f32 %v1781, %v1816
        %v1836 = vsub.f32 %v1783, %v1816
        %v1837 = vsub.f32 %v1787, %v1819
        %v1838 = vsub.f32 %v1789, %v1819
        %v1839 = vsub.f32 %v1791, %v1822
        %v1840 = vsub.f32 %v1793, %v1822
        %v1841 = vsub.f32 %v1797, %v1825
        %v1842 = vsub.f32 %v1799, %v1825
        %v1843 = vsub.f32 %v1801, %v1828
        %v1844 = vsub.f32 %v1803, %v1828
        %v1845 = vmul.f32 %v1829, 1.442695
        %v1846 = vpow.pop %v1845
        %v1847 = vmul.f32 %v1830, 1.442695
        %v1848 = vpow.pop %v1847
        %v1849 = vmul.f32 %v1831, 1.442695
        %v1850 = vpow.pop %v1849
        %v1851 = vmul.f32 %v1832, 1.442695
        %v1852 = vpow.pop %v1851
        %v1853 = vmul.f32 %v1833, 1.442695
        %v1854 = vpow.pop %v1853
        %v1855 = vmul.f32 %v1834, 1.442695
        %v1856 = vpow.pop %v1855
        %v1857 = vmul.f32 %v1835, 1.442695
        %v1858 = vpow.pop %v1857
        %v1859 = vmul.f32 %v1836, 1.442695
        %v1860 = vpow.pop %v1859
        %v1861 = vmul.f32 %v1837, 1.442695
        %v1862 = vpow.pop %v1861
        %v1863 = vmul.f32 %v1838, 1.442695
        %v1864 = vpow.pop %v1863
        %v1865 = vmul.f32 %v1839, 1.442695
        %v1866 = vpow.pop %v1865
        %v1867 = vmul.f32 %v1840, 1.442695
        %v1868 = vpow.pop %v1867
        %v1869 = vmul.f32 %v1841, 1.442695
        %v1870 = vpow.pop %v1869
        %v1871 = vmul.f32 %v1842, 1.442695
        %v1872 = vpow.pop %v1871
        %v1873 = vmul.f32 %v1843, 1.442695
        %v1874 = vpow.pop %v1873
        %v1875 = vmul.f32 %v1844, 1.442695
        %v1876 = vpow.pop %v1875
        %v1877 = vadd.f32 %v1846, %v1848
        %1878 = vadd.xlane.f32.xlu0 %v1877
        %v1879 = vpop.xlane.xlu0 %1878
        %v1880 = vadd.f32 %v1850, %v1852
        %1881 = vadd.xlane.f32.xlu0 %v1880
        %v1882 = vpop.xlane.xlu0 %1881
        %v1883 = vadd.f32 %v1854, %v1856
        %1884 = vadd.xlane.f32.xlu0 %v1883
        %v1885 = vpop.xlane.xlu0 %1884
        %v1886 = vadd.f32 %v1858, %v1860
        %1887 = vadd.xlane.f32.xlu0 %v1886
        %v1888 = vpop.xlane.xlu0 %1887
        %v1889 = vadd.f32 %v1862, %v1864
        %1890 = vadd.xlane.f32.xlu0 %v1889
        %v1891 = vpop.xlane.xlu0 %1890
        %v1892 = vadd.f32 %v1866, %v1868
        %1893 = vadd.xlane.f32.xlu0 %v1892
        %v1894 = vpop.xlane.xlu0 %1893
        %v1895 = vadd.f32 %v1870, %v1872
        %1896 = vadd.xlane.f32.xlu0 %v1895
        %v1897 = vpop.xlane.xlu0 %1896
        %v1898 = vadd.f32 %v1874, %v1876
        %1899 = vadd.xlane.f32.xlu0 %v1898
        %v1900 = vpop.xlane.xlu0 %1899
        %v1901 = vrcp.pop %v1879
        %v1902 = vrcp.pop %v1882
        %v1903 = vrcp.pop %v1885
        %v1904 = vrcp.pop %v1888
        %v1905 = vrcp.pop %v1891
        %v1906 = vrcp.pop %v1894
        %v1907 = vrcp.pop %v1897
        %v1908 = vrcp.pop %v1900
        %v1909 = vmul.f32 %v1846, %v1901
        %v1910 = vmul.f32 %v1848, %v1901
        %v1911 = vmul.f32 %v1850, %v1902
        %v1912 = vmul.f32 %v1852, %v1902
        %v1913 = vmul.f32 %v1854, %v1903
        %v1914 = vmul.f32 %v1856, %v1903
        %v1915 = vmul.f32 %v1858, %v1904
        %v1916 = vmul.f32 %v1860, %v1904
        %v1917 = vmul.f32 %v1862, %v1905
        %v1918 = vmul.f32 %v1864, %v1905
        %v1919 = vmul.f32 %v1866, %v1906
        %v1920 = vmul.f32 %v1868, %v1906
        %v1921 = vmul.f32 %v1870, %v1907
        %v1922 = vmul.f32 %v1872, %v1907
        %v1923 = vmul.f32 %v1874, %v1908
        %v1924 = vmul.f32 %v1876, %v1908
        %v1925 = vpack.c.bf16 %v1911, %v1909
        %v1926 = vpack.c.bf16 %v1912, %v1910
        %v1927 = vpack.c.bf16 %v1915, %v1913
        %v1928 = vpack.c.bf16 %v1916, %v1914
        %v1929 = vpack.c.bf16 %v1919, %v1917
        %v1930 = vpack.c.bf16 %v1920, %v1918
        %v1931 = vpack.c.bf16 %v1923, %v1921
        %v1932 = vpack.c.bf16 %v1924, %v1922
        %v1935 = vrot.slane %v992, 4
        %v1936 = vrot.slane %v993, 4
        %1939 = vmatprep.subr.bf16.mxu0 0
        %1940 = vmatpush1.bf16.xpose.msra.mxu0 0
        %1941 = vmatprep.subr.bf16.mxu0 0
        %1942 = vmatpush1.bf16.xpose.msra.mxu0 0
        %1943 = vmatprep.subr.bf16.mxu0 0
        %1944 = vmatpush1.bf16.xpose.msra.mxu0 0
        %1945 = vmatprep.subr.bf16.mxu0 0
        %1946 = vmatpush1.bf16.xpose.msra.mxu0 0
        %1947 = vmatprep.subr.bf16.mxu0 %v1932
        %1948 = vmatpush1.bf16.xpose.msra.mxu0 %v1931
        %1949 = vmatprep.subr.bf16.mxu0 %v1930
        %1950 = vmatpush1.bf16.xpose.msra.mxu0 %v1929
        %1951 = vmatprep.subr.bf16.mxu0 %v1928
        %1952 = vmatpush1.bf16.xpose.msra.mxu0 %v1927
        %1953 = vmatprep.subr.bf16.mxu0 %v1926
        %1954 = vmatpush1.bf16.xpose.msra.mxu0 %v1925
        %1955 = vmatprep.subr.bf16.mxu0 0
        %1956 = vmatpush2.bf16.xpose.msra.mxu0 0
        %1957 = vmatprep.subr.bf16.mxu0 0
        %1958 = vmatpush2.bf16.xpose.msra.mxu0 0
        %1959 = vmatprep.subr.bf16.mxu0 0
        %1960 = vmatpush2.bf16.xpose.msra.mxu0 0
        %1961 = vmatprep.subr.bf16.mxu0 0
        %1962 = vmatpush2.bf16.xpose.msra.mxu0 0
        %1963 = vmatprep.subr.bf16.mxu0 0
        %1964 = vmatpush2.bf16.xpose.msra.mxu0 0
        %1965 = vmatprep.subr.bf16.mxu0 0
        %1966 = vmatpush2.bf16.xpose.msra.mxu0 0
        %1967 = vmatprep.subr.bf16.mxu0 0
        %1968 = vmatpush2.bf16.xpose.msra.mxu0 0
        %1969 = vmatprep.subr.bf16.mxu0 0
        %1970 = vmatpush2.bf16.xpose.msra.mxu0 0
        %1971 = vmatprep.mubr.bf16.mxu0 %v1936
        %1972 = vmatmul.mubr.bf16.gmra.mxu0 %v1935
        %v1973 = vpop.f32.mrf.mxu0
        %v1974 = vadd.f32 0.0, %v1973
        %v1975 = vpop.f32.mrf.mxu0
        %v1976 = vpop.f32.mrf.mxu0
        %v1977 = vpop.f32.mrf.mxu0
        %1978 = vdwg.mxu0
        %s1979 = scalar_lea.vmem %s10, 64
        %v1980 = vld [vmem:[%s1979] sm:$0xff]
        %v1981 = vld [vmem:[%s1979 + $0x8] sm:$0xff]
        %v1982 = vld [vmem:[%s1979 + $0x10] sm:$0xff]
        %v1983 = vld [vmem:[%s1979 + $0x18] sm:$0xff]
        %v1984 = vld [vmem:[%s1979 + $0x20] sm:$0xff]
        %v1985 = vld [vmem:[%s1979 + $0x28] sm:$0xff]
        %v1986 = vld [vmem:[%s1979 + $0x30] sm:$0xff]
        %v1987 = vld [vmem:[%s1979 + $0x38] sm:$0xff]
        %v1988 = vunpack.c.l.bf16 %v1980
        %v1989 = vunpack.c.h.bf16 %v1980
        %v1990 = vunpack.c.l.bf16 %v1981
        %v1991 = vunpack.c.h.bf16 %v1981
        %v1992 = vunpack.c.l.bf16 %v1982
        %v1993 = vunpack.c.h.bf16 %v1982
        %v1994 = vunpack.c.l.bf16 %v1983
        %v1995 = vunpack.c.h.bf16 %v1983
        %v1996 = vunpack.c.l.bf16 %v1984
        %v1997 = vunpack.c.h.bf16 %v1984
        %v1998 = vunpack.c.l.bf16 %v1985
        %v1999 = vunpack.c.h.bf16 %v1985
        %v2000 = vunpack.c.l.bf16 %v1986
        %v2001 = vunpack.c.h.bf16 %v1986
        %v2002 = vunpack.c.l.bf16 %v1987
        %v2003 = vunpack.c.h.bf16 %v1987
        %v2006 = vrot.slane %v984, 4
        %v2007 = vrot.slane %v985, 4
        %v2009 = vsel %vm625, %v2006, 0
        %v2012 = vsel %vm625, %v2007, 0
        %2014 = vmatprep.subr.bf16.mxu0 0
        %2015 = vmatpush1.bf16.msra.mxu0 0
        %2016 = vmatprep.subr.bf16.mxu0 0
        %2017 = vmatpush1.bf16.msra.mxu0 0
        %2018 = vmatprep.subr.bf16.mxu0 0
        %2019 = vmatpush1.bf16.msra.mxu0 0
        %2020 = vmatprep.subr.bf16.mxu0 0
        %2021 = vmatpush1.bf16.msra.mxu0 0
        %2022 = vmatprep.subr.bf16.mxu0 0
        %2023 = vmatpush1.bf16.msra.mxu0 0
        %2024 = vmatprep.subr.bf16.mxu0 0
        %2025 = vmatpush1.bf16.msra.mxu0 0
        %2026 = vmatprep.subr.bf16.mxu0 0
        %2027 = vmatpush1.bf16.msra.mxu0 0
        %2028 = vmatprep.subr.bf16.mxu0 %v2012
        %2029 = vmatpush1.bf16.msra.mxu0 %v2009
        %2030 = vmatprep.subr.bf16.mxu0 0
        %2031 = vmatpush2.bf16.msra.mxu0 0
        %2032 = vmatprep.subr.bf16.mxu0 0
        %2033 = vmatpush2.bf16.msra.mxu0 0
        %2034 = vmatprep.subr.bf16.mxu0 0
        %2035 = vmatpush2.bf16.msra.mxu0 0
        %2036 = vmatprep.subr.bf16.mxu0 0
        %2037 = vmatpush2.bf16.msra.mxu0 0
        %2038 = vmatprep.subr.bf16.mxu0 0
        %2039 = vmatpush2.bf16.msra.mxu0 0
        %2040 = vmatprep.subr.bf16.mxu0 0
        %2041 = vmatpush2.bf16.msra.mxu0 0
        %2042 = vmatprep.subr.bf16.mxu0 0
        %2043 = vmatpush2.bf16.msra.mxu0 0
        %2044 = vmatprep.subr.bf16.mxu0 0
        %2045 = vmatpush2.bf16.msra.mxu0 0
        %2046 = vmatprep.mubr.bf16.mxu0 0
        %2047 = vmatmul.mubr.bf16.gmra.mxu0 %v1715
        %v2048 = vpop.f32.mrf.mxu0
        %v2049 = vadd.f32 %v1988, %v2048
        %v2050 = vpop.f32.mrf.mxu0
        %v2051 = vadd.f32 %v1989, %v2050
        %v2052 = vpop.f32.mrf.mxu0
        %v2053 = vadd.f32 %v1990, %v2052
        %v2054 = vpop.f32.mrf.mxu0
        %v2055 = vadd.f32 %v1991, %v2054
        %2056 = vmatprep.mubr.bf16.mxu0 0
        %2057 = vmatmul.mubr.bf16.gmra.mxu0 %v1718
        %v2058 = vpop.f32.mrf.mxu0
        %v2059 = vadd.f32 %v1992, %v2058
        %v2060 = vpop.f32.mrf.mxu0
        %v2061 = vadd.f32 %v1993, %v2060
        %v2062 = vpop.f32.mrf.mxu0
        %v2063 = vadd.f32 %v1994, %v2062
        %v2064 = vpop.f32.mrf.mxu0
        %v2065 = vadd.f32 %v1995, %v2064
        %2066 = vmatprep.mubr.bf16.mxu0 0
        %2067 = vmatmul.mubr.bf16.gmra.mxu0 %v1721
        %v2068 = vpop.f32.mrf.mxu0
        %v2069 = vadd.f32 %v1996, %v2068
        %v2070 = vpop.f32.mrf.mxu0
        %v2071 = vadd.f32 %v1997, %v2070
        %v2072 = vpop.f32.mrf.mxu0
        %v2073 = vadd.f32 %v1998, %v2072
        %v2074 = vpop.f32.mrf.mxu0
        %v2075 = vadd.f32 %v1999, %v2074
        %2076 = vmatprep.mubr.bf16.mxu0 0
        %2077 = vmatmul.mubr.bf16.gmra.mxu0 %v1724
        %v2078 = vpop.f32.mrf.mxu0
        %v2079 = vadd.f32 %v2000, %v2078
        %v2080 = vpop.f32.mrf.mxu0
        %v2081 = vadd.f32 %v2001, %v2080
        %v2082 = vpop.f32.mrf.mxu0
        %v2083 = vadd.f32 %v2002, %v2082
        %v2084 = vpop.f32.mrf.mxu0
        %v2085 = vadd.f32 %v2003, %v2084
        %2086 = vdwg.mxu0
        %v2087 = vmax.f32 %v2049, %v2059
        %v2088 = vmax.f32 %v2053, %v2063
        %v2089 = vmax.f32 %v2087, %v2069
        %v2090 = vmax.f32 %v2088, %v2073
        %v2091 = vmax.f32 %v2089, %v2079
        %v2092 = vmax.f32 %v2090, %v2083
        %v2093 = vmax.f32 %v2091, %v2092
        %v2094 = vrot.slane %v2093, 4
        %v2095 = vmax.f32 %v2093, %v2094
        %v2096 = vrot.slane %v2095, 2
        %v2097 = vmax.f32 %v2095, %v2096
        %v2098 = vrot.slane %v2097, 1
        %v2099 = vmax.f32 %v2097, %v2098
        %v2100 = vmax.f32 %v2051, %v2061
        %v2101 = vmax.f32 %v2055, %v2065
        %v2102 = vmax.f32 %v2100, %v2071
        %v2103 = vmax.f32 %v2101, %v2075
        %v2104 = vmax.f32 %v2102, %v2081
        %v2105 = vmax.f32 %v2103, %v2085
        %v2106 = vmax.f32 %v2104, %v2105
        %v2107 = vrot.slane %v2106, 4
        %v2108 = vmax.f32 %v2106, %v2107
        %v2109 = vrot.slane %v2108, 2
        %v2110 = vmax.f32 %v2108, %v2109
        %v2111 = vrot.slane %v2110, 1
        %v2112 = vmax.f32 %v2110, %v2111
        %v2113 = vsub.f32 %v2049, %v2099
        %v2114 = vsub.f32 %v2051, %v2112
        %v2115 = vsub.f32 %v2053, %v2099
        %v2116 = vsub.f32 %v2055, %v2112
        %v2117 = vsub.f32 %v2059, %v2099
        %v2118 = vsub.f32 %v2061, %v2112
        %v2119 = vsub.f32 %v2063, %v2099
        %v2120 = vsub.f32 %v2065, %v2112
        %v2121 = vsub.f32 %v2069, %v2099
        %v2122 = vsub.f32 %v2071, %v2112
        %v2123 = vsub.f32 %v2073, %v2099
        %v2124 = vsub.f32 %v2075, %v2112
        %v2125 = vsub.f32 %v2079, %v2099
        %v2126 = vsub.f32 %v2081, %v2112
        %v2127 = vsub.f32 %v2083, %v2099
        %v2128 = vsub.f32 %v2085, %v2112
        %v2129 = vmul.f32 %v2113, 1.442695
        %v2130 = vpow.pop %v2129
        %v2131 = vmul.f32 %v2114, 1.442695
        %v2132 = vpow.pop %v2131
        %v2133 = vmul.f32 %v2115, 1.442695
        %v2134 = vpow.pop %v2133
        %v2135 = vmul.f32 %v2116, 1.442695
        %v2136 = vpow.pop %v2135
        %v2137 = vmul.f32 %v2117, 1.442695
        %v2138 = vpow.pop %v2137
        %v2139 = vmul.f32 %v2118, 1.442695
        %v2140 = vpow.pop %v2139
        %v2141 = vmul.f32 %v2119, 1.442695
        %v2142 = vpow.pop %v2141
        %v2143 = vmul.f32 %v2120, 1.442695
        %v2144 = vpow.pop %v2143
        %v2145 = vmul.f32 %v2121, 1.442695
        %v2146 = vpow.pop %v2145
        %v2147 = vmul.f32 %v2122, 1.442695
        %v2148 = vpow.pop %v2147
        %v2149 = vmul.f32 %v2123, 1.442695
        %v2150 = vpow.pop %v2149
        %v2151 = vmul.f32 %v2124, 1.442695
        %v2152 = vpow.pop %v2151
        %v2153 = vmul.f32 %v2125, 1.442695
        %v2154 = vpow.pop %v2153
        %v2155 = vmul.f32 %v2126, 1.442695
        %v2156 = vpow.pop %v2155
        %v2157 = vmul.f32 %v2127, 1.442695
        %v2158 = vpow.pop %v2157
        %v2159 = vmul.f32 %v2128, 1.442695
        %v2160 = vpow.pop %v2159
        %v2161 = vadd.f32 %v2130, %v2134
        %v2162 = vadd.f32 %v2161, %v2138
        %v2163 = vadd.f32 %v2162, %v2142
        %v2164 = vadd.f32 %v2163, %v2146
        %v2165 = vadd.f32 %v2164, %v2150
        %v2166 = vadd.f32 %v2165, %v2154
        %v2167 = vadd.f32 %v2166, %v2158
        %v2168 = vrot.slane %v2167, 4
        %v2169 = vadd.f32 %v2167, %v2168
        %v2170 = vrot.slane %v2169, 2
        %v2171 = vadd.f32 %v2169, %v2170
        %v2172 = vrot.slane %v2171, 1
        %v2173 = vadd.f32 %v2171, %v2172
        %v2174 = vadd.f32 %v2132, %v2136
        %v2175 = vadd.f32 %v2174, %v2140
        %v2176 = vadd.f32 %v2175, %v2144
        %v2177 = vadd.f32 %v2176, %v2148
        %v2178 = vadd.f32 %v2177, %v2152
        %v2179 = vadd.f32 %v2178, %v2156
        %v2180 = vadd.f32 %v2179, %v2160
        %v2181 = vrot.slane %v2180, 4
        %v2182 = vadd.f32 %v2180, %v2181
        %v2183 = vrot.slane %v2182, 2
        %v2184 = vadd.f32 %v2182, %v2183
        %v2185 = vrot.slane %v2184, 1
        %v2186 = vadd.f32 %v2184, %v2185
        %v2187 = vrcp.pop %v2173
        %v2188 = vrcp.pop %v2186
        %v2189 = vmul.f32 %v2130, %v2187
        %v2190 = vmul.f32 %v2132, %v2188
        %v2191 = vmul.f32 %v2134, %v2187
        %v2192 = vmul.f32 %v2136, %v2188
        %v2193 = vmul.f32 %v2138, %v2187
        %v2194 = vmul.f32 %v2140, %v2188
        %v2195 = vmul.f32 %v2142, %v2187
        %v2196 = vmul.f32 %v2144, %v2188
        %v2197 = vmul.f32 %v2146, %v2187
        %v2198 = vmul.f32 %v2148, %v2188
        %v2199 = vmul.f32 %v2150, %v2187
        %v2200 = vmul.f32 %v2152, %v2188
        %v2201 = vmul.f32 %v2154, %v2187
        %v2202 = vmul.f32 %v2156, %v2188
        %v2203 = vmul.f32 %v2158, %v2187
        %v2204 = vmul.f32 %v2160, %v2188
        %v2205 = vpack.c.bf16 %v1974, %v1974
        %v2206 = vpack.c.bf16 %v2191, %v2189
        %v2207 = vpack.c.bf16 %v2192, %v2190
        %v2208 = vpack.c.bf16 %v2195, %v2193
        %v2209 = vpack.c.bf16 %v2196, %v2194
        %v2210 = vpack.c.bf16 %v2199, %v2197
        %v2211 = vpack.c.bf16 %v2200, %v2198
        %v2212 = vpack.c.bf16 %v2203, %v2201
        %v2213 = vpack.c.bf16 %v2204, %v2202
        %v2215 = vsel %vm1626, %v2205, 0
        %2217 = vmatprep.subr.bf16.mxu0 0
        %2218 = vmatpush1.bf16.msra.mxu0 0
        %2219 = vmatprep.subr.bf16.mxu0 0
        %2220 = vmatpush1.bf16.msra.mxu0 0
        %2221 = vmatprep.subr.bf16.mxu0 0
        %2222 = vmatpush1.bf16.msra.mxu0 0
        %2223 = vmatprep.subr.bf16.mxu0 0
        %2224 = vmatpush1.bf16.msra.mxu0 0
        %2225 = vmatprep.subr.bf16.mxu0 %v2213
        %2226 = vmatpush1.bf16.msra.mxu0 %v2212
        %2227 = vmatprep.subr.bf16.mxu0 %v2211
        %2228 = vmatpush1.bf16.msra.mxu0 %v2210
        %2229 = vmatprep.subr.bf16.mxu0 %v2209
        %2230 = vmatpush1.bf16.msra.mxu0 %v2208
        %2231 = vmatprep.subr.bf16.mxu0 %v2207
        %2232 = vmatpush1.bf16.msra.mxu0 %v2206
        %2233 = vmatprep.subr.bf16.mxu0 0
        %2234 = vmatpush2.bf16.msra.mxu0 0
        %2235 = vmatprep.subr.bf16.mxu0 0
        %2236 = vmatpush2.bf16.msra.mxu0 0
        %2237 = vmatprep.subr.bf16.mxu0 0
        %2238 = vmatpush2.bf16.msra.mxu0 0
        %2239 = vmatprep.subr.bf16.mxu0 0
        %2240 = vmatpush2.bf16.msra.mxu0 0
        %2241 = vmatprep.subr.bf16.mxu0 0
        %2242 = vmatpush2.bf16.msra.mxu0 0
        %2243 = vmatprep.subr.bf16.mxu0 0
        %2244 = vmatpush2.bf16.msra.mxu0 0
        %2245 = vmatprep.subr.bf16.mxu0 0
        %2246 = vmatpush2.bf16.msra.mxu0 0
        %2247 = vmatprep.subr.bf16.mxu0 0
        %2248 = vmatpush2.bf16.msra.mxu0 0
        %2249 = vmatprep.mubr.bf16.mxu0 0
        %2250 = vmatmul.mubr.bf16.gmra.mxu0 %v2215
        %v2251 = vpop.f32.mrf.mxu0
        %v2252 = vadd.f32 0.0, %v2251
        %v2253 = vpop.f32.mrf.mxu0
        %v2254 = vadd.f32 0.0, %v2253
        %v2255 = vpop.f32.mrf.mxu0
        %v2256 = vpop.f32.mrf.mxu0
        %2257 = vdwg.mxu0
        %2258 = vst [vmem:[#allocation2 + $0x10] sm:$0xff] %v2252
        %2259 = vst [vmem:[#allocation2 + $0x18] sm:$0xff] %v2254
        %s2260 = scalar_lea.vmem %s9, 128
        %v2261 = vld [vmem:[%s2260] sm:$0xff]
        %v2262 = vld [vmem:[%s2260 + $0x8] sm:$0xff]
        %v2263 = vld [vmem:[%s2260 + $0x10] sm:$0xff]
        %v2264 = vld [vmem:[%s2260 + $0x18] sm:$0xff]
        %v2265 = vld [vmem:[%s2260 + $0x20] sm:$0xff]
        %v2266 = vld [vmem:[%s2260 + $0x28] sm:$0xff]
        %v2267 = vld [vmem:[%s2260 + $0x30] sm:$0xff]
        %v2268 = vld [vmem:[%s2260 + $0x38] sm:$0xff]
        %v2269 = vunpack.c.l.bf16 %v2261
        %v2270 = vunpack.c.h.bf16 %v2261
        %v2271 = vunpack.c.l.bf16 %v2262
        %v2272 = vunpack.c.h.bf16 %v2262
        %v2273 = vunpack.c.l.bf16 %v2263
        %v2274 = vunpack.c.h.bf16 %v2263
        %v2275 = vunpack.c.l.bf16 %v2264
        %v2276 = vunpack.c.h.bf16 %v2264
        %v2277 = vunpack.c.l.bf16 %v2265
        %v2278 = vunpack.c.h.bf16 %v2265
        %v2279 = vunpack.c.l.bf16 %v2266
        %v2280 = vunpack.c.h.bf16 %v2266
        %v2281 = vunpack.c.l.bf16 %v2267
        %v2282 = vunpack.c.h.bf16 %v2267
        %v2283 = vunpack.c.l.bf16 %v2268
        %v2284 = vunpack.c.h.bf16 %v2268
        %2285 = vrot.lane.b32.xlu0 %v1109, 112
        %v2286 = vpop.permute.xlu0 %2285
        %2287 = vrot.lane.b32.xlu0 %v1110, 112
        %v2288 = vpop.permute.xlu0 %2287
        %2289 = vrot.lane.b32.xlu0 %v1111, 112
        %v2290 = vpop.permute.xlu0 %2289
        %2291 = vrot.lane.b32.xlu0 %v1112, 112
        %v2292 = vpop.permute.xlu0 %2291
        %v2294 = vsel %vm621, %v2286, 0
        %v2297 = vsel %vm621, %v2288, 0
        %v2300 = vsel %vm621, %v2290, 0
        %v2303 = vsel %vm621, %v2292, 0
        %v2306 = vsel %vm625, %v990, 0
        %v2309 = vsel %vm625, %v991, 0
        %2311 = vmatprep.subr.bf16.mxu0 0
        %2312 = vmatpush1.bf16.msra.mxu0 0
        %2313 = vmatprep.subr.bf16.mxu0 0
        %2314 = vmatpush1.bf16.msra.mxu0 0
        %2315 = vmatprep.subr.bf16.mxu0 0
        %2316 = vmatpush1.bf16.msra.mxu0 0
        %2317 = vmatprep.subr.bf16.mxu0 0
        %2318 = vmatpush1.bf16.msra.mxu0 0
        %2319 = vmatprep.subr.bf16.mxu0 0
        %2320 = vmatpush1.bf16.msra.mxu0 0
        %2321 = vmatprep.subr.bf16.mxu0 0
        %2322 = vmatpush1.bf16.msra.mxu0 0
        %2323 = vmatprep.subr.bf16.mxu0 0
        %2324 = vmatpush1.bf16.msra.mxu0 0
        %2325 = vmatprep.subr.bf16.mxu0 %v2309
        %2326 = vmatpush1.bf16.msra.mxu0 %v2306
        %2327 = vmatprep.subr.bf16.mxu0 0
        %2328 = vmatpush2.bf16.msra.mxu0 0
        %2329 = vmatprep.subr.bf16.mxu0 0
        %2330 = vmatpush2.bf16.msra.mxu0 0
        %2331 = vmatprep.subr.bf16.mxu0 0
        %2332 = vmatpush2.bf16.msra.mxu0 0
        %2333 = vmatprep.subr.bf16.mxu0 0
        %2334 = vmatpush2.bf16.msra.mxu0 0
        %2335 = vmatprep.subr.bf16.mxu0 0
        %2336 = vmatpush2.bf16.msra.mxu0 0
        %2337 = vmatprep.subr.bf16.mxu0 0
        %2338 = vmatpush2.bf16.msra.mxu0 0
        %2339 = vmatprep.subr.bf16.mxu0 0
        %2340 = vmatpush2.bf16.msra.mxu0 0
        %2341 = vmatprep.subr.bf16.mxu0 0
        %2342 = vmatpush2.bf16.msra.mxu0 0
        %2343 = vmatprep.mubr.bf16.mxu0 0
        %2344 = vmatmul.mubr.bf16.gmra.mxu0 %v2294
        %v2345 = vpop.f32.mrf.mxu0
        %v2346 = vadd.f32 %v2269, %v2345
        %v2347 = vpop.f32.mrf.mxu0
        %v2348 = vadd.f32 %v2270, %v2347
        %v2349 = vpop.f32.mrf.mxu0
        %v2350 = vadd.f32 %v2271, %v2349
        %v2351 = vpop.f32.mrf.mxu0
        %v2352 = vadd.f32 %v2272, %v2351
        %2353 = vmatprep.mubr.bf16.mxu0 0
        %2354 = vmatmul.mubr.bf16.gmra.mxu0 %v2297
        %v2355 = vpop.f32.mrf.mxu0
        %v2356 = vadd.f32 %v2273, %v2355
        %v2357 = vpop.f32.mrf.mxu0
        %v2358 = vadd.f32 %v2274, %v2357
        %v2359 = vpop.f32.mrf.mxu0
        %v2360 = vadd.f32 %v2275, %v2359
        %v2361 = vpop.f32.mrf.mxu0
        %v2362 = vadd.f32 %v2276, %v2361
        %2363 = vmatprep.mubr.bf16.mxu0 0
        %2364 = vmatmul.mubr.bf16.gmra.mxu0 %v2300
        %v2365 = vpop.f32.mrf.mxu0
        %v2366 = vadd.f32 %v2277, %v2365
        %v2367 = vpop.f32.mrf.mxu0
        %v2368 = vadd.f32 %v2278, %v2367
        %v2369 = vpop.f32.mrf.mxu0
        %v2370 = vadd.f32 %v2279, %v2369
        %v2371 = vpop.f32.mrf.mxu0
        %v2372 = vadd.f32 %v2280, %v2371
        %2373 = vmatprep.mubr.bf16.mxu0 0
        %2374 = vmatmul.mubr.bf16.gmra.mxu0 %v2303
        %v2375 = vpop.f32.mrf.mxu0
        %v2376 = vadd.f32 %v2281, %v2375
        %v2377 = vpop.f32.mrf.mxu0
        %v2378 = vadd.f32 %v2282, %v2377
        %v2379 = vpop.f32.mrf.mxu0
        %v2380 = vadd.f32 %v2283, %v2379
        %v2381 = vpop.f32.mrf.mxu0
        %v2382 = vadd.f32 %v2284, %v2381
        %2383 = vdwg.mxu0
        %v2384 = vmax.f32 %v2346, %v2348
        %2385 = vmax.xlane.f32.xlu0 %v2384
        %v2386 = vpop.xlane.xlu0 %2385
        %v2387 = vmax.f32 %v2350, %v2352
        %2388 = vmax.xlane.f32.xlu0 %v2387
        %v2389 = vpop.xlane.xlu0 %2388
        %v2390 = vmax.f32 %v2356, %v2358
        %2391 = vmax.xlane.f32.xlu0 %v2390
        %v2392 = vpop.xlane.xlu0 %2391
        %v2393 = vmax.f32 %v2360, %v2362
        %2394 = vmax.xlane.f32.xlu0 %v2393
        %v2395 = vpop.xlane.xlu0 %2394
        %v2396 = vmax.f32 %v2366, %v2368
        %2397 = vmax.xlane.f32.xlu0 %v2396
        %v2398 = vpop.xlane.xlu0 %2397
        %v2399 = vmax.f32 %v2370, %v2372
        %2400 = vmax.xlane.f32.xlu0 %v2399
        %v2401 = vpop.xlane.xlu0 %2400
        %v2402 = vmax.f32 %v2376, %v2378
        %2403 = vmax.xlane.f32.xlu0 %v2402
        %v2404 = vpop.xlane.xlu0 %2403
        %v2405 = vmax.f32 %v2380, %v2382
        %2406 = vmax.xlane.f32.xlu0 %v2405
        %v2407 = vpop.xlane.xlu0 %2406
        %v2408 = vsub.f32 %v2346, %v2386
        %v2409 = vsub.f32 %v2348, %v2386
        %v2410 = vsub.f32 %v2350, %v2389
        %v2411 = vsub.f32 %v2352, %v2389
        %v2412 = vsub.f32 %v2356, %v2392
        %v2413 = vsub.f32 %v2358, %v2392
        %v2414 = vsub.f32 %v2360, %v2395
        %v2415 = vsub.f32 %v2362, %v2395
        %v2416 = vsub.f32 %v2366, %v2398
        %v2417 = vsub.f32 %v2368, %v2398
        %v2418 = vsub.f32 %v2370, %v2401
        %v2419 = vsub.f32 %v2372, %v2401
        %v2420 = vsub.f32 %v2376, %v2404
        %v2421 = vsub.f32 %v2378, %v2404
        %v2422 = vsub.f32 %v2380, %v2407
        %v2423 = vsub.f32 %v2382, %v2407
        %v2424 = vmul.f32 %v2408, 1.442695
        %v2425 = vpow.pop %v2424
        %v2426 = vmul.f32 %v2409, 1.442695
        %v2427 = vpow.pop %v2426
        %v2428 = vmul.f32 %v2410, 1.442695
        %v2429 = vpow.pop %v2428
        %v2430 = vmul.f32 %v2411, 1.442695
        %v2431 = vpow.pop %v2430
        %v2432 = vmul.f32 %v2412, 1.442695
        %v2433 = vpow.pop %v2432
        %v2434 = vmul.f32 %v2413, 1.442695
        %v2435 = vpow.pop %v2434
        %v2436 = vmul.f32 %v2414, 1.442695
        %v2437 = vpow.pop %v2436
        %v2438 = vmul.f32 %v2415, 1.442695
        %v2439 = vpow.pop %v2438
        %v2440 = vmul.f32 %v2416, 1.442695
        %v2441 = vpow.pop %v2440
        %v2442 = vmul.f32 %v2417, 1.442695
        %v2443 = vpow.pop %v2442
        %v2444 = vmul.f32 %v2418, 1.442695
        %v2445 = vpow.pop %v2444
        %v2446 = vmul.f32 %v2419, 1.442695
        %v2447 = vpow.pop %v2446
        %v2448 = vmul.f32 %v2420, 1.442695
        %v2449 = vpow.pop %v2448
        %v2450 = vmul.f32 %v2421, 1.442695
        %v2451 = vpow.pop %v2450
        %v2452 = vmul.f32 %v2422, 1.442695
        %v2453 = vpow.pop %v2452
        %v2454 = vmul.f32 %v2423, 1.442695
        %v2455 = vpow.pop %v2454
        %v2456 = vadd.f32 %v2425, %v2427
        %2457 = vadd.xlane.f32.xlu0 %v2456
        %v2458 = vpop.xlane.xlu0 %2457
        %v2459 = vadd.f32 %v2429, %v2431
        %2460 = vadd.xlane.f32.xlu0 %v2459
        %v2461 = vpop.xlane.xlu0 %2460
        %v2462 = vadd.f32 %v2433, %v2435
        %2463 = vadd.xlane.f32.xlu0 %v2462
        %v2464 = vpop.xlane.xlu0 %2463
        %v2465 = vadd.f32 %v2437, %v2439
        %2466 = vadd.xlane.f32.xlu0 %v2465
        %v2467 = vpop.xlane.xlu0 %2466
        %v2468 = vadd.f32 %v2441, %v2443
        %2469 = vadd.xlane.f32.xlu0 %v2468
        %v2470 = vpop.xlane.xlu0 %2469
        %v2471 = vadd.f32 %v2445, %v2447
        %2472 = vadd.xlane.f32.xlu0 %v2471
        %v2473 = vpop.xlane.xlu0 %2472
        %v2474 = vadd.f32 %v2449, %v2451
        %2475 = vadd.xlane.f32.xlu0 %v2474
        %v2476 = vpop.xlane.xlu0 %2475
        %v2477 = vadd.f32 %v2453, %v2455
        %2478 = vadd.xlane.f32.xlu0 %v2477
        %v2479 = vpop.xlane.xlu0 %2478
        %v2480 = vrcp.pop %v2458
        %v2481 = vrcp.pop %v2461
        %v2482 = vrcp.pop %v2464
        %v2483 = vrcp.pop %v2467
        %v2484 = vrcp.pop %v2470
        %v2485 = vrcp.pop %v2473
        %v2486 = vrcp.pop %v2476
        %v2487 = vrcp.pop %v2479
        %v2488 = vmul.f32 %v2425, %v2480
        %v2489 = vmul.f32 %v2427, %v2480
        %v2490 = vmul.f32 %v2429, %v2481
        %v2491 = vmul.f32 %v2431, %v2481
        %v2492 = vmul.f32 %v2433, %v2482
        %v2493 = vmul.f32 %v2435, %v2482
        %v2494 = vmul.f32 %v2437, %v2483
        %v2495 = vmul.f32 %v2439, %v2483
        %v2496 = vmul.f32 %v2441, %v2484
        %v2497 = vmul.f32 %v2443, %v2484
        %v2498 = vmul.f32 %v2445, %v2485
        %v2499 = vmul.f32 %v2447, %v2485
        %v2500 = vmul.f32 %v2449, %v2486
        %v2501 = vmul.f32 %v2451, %v2486
        %v2502 = vmul.f32 %v2453, %v2487
        %v2503 = vmul.f32 %v2455, %v2487
        %v2504 = vpack.c.bf16 %v2490, %v2488
        %v2505 = vpack.c.bf16 %v2491, %v2489
        %v2506 = vpack.c.bf16 %v2494, %v2492
        %v2507 = vpack.c.bf16 %v2495, %v2493
        %v2508 = vpack.c.bf16 %v2498, %v2496
        %v2509 = vpack.c.bf16 %v2499, %v2497
        %v2510 = vpack.c.bf16 %v2502, %v2500
        %v2511 = vpack.c.bf16 %v2503, %v2501
        %2512 = vmatprep.subr.bf16.mxu0 0
        %2513 = vmatpush1.bf16.xpose.msra.mxu0 0
        %2514 = vmatprep.subr.bf16.mxu0 0
        %2515 = vmatpush1.bf16.xpose.msra.mxu0 0
        %2516 = vmatprep.subr.bf16.mxu0 0
        %2517 = vmatpush1.bf16.xpose.msra.mxu0 0
        %2518 = vmatprep.subr.bf16.mxu0 0
        %2519 = vmatpush1.bf16.xpose.msra.mxu0 0
        %2520 = vmatprep.subr.bf16.mxu0 %v2511
        %2521 = vmatpush1.bf16.xpose.msra.mxu0 %v2510
        %2522 = vmatprep.subr.bf16.mxu0 %v2509
        %2523 = vmatpush1.bf16.xpose.msra.mxu0 %v2508
        %2524 = vmatprep.subr.bf16.mxu0 %v2507
        %2525 = vmatpush1.bf16.xpose.msra.mxu0 %v2506
        %2526 = vmatprep.subr.bf16.mxu0 %v2505
        %2527 = vmatpush1.bf16.xpose.msra.mxu0 %v2504
        %2528 = vmatprep.subr.bf16.mxu0 0
        %2529 = vmatpush2.bf16.xpose.msra.mxu0 0
        %2530 = vmatprep.subr.bf16.mxu0 0
        %2531 = vmatpush2.bf16.xpose.msra.mxu0 0
        %2532 = vmatprep.subr.bf16.mxu0 0
        %2533 = vmatpush2.bf16.xpose.msra.mxu0 0
        %2534 = vmatprep.subr.bf16.mxu0 0
        %2535 = vmatpush2.bf16.xpose.msra.mxu0 0
        %2536 = vmatprep.subr.bf16.mxu0 0
        %2537 = vmatpush2.bf16.xpose.msra.mxu0 0
        %2538 = vmatprep.subr.bf16.mxu0 0
        %2539 = vmatpush2.bf16.xpose.msra.mxu0 0
        %2540 = vmatprep.subr.bf16.mxu0 0
        %2541 = vmatpush2.bf16.xpose.msra.mxu0 0
        %2542 = vmatprep.subr.bf16.mxu0 0
        %2543 = vmatpush2.bf16.xpose.msra.mxu0 0
        %2544 = vmatprep.mubr.bf16.mxu0 %v995
        %2545 = vmatmul.mubr.bf16.gmra.mxu0 %v994
        %v2546 = vpop.f32.mrf.mxu0
        %v2547 = vadd.f32 0.0, %v2546
        %v2548 = vpop.f32.mrf.mxu0
        %v2549 = vpop.f32.mrf.mxu0
        %v2550 = vpop.f32.mrf.mxu0
        %2551 = vdwg.mxu0
        %s2552 = scalar_lea.vmem %s10, 128
        %v2553 = vld [vmem:[%s2552] sm:$0xff]
        %v2554 = vld [vmem:[%s2552 + $0x8] sm:$0xff]
        %v2555 = vld [vmem:[%s2552 + $0x10] sm:$0xff]
        %v2556 = vld [vmem:[%s2552 + $0x18] sm:$0xff]
        %v2557 = vld [vmem:[%s2552 + $0x20] sm:$0xff]
        %v2558 = vld [vmem:[%s2552 + $0x28] sm:$0xff]
        %v2559 = vld [vmem:[%s2552 + $0x30] sm:$0xff]
        %v2560 = vld [vmem:[%s2552 + $0x38] sm:$0xff]
        %v2561 = vunpack.c.l.bf16 %v2553
        %v2562 = vunpack.c.h.bf16 %v2553
        %v2563 = vunpack.c.l.bf16 %v2554
        %v2564 = vunpack.c.h.bf16 %v2554
        %v2565 = vunpack.c.l.bf16 %v2555
        %v2566 = vunpack.c.h.bf16 %v2555
        %v2567 = vunpack.c.l.bf16 %v2556
        %v2568 = vunpack.c.h.bf16 %v2556
        %v2569 = vunpack.c.l.bf16 %v2557
        %v2570 = vunpack.c.h.bf16 %v2557
        %v2571 = vunpack.c.l.bf16 %v2558
        %v2572 = vunpack.c.h.bf16 %v2558
        %v2573 = vunpack.c.l.bf16 %v2559
        %v2574 = vunpack.c.h.bf16 %v2559
        %v2575 = vunpack.c.l.bf16 %v2560
        %v2576 = vunpack.c.h.bf16 %v2560
        %v2578 = vsel %vm625, %v986, 0
        %v2581 = vsel %vm625, %v987, 0
        %2583 = vmatprep.subr.bf16.mxu0 0
        %2584 = vmatpush1.bf16.msra.mxu0 0
        %2585 = vmatprep.subr.bf16.mxu0 0
        %2586 = vmatpush1.bf16.msra.mxu0 0
        %2587 = vmatprep.subr.bf16.mxu0 0
        %2588 = vmatpush1.bf16.msra.mxu0 0
        %2589 = vmatprep.subr.bf16.mxu0 0
        %2590 = vmatpush1.bf16.msra.mxu0 0
        %2591 = vmatprep.subr.bf16.mxu0 0
        %2592 = vmatpush1.bf16.msra.mxu0 0
        %2593 = vmatprep.subr.bf16.mxu0 0
        %2594 = vmatpush1.bf16.msra.mxu0 0
        %2595 = vmatprep.subr.bf16.mxu0 0
        %2596 = vmatpush1.bf16.msra.mxu0 0
        %2597 = vmatprep.subr.bf16.mxu0 %v2581
        %2598 = vmatpush1.bf16.msra.mxu0 %v2578
        %2599 = vmatprep.subr.bf16.mxu0 0
        %2600 = vmatpush2.bf16.msra.mxu0 0
        %2601 = vmatprep.subr.bf16.mxu0 0
        %2602 = vmatpush2.bf16.msra.mxu0 0
        %2603 = vmatprep.subr.bf16.mxu0 0
        %2604 = vmatpush2.bf16.msra.mxu0 0
        %2605 = vmatprep.subr.bf16.mxu0 0
        %2606 = vmatpush2.bf16.msra.mxu0 0
        %2607 = vmatprep.subr.bf16.mxu0 0
        %2608 = vmatpush2.bf16.msra.mxu0 0
        %2609 = vmatprep.subr.bf16.mxu0 0
        %2610 = vmatpush2.bf16.msra.mxu0 0
        %2611 = vmatprep.subr.bf16.mxu0 0
        %2612 = vmatpush2.bf16.msra.mxu0 0
        %2613 = vmatprep.subr.bf16.mxu0 0
        %2614 = vmatpush2.bf16.msra.mxu0 0
        %2615 = vmatprep.mubr.bf16.mxu0 0
        %2616 = vmatmul.mubr.bf16.gmra.mxu0 %v2294
        %v2617 = vpop.f32.mrf.mxu0
        %v2618 = vadd.f32 %v2561, %v2617
        %v2619 = vpop.f32.mrf.mxu0
        %v2620 = vadd.f32 %v2562, %v2619
        %v2621 = vpop.f32.mrf.mxu0
        %v2622 = vadd.f32 %v2563, %v2621
        %v2623 = vpop.f32.mrf.mxu0
        %v2624 = vadd.f32 %v2564, %v2623
        %2625 = vmatprep.mubr.bf16.mxu0 0
        %2626 = vmatmul.mubr.bf16.gmra.mxu0 %v2297
        %v2627 = vpop.f32.mrf.mxu0
        %v2628 = vadd.f32 %v2565, %v2627
        %v2629 = vpop.f32.mrf.mxu0
        %v2630 = vadd.f32 %v2566, %v2629
        %v2631 = vpop.f32.mrf.mxu0
        %v2632 = vadd.f32 %v2567, %v2631
        %v2633 = vpop.f32.mrf.mxu0
        %v2634 = vadd.f32 %v2568, %v2633
        %2635 = vmatprep.mubr.bf16.mxu0 0
        %2636 = vmatmul.mubr.bf16.gmra.mxu0 %v2300
        %v2637 = vpop.f32.mrf.mxu0
        %v2638 = vadd.f32 %v2569, %v2637
        %v2639 = vpop.f32.mrf.mxu0
        %v2640 = vadd.f32 %v2570, %v2639
        %v2641 = vpop.f32.mrf.mxu0
        %v2642 = vadd.f32 %v2571, %v2641
        %v2643 = vpop.f32.mrf.mxu0
        %v2644 = vadd.f32 %v2572, %v2643
        %2645 = vmatprep.mubr.bf16.mxu0 0
        %2646 = vmatmul.mubr.bf16.gmra.mxu0 %v2303
        %v2647 = vpop.f32.mrf.mxu0
        %v2648 = vadd.f32 %v2573, %v2647
        %v2649 = vpop.f32.mrf.mxu0
        %v2650 = vadd.f32 %v2574, %v2649
        %v2651 = vpop.f32.mrf.mxu0
        %v2652 = vadd.f32 %v2575, %v2651
        %v2653 = vpop.f32.mrf.mxu0
        %v2654 = vadd.f32 %v2576, %v2653
        %2655 = vdwg.mxu0
        %v2656 = vmax.f32 %v2618, %v2628
        %v2657 = vmax.f32 %v2622, %v2632
        %v2658 = vmax.f32 %v2656, %v2638
        %v2659 = vmax.f32 %v2657, %v2642
        %v2660 = vmax.f32 %v2658, %v2648
        %v2661 = vmax.f32 %v2659, %v2652
        %v2662 = vmax.f32 %v2660, %v2661
        %v2663 = vrot.slane %v2662, 4
        %v2664 = vmax.f32 %v2662, %v2663
        %v2665 = vrot.slane %v2664, 2
        %v2666 = vmax.f32 %v2664, %v2665
        %v2667 = vrot.slane %v2666, 1
        %v2668 = vmax.f32 %v2666, %v2667
        %v2669 = vmax.f32 %v2620, %v2630
        %v2670 = vmax.f32 %v2624, %v2634
        %v2671 = vmax.f32 %v2669, %v2640
        %v2672 = vmax.f32 %v2670, %v2644
        %v2673 = vmax.f32 %v2671, %v2650
        %v2674 = vmax.f32 %v2672, %v2654
        %v2675 = vmax.f32 %v2673, %v2674
        %v2676 = vrot.slane %v2675, 4
        %v2677 = vmax.f32 %v2675, %v2676
        %v2678 = vrot.slane %v2677, 2
        %v2679 = vmax.f32 %v2677, %v2678
        %v2680 = vrot.slane %v2679, 1
        %v2681 = vmax.f32 %v2679, %v2680
        %v2682 = vsub.f32 %v2618, %v2668
        %v2683 = vsub.f32 %v2620, %v2681
        %v2684 = vsub.f32 %v2622, %v2668
        %v2685 = vsub.f32 %v2624, %v2681
        %v2686 = vsub.f32 %v2628, %v2668
        %v2687 = vsub.f32 %v2630, %v2681
        %v2688 = vsub.f32 %v2632, %v2668
        %v2689 = vsub.f32 %v2634, %v2681
        %v2690 = vsub.f32 %v2638, %v2668
        %v2691 = vsub.f32 %v2640, %v2681
        %v2692 = vsub.f32 %v2642, %v2668
        %v2693 = vsub.f32 %v2644, %v2681
        %v2694 = vsub.f32 %v2648, %v2668
        %v2695 = vsub.f32 %v2650, %v2681
        %v2696 = vsub.f32 %v2652, %v2668
        %v2697 = vsub.f32 %v2654, %v2681
        %v2698 = vmul.f32 %v2682, 1.442695
        %v2699 = vpow.pop %v2698
        %v2700 = vmul.f32 %v2683, 1.442695
        %v2701 = vpow.pop %v2700
        %v2702 = vmul.f32 %v2684, 1.442695
        %v2703 = vpow.pop %v2702
        %v2704 = vmul.f32 %v2685, 1.442695
        %v2705 = vpow.pop %v2704
        %v2706 = vmul.f32 %v2686, 1.442695
        %v2707 = vpow.pop %v2706
        %v2708 = vmul.f32 %v2687, 1.442695
        %v2709 = vpow.pop %v2708
        %v2710 = vmul.f32 %v2688, 1.442695
        %v2711 = vpow.pop %v2710
        %v2712 = vmul.f32 %v2689, 1.442695
        %v2713 = vpow.pop %v2712
        %v2714 = vmul.f32 %v2690, 1.442695
        %v2715 = vpow.pop %v2714
        %v2716 = vmul.f32 %v2691, 1.442695
        %v2717 = vpow.pop %v2716
        %v2718 = vmul.f32 %v2692, 1.442695
        %v2719 = vpow.pop %v2718
        %v2720 = vmul.f32 %v2693, 1.442695
        %v2721 = vpow.pop %v2720
        %v2722 = vmul.f32 %v2694, 1.442695
        %v2723 = vpow.pop %v2722
        %v2724 = vmul.f32 %v2695, 1.442695
        %v2725 = vpow.pop %v2724
        %v2726 = vmul.f32 %v2696, 1.442695
        %v2727 = vpow.pop %v2726
        %v2728 = vmul.f32 %v2697, 1.442695
        %v2729 = vpow.pop %v2728
        %v2730 = vadd.f32 %v2699, %v2703
        %v2731 = vadd.f32 %v2730, %v2707
        %v2732 = vadd.f32 %v2731, %v2711
        %v2733 = vadd.f32 %v2732, %v2715
        %v2734 = vadd.f32 %v2733, %v2719
        %v2735 = vadd.f32 %v2734, %v2723
        %v2736 = vadd.f32 %v2735, %v2727
        %v2737 = vrot.slane %v2736, 4
        %v2738 = vadd.f32 %v2736, %v2737
        %v2739 = vrot.slane %v2738, 2
        %v2740 = vadd.f32 %v2738, %v2739
        %v2741 = vrot.slane %v2740, 1
        %v2742 = vadd.f32 %v2740, %v2741
        %v2743 = vadd.f32 %v2701, %v2705
        %v2744 = vadd.f32 %v2743, %v2709
        %v2745 = vadd.f32 %v2744, %v2713
        %v2746 = vadd.f32 %v2745, %v2717
        %v2747 = vadd.f32 %v2746, %v2721
        %v2748 = vadd.f32 %v2747, %v2725
        %v2749 = vadd.f32 %v2748, %v2729
        %v2750 = vrot.slane %v2749, 4
        %v2751 = vadd.f32 %v2749, %v2750
        %v2752 = vrot.slane %v2751, 2
        %v2753 = vadd.f32 %v2751, %v2752
        %v2754 = vrot.slane %v2753, 1
        %v2755 = vadd.f32 %v2753, %v2754
        %v2756 = vrcp.pop %v2742
        %v2757 = vrcp.pop %v2755
        %v2758 = vmul.f32 %v2699, %v2756
        %v2759 = vmul.f32 %v2701, %v2757
        %v2760 = vmul.f32 %v2703, %v2756
        %v2761 = vmul.f32 %v2705, %v2757
        %v2762 = vmul.f32 %v2707, %v2756
        %v2763 = vmul.f32 %v2709, %v2757
        %v2764 = vmul.f32 %v2711, %v2756
        %v2765 = vmul.f32 %v2713, %v2757
        %v2766 = vmul.f32 %v2715, %v2756
        %v2767 = vmul.f32 %v2717, %v2757
        %v2768 = vmul.f32 %v2719, %v2756
        %v2769 = vmul.f32 %v2721, %v2757
        %v2770 = vmul.f32 %v2723, %v2756
        %v2771 = vmul.f32 %v2725, %v2757
        %v2772 = vmul.f32 %v2727, %v2756
        %v2773 = vmul.f32 %v2729, %v2757
        %v2774 = vpack.c.bf16 %v2547, %v2547
        %v2775 = vpack.c.bf16 %v2760, %v2758
        %v2776 = vpack.c.bf16 %v2761, %v2759
        %v2777 = vpack.c.bf16 %v2764, %v2762
        %v2778 = vpack.c.bf16 %v2765, %v2763
        %v2779 = vpack.c.bf16 %v2768, %v2766
        %v2780 = vpack.c.bf16 %v2769, %v2767
        %v2781 = vpack.c.bf16 %v2772, %v2770
        %v2782 = vpack.c.bf16 %v2773, %v2771
        %v2784 = vsel %vm1626, %v2774, 0
        %2786 = vmatprep.subr.bf16.mxu0 0
        %2787 = vmatpush1.bf16.msra.mxu0 0
        %2788 = vmatprep.subr.bf16.mxu0 0
        %2789 = vmatpush1.bf16.msra.mxu0 0
        %2790 = vmatprep.subr.bf16.mxu0 0
        %2791 = vmatpush1.bf16.msra.mxu0 0
        %2792 = vmatprep.subr.bf16.mxu0 0
        %2793 = vmatpush1.bf16.msra.mxu0 0
        %2794 = vmatprep.subr.bf16.mxu0 %v2782
        %2795 = vmatpush1.bf16.msra.mxu0 %v2781
        %2796 = vmatprep.subr.bf16.mxu0 %v2780
        %2797 = vmatpush1.bf16.msra.mxu0 %v2779
        %2798 = vmatprep.subr.bf16.mxu0 %v2778
        %2799 = vmatpush1.bf16.msra.mxu0 %v2777
        %2800 = vmatprep.subr.bf16.mxu0 %v2776
        %2801 = vmatpush1.bf16.msra.mxu0 %v2775
        %2802 = vmatprep.subr.bf16.mxu0 0
        %2803 = vmatpush2.bf16.msra.mxu0 0
        %2804 = vmatprep.subr.bf16.mxu0 0
        %2805 = vmatpush2.bf16.msra.mxu0 0
        %2806 = vmatprep.subr.bf16.mxu0 0
        %2807 = vmatpush2.bf16.msra.mxu0 0
        %2808 = vmatprep.subr.bf16.mxu0 0
        %2809 = vmatpush2.bf16.msra.mxu0 0
        %2810 = vmatprep.subr.bf16.mxu0 0
        %2811 = vmatpush2.bf16.msra.mxu0 0
        %2812 = vmatprep.subr.bf16.mxu0 0
        %2813 = vmatpush2.bf16.msra.mxu0 0
        %2814 = vmatprep.subr.bf16.mxu0 0
        %2815 = vmatpush2.bf16.msra.mxu0 0
        %2816 = vmatprep.subr.bf16.mxu0 0
        %2817 = vmatpush2.bf16.msra.mxu0 0
        %2818 = vmatprep.mubr.bf16.mxu0 0
        %2819 = vmatmul.mubr.bf16.gmra.mxu0 %v2784
        %v2820 = vpop.f32.mrf.mxu0
        %v2821 = vadd.f32 0.0, %v2820
        %v2822 = vpop.f32.mrf.mxu0
        %v2823 = vadd.f32 0.0, %v2822
        %v2824 = vpop.f32.mrf.mxu0
        %v2825 = vpop.f32.mrf.mxu0
        %2826 = vdwg.mxu0
        %2827 = vst [vmem:[#allocation2 + $0x20] sm:$0xff] %v2821
        %2828 = vst [vmem:[#allocation2 + $0x28] sm:$0xff] %v2823
        %s2829 = scalar_lea.vmem %s9, 192
        %v2830 = vld [vmem:[%s2829] sm:$0xff]
        %v2831 = vld [vmem:[%s2829 + $0x8] sm:$0xff]
        %v2832 = vld [vmem:[%s2829 + $0x10] sm:$0xff]
        %v2833 = vld [vmem:[%s2829 + $0x18] sm:$0xff]
        %v2834 = vld [vmem:[%s2829 + $0x20] sm:$0xff]
        %v2835 = vld [vmem:[%s2829 + $0x28] sm:$0xff]
        %v2836 = vld [vmem:[%s2829 + $0x30] sm:$0xff]
        %v2837 = vld [vmem:[%s2829 + $0x38] sm:$0xff]
        %v2838 = vunpack.c.l.bf16 %v2830
        %v2839 = vunpack.c.h.bf16 %v2830
        %v2840 = vunpack.c.l.bf16 %v2831
        %v2841 = vunpack.c.h.bf16 %v2831
        %v2842 = vunpack.c.l.bf16 %v2832
        %v2843 = vunpack.c.h.bf16 %v2832
        %v2844 = vunpack.c.l.bf16 %v2833
        %v2845 = vunpack.c.h.bf16 %v2833
        %v2846 = vunpack.c.l.bf16 %v2834
        %v2847 = vunpack.c.h.bf16 %v2834
        %v2848 = vunpack.c.l.bf16 %v2835
        %v2849 = vunpack.c.h.bf16 %v2835
        %v2850 = vunpack.c.l.bf16 %v2836
        %v2851 = vunpack.c.h.bf16 %v2836
        %v2852 = vunpack.c.l.bf16 %v2837
        %v2853 = vunpack.c.h.bf16 %v2837
        %2854 = vrot.lane.b32.xlu0 %v1109, 104
        %v2855 = vpop.permute.xlu0 %2854
        %2856 = vrot.lane.b32.xlu0 %v1110, 104
        %v2857 = vpop.permute.xlu0 %2856
        %2858 = vrot.lane.b32.xlu0 %v1111, 104
        %v2859 = vpop.permute.xlu0 %2858
        %2860 = vrot.lane.b32.xlu0 %v1112, 104
        %v2861 = vpop.permute.xlu0 %2860
        %v2864 = vrot.slane %v990, 4
        %v2865 = vrot.slane %v991, 4
        %v2867 = vsel %vm621, %v2855, 0
        %v2870 = vsel %vm621, %v2857, 0
        %v2873 = vsel %vm621, %v2859, 0
        %v2876 = vsel %vm621, %v2861, 0
        %v2879 = vsel %vm625, %v2864, 0
        %v2882 = vsel %vm625, %v2865, 0
        %2884 = vmatprep.subr.bf16.mxu0 0
        %2885 = vmatpush1.bf16.msra.mxu0 0
        %2886 = vmatprep.subr.bf16.mxu0 0
        %2887 = vmatpush1.bf16.msra.mxu0 0
        %2888 = vmatprep.subr.bf16.mxu0 0
        %2889 = vmatpush1.bf16.msra.mxu0 0
        %2890 = vmatprep.subr.bf16.mxu0 0
        %2891 = vmatpush1.bf16.msra.mxu0 0
        %2892 = vmatprep.subr.bf16.mxu0 0
        %2893 = vmatpush1.bf16.msra.mxu0 0
        %2894 = vmatprep.subr.bf16.mxu0 0
        %2895 = vmatpush1.bf16.msra.mxu0 0
        %2896 = vmatprep.subr.bf16.mxu0 0
        %2897 = vmatpush1.bf16.msra.mxu0 0
        %2898 = vmatprep.subr.bf16.mxu0 %v2882
        %2899 = vmatpush1.bf16.msra.mxu0 %v2879
        %2900 = vmatprep.subr.bf16.mxu0 0
        %2901 = vmatpush2.bf16.msra.mxu0 0
        %2902 = vmatprep.subr.bf16.mxu0 0
        %2903 = vmatpush2.bf16.msra.mxu0 0
        %2904 = vmatprep.subr.bf16.mxu0 0
        %2905 = vmatpush2.bf16.msra.mxu0 0
        %2906 = vmatprep.subr.bf16.mxu0 0
        %2907 = vmatpush2.bf16.msra.mxu0 0
        %2908 = vmatprep.subr.bf16.mxu0 0
        %2909 = vmatpush2.bf16.msra.mxu0 0
        %2910 = vmatprep.subr.bf16.mxu0 0
        %2911 = vmatpush2.bf16.msra.mxu0 0
        %2912 = vmatprep.subr.bf16.mxu0 0
        %2913 = vmatpush2.bf16.msra.mxu0 0
        %2914 = vmatprep.subr.bf16.mxu0 0
        %2915 = vmatpush2.bf16.msra.mxu0 0
        %2916 = vmatprep.mubr.bf16.mxu0 0
        %2917 = vmatmul.mubr.bf16.gmra.mxu0 %v2867
        %v2918 = vpop.f32.mrf.mxu0
        %v2919 = vadd.f32 %v2838, %v2918
        %v2920 = vpop.f32.mrf.mxu0
        %v2921 = vadd.f32 %v2839, %v2920
        %v2922 = vpop.f32.mrf.mxu0
        %v2923 = vadd.f32 %v2840, %v2922
        %v2924 = vpop.f32.mrf.mxu0
        %v2925 = vadd.f32 %v2841, %v2924
        %2926 = vmatprep.mubr.bf16.mxu0 0
        %2927 = vmatmul.mubr.bf16.gmra.mxu0 %v2870
        %v2928 = vpop.f32.mrf.mxu0
        %v2929 = vadd.f32 %v2842, %v2928
        %v2930 = vpop.f32.mrf.mxu0
        %v2931 = vadd.f32 %v2843, %v2930
        %v2932 = vpop.f32.mrf.mxu0
        %v2933 = vadd.f32 %v2844, %v2932
        %v2934 = vpop.f32.mrf.mxu0
        %v2935 = vadd.f32 %v2845, %v2934
        %2936 = vmatprep.mubr.bf16.mxu0 0
        %2937 = vmatmul.mubr.bf16.gmra.mxu0 %v2873
        %v2938 = vpop.f32.mrf.mxu0
        %v2939 = vadd.f32 %v2846, %v2938
        %v2940 = vpop.f32.mrf.mxu0
        %v2941 = vadd.f32 %v2847, %v2940
        %v2942 = vpop.f32.mrf.mxu0
        %v2943 = vadd.f32 %v2848, %v2942
        %v2944 = vpop.f32.mrf.mxu0
        %v2945 = vadd.f32 %v2849, %v2944
        %2946 = vmatprep.mubr.bf16.mxu0 0
        %2947 = vmatmul.mubr.bf16.gmra.mxu0 %v2876
        %v2948 = vpop.f32.mrf.mxu0
        %v2949 = vadd.f32 %v2850, %v2948
        %v2950 = vpop.f32.mrf.mxu0
        %v2951 = vadd.f32 %v2851, %v2950
        %v2952 = vpop.f32.mrf.mxu0
        %v2953 = vadd.f32 %v2852, %v2952
        %v2954 = vpop.f32.mrf.mxu0
        %v2955 = vadd.f32 %v2853, %v2954
        %2956 = vdwg.mxu0
        %v2957 = vmax.f32 %v2919, %v2921
        %2958 = vmax.xlane.f32.xlu0 %v2957
        %v2959 = vpop.xlane.xlu0 %2958
        %v2960 = vmax.f32 %v2923, %v2925
        %2961 = vmax.xlane.f32.xlu0 %v2960
        %v2962 = vpop.xlane.xlu0 %2961
        %v2963 = vmax.f32 %v2929, %v2931
        %2964 = vmax.xlane.f32.xlu0 %v2963
        %v2965 = vpop.xlane.xlu0 %2964
        %v2966 = vmax.f32 %v2933, %v2935
        %2967 = vmax.xlane.f32.xlu0 %v2966
        %v2968 = vpop.xlane.xlu0 %2967
        %v2969 = vmax.f32 %v2939, %v2941
        %2970 = vmax.xlane.f32.xlu0 %v2969
        %v2971 = vpop.xlane.xlu0 %2970
        %v2972 = vmax.f32 %v2943, %v2945
        %2973 = vmax.xlane.f32.xlu0 %v2972
        %v2974 = vpop.xlane.xlu0 %2973
        %v2975 = vmax.f32 %v2949, %v2951
        %2976 = vmax.xlane.f32.xlu0 %v2975
        %v2977 = vpop.xlane.xlu0 %2976
        %v2978 = vmax.f32 %v2953, %v2955
        %2979 = vmax.xlane.f32.xlu0 %v2978
        %v2980 = vpop.xlane.xlu0 %2979
        %v2981 = vsub.f32 %v2919, %v2959
        %v2982 = vsub.f32 %v2921, %v2959
        %v2983 = vsub.f32 %v2923, %v2962
        %v2984 = vsub.f32 %v2925, %v2962
        %v2985 = vsub.f32 %v2929, %v2965
        %v2986 = vsub.f32 %v2931, %v2965
        %v2987 = vsub.f32 %v2933, %v2968
        %v2988 = vsub.f32 %v2935, %v2968
        %v2989 = vsub.f32 %v2939, %v2971
        %v2990 = vsub.f32 %v2941, %v2971
        %v2991 = vsub.f32 %v2943, %v2974
        %v2992 = vsub.f32 %v2945, %v2974
        %v2993 = vsub.f32 %v2949, %v2977
        %v2994 = vsub.f32 %v2951, %v2977
        %v2995 = vsub.f32 %v2953, %v2980
        %v2996 = vsub.f32 %v2955, %v2980
        %v2997 = vmul.f32 %v2981, 1.442695
        %v2998 = vpow.pop %v2997
        %v2999 = vmul.f32 %v2982, 1.442695
        %v3000 = vpow.pop %v2999
        %v3001 = vmul.f32 %v2983, 1.442695
        %v3002 = vpow.pop %v3001
        %v3003 = vmul.f32 %v2984, 1.442695
        %v3004 = vpow.pop %v3003
        %v3005 = vmul.f32 %v2985, 1.442695
        %v3006 = vpow.pop %v3005
        %v3007 = vmul.f32 %v2986, 1.442695
        %v3008 = vpow.pop %v3007
        %v3009 = vmul.f32 %v2987, 1.442695
        %v3010 = vpow.pop %v3009
        %v3011 = vmul.f32 %v2988, 1.442695
        %v3012 = vpow.pop %v3011
        %v3013 = vmul.f32 %v2989, 1.442695
        %v3014 = vpow.pop %v3013
        %v3015 = vmul.f32 %v2990, 1.442695
        %v3016 = vpow.pop %v3015
        %v3017 = vmul.f32 %v2991, 1.442695
        %v3018 = vpow.pop %v3017
        %v3019 = vmul.f32 %v2992, 1.442695
        %v3020 = vpow.pop %v3019
        %v3021 = vmul.f32 %v2993, 1.442695
        %v3022 = vpow.pop %v3021
        %v3023 = vmul.f32 %v2994, 1.442695
        %v3024 = vpow.pop %v3023
        %v3025 = vmul.f32 %v2995, 1.442695
        %v3026 = vpow.pop %v3025
        %v3027 = vmul.f32 %v2996, 1.442695
        %v3028 = vpow.pop %v3027
        %v3029 = vadd.f32 %v2998, %v3000
        %3030 = vadd.xlane.f32.xlu0 %v3029
        %v3031 = vpop.xlane.xlu0 %3030
        %v3032 = vadd.f32 %v3002, %v3004
        %3033 = vadd.xlane.f32.xlu0 %v3032
        %v3034 = vpop.xlane.xlu0 %3033
        %v3035 = vadd.f32 %v3006, %v3008
        %3036 = vadd.xlane.f32.xlu0 %v3035
        %v3037 = vpop.xlane.xlu0 %3036
        %v3038 = vadd.f32 %v3010, %v3012
        %3039 = vadd.xlane.f32.xlu0 %v3038
        %v3040 = vpop.xlane.xlu0 %3039
        %v3041 = vadd.f32 %v3014, %v3016
        %3042 = vadd.xlane.f32.xlu0 %v3041
        %v3043 = vpop.xlane.xlu0 %3042
        %v3044 = vadd.f32 %v3018, %v3020
        %3045 = vadd.xlane.f32.xlu0 %v3044
        %v3046 = vpop.xlane.xlu0 %3045
        %v3047 = vadd.f32 %v3022, %v3024
        %3048 = vadd.xlane.f32.xlu0 %v3047
        %v3049 = vpop.xlane.xlu0 %3048
        %v3050 = vadd.f32 %v3026, %v3028
        %3051 = vadd.xlane.f32.xlu0 %v3050
        %v3052 = vpop.xlane.xlu0 %3051
        %v3053 = vrcp.pop %v3031
        %v3054 = vrcp.pop %v3034
        %v3055 = vrcp.pop %v3037
        %v3056 = vrcp.pop %v3040
        %v3057 = vrcp.pop %v3043
        %v3058 = vrcp.pop %v3046
        %v3059 = vrcp.pop %v3049
        %v3060 = vrcp.pop %v3052
        %v3061 = vmul.f32 %v2998, %v3053
        %v3062 = vmul.f32 %v3000, %v3053
        %v3063 = vmul.f32 %v3002, %v3054
        %v3064 = vmul.f32 %v3004, %v3054
        %v3065 = vmul.f32 %v3006, %v3055
        %v3066 = vmul.f32 %v3008, %v3055
        %v3067 = vmul.f32 %v3010, %v3056
        %v3068 = vmul.f32 %v3012, %v3056
        %v3069 = vmul.f32 %v3014, %v3057
        %v3070 = vmul.f32 %v3016, %v3057
        %v3071 = vmul.f32 %v3018, %v3058
        %v3072 = vmul.f32 %v3020, %v3058
        %v3073 = vmul.f32 %v3022, %v3059
        %v3074 = vmul.f32 %v3024, %v3059
        %v3075 = vmul.f32 %v3026, %v3060
        %v3076 = vmul.f32 %v3028, %v3060
        %v3077 = vpack.c.bf16 %v3063, %v3061
        %v3078 = vpack.c.bf16 %v3064, %v3062
        %v3079 = vpack.c.bf16 %v3067, %v3065
        %v3080 = vpack.c.bf16 %v3068, %v3066
        %v3081 = vpack.c.bf16 %v3071, %v3069
        %v3082 = vpack.c.bf16 %v3072, %v3070
        %v3083 = vpack.c.bf16 %v3075, %v3073
        %v3084 = vpack.c.bf16 %v3076, %v3074
        %v3087 = vrot.slane %v994, 4
        %v3088 = vrot.slane %v995, 4
        %3091 = vmatprep.subr.bf16.mxu0 0
        %3092 = vmatpush1.bf16.xpose.msra.mxu0 0
        %3093 = vmatprep.subr.bf16.mxu0 0
        %3094 = vmatpush1.bf16.xpose.msra.mxu0 0
        %3095 = vmatprep.subr.bf16.mxu0 0
        %3096 = vmatpush1.bf16.xpose.msra.mxu0 0
        %3097 = vmatprep.subr.bf16.mxu0 0
        %3098 = vmatpush1.bf16.xpose.msra.mxu0 0
        %3099 = vmatprep.subr.bf16.mxu0 %v3084
        %3100 = vmatpush1.bf16.xpose.msra.mxu0 %v3083
        %3101 = vmatprep.subr.bf16.mxu0 %v3082
        %3102 = vmatpush1.bf16.xpose.msra.mxu0 %v3081
        %3103 = vmatprep.subr.bf16.mxu0 %v3080
        %3104 = vmatpush1.bf16.xpose.msra.mxu0 %v3079
        %3105 = vmatprep.subr.bf16.mxu0 %v3078
        %3106 = vmatpush1.bf16.xpose.msra.mxu0 %v3077
        %3107 = vmatprep.subr.bf16.mxu0 0
        %3108 = vmatpush2.bf16.xpose.msra.mxu0 0
        %3109 = vmatprep.subr.bf16.mxu0 0
        %3110 = vmatpush2.bf16.xpose.msra.mxu0 0
        %3111 = vmatprep.subr.bf16.mxu0 0
        %3112 = vmatpush2.bf16.xpose.msra.mxu0 0
        %3113 = vmatprep.subr.bf16.mxu0 0
        %3114 = vmatpush2.bf16.xpose.msra.mxu0 0
        %3115 = vmatprep.subr.bf16.mxu0 0
        %3116 = vmatpush2.bf16.xpose.msra.mxu0 0
        %3117 = vmatprep.subr.bf16.mxu0 0
        %3118 = vmatpush2.bf16.xpose.msra.mxu0 0
        %3119 = vmatprep.subr.bf16.mxu0 0
        %3120 = vmatpush2.bf16.xpose.msra.mxu0 0
        %3121 = vmatprep.subr.bf16.mxu0 0
        %3122 = vmatpush2.bf16.xpose.msra.mxu0 0
        %3123 = vmatprep.mubr.bf16.mxu0 %v3088
        %3124 = vmatmul.mubr.bf16.gmra.mxu0 %v3087
        %v3125 = vpop.f32.mrf.mxu0
        %v3126 = vadd.f32 0.0, %v3125
        %v3127 = vpop.f32.mrf.mxu0
        %v3128 = vpop.f32.mrf.mxu0
        %v3129 = vpop.f32.mrf.mxu0
        %3130 = vdwg.mxu0
        %s3131 = scalar_lea.vmem %s10, 192
        %v3132 = vld [vmem:[%s3131] sm:$0xff]
        %v3133 = vld [vmem:[%s3131 + $0x8] sm:$0xff]
        %v3134 = vld [vmem:[%s3131 + $0x10] sm:$0xff]
        %v3135 = vld [vmem:[%s3131 + $0x18] sm:$0xff]
        %v3136 = vld [vmem:[%s3131 + $0x20] sm:$0xff]
        %v3137 = vld [vmem:[%s3131 + $0x28] sm:$0xff]
        %v3138 = vld [vmem:[%s3131 + $0x30] sm:$0xff]
        %v3139 = vld [vmem:[%s3131 + $0x38] sm:$0xff]
        %v3140 = vunpack.c.l.bf16 %v3132
        %v3141 = vunpack.c.h.bf16 %v3132
        %v3142 = vunpack.c.l.bf16 %v3133
        %v3143 = vunpack.c.h.bf16 %v3133
        %v3144 = vunpack.c.l.bf16 %v3134
        %v3145 = vunpack.c.h.bf16 %v3134
        %v3146 = vunpack.c.l.bf16 %v3135
        %v3147 = vunpack.c.h.bf16 %v3135
        %v3148 = vunpack.c.l.bf16 %v3136
        %v3149 = vunpack.c.h.bf16 %v3136
        %v3150 = vunpack.c.l.bf16 %v3137
        %v3151 = vunpack.c.h.bf16 %v3137
        %v3152 = vunpack.c.l.bf16 %v3138
        %v3153 = vunpack.c.h.bf16 %v3138
        %v3154 = vunpack.c.l.bf16 %v3139
        %v3155 = vunpack.c.h.bf16 %v3139
        %v3158 = vrot.slane %v986, 4
        %v3159 = vrot.slane %v987, 4
        %v3161 = vsel %vm625, %v3158, 0
        %v3164 = vsel %vm625, %v3159, 0
        %3166 = vmatprep.subr.bf16.mxu0 0
        %3167 = vmatpush1.bf16.msra.mxu0 0
        %3168 = vmatprep.subr.bf16.mxu0 0
        %3169 = vmatpush1.bf16.msra.mxu0 0
        %3170 = vmatprep.subr.bf16.mxu0 0
        %3171 = vmatpush1.bf16.msra.mxu0 0
        %3172 = vmatprep.subr.bf16.mxu0 0
        %3173 = vmatpush1.bf16.msra.mxu0 0
        %3174 = vmatprep.subr.bf16.mxu0 0
        %3175 = vmatpush1.bf16.msra.mxu0 0
        %3176 = vmatprep.subr.bf16.mxu0 0
        %3177 = vmatpush1.bf16.msra.mxu0 0
        %3178 = vmatprep.subr.bf16.mxu0 0
        %3179 = vmatpush1.bf16.msra.mxu0 0
        %3180 = vmatprep.subr.bf16.mxu0 %v3164
        %3181 = vmatpush1.bf16.msra.mxu0 %v3161
        %3182 = vmatprep.subr.bf16.mxu0 0
        %3183 = vmatpush2.bf16.msra.mxu0 0
        %3184 = vmatprep.subr.bf16.mxu0 0
        %3185 = vmatpush2.bf16.msra.mxu0 0
        %3186 = vmatprep.subr.bf16.mxu0 0
        %3187 = vmatpush2.bf16.msra.mxu0 0
        %3188 = vmatprep.subr.bf16.mxu0 0
        %3189 = vmatpush2.bf16.msra.mxu0 0
        %3190 = vmatprep.subr.bf16.mxu0 0
        %3191 = vmatpush2.bf16.msra.mxu0 0
        %3192 = vmatprep.subr.bf16.mxu0 0
        %3193 = vmatpush2.bf16.msra.mxu0 0
        %3194 = vmatprep.subr.bf16.mxu0 0
        %3195 = vmatpush2.bf16.msra.mxu0 0
        %3196 = vmatprep.subr.bf16.mxu0 0
        %3197 = vmatpush2.bf16.msra.mxu0 0
        %3198 = vmatprep.mubr.bf16.mxu0 0
        %3199 = vmatmul.mubr.bf16.gmra.mxu0 %v2867
        %v3200 = vpop.f32.mrf.mxu0
        %v3201 = vadd.f32 %v3140, %v3200
        %v3202 = vpop.f32.mrf.mxu0
        %v3203 = vadd.f32 %v3141, %v3202
        %v3204 = vpop.f32.mrf.mxu0
        %v3205 = vadd.f32 %v3142, %v3204
        %v3206 = vpop.f32.mrf.mxu0
        %v3207 = vadd.f32 %v3143, %v3206
        %3208 = vmatprep.mubr.bf16.mxu0 0
        %3209 = vmatmul.mubr.bf16.gmra.mxu0 %v2870
        %v3210 = vpop.f32.mrf.mxu0
        %v3211 = vadd.f32 %v3144, %v3210
        %v3212 = vpop.f32.mrf.mxu0
        %v3213 = vadd.f32 %v3145, %v3212
        %v3214 = vpop.f32.mrf.mxu0
        %v3215 = vadd.f32 %v3146, %v3214
        %v3216 = vpop.f32.mrf.mxu0
        %v3217 = vadd.f32 %v3147, %v3216
        %3218 = vmatprep.mubr.bf16.mxu0 0
        %3219 = vmatmul.mubr.bf16.gmra.mxu0 %v2873
        %v3220 = vpop.f32.mrf.mxu0
        %v3221 = vadd.f32 %v3148, %v3220
        %v3222 = vpop.f32.mrf.mxu0
        %v3223 = vadd.f32 %v3149, %v3222
        %v3224 = vpop.f32.mrf.mxu0
        %v3225 = vadd.f32 %v3150, %v3224
        %v3226 = vpop.f32.mrf.mxu0
        %v3227 = vadd.f32 %v3151, %v3226
        %3228 = vmatprep.mubr.bf16.mxu0 0
        %3229 = vmatmul.mubr.bf16.gmra.mxu0 %v2876
        %v3230 = vpop.f32.mrf.mxu0
        %v3231 = vadd.f32 %v3152, %v3230
        %v3232 = vpop.f32.mrf.mxu0
        %v3233 = vadd.f32 %v3153, %v3232
        %v3234 = vpop.f32.mrf.mxu0
        %v3235 = vadd.f32 %v3154, %v3234
        %v3236 = vpop.f32.mrf.mxu0
        %v3237 = vadd.f32 %v3155, %v3236
        %3238 = vdwg.mxu0
        %v3239 = vmax.f32 %v3201, %v3211
        %v3240 = vmax.f32 %v3205, %v3215
        %v3241 = vmax.f32 %v3239, %v3221
        %v3242 = vmax.f32 %v3240, %v3225
        %v3243 = vmax.f32 %v3241, %v3231
        %v3244 = vmax.f32 %v3242, %v3235
        %v3245 = vmax.f32 %v3243, %v3244
        %v3246 = vrot.slane %v3245, 4
        %v3247 = vmax.f32 %v3245, %v3246
        %v3248 = vrot.slane %v3247, 2
        %v3249 = vmax.f32 %v3247, %v3248
        %v3250 = vrot.slane %v3249, 1
        %v3251 = vmax.f32 %v3249, %v3250
        %v3252 = vmax.f32 %v3203, %v3213
        %v3253 = vmax.f32 %v3207, %v3217
        %v3254 = vmax.f32 %v3252, %v3223
        %v3255 = vmax.f32 %v3253, %v3227
        %v3256 = vmax.f32 %v3254, %v3233
        %v3257 = vmax.f32 %v3255, %v3237
        %v3258 = vmax.f32 %v3256, %v3257
        %v3259 = vrot.slane %v3258, 4
        %v3260 = vmax.f32 %v3258, %v3259
        %v3261 = vrot.slane %v3260, 2
        %v3262 = vmax.f32 %v3260, %v3261
        %v3263 = vrot.slane %v3262, 1
        %v3264 = vmax.f32 %v3262, %v3263
        %v3265 = vsub.f32 %v3201, %v3251
        %v3266 = vsub.f32 %v3203, %v3264
        %v3267 = vsub.f32 %v3205, %v3251
        %v3268 = vsub.f32 %v3207, %v3264
        %v3269 = vsub.f32 %v3211, %v3251
        %v3270 = vsub.f32 %v3213, %v3264
        %v3271 = vsub.f32 %v3215, %v3251
        %v3272 = vsub.f32 %v3217, %v3264
        %v3273 = vsub.f32 %v3221, %v3251
        %v3274 = vsub.f32 %v3223, %v3264
        %v3275 = vsub.f32 %v3225, %v3251
        %v3276 = vsub.f32 %v3227, %v3264
        %v3277 = vsub.f32 %v3231, %v3251
        %v3278 = vsub.f32 %v3233, %v3264
        %v3279 = vsub.f32 %v3235, %v3251
        %v3280 = vsub.f32 %v3237, %v3264
        %v3281 = vmul.f32 %v3265, 1.442695
        %v3282 = vpow.pop %v3281
        %v3283 = vmul.f32 %v3266, 1.442695
        %v3284 = vpow.pop %v3283
        %v3285 = vmul.f32 %v3267, 1.442695
        %v3286 = vpow.pop %v3285
        %v3287 = vmul.f32 %v3268, 1.442695
        %v3288 = vpow.pop %v3287
        %v3289 = vmul.f32 %v3269, 1.442695
        %v3290 = vpow.pop %v3289
        %v3291 = vmul.f32 %v3270, 1.442695
        %v3292 = vpow.pop %v3291
        %v3293 = vmul.f32 %v3271, 1.442695
        %v3294 = vpow.pop %v3293
        %v3295 = vmul.f32 %v3272, 1.442695
        %v3296 = vpow.pop %v3295
        %v3297 = vmul.f32 %v3273, 1.442695
        %v3298 = vpow.pop %v3297
        %v3299 = vmul.f32 %v3274, 1.442695
        %v3300 = vpow.pop %v3299
        %v3301 = vmul.f32 %v3275, 1.442695
        %v3302 = vpow.pop %v3301
        %v3303 = vmul.f32 %v3276, 1.442695
        %v3304 = vpow.pop %v3303
        %v3305 = vmul.f32 %v3277, 1.442695
        %v3306 = vpow.pop %v3305
        %v3307 = vmul.f32 %v3278, 1.442695
        %v3308 = vpow.pop %v3307
        %v3309 = vmul.f32 %v3279, 1.442695
        %v3310 = vpow.pop %v3309
        %v3311 = vmul.f32 %v3280, 1.442695
        %v3312 = vpow.pop %v3311
        %v3313 = vadd.f32 %v3282, %v3286
        %v3314 = vadd.f32 %v3313, %v3290
        %v3315 = vadd.f32 %v3314, %v3294
        %v3316 = vadd.f32 %v3315, %v3298
        %v3317 = vadd.f32 %v3316, %v3302
        %v3318 = vadd.f32 %v3317, %v3306
        %v3319 = vadd.f32 %v3318, %v3310
        %v3320 = vrot.slane %v3319, 4
        %v3321 = vadd.f32 %v3319, %v3320
        %v3322 = vrot.slane %v3321, 2
        %v3323 = vadd.f32 %v3321, %v3322
        %v3324 = vrot.slane %v3323, 1
        %v3325 = vadd.f32 %v3323, %v3324
        %v3326 = vadd.f32 %v3284, %v3288
        %v3327 = vadd.f32 %v3326, %v3292
        %v3328 = vadd.f32 %v3327, %v3296
        %v3329 = vadd.f32 %v3328, %v3300
        %v3330 = vadd.f32 %v3329, %v3304
        %v3331 = vadd.f32 %v3330, %v3308
        %v3332 = vadd.f32 %v3331, %v3312
        %v3333 = vrot.slane %v3332, 4
        %v3334 = vadd.f32 %v3332, %v3333
        %v3335 = vrot.slane %v3334, 2
        %v3336 = vadd.f32 %v3334, %v3335
        %v3337 = vrot.slane %v3336, 1
        %v3338 = vadd.f32 %v3336, %v3337
        %v3339 = vrcp.pop %v3325
        %v3340 = vrcp.pop %v3338
        %v3341 = vmul.f32 %v3282, %v3339
        %v3342 = vmul.f32 %v3284, %v3340
        %v3343 = vmul.f32 %v3286, %v3339
        %v3344 = vmul.f32 %v3288, %v3340
        %v3345 = vmul.f32 %v3290, %v3339
        %v3346 = vmul.f32 %v3292, %v3340
        %v3347 = vmul.f32 %v3294, %v3339
        %v3348 = vmul.f32 %v3296, %v3340
        %v3349 = vmul.f32 %v3298, %v3339
        %v3350 = vmul.f32 %v3300, %v3340
        %v3351 = vmul.f32 %v3302, %v3339
        %v3352 = vmul.f32 %v3304, %v3340
        %v3353 = vmul.f32 %v3306, %v3339
        %v3354 = vmul.f32 %v3308, %v3340
        %v3355 = vmul.f32 %v3310, %v3339
        %v3356 = vmul.f32 %v3312, %v3340
        %v3357 = vpack.c.bf16 %v3126, %v3126
        %v3358 = vpack.c.bf16 %v3343, %v3341
        %v3359 = vpack.c.bf16 %v3344, %v3342
        %v3360 = vpack.c.bf16 %v3347, %v3345
        %v3361 = vpack.c.bf16 %v3348, %v3346
        %v3362 = vpack.c.bf16 %v3351, %v3349
        %v3363 = vpack.c.bf16 %v3352, %v3350
        %v3364 = vpack.c.bf16 %v3355, %v3353
        %v3365 = vpack.c.bf16 %v3356, %v3354
        %v3367 = vsel %vm1626, %v3357, 0
        %3369 = vmatprep.subr.bf16.mxu0 0
        %3370 = vmatpush1.bf16.msra.mxu0 0
        %3371 = vmatprep.subr.bf16.mxu0 0
        %3372 = vmatpush1.bf16.msra.mxu0 0
        %3373 = vmatprep.subr.bf16.mxu0 0
        %3374 = vmatpush1.bf16.msra.mxu0 0
        %3375 = vmatprep.subr.bf16.mxu0 0
        %3376 = vmatpush1.bf16.msra.mxu0 0
        %3377 = vmatprep.subr.bf16.mxu0 %v3365
        %3378 = vmatpush1.bf16.msra.mxu0 %v3364
        %3379 = vmatprep.subr.bf16.mxu0 %v3363
        %3380 = vmatpush1.bf16.msra.mxu0 %v3362
        %3381 = vmatprep.subr.bf16.mxu0 %v3361
        %3382 = vmatpush1.bf16.msra.mxu0 %v3360
        %3383 = vmatprep.subr.bf16.mxu0 %v3359
        %3384 = vmatpush1.bf16.msra.mxu0 %v3358
        %3385 = vmatprep.subr.bf16.mxu0 0
        %3386 = vmatpush2.bf16.msra.mxu0 0
        %3387 = vmatprep.subr.bf16.mxu0 0
        %3388 = vmatpush2.bf16.msra.mxu0 0
        %3389 = vmatprep.subr.bf16.mxu0 0
        %3390 = vmatpush2.bf16.msra.mxu0 0
        %3391 = vmatprep.subr.bf16.mxu0 0
        %3392 = vmatpush2.bf16.msra.mxu0 0
        %3393 = vmatprep.subr.bf16.mxu0 0
        %3394 = vmatpush2.bf16.msra.mxu0 0
        %3395 = vmatprep.subr.bf16.mxu0 0
        %3396 = vmatpush2.bf16.msra.mxu0 0
        %3397 = vmatprep.subr.bf16.mxu0 0
        %3398 = vmatpush2.bf16.msra.mxu0 0
        %3399 = vmatprep.subr.bf16.mxu0 0
        %3400 = vmatpush2.bf16.msra.mxu0 0
        %3401 = vmatprep.mubr.bf16.mxu0 0
        %3402 = vmatmul.mubr.bf16.gmra.mxu0 %v3367
        %v3403 = vpop.f32.mrf.mxu0
        %v3404 = vadd.f32 0.0, %v3403
        %v3405 = vpop.f32.mrf.mxu0
        %v3406 = vadd.f32 0.0, %v3405
        %v3407 = vpop.f32.mrf.mxu0
        %v3408 = vpop.f32.mrf.mxu0
        %3409 = vdwg.mxu0
        %3410 = vst [vmem:[#allocation2 + $0x30] sm:$0xff] %v3404
        %3411 = vst [vmem:[#allocation2 + $0x38] sm:$0xff] %v3406
        %v3412 = vld [vmem:[%s11] sm:$0xff]
        %v3413 = vld [vmem:[%s11 + $0x8] sm:$0xff]
        %v3414 = vld [vmem:[%s11 + $0x10] sm:$0xff]
        %v3415 = vld [vmem:[%s11 + $0x18] sm:$0xff]
        %v3416 = vld [vmem:[%s11 + $0x20] sm:$0xff]
        %v3417 = vld [vmem:[%s11 + $0x28] sm:$0xff]
        %v3418 = vld [vmem:[%s11 + $0x30] sm:$0xff]
        %v3419 = vld [vmem:[%s11 + $0x38] sm:$0xff]
        %v3420 = vld [vmem:[%s11 + $0x40] sm:$0xff]
        %v3421 = vld [vmem:[%s11 + $0x48] sm:$0xff]
        %v3422 = vld [vmem:[%s11 + $0x50] sm:$0xff]
        %v3423 = vld [vmem:[%s11 + $0x58] sm:$0xff]
        %v3424 = vld [vmem:[%s11 + $0x60] sm:$0xff]
        %v3425 = vld [vmem:[%s11 + $0x68] sm:$0xff]
        %v3426 = vld [vmem:[%s11 + $0x70] sm:$0xff]
        %v3427 = vld [vmem:[%s11 + $0x78] sm:$0xff]
        %v3428 = vld [vmem:[%s11 + $0x80] sm:$0xff]
        %v3429 = vld [vmem:[%s11 + $0x88] sm:$0xff]
        %v3430 = vld [vmem:[%s11 + $0x90] sm:$0xff]
        %v3431 = vld [vmem:[%s11 + $0x98] sm:$0xff]
        %v3432 = vld [vmem:[%s11 + $0xa0] sm:$0xff]
        %v3433 = vld [vmem:[%s11 + $0xa8] sm:$0xff]
        %v3434 = vld [vmem:[%s11 + $0xb0] sm:$0xff]
        %v3435 = vld [vmem:[%s11 + $0xb8] sm:$0xff]
        %v3436 = vld [vmem:[%s11 + $0xc0] sm:$0xff]
        %v3437 = vld [vmem:[%s11 + $0xc8] sm:$0xff]
        %v3438 = vld [vmem:[%s11 + $0xd0] sm:$0xff]
        %v3439 = vld [vmem:[%s11 + $0xd8] sm:$0xff]
        %v3440 = vld [vmem:[%s11 + $0xe0] sm:$0xff]
        %v3441 = vld [vmem:[%s11 + $0xe8] sm:$0xff]
        %v3442 = vld [vmem:[%s11 + $0xf0] sm:$0xff]
        %v3443 = vld [vmem:[%s11 + $0xf8] sm:$0xff]
        %v3444 = vld [vmem:[%s11 + $0x100] sm:$0xff]
        %v3445 = vld [vmem:[%s11 + $0x108] sm:$0xff]
        %v3446 = vld [vmem:[%s11 + $0x110] sm:$0xff]
        %v3447 = vld [vmem:[%s11 + $0x118] sm:$0xff]
        %3449 = vset.pattern.permute.xlu0 0
        %3450 = vperm.xlu0 %3449, %v3428
        %v3451 = vpop.permute.xlu0 %3450
        %3454 = vset.pattern.permute.xlu0 0
        %3455 = vperm.xlu0 %3454, %v3429
        %v3456 = vpop.permute.xlu0 %3455
        %3459 = vset.pattern.permute.xlu0 0
        %3460 = vperm.xlu0 %3459, %v3430
        %v3461 = vpop.permute.xlu0 %3460
        %3464 = vset.pattern.permute.xlu0 0
        %3465 = vperm.xlu0 %3464, %v3431
        %v3466 = vpop.permute.xlu0 %3465
        %v3468 = vmul.f32 %v966, %v3451
        %v3469 = vmul.f32 %v968, %v3451
        %v3470 = vmul.f32 %v970, %v3456
        %v3471 = vmul.f32 %v972, %v3456
        %v3472 = vmul.f32 %v976, %v3461
        %v3473 = vmul.f32 %v978, %v3461
        %v3474 = vmul.f32 %v980, %v3466
        %v3475 = vmul.f32 %v982, %v3466
        %v3476 = vld [vmem:[%s12] sm:$0xff]
        %v3477 = vld [vmem:[%s12 + $0x8] sm:$0xff]
        %v3478 = vld [vmem:[%s12 + $0x10] sm:$0xff]
        %v3479 = vld [vmem:[%s12 + $0x18] sm:$0xff]
        %3481 = vset.pattern.permute.xlu0 0
        %3482 = vperm.xlu0 %3481, %v3476
        %v3483 = vpop.permute.xlu0 %3482
        %3486 = vset.pattern.permute.xlu0 0
        %3487 = vperm.xlu0 %3486, %v3477
        %v3488 = vpop.permute.xlu0 %3487
        %3491 = vset.pattern.permute.xlu0 0
        %3492 = vperm.xlu0 %3491, %v3478
        %v3493 = vpop.permute.xlu0 %3492
        %3496 = vset.pattern.permute.xlu0 0
        %3497 = vperm.xlu0 %3496, %v3479
        %v3498 = vpop.permute.xlu0 %3497
        %v3500 = vadd.f32 %v3468, %v3483
        %v3501 = vadd.f32 %v3469, %v3483
        %v3502 = vadd.f32 %v3470, %v3488
        %v3503 = vadd.f32 %v3471, %v3488
        %v3504 = vadd.f32 %v3472, %v3493
        %v3505 = vadd.f32 %v3473, %v3493
        %v3506 = vadd.f32 %v3474, %v3498
        %v3507 = vadd.f32 %v3475, %v3498
        %3508 = vrot.lane.b32.xlu0 %v966, 17
        %v3509 = vpop.permute.xlu0 %3508
        %3510 = vrot.lane.b32.xlu0 %v970, 17
        %v3511 = vpop.permute.xlu0 %3510
        %3512 = vrot.lane.b32.xlu0 %v976, 17
        %v3513 = vpop.permute.xlu0 %3512
        %3514 = vrot.lane.b32.xlu0 %v980, 17
        %v3515 = vpop.permute.xlu0 %3514
        %3516 = vrot.lane.b32.xlu0 %v968, 17
        %v3517 = vpop.permute.xlu0 %3516
        %3518 = vrot.lane.b32.xlu0 %v972, 17
        %v3519 = vpop.permute.xlu0 %3518
        %3520 = vrot.lane.b32.xlu0 %v978, 17
        %v3521 = vpop.permute.xlu0 %3520
        %3522 = vrot.lane.b32.xlu0 %v982, 17
        %v3523 = vpop.permute.xlu0 %3522
        %v3524 = vlaneseq
        %v3525 = vand.u32 %v3524, 127
        %vm3526 = vcmp.lt.s32.totalorder %v3525, 17
        %v3527 = vsel %vm3526, %v3509, %v3517
        %v3528 = vsel %vm3526, %v3511, %v3519
        %v3529 = vsel %vm3526, %v3513, %v3521
        %v3530 = vsel %vm3526, %v3515, %v3523
        %v3531 = vsel %vm3526, %v3517, %v3509
        %v3532 = vsel %vm3526, %v3519, %v3511
        %v3533 = vsel %vm3526, %v3521, %v3513
        %v3534 = vsel %vm3526, %v3523, %v3515
        %v3536 = vlaneseq
        %v3537 = vshrl.u32 %v3536, 7
        %v3538 = vsub.s32 0, %v3537
        %v3539 = vrot.slane %v743, %v3538
        %v3540 = vlaneseq
        %v3541 = vshrl.u32 %v3540, 7
        %v3542 = vsub.s32 1, %v3541
        %v3543 = vrot.slane %v743, %v3542
        %v3546 = vmul.f32 %v3531, %v3539
        %v3547 = vmul.f32 %v3527, %v3543
        %v3548 = vmul.f32 %v3532, %v3539
        %v3549 = vmul.f32 %v3528, %v3543
        %v3550 = vmul.f32 %v3533, %v3539
        %v3551 = vmul.f32 %v3529, %v3543
        %v3552 = vmul.f32 %v3534, %v3539
        %v3553 = vmul.f32 %v3530, %v3543
        %3555 = vset.pattern.permute.xlu0 0
        %3556 = vperm.xlu0 %3555, %v3412
        %v3557 = vpop.permute.xlu0 %3556
        %3560 = vset.pattern.permute.xlu0 0
        %3561 = vperm.xlu0 %3560, %v3413
        %v3562 = vpop.permute.xlu0 %3561
        %3565 = vset.pattern.permute.xlu0 0
        %3566 = vperm.xlu0 %3565, %v3414
        %v3567 = vpop.permute.xlu0 %3566
        %3570 = vset.pattern.permute.xlu0 0
        %3571 = vperm.xlu0 %3570, %v3415
        %v3572 = vpop.permute.xlu0 %3571
        %v3574 = vmul.f32 %v3546, %v3557
        %v3575 = vmul.f32 %v3547, %v3557
        %v3576 = vmul.f32 %v3548, %v3562
        %v3577 = vmul.f32 %v3549, %v3562
        %v3578 = vmul.f32 %v3550, %v3567
        %v3579 = vmul.f32 %v3551, %v3567
        %v3580 = vmul.f32 %v3552, %v3572
        %v3581 = vmul.f32 %v3553, %v3572
        %v3582 = vadd.f32 %v3500, %v3574
        %v3583 = vadd.f32 %v3501, %v3575
        %v3584 = vadd.f32 %v3502, %v3576
        %v3585 = vadd.f32 %v3503, %v3577
        %v3586 = vadd.f32 %v3504, %v3578
        %v3587 = vadd.f32 %v3505, %v3579
        %v3588 = vadd.f32 %v3506, %v3580
        %v3589 = vadd.f32 %v3507, %v3581
        %3590 = vrot.lane.b32.xlu0 %v966, 16
        %v3591 = vpop.permute.xlu0 %3590
        %3592 = vrot.lane.b32.xlu0 %v970, 16
        %v3593 = vpop.permute.xlu0 %3592
        %3594 = vrot.lane.b32.xlu0 %v976, 16
        %v3595 = vpop.permute.xlu0 %3594
        %3596 = vrot.lane.b32.xlu0 %v980, 16
        %v3597 = vpop.permute.xlu0 %3596
        %3598 = vrot.lane.b32.xlu0 %v968, 16
        %v3599 = vpop.permute.xlu0 %3598
        %3600 = vrot.lane.b32.xlu0 %v972, 16
        %v3601 = vpop.permute.xlu0 %3600
        %3602 = vrot.lane.b32.xlu0 %v978, 16
        %v3603 = vpop.permute.xlu0 %3602
        %3604 = vrot.lane.b32.xlu0 %v982, 16
        %v3605 = vpop.permute.xlu0 %3604
        %vm3606 = vcmp.lt.s32.totalorder %v3525, 16
        %v3607 = vsel %vm3606, %v3591, %v3599
        %v3608 = vsel %vm3606, %v3593, %v3601
        %v3609 = vsel %vm3606, %v3595, %v3603
        %v3610 = vsel %vm3606, %v3597, %v3605
        %v3611 = vsel %vm3606, %v3599, %v3591
        %v3612 = vsel %vm3606, %v3601, %v3593
        %v3613 = vsel %vm3606, %v3603, %v3595
        %v3614 = vsel %vm3606, %v3605, %v3597
        %v3616 = vlaneseq
        %v3617 = vshrl.u32 %v3616, 7
        %v3618 = vsub.s32 0, %v3617
        %v3619 = vrot.slane %v744, %v3618
        %v3620 = vlaneseq
        %v3621 = vshrl.u32 %v3620, 7
        %v3622 = vsub.s32 1, %v3621
        %v3623 = vrot.slane %v744, %v3622
        %v3626 = vmul.f32 %v3611, %v3619
        %v3627 = vmul.f32 %v3607, %v3623
        %v3628 = vmul.f32 %v3612, %v3619
        %v3629 = vmul.f32 %v3608, %v3623
        %v3630 = vmul.f32 %v3613, %v3619
        %v3631 = vmul.f32 %v3609, %v3623
        %v3632 = vmul.f32 %v3614, %v3619
        %v3633 = vmul.f32 %v3610, %v3623
        %3635 = vset.pattern.permute.xlu0 0
        %3636 = vperm.xlu0 %3635, %v3416
        %v3637 = vpop.permute.xlu0 %3636
        %3640 = vset.pattern.permute.xlu0 0
        %3641 = vperm.xlu0 %3640, %v3417
        %v3642 = vpop.permute.xlu0 %3641
        %3645 = vset.pattern.permute.xlu0 0
        %3646 = vperm.xlu0 %3645, %v3418
        %v3647 = vpop.permute.xlu0 %3646
        %3650 = vset.pattern.permute.xlu0 0
        %3651 = vperm.xlu0 %3650, %v3419
        %v3652 = vpop.permute.xlu0 %3651
        %v3654 = vmul.f32 %v3626, %v3637
        %v3655 = vmul.f32 %v3627, %v3637
        %v3656 = vmul.f32 %v3628, %v3642
        %v3657 = vmul.f32 %v3629, %v3642
        %v3658 = vmul.f32 %v3630, %v3647
        %v3659 = vmul.f32 %v3631, %v3647
        %v3660 = vmul.f32 %v3632, %v3652
        %v3661 = vmul.f32 %v3633, %v3652
        %v3662 = vadd.f32 %v3582, %v3654
        %v3663 = vadd.f32 %v3583, %v3655
        %v3664 = vadd.f32 %v3584, %v3656
        %v3665 = vadd.f32 %v3585, %v3657
        %v3666 = vadd.f32 %v3586, %v3658
        %v3667 = vadd.f32 %v3587, %v3659
        %v3668 = vadd.f32 %v3588, %v3660
        %v3669 = vadd.f32 %v3589, %v3661
        %3670 = vrot.lane.b32.xlu0 %v966, 15
        %v3671 = vpop.permute.xlu0 %3670
        %3672 = vrot.lane.b32.xlu0 %v970, 15
        %v3673 = vpop.permute.xlu0 %3672
        %3674 = vrot.lane.b32.xlu0 %v976, 15
        %v3675 = vpop.permute.xlu0 %3674
        %3676 = vrot.lane.b32.xlu0 %v980, 15
        %v3677 = vpop.permute.xlu0 %3676
        %3678 = vrot.lane.b32.xlu0 %v968, 15
        %v3679 = vpop.permute.xlu0 %3678
        %3680 = vrot.lane.b32.xlu0 %v972, 15
        %v3681 = vpop.permute.xlu0 %3680
        %3682 = vrot.lane.b32.xlu0 %v978, 15
        %v3683 = vpop.permute.xlu0 %3682
        %3684 = vrot.lane.b32.xlu0 %v982, 15
        %v3685 = vpop.permute.xlu0 %3684
        %vm3686 = vcmp.lt.s32.totalorder %v3525, 15
        %v3687 = vsel %vm3686, %v3671, %v3679
        %v3688 = vsel %vm3686, %v3673, %v3681
        %v3689 = vsel %vm3686, %v3675, %v3683
        %v3690 = vsel %vm3686, %v3677, %v3685
        %v3691 = vsel %vm3686, %v3679, %v3671
        %v3692 = vsel %vm3686, %v3681, %v3673
        %v3693 = vsel %vm3686, %v3683, %v3675
        %v3694 = vsel %vm3686, %v3685, %v3677
        %v3696 = vlaneseq
        %v3697 = vshrl.u32 %v3696, 7
        %v3698 = vsub.s32 0, %v3697
        %v3699 = vrot.slane %v745, %v3698
        %v3700 = vlaneseq
        %v3701 = vshrl.u32 %v3700, 7
        %v3702 = vsub.s32 1, %v3701
        %v3703 = vrot.slane %v745, %v3702
        %v3706 = vmul.f32 %v3691, %v3699
        %v3707 = vmul.f32 %v3687, %v3703
        %v3708 = vmul.f32 %v3692, %v3699
        %v3709 = vmul.f32 %v3688, %v3703
        %v3710 = vmul.f32 %v3693, %v3699
        %v3711 = vmul.f32 %v3689, %v3703
        %v3712 = vmul.f32 %v3694, %v3699
        %v3713 = vmul.f32 %v3690, %v3703
        %3715 = vset.pattern.permute.xlu0 0
        %3716 = vperm.xlu0 %3715, %v3420
        %v3717 = vpop.permute.xlu0 %3716
        %3720 = vset.pattern.permute.xlu0 0
        %3721 = vperm.xlu0 %3720, %v3421
        %v3722 = vpop.permute.xlu0 %3721
        %3725 = vset.pattern.permute.xlu0 0
        %3726 = vperm.xlu0 %3725, %v3422
        %v3727 = vpop.permute.xlu0 %3726
        %3730 = vset.pattern.permute.xlu0 0
        %3731 = vperm.xlu0 %3730, %v3423
        %v3732 = vpop.permute.xlu0 %3731
        %v3734 = vmul.f32 %v3706, %v3717
        %v3735 = vmul.f32 %v3707, %v3717
        %v3736 = vmul.f32 %v3708, %v3722
        %v3737 = vmul.f32 %v3709, %v3722
        %v3738 = vmul.f32 %v3710, %v3727
        %v3739 = vmul.f32 %v3711, %v3727
        %v3740 = vmul.f32 %v3712, %v3732
        %v3741 = vmul.f32 %v3713, %v3732
        %v3742 = vadd.f32 %v3662, %v3734
        %v3743 = vadd.f32 %v3663, %v3735
        %v3744 = vadd.f32 %v3664, %v3736
        %v3745 = vadd.f32 %v3665, %v3737
        %v3746 = vadd.f32 %v3666, %v3738
        %v3747 = vadd.f32 %v3667, %v3739
        %v3748 = vadd.f32 %v3668, %v3740
        %v3749 = vadd.f32 %v3669, %v3741
        %3750 = vrot.lane.b32.xlu0 %v966, 1
        %v3751 = vpop.permute.xlu0 %3750
        %3752 = vrot.lane.b32.xlu0 %v970, 1
        %v3753 = vpop.permute.xlu0 %3752
        %3754 = vrot.lane.b32.xlu0 %v976, 1
        %v3755 = vpop.permute.xlu0 %3754
        %3756 = vrot.lane.b32.xlu0 %v980, 1
        %v3757 = vpop.permute.xlu0 %3756
        %3758 = vrot.lane.b32.xlu0 %v968, 1
        %v3759 = vpop.permute.xlu0 %3758
        %3760 = vrot.lane.b32.xlu0 %v972, 1
        %v3761 = vpop.permute.xlu0 %3760
        %3762 = vrot.lane.b32.xlu0 %v978, 1
        %v3763 = vpop.permute.xlu0 %3762
        %3764 = vrot.lane.b32.xlu0 %v982, 1
        %v3765 = vpop.permute.xlu0 %3764
        %vm3766 = vcmp.lt.s32.totalorder %v3525, 1
        %v3767 = vsel %vm3766, %v3751, %v3759
        %v3768 = vsel %vm3766, %v3753, %v3761
        %v3769 = vsel %vm3766, %v3755, %v3763
        %v3770 = vsel %vm3766, %v3757, %v3765
        %v3771 = vsel %vm3766, %v3759, %v3751
        %v3772 = vsel %vm3766, %v3761, %v3753
        %v3773 = vsel %vm3766, %v3763, %v3755
        %v3774 = vsel %vm3766, %v3765, %v3757
        %v3776 = vlaneseq
        %v3777 = vshrl.u32 %v3776, 7
        %v3778 = vsub.s32 0, %v3777
        %v3779 = vrot.slane %v746, %v3778
        %v3780 = vlaneseq
        %v3781 = vshrl.u32 %v3780, 7
        %v3782 = vsub.s32 1, %v3781
        %v3783 = vrot.slane %v746, %v3782
        %v3786 = vmul.f32 %v3771, %v3779
        %v3787 = vmul.f32 %v3767, %v3783
        %v3788 = vmul.f32 %v3772, %v3779
        %v3789 = vmul.f32 %v3768, %v3783
        %v3790 = vmul.f32 %v3773, %v3779
        %v3791 = vmul.f32 %v3769, %v3783
        %v3792 = vmul.f32 %v3774, %v3779
        %v3793 = vmul.f32 %v3770, %v3783
        %3795 = vset.pattern.permute.xlu0 0
        %3796 = vperm.xlu0 %3795, %v3424
        %v3797 = vpop.permute.xlu0 %3796
        %3800 = vset.pattern.permute.xlu0 0
        %3801 = vperm.xlu0 %3800, %v3425
        %v3802 = vpop.permute.xlu0 %3801
        %3805 = vset.pattern.permute.xlu0 0
        %3806 = vperm.xlu0 %3805, %v3426
        %v3807 = vpop.permute.xlu0 %3806
        %3810 = vset.pattern.permute.xlu0 0
        %3811 = vperm.xlu0 %3810, %v3427
        %v3812 = vpop.permute.xlu0 %3811
        %v3814 = vmul.f32 %v3786, %v3797
        %v3815 = vmul.f32 %v3787, %v3797
        %v3816 = vmul.f32 %v3788, %v3802
        %v3817 = vmul.f32 %v3789, %v3802
        %v3818 = vmul.f32 %v3790, %v3807
        %v3819 = vmul.f32 %v3791, %v3807
        %v3820 = vmul.f32 %v3792, %v3812
        %v3821 = vmul.f32 %v3793, %v3812
        %v3822 = vadd.f32 %v3742, %v3814
        %v3823 = vadd.f32 %v3743, %v3815
        %v3824 = vadd.f32 %v3744, %v3816
        %v3825 = vadd.f32 %v3745, %v3817
        %v3826 = vadd.f32 %v3746, %v3818
        %v3827 = vadd.f32 %v3747, %v3819
        %v3828 = vadd.f32 %v3748, %v3820
        %v3829 = vadd.f32 %v3749, %v3821
        %3830 = vrot.lane.b32.xlu0 %v966, 127
        %v3831 = vpop.permute.xlu0 %3830
        %3832 = vrot.lane.b32.xlu0 %v970, 127
        %v3833 = vpop.permute.xlu0 %3832
        %3834 = vrot.lane.b32.xlu0 %v976, 127
        %v3835 = vpop.permute.xlu0 %3834
        %3836 = vrot.lane.b32.xlu0 %v980, 127
        %v3837 = vpop.permute.xlu0 %3836
        %3838 = vrot.lane.b32.xlu0 %v968, 127
        %v3839 = vpop.permute.xlu0 %3838
        %3840 = vrot.lane.b32.xlu0 %v972, 127
        %v3841 = vpop.permute.xlu0 %3840
        %3842 = vrot.lane.b32.xlu0 %v978, 127
        %v3843 = vpop.permute.xlu0 %3842
        %3844 = vrot.lane.b32.xlu0 %v982, 127
        %v3845 = vpop.permute.xlu0 %3844
        %vm3846 = vcmp.lt.s32.totalorder %v3525, 127
        %v3847 = vsel %vm3846, %v3831, %v3839
        %v3848 = vsel %vm3846, %v3833, %v3841
        %v3849 = vsel %vm3846, %v3835, %v3843
        %v3850 = vsel %vm3846, %v3837, %v3845
        %v3851 = vsel %vm3846, %v3839, %v3831
        %v3852 = vsel %vm3846, %v3841, %v3833
        %v3853 = vsel %vm3846, %v3843, %v3835
        %v3854 = vsel %vm3846, %v3845, %v3837
        %v3856 = vlaneseq
        %v3857 = vshrl.u32 %v3856, 7
        %v3858 = vsub.s32 0, %v3857
        %v3859 = vrot.slane %v747, %v3858
        %v3860 = vlaneseq
        %v3861 = vshrl.u32 %v3860, 7
        %v3862 = vsub.s32 1, %v3861
        %v3863 = vrot.slane %v747, %v3862
        %v3866 = vmul.f32 %v3847, %v3859
        %v3867 = vmul.f32 %v3851, %v3863
        %v3868 = vmul.f32 %v3848, %v3859
        %v3869 = vmul.f32 %v3852, %v3863
        %v3870 = vmul.f32 %v3849, %v3859
        %v3871 = vmul.f32 %v3853, %v3863
        %v3872 = vmul.f32 %v3850, %v3859
        %v3873 = vmul.f32 %v3854, %v3863
        %3875 = vset.pattern.permute.xlu0 0
        %3876 = vperm.xlu0 %3875, %v3432
        %v3877 = vpop.permute.xlu0 %3876
        %3880 = vset.pattern.permute.xlu0 0
        %3881 = vperm.xlu0 %3880, %v3433
        %v3882 = vpop.permute.xlu0 %3881
        %3885 = vset.pattern.permute.xlu0 0
        %3886 = vperm.xlu0 %3885, %v3434
        %v3887 = vpop.permute.xlu0 %3886
        %3890 = vset.pattern.permute.xlu0 0
        %3891 = vperm.xlu0 %3890, %v3435
        %v3892 = vpop.permute.xlu0 %3891
        %v3894 = vmul.f32 %v3866, %v3877
        %v3895 = vmul.f32 %v3867, %v3877
        %v3896 = vmul.f32 %v3868, %v3882
        %v3897 = vmul.f32 %v3869, %v3882
        %v3898 = vmul.f32 %v3870, %v3887
        %v3899 = vmul.f32 %v3871, %v3887
        %v3900 = vmul.f32 %v3872, %v3892
        %v3901 = vmul.f32 %v3873, %v3892
        %v3902 = vadd.f32 %v3822, %v3894
        %v3903 = vadd.f32 %v3823, %v3895
        %v3904 = vadd.f32 %v3824, %v3896
        %v3905 = vadd.f32 %v3825, %v3897
        %v3906 = vadd.f32 %v3826, %v3898
        %v3907 = vadd.f32 %v3827, %v3899
        %v3908 = vadd.f32 %v3828, %v3900
        %v3909 = vadd.f32 %v3829, %v3901
        %3910 = vrot.lane.b32.xlu0 %v966, 113
        %v3911 = vpop.permute.xlu0 %3910
        %3912 = vrot.lane.b32.xlu0 %v970, 113
        %v3913 = vpop.permute.xlu0 %3912
        %3914 = vrot.lane.b32.xlu0 %v976, 113
        %v3915 = vpop.permute.xlu0 %3914
        %3916 = vrot.lane.b32.xlu0 %v980, 113
        %v3917 = vpop.permute.xlu0 %3916
        %3918 = vrot.lane.b32.xlu0 %v968, 113
        %v3919 = vpop.permute.xlu0 %3918
        %3920 = vrot.lane.b32.xlu0 %v972, 113
        %v3921 = vpop.permute.xlu0 %3920
        %3922 = vrot.lane.b32.xlu0 %v978, 113
        %v3923 = vpop.permute.xlu0 %3922
        %3924 = vrot.lane.b32.xlu0 %v982, 113
        %v3925 = vpop.permute.xlu0 %3924
        %vm3926 = vcmp.lt.s32.totalorder %v3525, 113
        %v3927 = vsel %vm3926, %v3911, %v3919
        %v3928 = vsel %vm3926, %v3913, %v3921
        %v3929 = vsel %vm3926, %v3915, %v3923
        %v3930 = vsel %vm3926, %v3917, %v3925
        %v3931 = vsel %vm3926, %v3919, %v3911
        %v3932 = vsel %vm3926, %v3921, %v3913
        %v3933 = vsel %vm3926, %v3923, %v3915
        %v3934 = vsel %vm3926, %v3925, %v3917
        %v3936 = vlaneseq
        %v3937 = vshrl.u32 %v3936, 7
        %v3938 = vsub.s32 0, %v3937
        %v3939 = vrot.slane %v748, %v3938
        %v3940 = vlaneseq
        %v3941 = vshrl.u32 %v3940, 7
        %v3942 = vsub.s32 1, %v3941
        %v3943 = vrot.slane %v748, %v3942
        %v3946 = vmul.f32 %v3927, %v3939
        %v3947 = vmul.f32 %v3931, %v3943
        %v3948 = vmul.f32 %v3928, %v3939
        %v3949 = vmul.f32 %v3932, %v3943
        %v3950 = vmul.f32 %v3929, %v3939
        %v3951 = vmul.f32 %v3933, %v3943
        %v3952 = vmul.f32 %v3930, %v3939
        %v3953 = vmul.f32 %v3934, %v3943
        %3955 = vset.pattern.permute.xlu0 0
        %3956 = vperm.xlu0 %3955, %v3436
        %v3957 = vpop.permute.xlu0 %3956
        %3960 = vset.pattern.permute.xlu0 0
        %3961 = vperm.xlu0 %3960, %v3437
        %v3962 = vpop.permute.xlu0 %3961
        %3965 = vset.pattern.permute.xlu0 0
        %3966 = vperm.xlu0 %3965, %v3438
        %v3967 = vpop.permute.xlu0 %3966
        %3970 = vset.pattern.permute.xlu0 0
        %3971 = vperm.xlu0 %3970, %v3439
        %v3972 = vpop.permute.xlu0 %3971
        %v3974 = vmul.f32 %v3946, %v3957
        %v3975 = vmul.f32 %v3947, %v3957
        %v3976 = vmul.f32 %v3948, %v3962
        %v3977 = vmul.f32 %v3949, %v3962
        %v3978 = vmul.f32 %v3950, %v3967
        %v3979 = vmul.f32 %v3951, %v3967
        %v3980 = vmul.f32 %v3952, %v3972
        %v3981 = vmul.f32 %v3953, %v3972
        %v3982 = vadd.f32 %v3902, %v3974
        %v3983 = vadd.f32 %v3903, %v3975
        %v3984 = vadd.f32 %v3904, %v3976
        %v3985 = vadd.f32 %v3905, %v3977
        %v3986 = vadd.f32 %v3906, %v3978
        %v3987 = vadd.f32 %v3907, %v3979
        %v3988 = vadd.f32 %v3908, %v3980
        %v3989 = vadd.f32 %v3909, %v3981
        %3990 = vrot.lane.b32.xlu0 %v966, 112
        %v3991 = vpop.permute.xlu0 %3990
        %3992 = vrot.lane.b32.xlu0 %v970, 112
        %v3993 = vpop.permute.xlu0 %3992
        %3994 = vrot.lane.b32.xlu0 %v976, 112
        %v3995 = vpop.permute.xlu0 %3994
        %3996 = vrot.lane.b32.xlu0 %v980, 112
        %v3997 = vpop.permute.xlu0 %3996
        %3998 = vrot.lane.b32.xlu0 %v968, 112
        %v3999 = vpop.permute.xlu0 %3998
        %4000 = vrot.lane.b32.xlu0 %v972, 112
        %v4001 = vpop.permute.xlu0 %4000
        %4002 = vrot.lane.b32.xlu0 %v978, 112
        %v4003 = vpop.permute.xlu0 %4002
        %4004 = vrot.lane.b32.xlu0 %v982, 112
        %v4005 = vpop.permute.xlu0 %4004
        %vm4006 = vcmp.lt.s32.totalorder %v3525, 112
        %v4007 = vsel %vm4006, %v3991, %v3999
        %v4008 = vsel %vm4006, %v3993, %v4001
        %v4009 = vsel %vm4006, %v3995, %v4003
        %v4010 = vsel %vm4006, %v3997, %v4005
        %v4011 = vsel %vm4006, %v3999, %v3991
        %v4012 = vsel %vm4006, %v4001, %v3993
        %v4013 = vsel %vm4006, %v4003, %v3995
        %v4014 = vsel %vm4006, %v4005, %v3997
        %v4016 = vlaneseq
        %v4017 = vshrl.u32 %v4016, 7
        %v4018 = vsub.s32 0, %v4017
        %v4019 = vrot.slane %v749, %v4018
        %v4020 = vlaneseq
        %v4021 = vshrl.u32 %v4020, 7
        %v4022 = vsub.s32 1, %v4021
        %v4023 = vrot.slane %v749, %v4022
        %v4026 = vmul.f32 %v4007, %v4019
        %v4027 = vmul.f32 %v4011, %v4023
        %v4028 = vmul.f32 %v4008, %v4019
        %v4029 = vmul.f32 %v4012, %v4023
        %v4030 = vmul.f32 %v4009, %v4019
        %v4031 = vmul.f32 %v4013, %v4023
        %v4032 = vmul.f32 %v4010, %v4019
        %v4033 = vmul.f32 %v4014, %v4023
        %4035 = vset.pattern.permute.xlu0 0
        %4036 = vperm.xlu0 %4035, %v3440
        %v4037 = vpop.permute.xlu0 %4036
        %4040 = vset.pattern.permute.xlu0 0
        %4041 = vperm.xlu0 %4040, %v3441
        %v4042 = vpop.permute.xlu0 %4041
        %4045 = vset.pattern.permute.xlu0 0
        %4046 = vperm.xlu0 %4045, %v3442
        %v4047 = vpop.permute.xlu0 %4046
        %4050 = vset.pattern.permute.xlu0 0
        %4051 = vperm.xlu0 %4050, %v3443
        %v4052 = vpop.permute.xlu0 %4051
        %v4054 = vmul.f32 %v4026, %v4037
        %v4055 = vmul.f32 %v4027, %v4037
        %v4056 = vmul.f32 %v4028, %v4042
        %v4057 = vmul.f32 %v4029, %v4042
        %v4058 = vmul.f32 %v4030, %v4047
        %v4059 = vmul.f32 %v4031, %v4047
        %v4060 = vmul.f32 %v4032, %v4052
        %v4061 = vmul.f32 %v4033, %v4052
        %v4062 = vadd.f32 %v3982, %v4054
        %v4063 = vadd.f32 %v3983, %v4055
        %v4064 = vadd.f32 %v3984, %v4056
        %v4065 = vadd.f32 %v3985, %v4057
        %v4066 = vadd.f32 %v3986, %v4058
        %v4067 = vadd.f32 %v3987, %v4059
        %v4068 = vadd.f32 %v3988, %v4060
        %v4069 = vadd.f32 %v3989, %v4061
        %4070 = vrot.lane.b32.xlu0 %v966, 111
        %v4071 = vpop.permute.xlu0 %4070
        %4072 = vrot.lane.b32.xlu0 %v970, 111
        %v4073 = vpop.permute.xlu0 %4072
        %4074 = vrot.lane.b32.xlu0 %v976, 111
        %v4075 = vpop.permute.xlu0 %4074
        %4076 = vrot.lane.b32.xlu0 %v980, 111
        %v4077 = vpop.permute.xlu0 %4076
        %4078 = vrot.lane.b32.xlu0 %v968, 111
        %v4079 = vpop.permute.xlu0 %4078
        %4080 = vrot.lane.b32.xlu0 %v972, 111
        %v4081 = vpop.permute.xlu0 %4080
        %4082 = vrot.lane.b32.xlu0 %v978, 111
        %v4083 = vpop.permute.xlu0 %4082
        %4084 = vrot.lane.b32.xlu0 %v982, 111
        %v4085 = vpop.permute.xlu0 %4084
        %vm4086 = vcmp.lt.s32.totalorder %v3525, 111
        %v4087 = vsel %vm4086, %v4071, %v4079
        %v4088 = vsel %vm4086, %v4073, %v4081
        %v4089 = vsel %vm4086, %v4075, %v4083
        %v4090 = vsel %vm4086, %v4077, %v4085
        %v4091 = vsel %vm4086, %v4079, %v4071
        %v4092 = vsel %vm4086, %v4081, %v4073
        %v4093 = vsel %vm4086, %v4083, %v4075
        %v4094 = vsel %vm4086, %v4085, %v4077
        %v4096 = vlaneseq
        %v4097 = vshrl.u32 %v4096, 7
        %v4098 = vsub.s32 0, %v4097
        %v4099 = vrot.slane %v750, %v4098
        %v4100 = vlaneseq
        %v4101 = vshrl.u32 %v4100, 7
        %v4102 = vsub.s32 1, %v4101
        %v4103 = vrot.slane %v750, %v4102
        %v4106 = vmul.f32 %v4087, %v4099
        %v4107 = vmul.f32 %v4091, %v4103
        %v4108 = vmul.f32 %v4088, %v4099
        %v4109 = vmul.f32 %v4092, %v4103
        %v4110 = vmul.f32 %v4089, %v4099
        %v4111 = vmul.f32 %v4093, %v4103
        %v4112 = vmul.f32 %v4090, %v4099
        %v4113 = vmul.f32 %v4094, %v4103
        %4115 = vset.pattern.permute.xlu0 0
        %4116 = vperm.xlu0 %4115, %v3444
        %v4117 = vpop.permute.xlu0 %4116
        %4120 = vset.pattern.permute.xlu0 0
        %4121 = vperm.xlu0 %4120, %v3445
        %v4122 = vpop.permute.xlu0 %4121
        %4125 = vset.pattern.permute.xlu0 0
        %4126 = vperm.xlu0 %4125, %v3446
        %v4127 = vpop.permute.xlu0 %4126
        %4130 = vset.pattern.permute.xlu0 0
        %4131 = vperm.xlu0 %4130, %v3447
        %v4132 = vpop.permute.xlu0 %4131
        %v4134 = vmul.f32 %v4106, %v4117
        %v4135 = vmul.f32 %v4107, %v4117
        %v4136 = vmul.f32 %v4108, %v4122
        %v4137 = vmul.f32 %v4109, %v4122
        %v4138 = vmul.f32 %v4110, %v4127
        %v4139 = vmul.f32 %v4111, %v4127
        %v4140 = vmul.f32 %v4112, %v4132
        %v4141 = vmul.f32 %v4113, %v4132
        %v4142 = vadd.f32 %v4062, %v4134
        %v4143 = vadd.f32 %v4063, %v4135
        %v4144 = vadd.f32 %v4064, %v4136
        %v4145 = vadd.f32 %v4065, %v4137
        %v4146 = vadd.f32 %v4066, %v4138
        %v4147 = vadd.f32 %v4067, %v4139
        %v4148 = vadd.f32 %v4068, %v4140
        %v4149 = vadd.f32 %v4069, %v4141
        %v4150 = vld [vmem:[#allocation6] sm:$0xf]
        %v4151 = vld [vmem:[#allocation2] sm:$0xff]
        %v4152 = vld [vmem:[#allocation2 + $0x8] sm:$0xff]
        %v4153 = vld [vmem:[#allocation2 + $0x10] sm:$0xff]
        %v4154 = vld [vmem:[#allocation2 + $0x18] sm:$0xff]
        %v4155 = vld [vmem:[#allocation2 + $0x20] sm:$0xff]
        %v4156 = vld [vmem:[#allocation2 + $0x28] sm:$0xff]
        %v4157 = vld [vmem:[#allocation2 + $0x30] sm:$0xff]
        %v4158 = vld [vmem:[#allocation2 + $0x38] sm:$0xff]
        %v4159 = vadd.f32 %v4151, %v4142
        %v4160 = vadd.f32 %v4152, %v4143
        %v4161 = vadd.f32 %v4153, %v4144
        %v4162 = vadd.f32 %v4154, %v4145
        %v4163 = vadd.f32 %v4155, %v4146
        %v4164 = vadd.f32 %v4156, %v4147
        %v4165 = vadd.f32 %v4157, %v4148
        %v4166 = vadd.f32 %v4158, %v4149
        %v4167 = vpack.c.bf16 %v4161, %v4159
        %v4168 = vpack.c.bf16 %v4162, %v4160
        %v4169 = vpack.c.bf16 %v4165, %v4163
        %v4170 = vpack.c.bf16 %v4166, %v4164
        %v4171 = vld [vmem:[%s7] sm:$0xff]
        %4173 = vset.pattern.permute.xlu0 0
        %4174 = vperm.xlu0 %4173, %v4171
        %v4175 = vpop.permute.xlu0 %4174
        %vm4177 = vcmask 261120
        %v4179 = vsel %vm4177, %v4150, 0
        %4181 = vmatprep.subr.bf16.mxu0 0
        %4182 = vmatpush1.bf16.msra.mxu0 0
        %4183 = vmatprep.subr.bf16.mxu0 0
        %4184 = vmatpush1.bf16.msra.mxu0 0
        %4185 = vmatprep.subr.bf16.mxu0 0
        %4186 = vmatpush1.bf16.msra.mxu0 0
        %4187 = vmatprep.subr.bf16.mxu0 0
        %4188 = vmatpush1.bf16.msra.mxu0 0
        %4189 = vmatprep.subr.bf16.mxu0 0
        %4190 = vmatpush1.bf16.msra.mxu0 0
        %4191 = vmatprep.subr.bf16.mxu0 0
        %4192 = vmatpush1.bf16.msra.mxu0 0
        %4193 = vmatprep.subr.bf16.mxu0 %v4170
        %4194 = vmatpush1.bf16.msra.mxu0 %v4169
        %4195 = vmatprep.subr.bf16.mxu0 %v4168
        %4196 = vmatpush1.bf16.msra.mxu0 %v4167
        %4197 = vmatprep.subr.bf16.mxu0 0
        %4198 = vmatpush2.bf16.msra.mxu0 0
        %4199 = vmatprep.subr.bf16.mxu0 0
        %4200 = vmatpush2.bf16.msra.mxu0 0
        %4201 = vmatprep.subr.bf16.mxu0 0
        %4202 = vmatpush2.bf16.msra.mxu0 0
        %4203 = vmatprep.subr.bf16.mxu0 0
        %4204 = vmatpush2.bf16.msra.mxu0 0
        %4205 = vmatprep.subr.bf16.mxu0 0
        %4206 = vmatpush2.bf16.msra.mxu0 0
        %4207 = vmatprep.subr.bf16.mxu0 0
        %4208 = vmatpush2.bf16.msra.mxu0 0
        %4209 = vmatprep.subr.bf16.mxu0 0
        %4210 = vmatpush2.bf16.msra.mxu0 0
        %4211 = vmatprep.subr.bf16.mxu0 0
        %4212 = vmatpush2.bf16.msra.mxu0 0
        %4213 = vmatprep.mubr.bf16.mxu0 0
        %4214 = vmatmul.mubr.bf16.gmra.mxu0 %v4179
        %v4215 = vpop.f32.mrf.mxu0
        %v4216 = vadd.f32 %v4175, %v4215
        %v4217 = vpop.f32.mrf.mxu0
        %v4218 = vadd.f32 %v4175, %v4217
        %v4219 = vpop.f32.mrf.mxu0
        %v4220 = vpop.f32.mrf.mxu0
        %4221 = vdwg.mxu0
        %v4222 = vxor.u32 %v4216, 2147483648
        %v4223 = vxor.u32 %v4218, 2147483648
        %v4224 = vmul.f32 %v4222, 1.442695
        %v4225 = vpow.pop %v4224
        %v4226 = vmul.f32 %v4223, 1.442695
        %v4227 = vpow.pop %v4226
        %v4228 = vadd.f32 %v4225, 1.0
        %v4229 = vadd.f32 %v4227, 1.0
        %v4230 = vrcp.pop %v4228
        %v4231 = vmul.f32 1.0, %v4230
        %v4232 = vrcp.pop %v4229
        %v4233 = vmul.f32 1.0, %v4232
        %v4234 = vmul.f32 %v733, %v4231
        %v4235 = vmul.f32 %v734, %v4233
        %v4236 = vpack.c.bf16 %v733, %v731
        %v4237 = vpack.c.bf16 %v734, %v732
        %v4238 = vpack.c.bf16 %v4234, %v4234
        %v4239 = vpack.c.bf16 %v4235, %v4235
        %v4240 = vld [vmem:[#allocation9] sm:$0xf]
        %v4241 = vld [vmem:[#allocation9 + $0x4] sm:$0xf]
        %v4244 = vunpack.c.l.b16 %v4240
        %v4245 = vunpack.c.l.b16 %v4241
        %v4246 = vpack.c.b16 %v4245, %v4244
        %vm4247 = vcmask 195584
        %v4249 = vsel %vm4247, %v4246, 0
        %v4252 = vsel %vm625, %v4238, 0
        %v4255 = vsel %vm625, %v4239, 0
        %4257 = vmatprep.subr.bf16.mxu0 0
        %4258 = vmatpush1.bf16.msra.mxu0 0
        %4259 = vmatprep.subr.bf16.mxu0 0
        %4260 = vmatpush1.bf16.msra.mxu0 0
        %4261 = vmatprep.subr.bf16.mxu0 0
        %4262 = vmatpush1.bf16.msra.mxu0 0
        %4263 = vmatprep.subr.bf16.mxu0 0
        %4264 = vmatpush1.bf16.msra.mxu0 0
        %4265 = vmatprep.subr.bf16.mxu0 0
        %4266 = vmatpush1.bf16.msra.mxu0 0
        %4267 = vmatprep.subr.bf16.mxu0 0
        %4268 = vmatpush1.bf16.msra.mxu0 0
        %4269 = vmatprep.subr.bf16.mxu0 %v4255
        %4270 = vmatpush1.bf16.msra.mxu0 %v4252
        %4271 = vmatprep.subr.bf16.mxu0 %v4237
        %4272 = vmatpush1.bf16.msra.mxu0 %v4236
        %4273 = vmatprep.subr.bf16.mxu0 0
        %4274 = vmatpush2.bf16.msra.mxu0 0
        %4275 = vmatprep.subr.bf16.mxu0 0
        %4276 = vmatpush2.bf16.msra.mxu0 0
        %4277 = vmatprep.subr.bf16.mxu0 0
        %4278 = vmatpush2.bf16.msra.mxu0 0
        %4279 = vmatprep.subr.bf16.mxu0 0
        %4280 = vmatpush2.bf16.msra.mxu0 0
        %4281 = vmatprep.subr.bf16.mxu0 0
        %4282 = vmatpush2.bf16.msra.mxu0 0
        %4283 = vmatprep.subr.bf16.mxu0 0
        %4284 = vmatpush2.bf16.msra.mxu0 0
        %4285 = vmatprep.subr.bf16.mxu0 0
        %4286 = vmatpush2.bf16.msra.mxu0 0
        %4287 = vmatprep.subr.bf16.mxu0 0
        %4288 = vmatpush2.bf16.msra.mxu0 0
        %4289 = vmatprep.mubr.bf16.mxu0 0
        %4290 = vmatmul.mubr.bf16.gmra.mxu0 %v4249
        %v4291 = vpop.f32.mrf.mxu0
        %v4292 = vadd.f32 0.0, %v4291
        %v4293 = vpop.f32.mrf.mxu0
        %v4294 = vadd.f32 0.0, %v4293
        %v4295 = vpop.f32.mrf.mxu0
        %v4296 = vadd.f32 0.0, %v4295
        %v4297 = vpop.f32.mrf.mxu0
        %v4298 = vadd.f32 0.0, %v4297
        %4299 = vdwg.mxu0
        %v4300 = vld [vmem:[%s15] sm:$0xff]
        %v4301 = vld [vmem:[%s15 + $0x8] sm:$0xff]
        %4303 = vset.pattern.permute.xlu0 0
        %4304 = vperm.xlu0 %4303, %v4300
        %v4305 = vpop.permute.xlu0 %4304
        %4308 = vset.pattern.permute.xlu0 0
        %4309 = vperm.xlu0 %4308, %v4301
        %v4310 = vpop.permute.xlu0 %4309
        %v4312 = vmul.f32 %v4292, %v4305
        %v4313 = vmul.f32 %v4294, %v4305
        %v4314 = vmul.f32 %v4296, %v4310
        %v4315 = vmul.f32 %v4298, %v4310
        %v4316 = vld [vmem:[%s16] sm:$0xff]
        %v4317 = vld [vmem:[%s16 + $0x8] sm:$0xff]
        %4319 = vset.pattern.permute.xlu0 0
        %4320 = vperm.xlu0 %4319, %v4316
        %v4321 = vpop.permute.xlu0 %4320
        %4324 = vset.pattern.permute.xlu0 0
        %4325 = vperm.xlu0 %4324, %v4317
        %v4326 = vpop.permute.xlu0 %4325
        %v4328 = vadd.f32 %v4312, %v4321
        %v4329 = vadd.f32 %v4313, %v4321
        %v4330 = vadd.f32 %v4314, %v4326
        %v4331 = vadd.f32 %v4315, %v4326
        %v4332 = vxor.u32 %v4328, 2147483648
        %v4333 = vxor.u32 %v4329, 2147483648
        %v4334 = vxor.u32 %v4330, 2147483648
        %v4335 = vxor.u32 %v4331, 2147483648
        %v4336 = vmul.f32 %v4332, 1.442695
        %v4337 = vpow.pop %v4336
        %v4338 = vmul.f32 %v4333, 1.442695
        %v4339 = vpow.pop %v4338
        %v4340 = vmul.f32 %v4334, 1.442695
        %v4341 = vpow.pop %v4340
        %v4342 = vmul.f32 %v4335, 1.442695
        %v4343 = vpow.pop %v4342
        %v4344 = vadd.f32 %v4337, 1.0
        %v4345 = vadd.f32 %v4339, 1.0
        %v4346 = vadd.f32 %v4341, 1.0
        %v4347 = vadd.f32 %v4343, 1.0
        %v4348 = vrcp.pop %v4344
        %v4349 = vmul.f32 1.0, %v4348
        %v4350 = vrcp.pop %v4345
        %v4351 = vmul.f32 1.0, %v4350
        %v4352 = vrcp.pop %v4346
        %v4353 = vmul.f32 1.0, %v4352
        %v4354 = vrcp.pop %v4347
        %v4355 = vmul.f32 1.0, %v4354
        %v4356 = vmul.f32 %v4328, %v4349
        %v4357 = vmul.f32 %v4329, %v4351
        %v4358 = vmul.f32 %v4330, %v4353
        %v4359 = vmul.f32 %v4331, %v4355
        %v4360 = vpack.c.bf16 %v4358, %v4356
        %v4361 = vpack.c.bf16 %v4359, %v4357
        %v4364 = vunpack.c.l.b16 %v4360
        %v4365 = vunpack.c.l.b16 %v4361
        %v4366 = vunpack.c.h.b16 %v4360
        %v4367 = vunpack.c.h.b16 %v4361
        %v4368 = vpack.c.b16 %v4365, %v4364
        %v4369 = vpack.c.b16 %v4367, %v4366
        %4372 = vst [vmem:[%s606] sm:$0xff] %v4368
        %4373 = vst [vmem:[%s606 + $0x8] sm:$0xff] %v4369
        %s4374 = sand.u32 %s406, 1
        %s4375 = scalar_lea.sflag [#allocation5], %s4374
        %s4376 = sand.u32 %s406, 1
        %s4377 = smul.addr %s4376, 16
        %s4378 = scalar_lea.vmem [#allocation11], %s4377
        // Predicated region
        $region105: #{tpu_custom_call.1} parent=87 // pred_check
          %p4379 = pneg %p416
        $region106: #{tpu_custom_call.1} parent=87 // pred_check_branch
          %4381 = sbr.rel (%p4379) target = $region108
        $region107: #{tpu_custom_call.1} parent=87 // pred_region
          %s4383 = ssub.s32 256, 256
          %4384 = vsyncadd %s4375, %s4383
          %s4385 = smul.addr %s36, 4
          %s4386 = smul.addr %s4385, 64
          %s4387 = scalar_lea.hbm %s17, %s4386
          %s4388 = sshll.u32 %s4378, 4
          %s4389 = int_to_ptr.vmem [resolvable:$true] %s4388
          %4394 = dma.vmem_to_hbm [thread:$0]  %s4389, 256, %s4387, %s4375, 128, 128, 8
        $region108: #{tpu_custom_call.1} parent=87 // pred_fallthru
          _
      $region88: #{tpu_custom_call.1} parent=5 // pred_fallthru
        _
      %p4395 = scmp.le.s32.totalorder 2, %s31
      // Predicated region
      $region109: #{tpu_custom_call.1} parent=5 // pred_check
        %p4396 = pneg %p4395
      $region110: #{tpu_custom_call.1} parent=5 // pred_check_branch
        %4398 = sbr.rel (%p4396) target = $region112
      $region111: #{tpu_custom_call.1} parent=5 // pred_region
        %s4399 = ssub.s32 %s31, 2
        // Predicated region
        $region113: #{tpu_custom_call.1} parent=111 // pred_check
          %p4400 = pneg %p422
        $region114: #{tpu_custom_call.1} parent=111 // pred_check_branch
          %4402 = sbr.rel (%p4400) target = $region116
        $region115: #{tpu_custom_call.1} parent=111 // pred_region
          %s4403 = sand.u32 %s407, 1
          %s4404 = scalar_lea.sflag [#allocation5], %s4403
          %s4405 = sand.u32 %s407, 1
          %s4406 = smul.addr %s4405, 16
          %s4407 = scalar_lea.vmem [#allocation11], %s4406
          %4408 = dma.done %s4404, 256
        $region116: #{tpu_custom_call.1} parent=111 // pred_fallthru
          _
      $region112: #{tpu_custom_call.1} parent=5 // pred_fallthru
        _
    $region6: #{tpu_custom_call.1} parent=1 // loop_footer
      %s35 = sadd.s32 1, %s31
    $region7: #{tpu_custom_call.1} parent=1 // loop_footer_branch
      %30 = sbr.rel target = $region3
    $region8: #{tpu_custom_call.1} parent=1 // loop_exit
      _
    %4409 = vsyncpa [#allocation4], 1
    %s4410 = scalar_lea.sflag [#allocation4], 1
    %4411 = vsyncpa %s4410, 1
    %4412 = vsyncpa [#allocation7], 1
    %4413 = vsyncpa [#allocation10], 1
    %4414 = vsyncpa [#allocation5], 1
    %s4415 = scalar_lea.sflag [#allocation5], 1
    %4416 = vsyncpa %s4415, 1

</llo_original>
